<compile_context>
chip_gen: v7x
topology: tpu7x:2x2x1
jax: 0.10.0
libtpu: 0.0.40
codegen_flags: <defaults>
</compile_context>

<pallas_src>
import functools
import math

import jax
import jax.numpy as jnp
from jax.experimental import pallas as pl
from jax.experimental.pallas import tpu as pltpu

HEADS = 4
K_SEEDS = 10
CHANNELS = 96                  # 3 x 32 GCN outputs = GMT channel width
CP = 128                       # lane-padded channel width
HEAD_DIM = CHANNELS // HEADS   # 24 (real head dim, used for the softmax scale)
HEAD_PAD = CP // HEADS         # 32 (lane-aligned head stride; lanes 24..31 zero)

# weight-stack slots for the fused GMT tail kernel
W_PMA1, W_MAB1, W_SAB, W_PMA2, W_MAB2, W_LIN1, W_LIN2 = 0, 1, 6, 11, 12, 17, 18
N_STACK = 19

A_RESIDENT_MAX_N = 4096        # n_pad^2 bf16 = 32 MiB -> fits v7x's 64 MiB VMEM
GRAPHS_PER_STEP = 8            # GMT-tail graph batching factor


def _round_up(x, m):
    return ((x + m - 1) // m) * m


# ---------------------------------------------------------------------------
# GCN fast path: A_hat VMEM-resident, all three layers + concat fused into one
# kernel.  A is the only large operand and is read from HBM exactly once.
# ---------------------------------------------------------------------------
def _gcn_fused_kernel(a_ref, x0_ref, w1_ref, b1_ref, w2_ref, b2_ref, w3_ref, b3_ref,
                      o_ref):
    a = a_ref[...]                                       # [n_pad, n_pad] bf16

    def layer(x, w_r, b_r):
        xw = jnp.dot(x, w_r[...], preferred_element_type=jnp.float32)
        agg = jnp.dot(a, xw.astype(jnp.bfloat16), preferred_element_type=jnp.float32)
        return jnp.maximum(agg + b_r[...], 0.0)

    x1 = layer(x0_ref[...], w1_ref, b1_ref)              # [n_pad, 32]
    x2 = layer(x1, w2_ref, b2_ref)
    x3 = layer(x2, w3_ref, b3_ref)
    pad = jnp.zeros((x1.shape[0], CP - CHANNELS), jnp.float32)
    # fused concat -> lane-dense [n_pad, 128] band buffer (x1 | x2 | x3 | 0)
    o_ref[...] = jnp.concatenate([x1, x2, x3, pad], axis=-1)


def gcn_fused(a_pad, x0_pad, params):
    n_pad = a_pad.shape[0]
    vmem = pl.BlockSpec(memory_space=pltpu.MemorySpace.VMEM)
    return pl.pallas_call(
        _gcn_fused_kernel,
        out_shape=jax.ShapeDtypeStruct((n_pad, CP), jnp.float32),
        in_specs=[vmem] * 8,
        out_specs=vmem,
        compiler_params=pltpu.CompilerParams(vmem_limit_bytes=52 * 1024 * 1024),
    )(a_pad, x0_pad, params['w1'], params['b1'], params['w2'], params['b2'],
      params['w3'], params['b3'])


# ---------------------------------------------------------------------------
# GCN fallback (A too big for VMEM): tiled relu(A_hat @ XW + b) with the X@W
# product hoisted out of the k-loop (computed once per layer, streamed in bf16).
# ---------------------------------------------------------------------------
def _gcn_tiled_kernel(a_ref, xw_ref, b_ref, o_ref, acc_ref):
    @pl.when(pl.program_id(1) == 0)
    def _():
        acc_ref[...] = jnp.zeros_like(acc_ref)

    acc_ref[...] += jnp.dot(a_ref[...], xw_ref[...], preferred_element_type=jnp.float32)

    @pl.when(pl.program_id(1) == pl.num_programs(1) - 1)
    def _():
        o_ref[...] = jnp.maximum(acc_ref[...] + b_ref[...], 0.0)


def gcn_layer_tiled(a_pad, xw_bf16, b, tile):
    n_pad = a_pad.shape[0]
    f_out = xw_bf16.shape[1]
    return pl.pallas_call(
        _gcn_tiled_kernel,
        out_shape=jax.ShapeDtypeStruct((n_pad, f_out), jnp.float32),
        grid=(n_pad // tile, n_pad // tile),
        in_specs=[
            pl.BlockSpec((tile, tile), lambda i, k: (i, k)),    # A_hat tile (bf16)
            pl.BlockSpec((tile, f_out), lambda i, k: (k, 0)),   # hoisted X@W k-block (bf16)
            pl.BlockSpec((1, f_out), lambda i, k: (0, 0)),      # bias
        ],
        out_specs=pl.BlockSpec((tile, f_out), lambda i, k: (i, 0)),
        scratch_shapes=[pltpu.VMEM((tile, f_out), jnp.float32)],
        compiler_params=pltpu.CompilerParams(
            dimension_semantics=("parallel", "arbitrary")),
    )(a_pad, xw_bf16, b)


def _pick_tile(n_pad):
    # biggest tile that divides n_pad while keeping >= 2 row blocks (v7x megacore)
    for t in (1024, 512, 256):
        if n_pad % t == 0 and n_pad // t >= 2:
            return t
    return 256


# ---------------------------------------------------------------------------
# Fused GMT tail: PMA1 -> SAB -> PMA2 -> lin1.relu -> lin2, G graphs per step.
# All channel projections are single stacked matmuls; only the masked softmax /
# seed-side attention is per-graph (tiny, statically unrolled).
# ---------------------------------------------------------------------------
def _gmt_tail_kernel(x_ref, kmask_ref, seed1_ref, seed2_ref, w_ref, b_ref, o_ref):
    g, _, n_keys = kmask_ref.shape                 # graphs per step, padded node count
    scale = 1.0 / math.sqrt(HEAD_DIM)

    def dense(x, i, relu=False):
        # bf16 MXU inputs, f32 accumulate / bias / activation
        y = jnp.dot(x.astype(jnp.bfloat16), w_ref[i],
                    preferred_element_type=jnp.float32) + b_ref[i]
        return jnp.maximum(y, 0.0) if relu else y

    def mab(q_rows, kv_rows, sq, sk, base, key_mask=None):
        # MAB (layer_norm=False, dropout=0): out = MHA(q, kv, kv) + q ; out += relu(Lin(out))
        # q_rows: [g*sq, 128] (original channel layout); kv_rows: [g*sk, 128]
        # key_mask: [g, 1, sk] additive mask or None
        q = dense(q_rows, base + 0)                # head-aligned columns
        k = dense(kv_rows, base + 1)
        v = dense(kv_rows, base + 2)
        attn_rows = []
        for gi in range(g):                        # per-graph masked softmax (unrolled)
            qg = q[gi * sq:(gi + 1) * sq]
            kg = k[gi * sk:(gi + 1) * sk]
            vg = v[gi * sk:(gi + 1) * sk]
            heads = []
            for h in range(HEADS):                 # heads on 32-lane-aligned slices
                c0 = h * HEAD_PAD
                s = jax.lax.dot_general(
                    qg[:, c0:c0 + HEAD_PAD], kg[:, c0:c0 + HEAD_PAD],
                    (((1,), (1,)), ((), ())),
                    preferred_element_type=jnp.float32) * scale
                if key_mask is not None:
                    s = s + key_mask[gi]
                s = s - jnp.max(s, axis=-1, keepdims=True)
                p = jnp.exp(s)
                p = p * pl.reciprocal(jnp.sum(p, axis=-1, keepdims=True), approx=True)
                heads.append(jnp.dot(p, vg[:, c0:c0 + HEAD_PAD],
                                     preferred_element_type=jnp.float32))
            attn_rows.append(jnp.concatenate(heads, axis=-1))     # [sq, 128]
        attn = jnp.concatenate(attn_rows, axis=0)                 # [g*sq, 128]
        # single K=128 output-projection matmul over all graphs + residual(q input)
        out = dense(attn, base + 3) + q_rows.astype(jnp.float32)
        return out + dense(out, base + 4, relu=True)              # relu-FFN residual

    x = x_ref[...]                                 # [g*n_keys, 128] bf16 node rows
    kmask = kmask_ref[...]                         # [g, 1, n_keys] f32 additive key mask
    seed1 = jnp.concatenate([seed1_ref[...].astype(jnp.float32)] * g, axis=0)  # [g*10,128]
    seed2 = jnp.concatenate([seed2_ref[...].astype(jnp.float32)] * g, axis=0)  # [g, 128]

    h1 = dense(x, W_PMA1, relu=True)                              # PMA1 lin.relu (one matmul)
    y = mab(seed1, h1, K_SEEDS, n_keys, W_MAB1, key_mask=kmask)   # [g*10, 128]
    y = mab(y, y, K_SEEDS, K_SEEDS, W_SAB)                        # SAB over the 10 seeds
    h2 = dense(y, W_PMA2, relu=True)                              # PMA2 lin.relu
    z = mab(seed2, h2, 1, K_SEEDS, W_MAB2)                        # [g, 128] pooled embeddings
    t = dense(z, W_LIN1, relu=True)                               # lin1.relu; eval dropout = id
    o_ref[...] = dense(t, W_LIN2)                                 # lin2 -> lanes [0, classes)


def gmt_tail(params, x_dense, kmask_add, graphs_per_step):
    b_pad, n_max_p, cp = x_dense.shape
    g = graphs_per_step
    x_flat = x_dense.reshape(b_pad * n_max_p, cp)   # row-major -> free reshape
    return pl.pallas_call(
        _gmt_tail_kernel,
        out_shape=jax.ShapeDtypeStruct((b_pad, cp), jnp.float32),
        grid=(b_pad // g,),
        in_specs=[
            pl.BlockSpec((g * n_max_p, cp), lambda i: (i, 0)),    # bf16 node rows (G graphs)
            pl.BlockSpec((g, 1, n_max_p), lambda i: (i, 0, 0)),   # additive key mask
            pl.BlockSpec((K_SEEDS, cp), lambda i: (0, 0)),        # seed1 (bf16, constant)
            pl.BlockSpec((1, cp), lambda i: (0, 0)),              # seed2 (bf16, constant)
            pl.BlockSpec((N_STACK, cp, cp), lambda i: (0, 0, 0)),  # bf16 weight stack
            pl.BlockSpec((N_STACK, 1, cp), lambda i: (0, 0, 0)),   # f32 bias stack
        ],
        out_specs=pl.BlockSpec((g, cp), lambda i: (i, 0)),
        compiler_params=pltpu.CompilerParams(dimension_semantics=("parallel",)),
    )(x_flat, kmask_add, params['seed1'], params['seed2'],
      params['w_stack'], params['b_stack'])


# ---------------------------------------------------------------------------
# Model glue
# ---------------------------------------------------------------------------
@functools.partial(jax.jit, static_argnums=(4, 5, 6))
def net_forward(params, x0, a_hat, batch, num_graphs, max_nodes, num_classes):
    n, f_in = x0.shape

    # ---- GCN stack -> lane-dense [n_pad, 128] band buffer (x1 | x2 | x3 | 0) ----
    if _round_up(n, 128) <= A_RESIDENT_MAX_N:
        # fast path: A_hat resident in VMEM, read from HBM once for all 3 layers
        n_pad = _round_up(n, 128)
        a_pad = jnp.zeros((n_pad, n_pad), jnp.bfloat16).at[:n, :n].set(
            a_hat.astype(jnp.bfloat16))
        x0_pad = jnp.zeros((n_pad, f_in), jnp.float32).at[:n, :].set(x0)
        x_cat_pad = gcn_fused(a_pad, x0_pad, params)
    else:
        # fallback: tiled, HBM-streamed A (pad N to 256 to bound padding waste)
        n_pad = _round_up(n, 256)
        tile = _pick_tile(n_pad)
        a_pad = jnp.zeros((n_pad, n_pad), jnp.bfloat16).at[:n, :n].set(
            a_hat.astype(jnp.bfloat16))
        x0_pad = jnp.zeros((n_pad, f_in), jnp.float32).at[:n, :].set(x0)
        xw1 = jnp.dot(x0_pad, params['w1']).astype(jnp.bfloat16)   # hoisted X@W
        x1 = gcn_layer_tiled(a_pad, xw1, params['b1'], tile)
        xw2 = jnp.dot(x1, params['w2']).astype(jnp.bfloat16)
        x2 = gcn_layer_tiled(a_pad, xw2, params['b2'], tile)
        xw3 = jnp.dot(x2, params['w3']).astype(jnp.bfloat16)
        x3 = gcn_layer_tiled(a_pad, xw3, params['b3'], tile)
        x_cat_pad = jnp.concatenate(
            [x1, x2, x3, jnp.zeros((n_pad, CP - CHANNELS), jnp.float32)], axis=-1)

    x_cat = x_cat_pad[:n]

    # ---- to_dense_batch glue (JAX scatter), graphs padded to a multiple of G ----
    n_max_p = _round_up(max(max_nodes, 1), 16)
    g = min(GRAPHS_PER_STEP, num_graphs)
    b_pad = _round_up(num_graphs, g)
    counts = jnp.zeros((num_graphs,), jnp.int32).at[batch].add(1)
    offsets = jnp.cumsum(counts) - counts
    pos = jnp.arange(n, dtype=jnp.int32) - offsets[batch]
    x_dense = jnp.zeros((b_pad, n_max_p, CP), jnp.bfloat16).at[batch, pos].set(
        x_cat.astype(jnp.bfloat16))
    mask = jnp.zeros((b_pad, n_max_p), dtype=bool).at[batch, pos].set(True)
    kmask_add = jnp.where(mask, 0.0, -1e9).astype(jnp.float32)[:, None, :]  # [B_pad,1,N]

    out_pad = gmt_tail(params, x_dense, kmask_add, g)    # [B_pad, 128]
    return out_pad[:num_graphs, :num_classes]


# ---------------------------------------------------------------------------
# Deterministic parameter init (logical shapes follow the torch module),
# plus lane-padding / head-alignment / bf16 stacking for the fused tail kernel.
# ---------------------------------------------------------------------------
def _dense_init(key, fan_in, fan_out):
    kw, kb = jax.random.split(key)
    w = jax.random.normal(kw, (fan_in, fan_out), jnp.float32) / math.sqrt(fan_in)
    b = jax.random.normal(kb, (fan_out,), jnp.float32) * 0.01
    return w, b


def _pad_w(w):
    out = jnp.zeros((CP, CP), jnp.float32)
    return out.at[:w.shape[0], :w.shape[1]].set(w)


def _pad_b(b):
    out = jnp.zeros((CP,), jnp.float32)
    return out.at[:b.shape[0]].set(b)


def _pad_cols(x):
    out = jnp.zeros(x.shape[:-1] + (CP,), jnp.float32)
    return out.at[..., :x.shape[-1]].set(x)


def _head_cols(w):
    # [C,C] -> [CP,CP]; head h output columns land at lanes [h*32, h*32+24)
    out = jnp.zeros((CP, CP), jnp.float32)
    for h in range(HEADS):
        out = out.at[:CHANNELS, h * HEAD_PAD:h * HEAD_PAD + HEAD_DIM].set(
            w[:, h * HEAD_DIM:(h + 1) * HEAD_DIM])
    return out


def _head_cols_b(b):
    out = jnp.zeros((CP,), jnp.float32)
    for h in range(HEADS):
        out = out.at[h * HEAD_PAD:h * HEAD_PAD + HEAD_DIM].set(
            b[h * HEAD_DIM:(h + 1) * HEAD_DIM])
    return out


def _head_rows(w):
    # [C,C] -> [CP,CP]; head h input rows land at sublanes [h*32, h*32+24)
    out = jnp.zeros((CP, CP), jnp.float32)
    for h in range(HEADS):
        out = out.at[h * HEAD_PAD:h * HEAD_PAD + HEAD_DIM, :CHANNELS].set(
            w[h * HEAD_DIM:(h + 1) * HEAD_DIM, :])
    return out


def _mab_padded(key):
    kq, kk, kv, ko, kf = jax.random.split(key, 5)
    wq, bq = _dense_init(kq, CHANNELS, CHANNELS)
    wk, bk = _dense_init(kk, CHANNELS, CHANNELS)
    wv, bv = _dense_init(kv, CHANNELS, CHANNELS)
    wo, bo = _dense_init(ko, CHANNELS, CHANNELS)
    wf, bf = _dense_init(kf, CHANNELS, CHANNELS)
    ws = [_head_cols(wq), _head_cols(wk), _head_cols(wv), _head_rows(wo), _pad_w(wf)]
    bs = [_head_cols_b(bq), _head_cols_b(bk), _head_cols_b(bv), _pad_b(bo), _pad_b(bf)]
    return ws, bs


def init_params(key, num_features, num_classes):
    keys = jax.random.split(key, 12)
    params = {}

    # GCN layers (logical, unpadded channel dims)
    w1, b1 = _dense_init(keys[0], num_features, 32)
    w2, b2 = _dense_init(keys[1], 32, 32)
    w3, b3 = _dense_init(keys[2], 32, 32)
    params['w1'], params['b1'] = w1, b1[None, :]
    params['w2'], params['b2'] = w2, b2[None, :]
    params['w3'], params['b3'] = w3, b3[None, :]

    # GMT tail (lane-padded / head-aligned, stacked; weights+seeds bf16, biases f32)
    pma1_w, pma1_b = _dense_init(keys[3], CHANNELS, CHANNELS)
    mab1_ws, mab1_bs = _mab_padded(keys[5])
    sab_ws, sab_bs = _mab_padded(keys[6])
    pma2_w, pma2_b = _dense_init(keys[7], CHANNELS, CHANNELS)
    mab2_ws, mab2_bs = _mab_padded(keys[9])
    lin1_w, lin1_b = _dense_init(keys[10], CHANNELS, 16)
    lin2_w, lin2_b = _dense_init(keys[11], 16, num_classes)

    ws = ([_pad_w(pma1_w)] + mab1_ws + sab_ws + [_pad_w(pma2_w)] + mab2_ws
          + [_pad_w(lin1_w), _pad_w(lin2_w)])
    bs = ([_pad_b(pma1_b)] + mab1_bs + sab_bs + [_pad_b(pma2_b)] + mab2_bs
          + [_pad_b(lin1_b), _pad_b(lin2_b)])
    params['w_stack'] = jnp.stack(ws).astype(jnp.bfloat16)    # [19, 128, 128] bf16
    params['b_stack'] = jnp.stack(bs)[:, None, :]             # [19, 1, 128]  f32
    params['seed1'] = _pad_cols(
        jax.random.normal(keys[4], (K_SEEDS, CHANNELS), jnp.float32)
    ).astype(jnp.bfloat16)                                    # [10, 128] bf16
    params['seed2'] = _pad_cols(
        jax.random.normal(keys[8], (1, CHANNELS), jnp.float32)
    ).astype(jnp.bfloat16)                                    # [1, 128]  bf16
    return params


# ---------------------------------------------------------------------------
if __name__ == "__main__":
    key = jax.random.PRNGKey(0)
    num_features = 3    # PROTEINS: dataset.num_features
    num_classes = 2     # PROTEINS: dataset.num_classes

    # Small synthetic batch of 2 undirected ring graphs, 6 nodes each.
    nodes_per_graph = [6, 6]
    num_graphs = len(nodes_per_graph)
    n_total = sum(nodes_per_graph)
    max_nodes = max(nodes_per_graph)

    batch = jnp.array(sum([[g] * n for g, n in enumerate(nodes_per_graph)], []),
                      dtype=jnp.int32)

    src, dst = [], []
    off = 0
    for n in nodes_per_graph:
        for i in range(n):
            j = (i + 1) % n
            src += [off + i, off + j]
            dst += [off + j, off + i]
        off += n
    edge_index = jnp.array([src, dst], dtype=jnp.int32)     # [2, E]

    kx, kp = jax.random.split(key)
    x0 = jax.random.normal(kx, (n_total, num_features), jnp.float32)

    # Dense GCN-normalized adjacency: A_hat = D^{-1/2} (A + I) D^{-1/2}
    adj = jnp.zeros((n_total, n_total), jnp.float32).at[edge_index[0], edge_index[1]].set(1.0)
    adj = adj + jnp.eye(n_total, dtype=jnp.float32)
    deg_inv_sqrt = 1.0 / jnp.sqrt(adj.sum(axis=1))
    a_hat = adj * deg_inv_sqrt[:, None] * deg_inv_sqrt[None, :]

    params = init_params(kp, num_features, num_classes)

    out = net_forward(params, x0, a_hat, batch, num_graphs, max_nodes, num_classes)
    out = jax.block_until_ready(out)
    assert out.shape == (num_graphs, num_classes)
    assert bool(jnp.all(jnp.isfinite(out)))
    print("KERNEL_OK")
</pallas_src>

<mosaic_0001>
module attributes {stable_mosaic.version = 11 : i64} {
  func.func @_gmt_tail_kernel(%arg0: i32, %arg1: memref<32x128xbf16, #tpu.memory_space<vmem>>, %arg2: memref<2x1x16xf32, #tpu.memory_space<vmem>>, %arg3: memref<10x128xbf16, #tpu.memory_space<vmem>>, %arg4: memref<1x128xbf16, #tpu.memory_space<vmem>>, %arg5: memref<19x128x128xbf16, #tpu.memory_space<vmem>>, %arg6: memref<19x1x128xf32, #tpu.memory_space<vmem>>, %arg7: memref<2x128xf32, #tpu.memory_space<vmem>>) attributes {dimension_semantics = [#tpu.dimension_semantics<parallel>], iteration_bounds = array<i64: 1>, scalar_prefetch = 0 : i64, scratch_operands = 0 : i64, tpu.core_type = #tpu.core_type<tc>, window_params = [{transform_indices = @transform_0, window_bounds = array<i64: 32, 128>}, {transform_indices = @transform_1, window_bounds = array<i64: 2, 1, 16>}, {pipeline_mode = #tpu.pipeline_mode<synchronous>, transform_indices = @transform_2, window_bounds = array<i64: 10, 128>}, {pipeline_mode = #tpu.pipeline_mode<synchronous>, transform_indices = @transform_3, window_bounds = array<i64: 1, 128>}, {pipeline_mode = #tpu.pipeline_mode<synchronous>, transform_indices = @transform_4, window_bounds = array<i64: 19, 128, 128>}, {pipeline_mode = #tpu.pipeline_mode<synchronous>, transform_indices = @transform_5, window_bounds = array<i64: 19, 1, 128>}, {transform_indices = @transform_6, window_bounds = array<i64: 2, 128>}]} {
    %c0 = arith.constant 0 : index
    %c0_0 = arith.constant 0 : index
    %0 = vector.load %arg1[%c0, %c0_0] : memref<32x128xbf16, #tpu.memory_space<vmem>>, vector<32x128xbf16>
    %c0_1 = arith.constant 0 : index
    %c0_2 = arith.constant 0 : index
    %c0_3 = arith.constant 0 : index
    %1 = vector.load %arg2[%c0_1, %c0_2, %c0_3] : memref<2x1x16xf32, #tpu.memory_space<vmem>>, vector<2x1x16xf32>
    %c0_4 = arith.constant 0 : index
    %c0_5 = arith.constant 0 : index
    %2 = vector.load %arg3[%c0_4, %c0_5] : memref<10x128xbf16, #tpu.memory_space<vmem>>, vector<10x128xbf16>
    %3 = arith.extf %2 : vector<10x128xbf16> to vector<10x128xf32>
    %4 = tpu.concatenate %3, %3 in 0 : vector<10x128xf32>, vector<10x128xf32> -> vector<20x128xf32>
    %c0_6 = arith.constant 0 : index
    %c0_7 = arith.constant 0 : index
    %5 = vector.load %arg4[%c0_6, %c0_7] : memref<1x128xbf16, #tpu.memory_space<vmem>>, vector<1x128xbf16>
    %6 = arith.extf %5 : vector<1x128xbf16> to vector<1x128xf32>
    %7 = tpu.concatenate %6, %6 in 0 : vector<1x128xf32>, vector<1x128xf32> -> vector<2x128xf32>
    %c0_8 = arith.constant 0 : index
    %c0_9 = arith.constant 0 : index
    %c0_10 = arith.constant 0 : index
    %8 = vector.load %arg5[%c0_8, %c0_9, %c0_10] : memref<19x128x128xbf16, #tpu.memory_space<vmem>>, vector<1x128x128xbf16>
    %9 = vector.shape_cast %8 : vector<1x128x128xbf16> to vector<128x128xbf16>
    %cst = arith.constant dense<0.000000e+00> : vector<32x128xf32>
    %10 = tpu.matmul %0, %9, %cst {dimension_numbers = #tpu.dot_dimension_numbers<[1], [0], [0], [1], [0, 0, 1, 1], [], []>} : vector<32x128xbf16>, vector<128x128xbf16>, vector<32x128xf32> -> vector<32x128xf32>
    %c0_11 = arith.constant 0 : index
    %c0_12 = arith.constant 0 : index
    %c0_13 = arith.constant 0 : index
    %11 = vector.load %arg6[%c0_11, %c0_12, %c0_13] : memref<19x1x128xf32, #tpu.memory_space<vmem>>, vector<1x1x128xf32>
    %12 = vector.shape_cast %11 : vector<1x1x128xf32> to vector<1x128xf32>
    %13 = vector.broadcast %12 : vector<1x128xf32> to vector<32x128xf32>
    %14 = arith.addf %10, %13 : vector<32x128xf32>
    %cst_14 = arith.constant 0.000000e+00 : f32
    %15 = vector.broadcast %cst_14 : f32 to vector<32x128xf32>
    %16 = arith.maximumf %14, %15 : vector<32x128xf32>
    %17 = arith.truncf %4 : vector<20x128xf32> to vector<20x128xbf16>
    %c1 = arith.constant 1 : index
    %c0_15 = arith.constant 0 : index
    %c0_16 = arith.constant 0 : index
    %18 = vector.load %arg5[%c1, %c0_15, %c0_16] : memref<19x128x128xbf16, #tpu.memory_space<vmem>>, vector<1x128x128xbf16>
    %19 = vector.shape_cast %18 : vector<1x128x128xbf16> to vector<128x128xbf16>
    %cst_17 = arith.constant dense<0.000000e+00> : vector<20x128xf32>
    %20 = tpu.matmul %17, %19, %cst_17 {dimension_numbers = #tpu.dot_dimension_numbers<[1], [0], [0], [1], [0, 0, 1, 1], [], []>} : vector<20x128xbf16>, vector<128x128xbf16>, vector<20x128xf32> -> vector<20x128xf32>
    %c1_18 = arith.constant 1 : index
    %c0_19 = arith.constant 0 : index
    %c0_20 = arith.constant 0 : index
    %21 = vector.load %arg6[%c1_18, %c0_19, %c0_20] : memref<19x1x128xf32, #tpu.memory_space<vmem>>, vector<1x1x128xf32>
    %22 = vector.shape_cast %21 : vector<1x1x128xf32> to vector<1x128xf32>
    %23 = vector.broadcast %22 : vector<1x128xf32> to vector<20x128xf32>
    %24 = arith.addf %20, %23 : vector<20x128xf32>
    %25 = arith.truncf %16 : vector<32x128xf32> to vector<32x128xbf16>
    %c2 = arith.constant 2 : index
    %c0_21 = arith.constant 0 : index
    %c0_22 = arith.constant 0 : index
    %26 = vector.load %arg5[%c2, %c0_21, %c0_22] : memref<19x128x128xbf16, #tpu.memory_space<vmem>>, vector<1x128x128xbf16>
    %27 = vector.shape_cast %26 : vector<1x128x128xbf16> to vector<128x128xbf16>
    %cst_23 = arith.constant dense<0.000000e+00> : vector<32x128xf32>
    %28 = tpu.matmul %25, %27, %cst_23 {dimension_numbers = #tpu.dot_dimension_numbers<[1], [0], [0], [1], [0, 0, 1, 1], [], []>} : vector<32x128xbf16>, vector<128x128xbf16>, vector<32x128xf32> -> vector<32x128xf32>
    %c2_24 = arith.constant 2 : index
    %c0_25 = arith.constant 0 : index
    %c0_26 = arith.constant 0 : index
    %29 = vector.load %arg6[%c2_24, %c0_25, %c0_26] : memref<19x1x128xf32, #tpu.memory_space<vmem>>, vector<1x1x128xf32>
    %30 = vector.shape_cast %29 : vector<1x1x128xf32> to vector<1x128xf32>
    %31 = vector.broadcast %30 : vector<1x128xf32> to vector<32x128xf32>
    %32 = arith.addf %28, %31 : vector<32x128xf32>
    %33 = arith.truncf %16 : vector<32x128xf32> to vector<32x128xbf16>
    %c3 = arith.constant 3 : index
    %c0_27 = arith.constant 0 : index
    %c0_28 = arith.constant 0 : index
    %34 = vector.load %arg5[%c3, %c0_27, %c0_28] : memref<19x128x128xbf16, #tpu.memory_space<vmem>>, vector<1x128x128xbf16>
    %35 = vector.shape_cast %34 : vector<1x128x128xbf16> to vector<128x128xbf16>
    %cst_29 = arith.constant dense<0.000000e+00> : vector<32x128xf32>
    %36 = tpu.matmul %33, %35, %cst_29 {dimension_numbers = #tpu.dot_dimension_numbers<[1], [0], [0], [1], [0, 0, 1, 1], [], []>} : vector<32x128xbf16>, vector<128x128xbf16>, vector<32x128xf32> -> vector<32x128xf32>
    %c3_30 = arith.constant 3 : index
    %c0_31 = arith.constant 0 : index
    %c0_32 = arith.constant 0 : index
    %37 = vector.load %arg6[%c3_30, %c0_31, %c0_32] : memref<19x1x128xf32, #tpu.memory_space<vmem>>, vector<1x1x128xf32>
    %38 = vector.shape_cast %37 : vector<1x1x128xf32> to vector<1x128xf32>
    %39 = vector.broadcast %38 : vector<1x128xf32> to vector<32x128xf32>
    %40 = arith.addf %36, %39 : vector<32x128xf32>
    %41 = vector.extract_strided_slice %24 {offsets = [0, 0], sizes = [10, 128], strides = [1, 1]} : vector<20x128xf32> to vector<10x128xf32>
    %42 = vector.extract_strided_slice %32 {offsets = [0, 0], sizes = [16, 128], strides = [1, 1]} : vector<32x128xf32> to vector<16x128xf32>
    %43 = vector.extract_strided_slice %40 {offsets = [0, 0], sizes = [16, 128], strides = [1, 1]} : vector<32x128xf32> to vector<16x128xf32>
    %44 = vector.extract_strided_slice %41 {offsets = [0, 0], sizes = [10, 32], strides = [1, 1]} : vector<10x128xf32> to vector<10x32xf32>
    %45 = vector.extract_strided_slice %42 {offsets = [0, 0], sizes = [16, 32], strides = [1, 1]} : vector<16x128xf32> to vector<16x32xf32>
    %cst_33 = arith.constant dense<0.000000e+00> : vector<10x16xf32>
    %46 = tpu.matmul %44, %45, %cst_33 {dimension_numbers = #tpu.dot_dimension_numbers<[1], [1], [0], [0], [0, 0, 1, 0], [], []>} : vector<10x32xf32>, vector<16x32xf32>, vector<10x16xf32> -> vector<10x16xf32>
    %cst_34 = arith.constant 0.204124153 : f32
    %47 = vector.broadcast %cst_34 : f32 to vector<10x16xf32>
    %48 = arith.mulf %46, %47 : vector<10x16xf32>
    %49 = vector.extract_strided_slice %1 {offsets = [0, 0, 0], sizes = [1, 1, 16], strides = [1, 1, 1]} : vector<2x1x16xf32> to vector<1x1x16xf32>
    %50 = vector.shape_cast %49 : vector<1x1x16xf32> to vector<1x16xf32>
    %51 = vector.broadcast %50 : vector<1x16xf32> to vector<10x16xf32>
    %52 = arith.addf %48, %51 : vector<10x16xf32>
    %cst_35 = arith.constant dense<0xFF800000> : vector<10xf32>
    %53 = vector.multi_reduction <maximumf>, %52, %cst_35 [1] : vector<10x16xf32> to vector<10xf32>
    %54 = vector.shape_cast %53 : vector<10xf32> to vector<10x1xf32>
    %55 = vector.broadcast %54 : vector<10x1xf32> to vector<10x16xf32>
    %56 = arith.subf %52, %55 : vector<10x16xf32>
    %57 = math.exp %56 : vector<10x16xf32>
    %cst_36 = arith.constant dense<0.000000e+00> : vector<10xf32>
    %58 = vector.multi_reduction <add>, %57, %cst_36 [1] : vector<10x16xf32> to vector<10xf32>
    %59 = vector.shape_cast %58 : vector<10xf32> to vector<10x1xf32>
    %60 = tpu.reciprocal %59 {approx = true} : vector<10x1xf32> -> vector<10x1xf32>
    %61 = vector.broadcast %60 : vector<10x1xf32> to vector<10x16xf32>
    %62 = arith.mulf %57, %61 : vector<10x16xf32>
    %63 = vector.extract_strided_slice %43 {offsets = [0, 0], sizes = [16, 32], strides = [1, 1]} : vector<16x128xf32> to vector<16x32xf32>
    %cst_37 = arith.constant dense<0.000000e+00> : vector<10x32xf32>
    %64 = tpu.matmul %62, %63, %cst_37 {dimension_numbers = #tpu.dot_dimension_numbers<[1], [0], [0], [1], [0, 0, 1, 1], [], []>} : vector<10x16xf32>, vector<16x32xf32>, vector<10x32xf32> -> vector<10x32xf32>
    %65 = vector.extract_strided_slice %41 {offsets = [0, 32], sizes = [10, 32], strides = [1, 1]} : vector<10x128xf32> to vector<10x32xf32>
    %66 = vector.extract_strided_slice %42 {offsets = [0, 32], sizes = [16, 32], strides = [1, 1]} : vector<16x128xf32> to vector<16x32xf32>
    %cst_38 = arith.constant dense<0.000000e+00> : vector<10x16xf32>
    %67 = tpu.matmul %65, %66, %cst_38 {dimension_numbers = #tpu.dot_dimension_numbers<[1], [1], [0], [0], [0, 0, 1, 0], [], []>} : vector<10x32xf32>, vector<16x32xf32>, vector<10x16xf32> -> vector<10x16xf32>
    %cst_39 = arith.constant 0.204124153 : f32
    %68 = vector.broadcast %cst_39 : f32 to vector<10x16xf32>
    %69 = arith.mulf %67, %68 : vector<10x16xf32>
    %70 = vector.extract_strided_slice %1 {offsets = [0, 0, 0], sizes = [1, 1, 16], strides = [1, 1, 1]} : vector<2x1x16xf32> to vector<1x1x16xf32>
    %71 = vector.shape_cast %70 : vector<1x1x16xf32> to vector<1x16xf32>
    %72 = vector.broadcast %71 : vector<1x16xf32> to vector<10x16xf32>
    %73 = arith.addf %69, %72 : vector<10x16xf32>
    %cst_40 = arith.constant dense<0xFF800000> : vector<10xf32>
    %74 = vector.multi_reduction <maximumf>, %73, %cst_40 [1] : vector<10x16xf32> to vector<10xf32>
    %75 = vector.shape_cast %74 : vector<10xf32> to vector<10x1xf32>
    %76 = vector.broadcast %75 : vector<10x1xf32> to vector<10x16xf32>
    %77 = arith.subf %73, %76 : vector<10x16xf32>
    %78 = math.exp %77 : vector<10x16xf32>
    %cst_41 = arith.constant dense<0.000000e+00> : vector<10xf32>
    %79 = vector.multi_reduction <add>, %78, %cst_41 [1] : vector<10x16xf32> to vector<10xf32>
    %80 = vector.shape_cast %79 : vector<10xf32> to vector<10x1xf32>
    %81 = tpu.reciprocal %80 {approx = true} : vector<10x1xf32> -> vector<10x1xf32>
    %82 = vector.broadcast %81 : vector<10x1xf32> to vector<10x16xf32>
    %83 = arith.mulf %78, %82 : vector<10x16xf32>
    %84 = vector.extract_strided_slice %43 {offsets = [0, 32], sizes = [16, 32], strides = [1, 1]} : vector<16x128xf32> to vector<16x32xf32>
    %cst_42 = arith.constant dense<0.000000e+00> : vector<10x32xf32>
    %85 = tpu.matmul %83, %84, %cst_42 {dimension_numbers = #tpu.dot_dimension_numbers<[1], [0], [0], [1], [0, 0, 1, 1], [], []>} : vector<10x16xf32>, vector<16x32xf32>, vector<10x32xf32> -> vector<10x32xf32>
    %86 = vector.extract_strided_slice %41 {offsets = [0, 64], sizes = [10, 32], strides = [1, 1]} : vector<10x128xf32> to vector<10x32xf32>
    %87 = vector.extract_strided_slice %42 {offsets = [0, 64], sizes = [16, 32], strides = [1, 1]} : vector<16x128xf32> to vector<16x32xf32>
    %cst_43 = arith.constant dense<0.000000e+00> : vector<10x16xf32>
    %88 = tpu.matmul %86, %87, %cst_43 {dimension_numbers = #tpu.dot_dimension_numbers<[1], [1], [0], [0], [0, 0, 1, 0], [], []>} : vector<10x32xf32>, vector<16x32xf32>, vector<10x16xf32> -> vector<10x16xf32>
    %cst_44 = arith.constant 0.204124153 : f32
    %89 = vector.broadcast %cst_44 : f32 to vector<10x16xf32>
    %90 = arith.mulf %88, %89 : vector<10x16xf32>
    %91 = vector.extract_strided_slice %1 {offsets = [0, 0, 0], sizes = [1, 1, 16], strides = [1, 1, 1]} : vector<2x1x16xf32> to vector<1x1x16xf32>
    %92 = vector.shape_cast %91 : vector<1x1x16xf32> to vector<1x16xf32>
    %93 = vector.broadcast %92 : vector<1x16xf32> to vector<10x16xf32>
    %94 = arith.addf %90, %93 : vector<10x16xf32>
    %cst_45 = arith.constant dense<0xFF800000> : vector<10xf32>
    %95 = vector.multi_reduction <maximumf>, %94, %cst_45 [1] : vector<10x16xf32> to vector<10xf32>
    %96 = vector.shape_cast %95 : vector<10xf32> to vector<10x1xf32>
    %97 = vector.broadcast %96 : vector<10x1xf32> to vector<10x16xf32>
    %98 = arith.subf %94, %97 : vector<10x16xf32>
    %99 = math.exp %98 : vector<10x16xf32>
    %cst_46 = arith.constant dense<0.000000e+00> : vector<10xf32>
    %100 = vector.multi_reduction <add>, %99, %cst_46 [1] : vector<10x16xf32> to vector<10xf32>
    %101 = vector.shape_cast %100 : vector<10xf32> to vector<10x1xf32>
    %102 = tpu.reciprocal %101 {approx = true} : vector<10x1xf32> -> vector<10x1xf32>
    %103 = vector.broadcast %102 : vector<10x1xf32> to vector<10x16xf32>
    %104 = arith.mulf %99, %103 : vector<10x16xf32>
    %105 = vector.extract_strided_slice %43 {offsets = [0, 64], sizes = [16, 32], strides = [1, 1]} : vector<16x128xf32> to vector<16x32xf32>
    %cst_47 = arith.constant dense<0.000000e+00> : vector<10x32xf32>
    %106 = tpu.matmul %104, %105, %cst_47 {dimension_numbers = #tpu.dot_dimension_numbers<[1], [0], [0], [1], [0, 0, 1, 1], [], []>} : vector<10x16xf32>, vector<16x32xf32>, vector<10x32xf32> -> vector<10x32xf32>
    %107 = vector.extract_strided_slice %41 {offsets = [0, 96], sizes = [10, 32], strides = [1, 1]} : vector<10x128xf32> to vector<10x32xf32>
    %108 = vector.extract_strided_slice %42 {offsets = [0, 96], sizes = [16, 32], strides = [1, 1]} : vector<16x128xf32> to vector<16x32xf32>
    %cst_48 = arith.constant dense<0.000000e+00> : vector<10x16xf32>
    %109 = tpu.matmul %107, %108, %cst_48 {dimension_numbers = #tpu.dot_dimension_numbers<[1], [1], [0], [0], [0, 0, 1, 0], [], []>} : vector<10x32xf32>, vector<16x32xf32>, vector<10x16xf32> -> vector<10x16xf32>
    %cst_49 = arith.constant 0.204124153 : f32
    %110 = vector.broadcast %cst_49 : f32 to vector<10x16xf32>
    %111 = arith.mulf %109, %110 : vector<10x16xf32>
    %112 = vector.extract_strided_slice %1 {offsets = [0, 0, 0], sizes = [1, 1, 16], strides = [1, 1, 1]} : vector<2x1x16xf32> to vector<1x1x16xf32>
    %113 = vector.shape_cast %112 : vector<1x1x16xf32> to vector<1x16xf32>
    %114 = vector.broadcast %113 : vector<1x16xf32> to vector<10x16xf32>
    %115 = arith.addf %111, %114 : vector<10x16xf32>
    %cst_50 = arith.constant dense<0xFF800000> : vector<10xf32>
    %116 = vector.multi_reduction <maximumf>, %115, %cst_50 [1] : vector<10x16xf32> to vector<10xf32>
    %117 = vector.shape_cast %116 : vector<10xf32> to vector<10x1xf32>
    %118 = vector.broadcast %117 : vector<10x1xf32> to vector<10x16xf32>
    %119 = arith.subf %115, %118 : vector<10x16xf32>
    %120 = math.exp %119 : vector<10x16xf32>
    %cst_51 = arith.constant dense<0.000000e+00> : vector<10xf32>
    %121 = vector.multi_reduction <add>, %120, %cst_51 [1] : vector<10x16xf32> to vector<10xf32>
    %122 = vector.shape_cast %121 : vector<10xf32> to vector<10x1xf32>
    %123 = tpu.reciprocal %122 {approx = true} : vector<10x1xf32> -> vector<10x1xf32>
    %124 = vector.broadcast %123 : vector<10x1xf32> to vector<10x16xf32>
    %125 = arith.mulf %120, %124 : vector<10x16xf32>
    %126 = vector.extract_strided_slice %43 {offsets = [0, 96], sizes = [16, 32], strides = [1, 1]} : vector<16x128xf32> to vector<16x32xf32>
    %cst_52 = arith.constant dense<0.000000e+00> : vector<10x32xf32>
    %127 = tpu.matmul %125, %126, %cst_52 {dimension_numbers = #tpu.dot_dimension_numbers<[1], [0], [0], [1], [0, 0, 1, 1], [], []>} : vector<10x16xf32>, vector<16x32xf32>, vector<10x32xf32> -> vector<10x32xf32>
    %128 = tpu.concatenate %64, %85, %106, %127 in 1 : vector<10x32xf32>, vector<10x32xf32>, vector<10x32xf32>, vector<10x32xf32> -> vector<10x128xf32>
    %129 = vector.extract_strided_slice %24 {offsets = [10, 0], sizes = [10, 128], strides = [1, 1]} : vector<20x128xf32> to vector<10x128xf32>
    %130 = vector.extract_strided_slice %32 {offsets = [16, 0], sizes = [16, 128], strides = [1, 1]} : vector<32x128xf32> to vector<16x128xf32>
    %131 = vector.extract_strided_slice %40 {offsets = [16, 0], sizes = [16, 128], strides = [1, 1]} : vector<32x128xf32> to vector<16x128xf32>
    %132 = vector.extract_strided_slice %129 {offsets = [0, 0], sizes = [10, 32], strides = [1, 1]} : vector<10x128xf32> to vector<10x32xf32>
    %133 = vector.extract_strided_slice %130 {offsets = [0, 0], sizes = [16, 32], strides = [1, 1]} : vector<16x128xf32> to vector<16x32xf32>
    %cst_53 = arith.constant dense<0.000000e+00> : vector<10x16xf32>
    %134 = tpu.matmul %132, %133, %cst_53 {dimension_numbers = #tpu.dot_dimension_numbers<[1], [1], [0], [0], [0, 0, 1, 0], [], []>} : vector<10x32xf32>, vector<16x32xf32>, vector<10x16xf32> -> vector<10x16xf32>
    %cst_54 = arith.constant 0.204124153 : f32
    %135 = vector.broadcast %cst_54 : f32 to vector<10x16xf32>
    %136 = arith.mulf %134, %135 : vector<10x16xf32>
    %137 = vector.extract_strided_slice %1 {offsets = [1, 0, 0], sizes = [1, 1, 16], strides = [1, 1, 1]} : vector<2x1x16xf32> to vector<1x1x16xf32>
    %138 = vector.shape_cast %137 : vector<1x1x16xf32> to vector<1x16xf32>
    %139 = vector.broadcast %138 : vector<1x16xf32> to vector<10x16xf32>
    %140 = arith.addf %136, %139 : vector<10x16xf32>
    %cst_55 = arith.constant dense<0xFF800000> : vector<10xf32>
    %141 = vector.multi_reduction <maximumf>, %140, %cst_55 [1] : vector<10x16xf32> to vector<10xf32>
    %142 = vector.shape_cast %141 : vector<10xf32> to vector<10x1xf32>
    %143 = vector.broadcast %142 : vector<10x1xf32> to vector<10x16xf32>
    %144 = arith.subf %140, %143 : vector<10x16xf32>
    %145 = math.exp %144 : vector<10x16xf32>
    %cst_56 = arith.constant dense<0.000000e+00> : vector<10xf32>
    %146 = vector.multi_reduction <add>, %145, %cst_56 [1] : vector<10x16xf32> to vector<10xf32>
    %147 = vector.shape_cast %146 : vector<10xf32> to vector<10x1xf32>
    %148 = tpu.reciprocal %147 {approx = true} : vector<10x1xf32> -> vector<10x1xf32>
    %149 = vector.broadcast %148 : vector<10x1xf32> to vector<10x16xf32>
    %150 = arith.mulf %145, %149 : vector<10x16xf32>
    %151 = vector.extract_strided_slice %131 {offsets = [0, 0], sizes = [16, 32], strides = [1, 1]} : vector<16x128xf32> to vector<16x32xf32>
    %cst_57 = arith.constant dense<0.000000e+00> : vector<10x32xf32>
    %152 = tpu.matmul %150, %151, %cst_57 {dimension_numbers = #tpu.dot_dimension_numbers<[1], [0], [0], [1], [0, 0, 1, 1], [], []>} : vector<10x16xf32>, vector<16x32xf32>, vector<10x32xf32> -> vector<10x32xf32>
    %153 = vector.extract_strided_slice %129 {offsets = [0, 32], sizes = [10, 32], strides = [1, 1]} : vector<10x128xf32> to vector<10x32xf32>
    %154 = vector.extract_strided_slice %130 {offsets = [0, 32], sizes = [16, 32], strides = [1, 1]} : vector<16x128xf32> to vector<16x32xf32>
    %cst_58 = arith.constant dense<0.000000e+00> : vector<10x16xf32>
    %155 = tpu.matmul %153, %154, %cst_58 {dimension_numbers = #tpu.dot_dimension_numbers<[1], [1], [0], [0], [0, 0, 1, 0], [], []>} : vector<10x32xf32>, vector<16x32xf32>, vector<10x16xf32> -> vector<10x16xf32>
    %cst_59 = arith.constant 0.204124153 : f32
    %156 = vector.broadcast %cst_59 : f32 to vector<10x16xf32>
    %157 = arith.mulf %155, %156 : vector<10x16xf32>
    %158 = vector.extract_strided_slice %1 {offsets = [1, 0, 0], sizes = [1, 1, 16], strides = [1, 1, 1]} : vector<2x1x16xf32> to vector<1x1x16xf32>
    %159 = vector.shape_cast %158 : vector<1x1x16xf32> to vector<1x16xf32>
    %160 = vector.broadcast %159 : vector<1x16xf32> to vector<10x16xf32>
    %161 = arith.addf %157, %160 : vector<10x16xf32>
    %cst_60 = arith.constant dense<0xFF800000> : vector<10xf32>
    %162 = vector.multi_reduction <maximumf>, %161, %cst_60 [1] : vector<10x16xf32> to vector<10xf32>
    %163 = vector.shape_cast %162 : vector<10xf32> to vector<10x1xf32>
    %164 = vector.broadcast %163 : vector<10x1xf32> to vector<10x16xf32>
    %165 = arith.subf %161, %164 : vector<10x16xf32>
    %166 = math.exp %165 : vector<10x16xf32>
    %cst_61 = arith.constant dense<0.000000e+00> : vector<10xf32>
    %167 = vector.multi_reduction <add>, %166, %cst_61 [1] : vector<10x16xf32> to vector<10xf32>
    %168 = vector.shape_cast %167 : vector<10xf32> to vector<10x1xf32>
    %169 = tpu.reciprocal %168 {approx = true} : vector<10x1xf32> -> vector<10x1xf32>
    %170 = vector.broadcast %169 : vector<10x1xf32> to vector<10x16xf32>
    %171 = arith.mulf %166, %170 : vector<10x16xf32>
    %172 = vector.extract_strided_slice %131 {offsets = [0, 32], sizes = [16, 32], strides = [1, 1]} : vector<16x128xf32> to vector<16x32xf32>
    %cst_62 = arith.constant dense<0.000000e+00> : vector<10x32xf32>
    %173 = tpu.matmul %171, %172, %cst_62 {dimension_numbers = #tpu.dot_dimension_numbers<[1], [0], [0], [1], [0, 0, 1, 1], [], []>} : vector<10x16xf32>, vector<16x32xf32>, vector<10x32xf32> -> vector<10x32xf32>
    %174 = vector.extract_strided_slice %129 {offsets = [0, 64], sizes = [10, 32], strides = [1, 1]} : vector<10x128xf32> to vector<10x32xf32>
    %175 = vector.extract_strided_slice %130 {offsets = [0, 64], sizes = [16, 32], strides = [1, 1]} : vector<16x128xf32> to vector<16x32xf32>
    %cst_63 = arith.constant dense<0.000000e+00> : vector<10x16xf32>
    %176 = tpu.matmul %174, %175, %cst_63 {dimension_numbers = #tpu.dot_dimension_numbers<[1], [1], [0], [0], [0, 0, 1, 0], [], []>} : vector<10x32xf32>, vector<16x32xf32>, vector<10x16xf32> -> vector<10x16xf32>
    %cst_64 = arith.constant 0.204124153 : f32
    %177 = vector.broadcast %cst_64 : f32 to vector<10x16xf32>
    %178 = arith.mulf %176, %177 : vector<10x16xf32>
    %179 = vector.extract_strided_slice %1 {offsets = [1, 0, 0], sizes = [1, 1, 16], strides = [1, 1, 1]} : vector<2x1x16xf32> to vector<1x1x16xf32>
    %180 = vector.shape_cast %179 : vector<1x1x16xf32> to vector<1x16xf32>
    %181 = vector.broadcast %180 : vector<1x16xf32> to vector<10x16xf32>
    %182 = arith.addf %178, %181 : vector<10x16xf32>
    %cst_65 = arith.constant dense<0xFF800000> : vector<10xf32>
    %183 = vector.multi_reduction <maximumf>, %182, %cst_65 [1] : vector<10x16xf32> to vector<10xf32>
    %184 = vector.shape_cast %183 : vector<10xf32> to vector<10x1xf32>
    %185 = vector.broadcast %184 : vector<10x1xf32> to vector<10x16xf32>
    %186 = arith.subf %182, %185 : vector<10x16xf32>
    %187 = math.exp %186 : vector<10x16xf32>
    %cst_66 = arith.constant dense<0.000000e+00> : vector<10xf32>
    %188 = vector.multi_reduction <add>, %187, %cst_66 [1] : vector<10x16xf32> to vector<10xf32>
    %189 = vector.shape_cast %188 : vector<10xf32> to vector<10x1xf32>
    %190 = tpu.reciprocal %189 {approx = true} : vector<10x1xf32> -> vector<10x1xf32>
    %191 = vector.broadcast %190 : vector<10x1xf32> to vector<10x16xf32>
    %192 = arith.mulf %187, %191 : vector<10x16xf32>
    %193 = vector.extract_strided_slice %131 {offsets = [0, 64], sizes = [16, 32], strides = [1, 1]} : vector<16x128xf32> to vector<16x32xf32>
    %cst_67 = arith.constant dense<0.000000e+00> : vector<10x32xf32>
    %194 = tpu.matmul %192, %193, %cst_67 {dimension_numbers = #tpu.dot_dimension_numbers<[1], [0], [0], [1], [0, 0, 1, 1], [], []>} : vector<10x16xf32>, vector<16x32xf32>, vector<10x32xf32> -> vector<10x32xf32>
    %195 = vector.extract_strided_slice %129 {offsets = [0, 96], sizes = [10, 32], strides = [1, 1]} : vector<10x128xf32> to vector<10x32xf32>
    %196 = vector.extract_strided_slice %130 {offsets = [0, 96], sizes = [16, 32], strides = [1, 1]} : vector<16x128xf32> to vector<16x32xf32>
    %cst_68 = arith.constant dense<0.000000e+00> : vector<10x16xf32>
    %197 = tpu.matmul %195, %196, %cst_68 {dimension_numbers = #tpu.dot_dimension_numbers<[1], [1], [0], [0], [0, 0, 1, 0], [], []>} : vector<10x32xf32>, vector<16x32xf32>, vector<10x16xf32> -> vector<10x16xf32>
    %cst_69 = arith.constant 0.204124153 : f32
    %198 = vector.broadcast %cst_69 : f32 to vector<10x16xf32>
    %199 = arith.mulf %197, %198 : vector<10x16xf32>
    %200 = vector.extract_strided_slice %1 {offsets = [1, 0, 0], sizes = [1, 1, 16], strides = [1, 1, 1]} : vector<2x1x16xf32> to vector<1x1x16xf32>
    %201 = vector.shape_cast %200 : vector<1x1x16xf32> to vector<1x16xf32>
    %202 = vector.broadcast %201 : vector<1x16xf32> to vector<10x16xf32>
    %203 = arith.addf %199, %202 : vector<10x16xf32>
    %cst_70 = arith.constant dense<0xFF800000> : vector<10xf32>
    %204 = vector.multi_reduction <maximumf>, %203, %cst_70 [1] : vector<10x16xf32> to vector<10xf32>
    %205 = vector.shape_cast %204 : vector<10xf32> to vector<10x1xf32>
    %206 = vector.broadcast %205 : vector<10x1xf32> to vector<10x16xf32>
    %207 = arith.subf %203, %206 : vector<10x16xf32>
    %208 = math.exp %207 : vector<10x16xf32>
    %cst_71 = arith.constant dense<0.000000e+00> : vector<10xf32>
    %209 = vector.multi_reduction <add>, %208, %cst_71 [1] : vector<10x16xf32> to vector<10xf32>
    %210 = vector.shape_cast %209 : vector<10xf32> to vector<10x1xf32>
    %211 = tpu.reciprocal %210 {approx = true} : vector<10x1xf32> -> vector<10x1xf32>
    %212 = vector.broadcast %211 : vector<10x1xf32> to vector<10x16xf32>
    %213 = arith.mulf %208, %212 : vector<10x16xf32>
    %214 = vector.extract_strided_slice %131 {offsets = [0, 96], sizes = [16, 32], strides = [1, 1]} : vector<16x128xf32> to vector<16x32xf32>
    %cst_72 = arith.constant dense<0.000000e+00> : vector<10x32xf32>
    %215 = tpu.matmul %213, %214, %cst_72 {dimension_numbers = #tpu.dot_dimension_numbers<[1], [0], [0], [1], [0, 0, 1, 1], [], []>} : vector<10x16xf32>, vector<16x32xf32>, vector<10x32xf32> -> vector<10x32xf32>
    %216 = tpu.concatenate %152, %173, %194, %215 in 1 : vector<10x32xf32>, vector<10x32xf32>, vector<10x32xf32>, vector<10x32xf32> -> vector<10x128xf32>
    %217 = tpu.concatenate %128, %216 in 0 : vector<10x128xf32>, vector<10x128xf32> -> vector<20x128xf32>
    %218 = arith.truncf %217 : vector<20x128xf32> to vector<20x128xbf16>
    %c4 = arith.constant 4 : index
    %c0_73 = arith.constant 0 : index
    %c0_74 = arith.constant 0 : index
    %219 = vector.load %arg5[%c4, %c0_73, %c0_74] : memref<19x128x128xbf16, #tpu.memory_space<vmem>>, vector<1x128x128xbf16>
    %220 = vector.shape_cast %219 : vector<1x128x128xbf16> to vector<128x128xbf16>
    %cst_75 = arith.constant dense<0.000000e+00> : vector<20x128xf32>
    %221 = tpu.matmul %218, %220, %cst_75 {dimension_numbers = #tpu.dot_dimension_numbers<[1], [0], [0], [1], [0, 0, 1, 1], [], []>} : vector<20x128xbf16>, vector<128x128xbf16>, vector<20x128xf32> -> vector<20x128xf32>
    %c4_76 = arith.constant 4 : index
    %c0_77 = arith.constant 0 : index
    %c0_78 = arith.constant 0 : index
    %222 = vector.load %arg6[%c4_76, %c0_77, %c0_78] : memref<19x1x128xf32, #tpu.memory_space<vmem>>, vector<1x1x128xf32>
    %223 = vector.shape_cast %222 : vector<1x1x128xf32> to vector<1x128xf32>
    %224 = vector.broadcast %223 : vector<1x128xf32> to vector<20x128xf32>
    %225 = arith.addf %221, %224 : vector<20x128xf32>
    %226 = arith.addf %225, %4 : vector<20x128xf32>
    %227 = arith.truncf %226 : vector<20x128xf32> to vector<20x128xbf16>
    %c5 = arith.constant 5 : index
    %c0_79 = arith.constant 0 : index
    %c0_80 = arith.constant 0 : index
    %228 = vector.load %arg5[%c5, %c0_79, %c0_80] : memref<19x128x128xbf16, #tpu.memory_space<vmem>>, vector<1x128x128xbf16>
    %229 = vector.shape_cast %228 : vector<1x128x128xbf16> to vector<128x128xbf16>
    %cst_81 = arith.constant dense<0.000000e+00> : vector<20x128xf32>
    %230 = tpu.matmul %227, %229, %cst_81 {dimension_numbers = #tpu.dot_dimension_numbers<[1], [0], [0], [1], [0, 0, 1, 1], [], []>} : vector<20x128xbf16>, vector<128x128xbf16>, vector<20x128xf32> -> vector<20x128xf32>
    %c5_82 = arith.constant 5 : index
    %c0_83 = arith.constant 0 : index
    %c0_84 = arith.constant 0 : index
    %231 = vector.load %arg6[%c5_82, %c0_83, %c0_84] : memref<19x1x128xf32, #tpu.memory_space<vmem>>, vector<1x1x128xf32>
    %232 = vector.shape_cast %231 : vector<1x1x128xf32> to vector<1x128xf32>
    %233 = vector.broadcast %232 : vector<1x128xf32> to vector<20x128xf32>
    %234 = arith.addf %230, %233 : vector<20x128xf32>
    %cst_85 = arith.constant 0.000000e+00 : f32
    %235 = vector.broadcast %cst_85 : f32 to vector<20x128xf32>
    %236 = arith.maximumf %234, %235 : vector<20x128xf32>
    %237 = arith.addf %226, %236 : vector<20x128xf32>
    %238 = arith.truncf %237 : vector<20x128xf32> to vector<20x128xbf16>
    %c6 = arith.constant 6 : index
    %c0_86 = arith.constant 0 : index
    %c0_87 = arith.constant 0 : index
    %239 = vector.load %arg5[%c6, %c0_86, %c0_87] : memref<19x128x128xbf16, #tpu.memory_space<vmem>>, vector<1x128x128xbf16>
    %240 = vector.shape_cast %239 : vector<1x128x128xbf16> to vector<128x128xbf16>
    %cst_88 = arith.constant dense<0.000000e+00> : vector<20x128xf32>
    %241 = tpu.matmul %238, %240, %cst_88 {dimension_numbers = #tpu.dot_dimension_numbers<[1], [0], [0], [1], [0, 0, 1, 1], [], []>} : vector<20x128xbf16>, vector<128x128xbf16>, vector<20x128xf32> -> vector<20x128xf32>
    %c6_89 = arith.constant 6 : index
    %c0_90 = arith.constant 0 : index
    %c0_91 = arith.constant 0 : index
    %242 = vector.load %arg6[%c6_89, %c0_90, %c0_91] : memref<19x1x128xf32, #tpu.memory_space<vmem>>, vector<1x1x128xf32>
    %243 = vector.shape_cast %242 : vector<1x1x128xf32> to vector<1x128xf32>
    %244 = vector.broadcast %243 : vector<1x128xf32> to vector<20x128xf32>
    %245 = arith.addf %241, %244 : vector<20x128xf32>
    %246 = arith.truncf %237 : vector<20x128xf32> to vector<20x128xbf16>
    %c7 = arith.constant 7 : index
    %c0_92 = arith.constant 0 : index
    %c0_93 = arith.constant 0 : index
    %247 = vector.load %arg5[%c7, %c0_92, %c0_93] : memref<19x128x128xbf16, #tpu.memory_space<vmem>>, vector<1x128x128xbf16>
    %248 = vector.shape_cast %247 : vector<1x128x128xbf16> to vector<128x128xbf16>
    %cst_94 = arith.constant dense<0.000000e+00> : vector<20x128xf32>
    %249 = tpu.matmul %246, %248, %cst_94 {dimension_numbers = #tpu.dot_dimension_numbers<[1], [0], [0], [1], [0, 0, 1, 1], [], []>} : vector<20x128xbf16>, vector<128x128xbf16>, vector<20x128xf32> -> vector<20x128xf32>
    %c7_95 = arith.constant 7 : index
    %c0_96 = arith.constant 0 : index
    %c0_97 = arith.constant 0 : index
    %250 = vector.load %arg6[%c7_95, %c0_96, %c0_97] : memref<19x1x128xf32, #tpu.memory_space<vmem>>, vector<1x1x128xf32>
    %251 = vector.shape_cast %250 : vector<1x1x128xf32> to vector<1x128xf32>
    %252 = vector.broadcast %251 : vector<1x128xf32> to vector<20x128xf32>
    %253 = arith.addf %249, %252 : vector<20x128xf32>
    %254 = arith.truncf %237 : vector<20x128xf32> to vector<20x128xbf16>
    %c8 = arith.constant 8 : index
    %c0_98 = arith.constant 0 : index
    %c0_99 = arith.constant 0 : index
    %255 = vector.load %arg5[%c8, %c0_98, %c0_99] : memref<19x128x128xbf16, #tpu.memory_space<vmem>>, vector<1x128x128xbf16>
    %256 = vector.shape_cast %255 : vector<1x128x128xbf16> to vector<128x128xbf16>
    %cst_100 = arith.constant dense<0.000000e+00> : vector<20x128xf32>
    %257 = tpu.matmul %254, %256, %cst_100 {dimension_numbers = #tpu.dot_dimension_numbers<[1], [0], [0], [1], [0, 0, 1, 1], [], []>} : vector<20x128xbf16>, vector<128x128xbf16>, vector<20x128xf32> -> vector<20x128xf32>
    %c8_101 = arith.constant 8 : index
    %c0_102 = arith.constant 0 : index
    %c0_103 = arith.constant 0 : index
    %258 = vector.load %arg6[%c8_101, %c0_102, %c0_103] : memref<19x1x128xf32, #tpu.memory_space<vmem>>, vector<1x1x128xf32>
    %259 = vector.shape_cast %258 : vector<1x1x128xf32> to vector<1x128xf32>
    %260 = vector.broadcast %259 : vector<1x128xf32> to vector<20x128xf32>
    %261 = arith.addf %257, %260 : vector<20x128xf32>
    %262 = vector.extract_strided_slice %245 {offsets = [0, 0], sizes = [10, 128], strides = [1, 1]} : vector<20x128xf32> to vector<10x128xf32>
    %263 = vector.extract_strided_slice %253 {offsets = [0, 0], sizes = [10, 128], strides = [1, 1]} : vector<20x128xf32> to vector<10x128xf32>
    %264 = vector.extract_strided_slice %261 {offsets = [0, 0], sizes = [10, 128], strides = [1, 1]} : vector<20x128xf32> to vector<10x128xf32>
    %265 = vector.extract_strided_slice %262 {offsets = [0, 0], sizes = [10, 32], strides = [1, 1]} : vector<10x128xf32> to vector<10x32xf32>
    %266 = vector.extract_strided_slice %263 {offsets = [0, 0], sizes = [10, 32], strides = [1, 1]} : vector<10x128xf32> to vector<10x32xf32>
    %cst_104 = arith.constant dense<0.000000e+00> : vector<10x10xf32>
    %267 = tpu.matmul %265, %266, %cst_104 {dimension_numbers = #tpu.dot_dimension_numbers<[1], [1], [0], [0], [0, 0, 1, 0], [], []>} : vector<10x32xf32>, vector<10x32xf32>, vector<10x10xf32> -> vector<10x10xf32>
    %cst_105 = arith.constant 0.204124153 : f32
    %268 = vector.broadcast %cst_105 : f32 to vector<10x10xf32>
    %269 = arith.mulf %267, %268 : vector<10x10xf32>
    %cst_106 = arith.constant dense<0xFF800000> : vector<10xf32>
    %270 = vector.multi_reduction <maximumf>, %269, %cst_106 [1] : vector<10x10xf32> to vector<10xf32>
    %271 = vector.shape_cast %270 : vector<10xf32> to vector<10x1xf32>
    %272 = vector.broadcast %271 : vector<10x1xf32> to vector<10x10xf32>
    %273 = arith.subf %269, %272 : vector<10x10xf32>
    %274 = math.exp %273 : vector<10x10xf32>
    %cst_107 = arith.constant dense<0.000000e+00> : vector<10xf32>
    %275 = vector.multi_reduction <add>, %274, %cst_107 [1] : vector<10x10xf32> to vector<10xf32>
    %276 = vector.shape_cast %275 : vector<10xf32> to vector<10x1xf32>
    %277 = tpu.reciprocal %276 {approx = true} : vector<10x1xf32> -> vector<10x1xf32>
    %278 = vector.broadcast %277 : vector<10x1xf32> to vector<10x10xf32>
    %279 = arith.mulf %274, %278 : vector<10x10xf32>
    %280 = vector.extract_strided_slice %264 {offsets = [0, 0], sizes = [10, 32], strides = [1, 1]} : vector<10x128xf32> to vector<10x32xf32>
    %cst_108 = arith.constant dense<0.000000e+00> : vector<10x32xf32>
    %281 = tpu.matmul %279, %280, %cst_108 {dimension_numbers = #tpu.dot_dimension_numbers<[1], [0], [0], [1], [0, 0, 1, 1], [], []>} : vector<10x10xf32>, vector<10x32xf32>, vector<10x32xf32> -> vector<10x32xf32>
    %282 = vector.extract_strided_slice %262 {offsets = [0, 32], sizes = [10, 32], strides = [1, 1]} : vector<10x128xf32> to vector<10x32xf32>
    %283 = vector.extract_strided_slice %263 {offsets = [0, 32], sizes = [10, 32], strides = [1, 1]} : vector<10x128xf32> to vector<10x32xf32>
    %cst_109 = arith.constant dense<0.000000e+00> : vector<10x10xf32>
    %284 = tpu.matmul %282, %283, %cst_109 {dimension_numbers = #tpu.dot_dimension_numbers<[1], [1], [0], [0], [0, 0, 1, 0], [], []>} : vector<10x32xf32>, vector<10x32xf32>, vector<10x10xf32> -> vector<10x10xf32>
    %cst_110 = arith.constant 0.204124153 : f32
    %285 = vector.broadcast %cst_110 : f32 to vector<10x10xf32>
    %286 = arith.mulf %284, %285 : vector<10x10xf32>
    %cst_111 = arith.constant dense<0xFF800000> : vector<10xf32>
    %287 = vector.multi_reduction <maximumf>, %286, %cst_111 [1] : vector<10x10xf32> to vector<10xf32>
    %288 = vector.shape_cast %287 : vector<10xf32> to vector<10x1xf32>
    %289 = vector.broadcast %288 : vector<10x1xf32> to vector<10x10xf32>
    %290 = arith.subf %286, %289 : vector<10x10xf32>
    %291 = math.exp %290 : vector<10x10xf32>
    %cst_112 = arith.constant dense<0.000000e+00> : vector<10xf32>
    %292 = vector.multi_reduction <add>, %291, %cst_112 [1] : vector<10x10xf32> to vector<10xf32>
    %293 = vector.shape_cast %292 : vector<10xf32> to vector<10x1xf32>
    %294 = tpu.reciprocal %293 {approx = true} : vector<10x1xf32> -> vector<10x1xf32>
    %295 = vector.broadcast %294 : vector<10x1xf32> to vector<10x10xf32>
    %296 = arith.mulf %291, %295 : vector<10x10xf32>
    %297 = vector.extract_strided_slice %264 {offsets = [0, 32], sizes = [10, 32], strides = [1, 1]} : vector<10x128xf32> to vector<10x32xf32>
    %cst_113 = arith.constant dense<0.000000e+00> : vector<10x32xf32>
    %298 = tpu.matmul %296, %297, %cst_113 {dimension_numbers = #tpu.dot_dimension_numbers<[1], [0], [0], [1], [0, 0, 1, 1], [], []>} : vector<10x10xf32>, vector<10x32xf32>, vector<10x32xf32> -> vector<10x32xf32>
    %299 = vector.extract_strided_slice %262 {offsets = [0, 64], sizes = [10, 32], strides = [1, 1]} : vector<10x128xf32> to vector<10x32xf32>
    %300 = vector.extract_strided_slice %263 {offsets = [0, 64], sizes = [10, 32], strides = [1, 1]} : vector<10x128xf32> to vector<10x32xf32>
    %cst_114 = arith.constant dense<0.000000e+00> : vector<10x10xf32>
    %301 = tpu.matmul %299, %300, %cst_114 {dimension_numbers = #tpu.dot_dimension_numbers<[1], [1], [0], [0], [0, 0, 1, 0], [], []>} : vector<10x32xf32>, vector<10x32xf32>, vector<10x10xf32> -> vector<10x10xf32>
    %cst_115 = arith.constant 0.204124153 : f32
    %302 = vector.broadcast %cst_115 : f32 to vector<10x10xf32>
    %303 = arith.mulf %301, %302 : vector<10x10xf32>
    %cst_116 = arith.constant dense<0xFF800000> : vector<10xf32>
    %304 = vector.multi_reduction <maximumf>, %303, %cst_116 [1] : vector<10x10xf32> to vector<10xf32>
    %305 = vector.shape_cast %304 : vector<10xf32> to vector<10x1xf32>
    %306 = vector.broadcast %305 : vector<10x1xf32> to vector<10x10xf32>
    %307 = arith.subf %303, %306 : vector<10x10xf32>
    %308 = math.exp %307 : vector<10x10xf32>
    %cst_117 = arith.constant dense<0.000000e+00> : vector<10xf32>
    %309 = vector.multi_reduction <add>, %308, %cst_117 [1] : vector<10x10xf32> to vector<10xf32>
    %310 = vector.shape_cast %309 : vector<10xf32> to vector<10x1xf32>
    %311 = tpu.reciprocal %310 {approx = true} : vector<10x1xf32> -> vector<10x1xf32>
    %312 = vector.broadcast %311 : vector<10x1xf32> to vector<10x10xf32>
    %313 = arith.mulf %308, %312 : vector<10x10xf32>
    %314 = vector.extract_strided_slice %264 {offsets = [0, 64], sizes = [10, 32], strides = [1, 1]} : vector<10x128xf32> to vector<10x32xf32>
    %cst_118 = arith.constant dense<0.000000e+00> : vector<10x32xf32>
    %315 = tpu.matmul %313, %314, %cst_118 {dimension_numbers = #tpu.dot_dimension_numbers<[1], [0], [0], [1], [0, 0, 1, 1], [], []>} : vector<10x10xf32>, vector<10x32xf32>, vector<10x32xf32> -> vector<10x32xf32>
    %316 = vector.extract_strided_slice %262 {offsets = [0, 96], sizes = [10, 32], strides = [1, 1]} : vector<10x128xf32> to vector<10x32xf32>
    %317 = vector.extract_strided_slice %263 {offsets = [0, 96], sizes = [10, 32], strides = [1, 1]} : vector<10x128xf32> to vector<10x32xf32>
    %cst_119 = arith.constant dense<0.000000e+00> : vector<10x10xf32>
    %318 = tpu.matmul %316, %317, %cst_119 {dimension_numbers = #tpu.dot_dimension_numbers<[1], [1], [0], [0], [0, 0, 1, 0], [], []>} : vector<10x32xf32>, vector<10x32xf32>, vector<10x10xf32> -> vector<10x10xf32>
    %cst_120 = arith.constant 0.204124153 : f32
    %319 = vector.broadcast %cst_120 : f32 to vector<10x10xf32>
    %320 = arith.mulf %318, %319 : vector<10x10xf32>
    %cst_121 = arith.constant dense<0xFF800000> : vector<10xf32>
    %321 = vector.multi_reduction <maximumf>, %320, %cst_121 [1] : vector<10x10xf32> to vector<10xf32>
    %322 = vector.shape_cast %321 : vector<10xf32> to vector<10x1xf32>
    %323 = vector.broadcast %322 : vector<10x1xf32> to vector<10x10xf32>
    %324 = arith.subf %320, %323 : vector<10x10xf32>
    %325 = math.exp %324 : vector<10x10xf32>
    %cst_122 = arith.constant dense<0.000000e+00> : vector<10xf32>
    %326 = vector.multi_reduction <add>, %325, %cst_122 [1] : vector<10x10xf32> to vector<10xf32>
    %327 = vector.shape_cast %326 : vector<10xf32> to vector<10x1xf32>
    %328 = tpu.reciprocal %327 {approx = true} : vector<10x1xf32> -> vector<10x1xf32>
    %329 = vector.broadcast %328 : vector<10x1xf32> to vector<10x10xf32>
    %330 = arith.mulf %325, %329 : vector<10x10xf32>
    %331 = vector.extract_strided_slice %264 {offsets = [0, 96], sizes = [10, 32], strides = [1, 1]} : vector<10x128xf32> to vector<10x32xf32>
    %cst_123 = arith.constant dense<0.000000e+00> : vector<10x32xf32>
    %332 = tpu.matmul %330, %331, %cst_123 {dimension_numbers = #tpu.dot_dimension_numbers<[1], [0], [0], [1], [0, 0, 1, 1], [], []>} : vector<10x10xf32>, vector<10x32xf32>, vector<10x32xf32> -> vector<10x32xf32>
    %333 = tpu.concatenate %281, %298, %315, %332 in 1 : vector<10x32xf32>, vector<10x32xf32>, vector<10x32xf32>, vector<10x32xf32> -> vector<10x128xf32>
    %334 = vector.extract_strided_slice %245 {offsets = [10, 0], sizes = [10, 128], strides = [1, 1]} : vector<20x128xf32> to vector<10x128xf32>
    %335 = vector.extract_strided_slice %253 {offsets = [10, 0], sizes = [10, 128], strides = [1, 1]} : vector<20x128xf32> to vector<10x128xf32>
    %336 = vector.extract_strided_slice %261 {offsets = [10, 0], sizes = [10, 128], strides = [1, 1]} : vector<20x128xf32> to vector<10x128xf32>
    %337 = vector.extract_strided_slice %334 {offsets = [0, 0], sizes = [10, 32], strides = [1, 1]} : vector<10x128xf32> to vector<10x32xf32>
    %338 = vector.extract_strided_slice %335 {offsets = [0, 0], sizes = [10, 32], strides = [1, 1]} : vector<10x128xf32> to vector<10x32xf32>
    %cst_124 = arith.constant dense<0.000000e+00> : vector<10x10xf32>
    %339 = tpu.matmul %337, %338, %cst_124 {dimension_numbers = #tpu.dot_dimension_numbers<[1], [1], [0], [0], [0, 0, 1, 0], [], []>} : vector<10x32xf32>, vector<10x32xf32>, vector<10x10xf32> -> vector<10x10xf32>
    %cst_125 = arith.constant 0.204124153 : f32
    %340 = vector.broadcast %cst_125 : f32 to vector<10x10xf32>
    %341 = arith.mulf %339, %340 : vector<10x10xf32>
    %cst_126 = arith.constant dense<0xFF800000> : vector<10xf32>
    %342 = vector.multi_reduction <maximumf>, %341, %cst_126 [1] : vector<10x10xf32> to vector<10xf32>
    %343 = vector.shape_cast %342 : vector<10xf32> to vector<10x1xf32>
    %344 = vector.broadcast %343 : vector<10x1xf32> to vector<10x10xf32>
    %345 = arith.subf %341, %344 : vector<10x10xf32>
    %346 = math.exp %345 : vector<10x10xf32>
    %cst_127 = arith.constant dense<0.000000e+00> : vector<10xf32>
    %347 = vector.multi_reduction <add>, %346, %cst_127 [1] : vector<10x10xf32> to vector<10xf32>
    %348 = vector.shape_cast %347 : vector<10xf32> to vector<10x1xf32>
    %349 = tpu.reciprocal %348 {approx = true} : vector<10x1xf32> -> vector<10x1xf32>
    %350 = vector.broadcast %349 : vector<10x1xf32> to vector<10x10xf32>
    %351 = arith.mulf %346, %350 : vector<10x10xf32>
    %352 = vector.extract_strided_slice %336 {offsets = [0, 0], sizes = [10, 32], strides = [1, 1]} : vector<10x128xf32> to vector<10x32xf32>
    %cst_128 = arith.constant dense<0.000000e+00> : vector<10x32xf32>
    %353 = tpu.matmul %351, %352, %cst_128 {dimension_numbers = #tpu.dot_dimension_numbers<[1], [0], [0], [1], [0, 0, 1, 1], [], []>} : vector<10x10xf32>, vector<10x32xf32>, vector<10x32xf32> -> vector<10x32xf32>
    %354 = vector.extract_strided_slice %334 {offsets = [0, 32], sizes = [10, 32], strides = [1, 1]} : vector<10x128xf32> to vector<10x32xf32>
    %355 = vector.extract_strided_slice %335 {offsets = [0, 32], sizes = [10, 32], strides = [1, 1]} : vector<10x128xf32> to vector<10x32xf32>
    %cst_129 = arith.constant dense<0.000000e+00> : vector<10x10xf32>
    %356 = tpu.matmul %354, %355, %cst_129 {dimension_numbers = #tpu.dot_dimension_numbers<[1], [1], [0], [0], [0, 0, 1, 0], [], []>} : vector<10x32xf32>, vector<10x32xf32>, vector<10x10xf32> -> vector<10x10xf32>
    %cst_130 = arith.constant 0.204124153 : f32
    %357 = vector.broadcast %cst_130 : f32 to vector<10x10xf32>
    %358 = arith.mulf %356, %357 : vector<10x10xf32>
    %cst_131 = arith.constant dense<0xFF800000> : vector<10xf32>
    %359 = vector.multi_reduction <maximumf>, %358, %cst_131 [1] : vector<10x10xf32> to vector<10xf32>
    %360 = vector.shape_cast %359 : vector<10xf32> to vector<10x1xf32>
    %361 = vector.broadcast %360 : vector<10x1xf32> to vector<10x10xf32>
    %362 = arith.subf %358, %361 : vector<10x10xf32>
    %363 = math.exp %362 : vector<10x10xf32>
    %cst_132 = arith.constant dense<0.000000e+00> : vector<10xf32>
    %364 = vector.multi_reduction <add>, %363, %cst_132 [1] : vector<10x10xf32> to vector<10xf32>
    %365 = vector.shape_cast %364 : vector<10xf32> to vector<10x1xf32>
    %366 = tpu.reciprocal %365 {approx = true} : vector<10x1xf32> -> vector<10x1xf32>
    %367 = vector.broadcast %366 : vector<10x1xf32> to vector<10x10xf32>
    %368 = arith.mulf %363, %367 : vector<10x10xf32>
    %369 = vector.extract_strided_slice %336 {offsets = [0, 32], sizes = [10, 32], strides = [1, 1]} : vector<10x128xf32> to vector<10x32xf32>
    %cst_133 = arith.constant dense<0.000000e+00> : vector<10x32xf32>
    %370 = tpu.matmul %368, %369, %cst_133 {dimension_numbers = #tpu.dot_dimension_numbers<[1], [0], [0], [1], [0, 0, 1, 1], [], []>} : vector<10x10xf32>, vector<10x32xf32>, vector<10x32xf32> -> vector<10x32xf32>
    %371 = vector.extract_strided_slice %334 {offsets = [0, 64], sizes = [10, 32], strides = [1, 1]} : vector<10x128xf32> to vector<10x32xf32>
    %372 = vector.extract_strided_slice %335 {offsets = [0, 64], sizes = [10, 32], strides = [1, 1]} : vector<10x128xf32> to vector<10x32xf32>
    %cst_134 = arith.constant dense<0.000000e+00> : vector<10x10xf32>
    %373 = tpu.matmul %371, %372, %cst_134 {dimension_numbers = #tpu.dot_dimension_numbers<[1], [1], [0], [0], [0, 0, 1, 0], [], []>} : vector<10x32xf32>, vector<10x32xf32>, vector<10x10xf32> -> vector<10x10xf32>
    %cst_135 = arith.constant 0.204124153 : f32
    %374 = vector.broadcast %cst_135 : f32 to vector<10x10xf32>
    %375 = arith.mulf %373, %374 : vector<10x10xf32>
    %cst_136 = arith.constant dense<0xFF800000> : vector<10xf32>
    %376 = vector.multi_reduction <maximumf>, %375, %cst_136 [1] : vector<10x10xf32> to vector<10xf32>
    %377 = vector.shape_cast %376 : vector<10xf32> to vector<10x1xf32>
    %378 = vector.broadcast %377 : vector<10x1xf32> to vector<10x10xf32>
    %379 = arith.subf %375, %378 : vector<10x10xf32>
    %380 = math.exp %379 : vector<10x10xf32>
    %cst_137 = arith.constant dense<0.000000e+00> : vector<10xf32>
    %381 = vector.multi_reduction <add>, %380, %cst_137 [1] : vector<10x10xf32> to vector<10xf32>
    %382 = vector.shape_cast %381 : vector<10xf32> to vector<10x1xf32>
    %383 = tpu.reciprocal %382 {approx = true} : vector<10x1xf32> -> vector<10x1xf32>
    %384 = vector.broadcast %383 : vector<10x1xf32> to vector<10x10xf32>
    %385 = arith.mulf %380, %384 : vector<10x10xf32>
    %386 = vector.extract_strided_slice %336 {offsets = [0, 64], sizes = [10, 32], strides = [1, 1]} : vector<10x128xf32> to vector<10x32xf32>
    %cst_138 = arith.constant dense<0.000000e+00> : vector<10x32xf32>
    %387 = tpu.matmul %385, %386, %cst_138 {dimension_numbers = #tpu.dot_dimension_numbers<[1], [0], [0], [1], [0, 0, 1, 1], [], []>} : vector<10x10xf32>, vector<10x32xf32>, vector<10x32xf32> -> vector<10x32xf32>
    %388 = vector.extract_strided_slice %334 {offsets = [0, 96], sizes = [10, 32], strides = [1, 1]} : vector<10x128xf32> to vector<10x32xf32>
    %389 = vector.extract_strided_slice %335 {offsets = [0, 96], sizes = [10, 32], strides = [1, 1]} : vector<10x128xf32> to vector<10x32xf32>
    %cst_139 = arith.constant dense<0.000000e+00> : vector<10x10xf32>
    %390 = tpu.matmul %388, %389, %cst_139 {dimension_numbers = #tpu.dot_dimension_numbers<[1], [1], [0], [0], [0, 0, 1, 0], [], []>} : vector<10x32xf32>, vector<10x32xf32>, vector<10x10xf32> -> vector<10x10xf32>
    %cst_140 = arith.constant 0.204124153 : f32
    %391 = vector.broadcast %cst_140 : f32 to vector<10x10xf32>
    %392 = arith.mulf %390, %391 : vector<10x10xf32>
    %cst_141 = arith.constant dense<0xFF800000> : vector<10xf32>
    %393 = vector.multi_reduction <maximumf>, %392, %cst_141 [1] : vector<10x10xf32> to vector<10xf32>
    %394 = vector.shape_cast %393 : vector<10xf32> to vector<10x1xf32>
    %395 = vector.broadcast %394 : vector<10x1xf32> to vector<10x10xf32>
    %396 = arith.subf %392, %395 : vector<10x10xf32>
    %397 = math.exp %396 : vector<10x10xf32>
    %cst_142 = arith.constant dense<0.000000e+00> : vector<10xf32>
    %398 = vector.multi_reduction <add>, %397, %cst_142 [1] : vector<10x10xf32> to vector<10xf32>
    %399 = vector.shape_cast %398 : vector<10xf32> to vector<10x1xf32>
    %400 = tpu.reciprocal %399 {approx = true} : vector<10x1xf32> -> vector<10x1xf32>
    %401 = vector.broadcast %400 : vector<10x1xf32> to vector<10x10xf32>
    %402 = arith.mulf %397, %401 : vector<10x10xf32>
    %403 = vector.extract_strided_slice %336 {offsets = [0, 96], sizes = [10, 32], strides = [1, 1]} : vector<10x128xf32> to vector<10x32xf32>
    %cst_143 = arith.constant dense<0.000000e+00> : vector<10x32xf32>
    %404 = tpu.matmul %402, %403, %cst_143 {dimension_numbers = #tpu.dot_dimension_numbers<[1], [0], [0], [1], [0, 0, 1, 1], [], []>} : vector<10x10xf32>, vector<10x32xf32>, vector<10x32xf32> -> vector<10x32xf32>
    %405 = tpu.concatenate %353, %370, %387, %404 in 1 : vector<10x32xf32>, vector<10x32xf32>, vector<10x32xf32>, vector<10x32xf32> -> vector<10x128xf32>
    %406 = tpu.concatenate %333, %405 in 0 : vector<10x128xf32>, vector<10x128xf32> -> vector<20x128xf32>
    %407 = arith.truncf %406 : vector<20x128xf32> to vector<20x128xbf16>
    %c9 = arith.constant 9 : index
    %c0_144 = arith.constant 0 : index
    %c0_145 = arith.constant 0 : index
    %408 = vector.load %arg5[%c9, %c0_144, %c0_145] : memref<19x128x128xbf16, #tpu.memory_space<vmem>>, vector<1x128x128xbf16>
    %409 = vector.shape_cast %408 : vector<1x128x128xbf16> to vector<128x128xbf16>
    %cst_146 = arith.constant dense<0.000000e+00> : vector<20x128xf32>
    %410 = tpu.matmul %407, %409, %cst_146 {dimension_numbers = #tpu.dot_dimension_numbers<[1], [0], [0], [1], [0, 0, 1, 1], [], []>} : vector<20x128xbf16>, vector<128x128xbf16>, vector<20x128xf32> -> vector<20x128xf32>
    %c9_147 = arith.constant 9 : index
    %c0_148 = arith.constant 0 : index
    %c0_149 = arith.constant 0 : index
    %411 = vector.load %arg6[%c9_147, %c0_148, %c0_149] : memref<19x1x128xf32, #tpu.memory_space<vmem>>, vector<1x1x128xf32>
    %412 = vector.shape_cast %411 : vector<1x1x128xf32> to vector<1x128xf32>
    %413 = vector.broadcast %412 : vector<1x128xf32> to vector<20x128xf32>
    %414 = arith.addf %410, %413 : vector<20x128xf32>
    %415 = arith.addf %414, %237 : vector<20x128xf32>
    %416 = arith.truncf %415 : vector<20x128xf32> to vector<20x128xbf16>
    %c10 = arith.constant 10 : index
    %c0_150 = arith.constant 0 : index
    %c0_151 = arith.constant 0 : index
    %417 = vector.load %arg5[%c10, %c0_150, %c0_151] : memref<19x128x128xbf16, #tpu.memory_space<vmem>>, vector<1x128x128xbf16>
    %418 = vector.shape_cast %417 : vector<1x128x128xbf16> to vector<128x128xbf16>
    %cst_152 = arith.constant dense<0.000000e+00> : vector<20x128xf32>
    %419 = tpu.matmul %416, %418, %cst_152 {dimension_numbers = #tpu.dot_dimension_numbers<[1], [0], [0], [1], [0, 0, 1, 1], [], []>} : vector<20x128xbf16>, vector<128x128xbf16>, vector<20x128xf32> -> vector<20x128xf32>
    %c10_153 = arith.constant 10 : index
    %c0_154 = arith.constant 0 : index
    %c0_155 = arith.constant 0 : index
    %420 = vector.load %arg6[%c10_153, %c0_154, %c0_155] : memref<19x1x128xf32, #tpu.memory_space<vmem>>, vector<1x1x128xf32>
    %421 = vector.shape_cast %420 : vector<1x1x128xf32> to vector<1x128xf32>
    %422 = vector.broadcast %421 : vector<1x128xf32> to vector<20x128xf32>
    %423 = arith.addf %419, %422 : vector<20x128xf32>
    %cst_156 = arith.constant 0.000000e+00 : f32
    %424 = vector.broadcast %cst_156 : f32 to vector<20x128xf32>
    %425 = arith.maximumf %423, %424 : vector<20x128xf32>
    %426 = arith.addf %415, %425 : vector<20x128xf32>
    %427 = arith.truncf %426 : vector<20x128xf32> to vector<20x128xbf16>
    %c11 = arith.constant 11 : index
    %c0_157 = arith.constant 0 : index
    %c0_158 = arith.constant 0 : index
    %428 = vector.load %arg5[%c11, %c0_157, %c0_158] : memref<19x128x128xbf16, #tpu.memory_space<vmem>>, vector<1x128x128xbf16>
    %429 = vector.shape_cast %428 : vector<1x128x128xbf16> to vector<128x128xbf16>
    %cst_159 = arith.constant dense<0.000000e+00> : vector<20x128xf32>
    %430 = tpu.matmul %427, %429, %cst_159 {dimension_numbers = #tpu.dot_dimension_numbers<[1], [0], [0], [1], [0, 0, 1, 1], [], []>} : vector<20x128xbf16>, vector<128x128xbf16>, vector<20x128xf32> -> vector<20x128xf32>
    %c11_160 = arith.constant 11 : index
    %c0_161 = arith.constant 0 : index
    %c0_162 = arith.constant 0 : index
    %431 = vector.load %arg6[%c11_160, %c0_161, %c0_162] : memref<19x1x128xf32, #tpu.memory_space<vmem>>, vector<1x1x128xf32>
    %432 = vector.shape_cast %431 : vector<1x1x128xf32> to vector<1x128xf32>
    %433 = vector.broadcast %432 : vector<1x128xf32> to vector<20x128xf32>
    %434 = arith.addf %430, %433 : vector<20x128xf32>
    %cst_163 = arith.constant 0.000000e+00 : f32
    %435 = vector.broadcast %cst_163 : f32 to vector<20x128xf32>
    %436 = arith.maximumf %434, %435 : vector<20x128xf32>
    %437 = arith.truncf %7 : vector<2x128xf32> to vector<2x128xbf16>
    %c12 = arith.constant 12 : index
    %c0_164 = arith.constant 0 : index
    %c0_165 = arith.constant 0 : index
    %438 = vector.load %arg5[%c12, %c0_164, %c0_165] : memref<19x128x128xbf16, #tpu.memory_space<vmem>>, vector<1x128x128xbf16>
    %439 = vector.shape_cast %438 : vector<1x128x128xbf16> to vector<128x128xbf16>
    %cst_166 = arith.constant dense<0.000000e+00> : vector<2x128xf32>
    %440 = tpu.matmul %437, %439, %cst_166 {dimension_numbers = #tpu.dot_dimension_numbers<[1], [0], [0], [1], [0, 0, 1, 1], [], []>} : vector<2x128xbf16>, vector<128x128xbf16>, vector<2x128xf32> -> vector<2x128xf32>
    %c12_167 = arith.constant 12 : index
    %c0_168 = arith.constant 0 : index
    %c0_169 = arith.constant 0 : index
    %441 = vector.load %arg6[%c12_167, %c0_168, %c0_169] : memref<19x1x128xf32, #tpu.memory_space<vmem>>, vector<1x1x128xf32>
    %442 = vector.shape_cast %441 : vector<1x1x128xf32> to vector<1x128xf32>
    %443 = vector.broadcast %442 : vector<1x128xf32> to vector<2x128xf32>
    %444 = arith.addf %440, %443 : vector<2x128xf32>
    %445 = arith.truncf %436 : vector<20x128xf32> to vector<20x128xbf16>
    %c13 = arith.constant 13 : index
    %c0_170 = arith.constant 0 : index
    %c0_171 = arith.constant 0 : index
    %446 = vector.load %arg5[%c13, %c0_170, %c0_171] : memref<19x128x128xbf16, #tpu.memory_space<vmem>>, vector<1x128x128xbf16>
    %447 = vector.shape_cast %446 : vector<1x128x128xbf16> to vector<128x128xbf16>
    %cst_172 = arith.constant dense<0.000000e+00> : vector<20x128xf32>
    %448 = tpu.matmul %445, %447, %cst_172 {dimension_numbers = #tpu.dot_dimension_numbers<[1], [0], [0], [1], [0, 0, 1, 1], [], []>} : vector<20x128xbf16>, vector<128x128xbf16>, vector<20x128xf32> -> vector<20x128xf32>
    %c13_173 = arith.constant 13 : index
    %c0_174 = arith.constant 0 : index
    %c0_175 = arith.constant 0 : index
    %449 = vector.load %arg6[%c13_173, %c0_174, %c0_175] : memref<19x1x128xf32, #tpu.memory_space<vmem>>, vector<1x1x128xf32>
    %450 = vector.shape_cast %449 : vector<1x1x128xf32> to vector<1x128xf32>
    %451 = vector.broadcast %450 : vector<1x128xf32> to vector<20x128xf32>
    %452 = arith.addf %448, %451 : vector<20x128xf32>
    %453 = arith.truncf %436 : vector<20x128xf32> to vector<20x128xbf16>
    %c14 = arith.constant 14 : index
    %c0_176 = arith.constant 0 : index
    %c0_177 = arith.constant 0 : index
    %454 = vector.load %arg5[%c14, %c0_176, %c0_177] : memref<19x128x128xbf16, #tpu.memory_space<vmem>>, vector<1x128x128xbf16>
    %455 = vector.shape_cast %454 : vector<1x128x128xbf16> to vector<128x128xbf16>
    %cst_178 = arith.constant dense<0.000000e+00> : vector<20x128xf32>
    %456 = tpu.matmul %453, %455, %cst_178 {dimension_numbers = #tpu.dot_dimension_numbers<[1], [0], [0], [1], [0, 0, 1, 1], [], []>} : vector<20x128xbf16>, vector<128x128xbf16>, vector<20x128xf32> -> vector<20x128xf32>
    %c14_179 = arith.constant 14 : index
    %c0_180 = arith.constant 0 : index
    %c0_181 = arith.constant 0 : index
    %457 = vector.load %arg6[%c14_179, %c0_180, %c0_181] : memref<19x1x128xf32, #tpu.memory_space<vmem>>, vector<1x1x128xf32>
    %458 = vector.shape_cast %457 : vector<1x1x128xf32> to vector<1x128xf32>
    %459 = vector.broadcast %458 : vector<1x128xf32> to vector<20x128xf32>
    %460 = arith.addf %456, %459 : vector<20x128xf32>
    %461 = vector.extract_strided_slice %444 {offsets = [0, 0], sizes = [1, 128], strides = [1, 1]} : vector<2x128xf32> to vector<1x128xf32>
    %462 = vector.extract_strided_slice %452 {offsets = [0, 0], sizes = [10, 128], strides = [1, 1]} : vector<20x128xf32> to vector<10x128xf32>
    %463 = vector.extract_strided_slice %460 {offsets = [0, 0], sizes = [10, 128], strides = [1, 1]} : vector<20x128xf32> to vector<10x128xf32>
    %464 = vector.extract_strided_slice %461 {offsets = [0, 0], sizes = [1, 32], strides = [1, 1]} : vector<1x128xf32> to vector<1x32xf32>
    %465 = vector.extract_strided_slice %462 {offsets = [0, 0], sizes = [10, 32], strides = [1, 1]} : vector<10x128xf32> to vector<10x32xf32>
    %cst_182 = arith.constant dense<0.000000e+00> : vector<1x10xf32>
    %466 = tpu.matmul %464, %465, %cst_182 {dimension_numbers = #tpu.dot_dimension_numbers<[1], [1], [0], [0], [0, 0, 1, 0], [], []>} : vector<1x32xf32>, vector<10x32xf32>, vector<1x10xf32> -> vector<1x10xf32>
    %cst_183 = arith.constant 0.204124153 : f32
    %467 = vector.broadcast %cst_183 : f32 to vector<1x10xf32>
    %468 = arith.mulf %466, %467 : vector<1x10xf32>
    %cst_184 = arith.constant dense<0xFF800000> : vector<1xf32>
    %469 = vector.multi_reduction <maximumf>, %468, %cst_184 [1] : vector<1x10xf32> to vector<1xf32>
    %470 = vector.shape_cast %469 : vector<1xf32> to vector<1x1xf32>
    %471 = vector.broadcast %470 : vector<1x1xf32> to vector<1x10xf32>
    %472 = arith.subf %468, %471 : vector<1x10xf32>
    %473 = math.exp %472 : vector<1x10xf32>
    %cst_185 = arith.constant dense<0.000000e+00> : vector<1xf32>
    %474 = vector.multi_reduction <add>, %473, %cst_185 [1] : vector<1x10xf32> to vector<1xf32>
    %475 = vector.shape_cast %474 : vector<1xf32> to vector<1x1xf32>
    %476 = tpu.reciprocal %475 {approx = true} : vector<1x1xf32> -> vector<1x1xf32>
    %477 = vector.broadcast %476 : vector<1x1xf32> to vector<1x10xf32>
    %478 = arith.mulf %473, %477 : vector<1x10xf32>
    %479 = vector.extract_strided_slice %463 {offsets = [0, 0], sizes = [10, 32], strides = [1, 1]} : vector<10x128xf32> to vector<10x32xf32>
    %cst_186 = arith.constant dense<0.000000e+00> : vector<1x32xf32>
    %480 = tpu.matmul %478, %479, %cst_186 {dimension_numbers = #tpu.dot_dimension_numbers<[1], [0], [0], [1], [0, 0, 1, 1], [], []>} : vector<1x10xf32>, vector<10x32xf32>, vector<1x32xf32> -> vector<1x32xf32>
    %481 = vector.extract_strided_slice %461 {offsets = [0, 32], sizes = [1, 32], strides = [1, 1]} : vector<1x128xf32> to vector<1x32xf32>
    %482 = vector.extract_strided_slice %462 {offsets = [0, 32], sizes = [10, 32], strides = [1, 1]} : vector<10x128xf32> to vector<10x32xf32>
    %cst_187 = arith.constant dense<0.000000e+00> : vector<1x10xf32>
    %483 = tpu.matmul %481, %482, %cst_187 {dimension_numbers = #tpu.dot_dimension_numbers<[1], [1], [0], [0], [0, 0, 1, 0], [], []>} : vector<1x32xf32>, vector<10x32xf32>, vector<1x10xf32> -> vector<1x10xf32>
    %cst_188 = arith.constant 0.204124153 : f32
    %484 = vector.broadcast %cst_188 : f32 to vector<1x10xf32>
    %485 = arith.mulf %483, %484 : vector<1x10xf32>
    %cst_189 = arith.constant dense<0xFF800000> : vector<1xf32>
    %486 = vector.multi_reduction <maximumf>, %485, %cst_189 [1] : vector<1x10xf32> to vector<1xf32>
    %487 = vector.shape_cast %486 : vector<1xf32> to vector<1x1xf32>
    %488 = vector.broadcast %487 : vector<1x1xf32> to vector<1x10xf32>
    %489 = arith.subf %485, %488 : vector<1x10xf32>
    %490 = math.exp %489 : vector<1x10xf32>
    %cst_190 = arith.constant dense<0.000000e+00> : vector<1xf32>
    %491 = vector.multi_reduction <add>, %490, %cst_190 [1] : vector<1x10xf32> to vector<1xf32>
    %492 = vector.shape_cast %491 : vector<1xf32> to vector<1x1xf32>
    %493 = tpu.reciprocal %492 {approx = true} : vector<1x1xf32> -> vector<1x1xf32>
    %494 = vector.broadcast %493 : vector<1x1xf32> to vector<1x10xf32>
    %495 = arith.mulf %490, %494 : vector<1x10xf32>
    %496 = vector.extract_strided_slice %463 {offsets = [0, 32], sizes = [10, 32], strides = [1, 1]} : vector<10x128xf32> to vector<10x32xf32>
    %cst_191 = arith.constant dense<0.000000e+00> : vector<1x32xf32>
    %497 = tpu.matmul %495, %496, %cst_191 {dimension_numbers = #tpu.dot_dimension_numbers<[1], [0], [0], [1], [0, 0, 1, 1], [], []>} : vector<1x10xf32>, vector<10x32xf32>, vector<1x32xf32> -> vector<1x32xf32>
    %498 = vector.extract_strided_slice %461 {offsets = [0, 64], sizes = [1, 32], strides = [1, 1]} : vector<1x128xf32> to vector<1x32xf32>
    %499 = vector.extract_strided_slice %462 {offsets = [0, 64], sizes = [10, 32], strides = [1, 1]} : vector<10x128xf32> to vector<10x32xf32>
    %cst_192 = arith.constant dense<0.000000e+00> : vector<1x10xf32>
    %500 = tpu.matmul %498, %499, %cst_192 {dimension_numbers = #tpu.dot_dimension_numbers<[1], [1], [0], [0], [0, 0, 1, 0], [], []>} : vector<1x32xf32>, vector<10x32xf32>, vector<1x10xf32> -> vector<1x10xf32>
    %cst_193 = arith.constant 0.204124153 : f32
    %501 = vector.broadcast %cst_193 : f32 to vector<1x10xf32>
    %502 = arith.mulf %500, %501 : vector<1x10xf32>
    %cst_194 = arith.constant dense<0xFF800000> : vector<1xf32>
    %503 = vector.multi_reduction <maximumf>, %502, %cst_194 [1] : vector<1x10xf32> to vector<1xf32>
    %504 = vector.shape_cast %503 : vector<1xf32> to vector<1x1xf32>
    %505 = vector.broadcast %504 : vector<1x1xf32> to vector<1x10xf32>
    %506 = arith.subf %502, %505 : vector<1x10xf32>
    %507 = math.exp %506 : vector<1x10xf32>
    %cst_195 = arith.constant dense<0.000000e+00> : vector<1xf32>
    %508 = vector.multi_reduction <add>, %507, %cst_195 [1] : vector<1x10xf32> to vector<1xf32>
    %509 = vector.shape_cast %508 : vector<1xf32> to vector<1x1xf32>
    %510 = tpu.reciprocal %509 {approx = true} : vector<1x1xf32> -> vector<1x1xf32>
    %511 = vector.broadcast %510 : vector<1x1xf32> to vector<1x10xf32>
    %512 = arith.mulf %507, %511 : vector<1x10xf32>
    %513 = vector.extract_strided_slice %463 {offsets = [0, 64], sizes = [10, 32], strides = [1, 1]} : vector<10x128xf32> to vector<10x32xf32>
    %cst_196 = arith.constant dense<0.000000e+00> : vector<1x32xf32>
    %514 = tpu.matmul %512, %513, %cst_196 {dimension_numbers = #tpu.dot_dimension_numbers<[1], [0], [0], [1], [0, 0, 1, 1], [], []>} : vector<1x10xf32>, vector<10x32xf32>, vector<1x32xf32> -> vector<1x32xf32>
    %515 = vector.extract_strided_slice %461 {offsets = [0, 96], sizes = [1, 32], strides = [1, 1]} : vector<1x128xf32> to vector<1x32xf32>
    %516 = vector.extract_strided_slice %462 {offsets = [0, 96], sizes = [10, 32], strides = [1, 1]} : vector<10x128xf32> to vector<10x32xf32>
    %cst_197 = arith.constant dense<0.000000e+00> : vector<1x10xf32>
    %517 = tpu.matmul %515, %516, %cst_197 {dimension_numbers = #tpu.dot_dimension_numbers<[1], [1], [0], [0], [0, 0, 1, 0], [], []>} : vector<1x32xf32>, vector<10x32xf32>, vector<1x10xf32> -> vector<1x10xf32>
    %cst_198 = arith.constant 0.204124153 : f32
    %518 = vector.broadcast %cst_198 : f32 to vector<1x10xf32>
    %519 = arith.mulf %517, %518 : vector<1x10xf32>
    %cst_199 = arith.constant dense<0xFF800000> : vector<1xf32>
    %520 = vector.multi_reduction <maximumf>, %519, %cst_199 [1] : vector<1x10xf32> to vector<1xf32>
    %521 = vector.shape_cast %520 : vector<1xf32> to vector<1x1xf32>
    %522 = vector.broadcast %521 : vector<1x1xf32> to vector<1x10xf32>
    %523 = arith.subf %519, %522 : vector<1x10xf32>
    %524 = math.exp %523 : vector<1x10xf32>
    %cst_200 = arith.constant dense<0.000000e+00> : vector<1xf32>
    %525 = vector.multi_reduction <add>, %524, %cst_200 [1] : vector<1x10xf32> to vector<1xf32>
    %526 = vector.shape_cast %525 : vector<1xf32> to vector<1x1xf32>
    %527 = tpu.reciprocal %526 {approx = true} : vector<1x1xf32> -> vector<1x1xf32>
    %528 = vector.broadcast %527 : vector<1x1xf32> to vector<1x10xf32>
    %529 = arith.mulf %524, %528 : vector<1x10xf32>
    %530 = vector.extract_strided_slice %463 {offsets = [0, 96], sizes = [10, 32], strides = [1, 1]} : vector<10x128xf32> to vector<10x32xf32>
    %cst_201 = arith.constant dense<0.000000e+00> : vector<1x32xf32>
    %531 = tpu.matmul %529, %530, %cst_201 {dimension_numbers = #tpu.dot_dimension_numbers<[1], [0], [0], [1], [0, 0, 1, 1], [], []>} : vector<1x10xf32>, vector<10x32xf32>, vector<1x32xf32> -> vector<1x32xf32>
    %532 = tpu.concatenate %480, %497, %514, %531 in 1 : vector<1x32xf32>, vector<1x32xf32>, vector<1x32xf32>, vector<1x32xf32> -> vector<1x128xf32>
    %533 = vector.extract_strided_slice %444 {offsets = [1, 0], sizes = [1, 128], strides = [1, 1]} : vector<2x128xf32> to vector<1x128xf32>
    %534 = vector.extract_strided_slice %452 {offsets = [10, 0], sizes = [10, 128], strides = [1, 1]} : vector<20x128xf32> to vector<10x128xf32>
    %535 = vector.extract_strided_slice %460 {offsets = [10, 0], sizes = [10, 128], strides = [1, 1]} : vector<20x128xf32> to vector<10x128xf32>
    %536 = vector.extract_strided_slice %533 {offsets = [0, 0], sizes = [1, 32], strides = [1, 1]} : vector<1x128xf32> to vector<1x32xf32>
    %537 = vector.extract_strided_slice %534 {offsets = [0, 0], sizes = [10, 32], strides = [1, 1]} : vector<10x128xf32> to vector<10x32xf32>
    %cst_202 = arith.constant dense<0.000000e+00> : vector<1x10xf32>
    %538 = tpu.matmul %536, %537, %cst_202 {dimension_numbers = #tpu.dot_dimension_numbers<[1], [1], [0], [0], [0, 0, 1, 0], [], []>} : vector<1x32xf32>, vector<10x32xf32>, vector<1x10xf32> -> vector<1x10xf32>
    %cst_203 = arith.constant 0.204124153 : f32
    %539 = vector.broadcast %cst_203 : f32 to vector<1x10xf32>
    %540 = arith.mulf %538, %539 : vector<1x10xf32>
    %cst_204 = arith.constant dense<0xFF800000> : vector<1xf32>
    %541 = vector.multi_reduction <maximumf>, %540, %cst_204 [1] : vector<1x10xf32> to vector<1xf32>
    %542 = vector.shape_cast %541 : vector<1xf32> to vector<1x1xf32>
    %543 = vector.broadcast %542 : vector<1x1xf32> to vector<1x10xf32>
    %544 = arith.subf %540, %543 : vector<1x10xf32>
    %545 = math.exp %544 : vector<1x10xf32>
    %cst_205 = arith.constant dense<0.000000e+00> : vector<1xf32>
    %546 = vector.multi_reduction <add>, %545, %cst_205 [1] : vector<1x10xf32> to vector<1xf32>
    %547 = vector.shape_cast %546 : vector<1xf32> to vector<1x1xf32>
    %548 = tpu.reciprocal %547 {approx = true} : vector<1x1xf32> -> vector<1x1xf32>
    %549 = vector.broadcast %548 : vector<1x1xf32> to vector<1x10xf32>
    %550 = arith.mulf %545, %549 : vector<1x10xf32>
    %551 = vector.extract_strided_slice %535 {offsets = [0, 0], sizes = [10, 32], strides = [1, 1]} : vector<10x128xf32> to vector<10x32xf32>
    %cst_206 = arith.constant dense<0.000000e+00> : vector<1x32xf32>
    %552 = tpu.matmul %550, %551, %cst_206 {dimension_numbers = #tpu.dot_dimension_numbers<[1], [0], [0], [1], [0, 0, 1, 1], [], []>} : vector<1x10xf32>, vector<10x32xf32>, vector<1x32xf32> -> vector<1x32xf32>
    %553 = vector.extract_strided_slice %533 {offsets = [0, 32], sizes = [1, 32], strides = [1, 1]} : vector<1x128xf32> to vector<1x32xf32>
    %554 = vector.extract_strided_slice %534 {offsets = [0, 32], sizes = [10, 32], strides = [1, 1]} : vector<10x128xf32> to vector<10x32xf32>
    %cst_207 = arith.constant dense<0.000000e+00> : vector<1x10xf32>
    %555 = tpu.matmul %553, %554, %cst_207 {dimension_numbers = #tpu.dot_dimension_numbers<[1], [1], [0], [0], [0, 0, 1, 0], [], []>} : vector<1x32xf32>, vector<10x32xf32>, vector<1x10xf32> -> vector<1x10xf32>
    %cst_208 = arith.constant 0.204124153 : f32
    %556 = vector.broadcast %cst_208 : f32 to vector<1x10xf32>
    %557 = arith.mulf %555, %556 : vector<1x10xf32>
    %cst_209 = arith.constant dense<0xFF800000> : vector<1xf32>
    %558 = vector.multi_reduction <maximumf>, %557, %cst_209 [1] : vector<1x10xf32> to vector<1xf32>
    %559 = vector.shape_cast %558 : vector<1xf32> to vector<1x1xf32>
    %560 = vector.broadcast %559 : vector<1x1xf32> to vector<1x10xf32>
    %561 = arith.subf %557, %560 : vector<1x10xf32>
    %562 = math.exp %561 : vector<1x10xf32>
    %cst_210 = arith.constant dense<0.000000e+00> : vector<1xf32>
    %563 = vector.multi_reduction <add>, %562, %cst_210 [1] : vector<1x10xf32> to vector<1xf32>
    %564 = vector.shape_cast %563 : vector<1xf32> to vector<1x1xf32>
    %565 = tpu.reciprocal %564 {approx = true} : vector<1x1xf32> -> vector<1x1xf32>
    %566 = vector.broadcast %565 : vector<1x1xf32> to vector<1x10xf32>
    %567 = arith.mulf %562, %566 : vector<1x10xf32>
    %568 = vector.extract_strided_slice %535 {offsets = [0, 32], sizes = [10, 32], strides = [1, 1]} : vector<10x128xf32> to vector<10x32xf32>
    %cst_211 = arith.constant dense<0.000000e+00> : vector<1x32xf32>
    %569 = tpu.matmul %567, %568, %cst_211 {dimension_numbers = #tpu.dot_dimension_numbers<[1], [0], [0], [1], [0, 0, 1, 1], [], []>} : vector<1x10xf32>, vector<10x32xf32>, vector<1x32xf32> -> vector<1x32xf32>
    %570 = vector.extract_strided_slice %533 {offsets = [0, 64], sizes = [1, 32], strides = [1, 1]} : vector<1x128xf32> to vector<1x32xf32>
    %571 = vector.extract_strided_slice %534 {offsets = [0, 64], sizes = [10, 32], strides = [1, 1]} : vector<10x128xf32> to vector<10x32xf32>
    %cst_212 = arith.constant dense<0.000000e+00> : vector<1x10xf32>
    %572 = tpu.matmul %570, %571, %cst_212 {dimension_numbers = #tpu.dot_dimension_numbers<[1], [1], [0], [0], [0, 0, 1, 0], [], []>} : vector<1x32xf32>, vector<10x32xf32>, vector<1x10xf32> -> vector<1x10xf32>
    %cst_213 = arith.constant 0.204124153 : f32
    %573 = vector.broadcast %cst_213 : f32 to vector<1x10xf32>
    %574 = arith.mulf %572, %573 : vector<1x10xf32>
    %cst_214 = arith.constant dense<0xFF800000> : vector<1xf32>
    %575 = vector.multi_reduction <maximumf>, %574, %cst_214 [1] : vector<1x10xf32> to vector<1xf32>
    %576 = vector.shape_cast %575 : vector<1xf32> to vector<1x1xf32>
    %577 = vector.broadcast %576 : vector<1x1xf32> to vector<1x10xf32>
    %578 = arith.subf %574, %577 : vector<1x10xf32>
    %579 = math.exp %578 : vector<1x10xf32>
    %cst_215 = arith.constant dense<0.000000e+00> : vector<1xf32>
    %580 = vector.multi_reduction <add>, %579, %cst_215 [1] : vector<1x10xf32> to vector<1xf32>
    %581 = vector.shape_cast %580 : vector<1xf32> to vector<1x1xf32>
    %582 = tpu.reciprocal %581 {approx = true} : vector<1x1xf32> -> vector<1x1xf32>
    %583 = vector.broadcast %582 : vector<1x1xf32> to vector<1x10xf32>
    %584 = arith.mulf %579, %583 : vector<1x10xf32>
    %585 = vector.extract_strided_slice %535 {offsets = [0, 64], sizes = [10, 32], strides = [1, 1]} : vector<10x128xf32> to vector<10x32xf32>
    %cst_216 = arith.constant dense<0.000000e+00> : vector<1x32xf32>
    %586 = tpu.matmul %584, %585, %cst_216 {dimension_numbers = #tpu.dot_dimension_numbers<[1], [0], [0], [1], [0, 0, 1, 1], [], []>} : vector<1x10xf32>, vector<10x32xf32>, vector<1x32xf32> -> vector<1x32xf32>
    %587 = vector.extract_strided_slice %533 {offsets = [0, 96], sizes = [1, 32], strides = [1, 1]} : vector<1x128xf32> to vector<1x32xf32>
    %588 = vector.extract_strided_slice %534 {offsets = [0, 96], sizes = [10, 32], strides = [1, 1]} : vector<10x128xf32> to vector<10x32xf32>
    %cst_217 = arith.constant dense<0.000000e+00> : vector<1x10xf32>
    %589 = tpu.matmul %587, %588, %cst_217 {dimension_numbers = #tpu.dot_dimension_numbers<[1], [1], [0], [0], [0, 0, 1, 0], [], []>} : vector<1x32xf32>, vector<10x32xf32>, vector<1x10xf32> -> vector<1x10xf32>
    %cst_218 = arith.constant 0.204124153 : f32
    %590 = vector.broadcast %cst_218 : f32 to vector<1x10xf32>
    %591 = arith.mulf %589, %590 : vector<1x10xf32>
    %cst_219 = arith.constant dense<0xFF800000> : vector<1xf32>
    %592 = vector.multi_reduction <maximumf>, %591, %cst_219 [1] : vector<1x10xf32> to vector<1xf32>
    %593 = vector.shape_cast %592 : vector<1xf32> to vector<1x1xf32>
    %594 = vector.broadcast %593 : vector<1x1xf32> to vector<1x10xf32>
    %595 = arith.subf %591, %594 : vector<1x10xf32>
    %596 = math.exp %595 : vector<1x10xf32>
    %cst_220 = arith.constant dense<0.000000e+00> : vector<1xf32>
    %597 = vector.multi_reduction <add>, %596, %cst_220 [1] : vector<1x10xf32> to vector<1xf32>
    %598 = vector.shape_cast %597 : vector<1xf32> to vector<1x1xf32>
    %599 = tpu.reciprocal %598 {approx = true} : vector<1x1xf32> -> vector<1x1xf32>
    %600 = vector.broadcast %599 : vector<1x1xf32> to vector<1x10xf32>
    %601 = arith.mulf %596, %600 : vector<1x10xf32>
    %602 = vector.extract_strided_slice %535 {offsets = [0, 96], sizes = [10, 32], strides = [1, 1]} : vector<10x128xf32> to vector<10x32xf32>
    %cst_221 = arith.constant dense<0.000000e+00> : vector<1x32xf32>
    %603 = tpu.matmul %601, %602, %cst_221 {dimension_numbers = #tpu.dot_dimension_numbers<[1], [0], [0], [1], [0, 0, 1, 1], [], []>} : vector<1x10xf32>, vector<10x32xf32>, vector<1x32xf32> -> vector<1x32xf32>
    %604 = tpu.concatenate %552, %569, %586, %603 in 1 : vector<1x32xf32>, vector<1x32xf32>, vector<1x32xf32>, vector<1x32xf32> -> vector<1x128xf32>
    %605 = tpu.concatenate %532, %604 in 0 : vector<1x128xf32>, vector<1x128xf32> -> vector<2x128xf32>
    %606 = arith.truncf %605 : vector<2x128xf32> to vector<2x128xbf16>
    %c15 = arith.constant 15 : index
    %c0_222 = arith.constant 0 : index
    %c0_223 = arith.constant 0 : index
    %607 = vector.load %arg5[%c15, %c0_222, %c0_223] : memref<19x128x128xbf16, #tpu.memory_space<vmem>>, vector<1x128x128xbf16>
    %608 = vector.shape_cast %607 : vector<1x128x128xbf16> to vector<128x128xbf16>
    %cst_224 = arith.constant dense<0.000000e+00> : vector<2x128xf32>
    %609 = tpu.matmul %606, %608, %cst_224 {dimension_numbers = #tpu.dot_dimension_numbers<[1], [0], [0], [1], [0, 0, 1, 1], [], []>} : vector<2x128xbf16>, vector<128x128xbf16>, vector<2x128xf32> -> vector<2x128xf32>
    %c15_225 = arith.constant 15 : index
    %c0_226 = arith.constant 0 : index
    %c0_227 = arith.constant 0 : index
    %610 = vector.load %arg6[%c15_225, %c0_226, %c0_227] : memref<19x1x128xf32, #tpu.memory_space<vmem>>, vector<1x1x128xf32>
    %611 = vector.shape_cast %610 : vector<1x1x128xf32> to vector<1x128xf32>
    %612 = vector.broadcast %611 : vector<1x128xf32> to vector<2x128xf32>
    %613 = arith.addf %609, %612 : vector<2x128xf32>
    %614 = arith.addf %613, %7 : vector<2x128xf32>
    %615 = arith.truncf %614 : vector<2x128xf32> to vector<2x128xbf16>
    %c16 = arith.constant 16 : index
    %c0_228 = arith.constant 0 : index
    %c0_229 = arith.constant 0 : index
    %616 = vector.load %arg5[%c16, %c0_228, %c0_229] : memref<19x128x128xbf16, #tpu.memory_space<vmem>>, vector<1x128x128xbf16>
    %617 = vector.shape_cast %616 : vector<1x128x128xbf16> to vector<128x128xbf16>
    %cst_230 = arith.constant dense<0.000000e+00> : vector<2x128xf32>
    %618 = tpu.matmul %615, %617, %cst_230 {dimension_numbers = #tpu.dot_dimension_numbers<[1], [0], [0], [1], [0, 0, 1, 1], [], []>} : vector<2x128xbf16>, vector<128x128xbf16>, vector<2x128xf32> -> vector<2x128xf32>
    %c16_231 = arith.constant 16 : index
    %c0_232 = arith.constant 0 : index
    %c0_233 = arith.constant 0 : index
    %619 = vector.load %arg6[%c16_231, %c0_232, %c0_233] : memref<19x1x128xf32, #tpu.memory_space<vmem>>, vector<1x1x128xf32>
    %620 = vector.shape_cast %619 : vector<1x1x128xf32> to vector<1x128xf32>
    %621 = vector.broadcast %620 : vector<1x128xf32> to vector<2x128xf32>
    %622 = arith.addf %618, %621 : vector<2x128xf32>
    %cst_234 = arith.constant 0.000000e+00 : f32
    %623 = vector.broadcast %cst_234 : f32 to vector<2x128xf32>
    %624 = arith.maximumf %622, %623 : vector<2x128xf32>
    %625 = arith.addf %614, %624 : vector<2x128xf32>
    %626 = arith.truncf %625 : vector<2x128xf32> to vector<2x128xbf16>
    %c17 = arith.constant 17 : index
    %c0_235 = arith.constant 0 : index
    %c0_236 = arith.constant 0 : index
    %627 = vector.load %arg5[%c17, %c0_235, %c0_236] : memref<19x128x128xbf16, #tpu.memory_space<vmem>>, vector<1x128x128xbf16>
    %628 = vector.shape_cast %627 : vector<1x128x128xbf16> to vector<128x128xbf16>
    %cst_237 = arith.constant dense<0.000000e+00> : vector<2x128xf32>
    %629 = tpu.matmul %626, %628, %cst_237 {dimension_numbers = #tpu.dot_dimension_numbers<[1], [0], [0], [1], [0, 0, 1, 1], [], []>} : vector<2x128xbf16>, vector<128x128xbf16>, vector<2x128xf32> -> vector<2x128xf32>
    %c17_238 = arith.constant 17 : index
    %c0_239 = arith.constant 0 : index
    %c0_240 = arith.constant 0 : index
    %630 = vector.load %arg6[%c17_238, %c0_239, %c0_240] : memref<19x1x128xf32, #tpu.memory_space<vmem>>, vector<1x1x128xf32>
    %631 = vector.shape_cast %630 : vector<1x1x128xf32> to vector<1x128xf32>
    %632 = vector.broadcast %631 : vector<1x128xf32> to vector<2x128xf32>
    %633 = arith.addf %629, %632 : vector<2x128xf32>
    %cst_241 = arith.constant 0.000000e+00 : f32
    %634 = vector.broadcast %cst_241 : f32 to vector<2x128xf32>
    %635 = arith.maximumf %633, %634 : vector<2x128xf32>
    %636 = arith.truncf %635 : vector<2x128xf32> to vector<2x128xbf16>
    %c18 = arith.constant 18 : index
    %c0_242 = arith.constant 0 : index
    %c0_243 = arith.constant 0 : index
    %637 = vector.load %arg5[%c18, %c0_242, %c0_243] : memref<19x128x128xbf16, #tpu.memory_space<vmem>>, vector<1x128x128xbf16>
    %638 = vector.shape_cast %637 : vector<1x128x128xbf16> to vector<128x128xbf16>
    %cst_244 = arith.constant dense<0.000000e+00> : vector<2x128xf32>
    %639 = tpu.matmul %636, %638, %cst_244 {dimension_numbers = #tpu.dot_dimension_numbers<[1], [0], [0], [1], [0, 0, 1, 1], [], []>} : vector<2x128xbf16>, vector<128x128xbf16>, vector<2x128xf32> -> vector<2x128xf32>
    %c18_245 = arith.constant 18 : index
    %c0_246 = arith.constant 0 : index
    %c0_247 = arith.constant 0 : index
    %640 = vector.load %arg6[%c18_245, %c0_246, %c0_247] : memref<19x1x128xf32, #tpu.memory_space<vmem>>, vector<1x1x128xf32>
    %641 = vector.shape_cast %640 : vector<1x1x128xf32> to vector<1x128xf32>
    %642 = vector.broadcast %641 : vector<1x128xf32> to vector<2x128xf32>
    %643 = arith.addf %639, %642 : vector<2x128xf32>
    %c0_248 = arith.constant 0 : index
    %c0_249 = arith.constant 0 : index
    %644 = vector.load %arg7[%c0_248, %c0_249] : memref<2x128xf32, #tpu.memory_space<vmem>>, vector<2x128xf32>
    tpu.vector_store %arg7[%c0_248, %c0_249], %643 {strides = array<i32>} : memref<2x128xf32, #tpu.memory_space<vmem>>, vector<2x128xf32>,
    return
  }
  func.func @transform_0(%arg0: i32) -> (i32, i32) {
    %c0_i32 = arith.constant 0 : i32
    %c0_i32_0 = arith.constant 0 : i32
    return %arg0, %c0_i32 : i32, i32
  }
  func.func @transform_1(%arg0: i32) -> (i32, i32, i32) {
    %c0_i32 = arith.constant 0 : i32
    %c0_i32_0 = arith.constant 0 : i32
    %c0_i32_1 = arith.constant 0 : i32
    return %arg0, %c0_i32, %c0_i32_0 : i32, i32, i32
  }
  func.func @transform_2(%arg0: i32) -> (i32, i32) {
    %c0_i32 = arith.constant 0 : i32
    %c0_i32_0 = arith.constant 0 : i32
    %c0_i32_1 = arith.constant 0 : i32
    return %c0_i32, %c0_i32_0 : i32, i32
  }
  func.func @transform_3(%arg0: i32) -> (i32, i32) {
    %c0_i32 = arith.constant 0 : i32
    %c0_i32_0 = arith.constant 0 : i32
    %c0_i32_1 = arith.constant 0 : i32
    return %c0_i32, %c0_i32_0 : i32, i32
  }
  func.func @transform_4(%arg0: i32) -> (i32, i32, i32) {
    %c0_i32 = arith.constant 0 : i32
    %c0_i32_0 = arith.constant 0 : i32
    %c0_i32_1 = arith.constant 0 : i32
    %c0_i32_2 = arith.constant 0 : i32
    return %c0_i32, %c0_i32_0, %c0_i32_1 : i32, i32, i32
  }
  func.func @transform_5(%arg0: i32) -> (i32, i32, i32) {
    %c0_i32 = arith.constant 0 : i32
    %c0_i32_0 = arith.constant 0 : i32
    %c0_i32_1 = arith.constant 0 : i32
    %c0_i32_2 = arith.constant 0 : i32
    return %c0_i32, %c0_i32_0, %c0_i32_1 : i32, i32, i32
  }
  func.func @transform_6(%arg0: i32) -> (i32, i32) {
    %c0_i32 = arith.constant 0 : i32
    %c0_i32_0 = arith.constant 0 : i32
    return %arg0, %c0_i32 : i32, i32
  }
}

module attributes {stable_mosaic.version = 11 : i64} {
  func.func @_gcn_fused_kernel(%arg0: memref<128x128xbf16, #tpu.memory_space<vmem>>, %arg1: memref<128x3xf32, #tpu.memory_space<vmem>>, %arg2: memref<3x32xf32, #tpu.memory_space<vmem>>, %arg3: memref<1x32xf32, #tpu.memory_space<vmem>>, %arg4: memref<32x32xf32, #tpu.memory_space<vmem>>, %arg5: memref<1x32xf32, #tpu.memory_space<vmem>>, %arg6: memref<32x32xf32, #tpu.memory_space<vmem>>, %arg7: memref<1x32xf32, #tpu.memory_space<vmem>>, %arg8: memref<128x128xf32, #tpu.memory_space<vmem>>) attributes {dimension_semantics = [], scalar_prefetch = 0 : i64, scratch_operands = 0 : i64, tpu.core_type = #tpu.core_type<tc>} {
    %c0 = arith.constant 0 : index
    %c0_0 = arith.constant 0 : index
    %0 = vector.load %arg0[%c0, %c0_0] : memref<128x128xbf16, #tpu.memory_space<vmem>>, vector<128x128xbf16>
    %c0_1 = arith.constant 0 : index
    %c0_2 = arith.constant 0 : index
    %1 = vector.load %arg1[%c0_1, %c0_2] : memref<128x3xf32, #tpu.memory_space<vmem>>, vector<128x3xf32>
    %c0_3 = arith.constant 0 : index
    %c0_4 = arith.constant 0 : index
    %2 = vector.load %arg2[%c0_3, %c0_4] : memref<3x32xf32, #tpu.memory_space<vmem>>, vector<3x32xf32>
    %cst = arith.constant dense<0.000000e+00> : vector<128x32xf32>
    %3 = tpu.matmul %1, %2, %cst {dimension_numbers = #tpu.dot_dimension_numbers<[1], [0], [0], [1], [0, 0, 1, 1], [], []>} : vector<128x3xf32>, vector<3x32xf32>, vector<128x32xf32> -> vector<128x32xf32>
    %4 = arith.truncf %3 : vector<128x32xf32> to vector<128x32xbf16>
    %cst_5 = arith.constant dense<0.000000e+00> : vector<128x32xf32>
    %5 = tpu.matmul %0, %4, %cst_5 {dimension_numbers = #tpu.dot_dimension_numbers<[1], [0], [0], [1], [0, 0, 1, 1], [], []>} : vector<128x128xbf16>, vector<128x32xbf16>, vector<128x32xf32> -> vector<128x32xf32>
    %c0_6 = arith.constant 0 : index
    %c0_7 = arith.constant 0 : index
    %6 = vector.load %arg3[%c0_6, %c0_7] : memref<1x32xf32, #tpu.memory_space<vmem>>, vector<1x32xf32>
    %7 = vector.broadcast %6 : vector<1x32xf32> to vector<128x32xf32>
    %8 = arith.addf %5, %7 : vector<128x32xf32>
    %cst_8 = arith.constant 0.000000e+00 : f32
    %9 = vector.broadcast %cst_8 : f32 to vector<128x32xf32>
    %10 = arith.maximumf %8, %9 : vector<128x32xf32>
    %c0_9 = arith.constant 0 : index
    %c0_10 = arith.constant 0 : index
    %11 = vector.load %arg4[%c0_9, %c0_10] : memref<32x32xf32, #tpu.memory_space<vmem>>, vector<32x32xf32>
    %cst_11 = arith.constant dense<0.000000e+00> : vector<128x32xf32>
    %12 = tpu.matmul %10, %11, %cst_11 {dimension_numbers = #tpu.dot_dimension_numbers<[1], [0], [0], [1], [0, 0, 1, 1], [], []>} : vector<128x32xf32>, vector<32x32xf32>, vector<128x32xf32> -> vector<128x32xf32>
    %13 = arith.truncf %12 : vector<128x32xf32> to vector<128x32xbf16>
    %cst_12 = arith.constant dense<0.000000e+00> : vector<128x32xf32>
    %14 = tpu.matmul %0, %13, %cst_12 {dimension_numbers = #tpu.dot_dimension_numbers<[1], [0], [0], [1], [0, 0, 1, 1], [], []>} : vector<128x128xbf16>, vector<128x32xbf16>, vector<128x32xf32> -> vector<128x32xf32>
    %c0_13 = arith.constant 0 : index
    %c0_14 = arith.constant 0 : index
    %15 = vector.load %arg5[%c0_13, %c0_14] : memref<1x32xf32, #tpu.memory_space<vmem>>, vector<1x32xf32>
    %16 = vector.broadcast %15 : vector<1x32xf32> to vector<128x32xf32>
    %17 = arith.addf %14, %16 : vector<128x32xf32>
    %cst_15 = arith.constant 0.000000e+00 : f32
    %18 = vector.broadcast %cst_15 : f32 to vector<128x32xf32>
    %19 = arith.maximumf %17, %18 : vector<128x32xf32>
    %c0_16 = arith.constant 0 : index
    %c0_17 = arith.constant 0 : index
    %20 = vector.load %arg6[%c0_16, %c0_17] : memref<32x32xf32, #tpu.memory_space<vmem>>, vector<32x32xf32>
    %cst_18 = arith.constant dense<0.000000e+00> : vector<128x32xf32>
    %21 = tpu.matmul %19, %20, %cst_18 {dimension_numbers = #tpu.dot_dimension_numbers<[1], [0], [0], [1], [0, 0, 1, 1], [], []>} : vector<128x32xf32>, vector<32x32xf32>, vector<128x32xf32> -> vector<128x32xf32>
    %22 = arith.truncf %21 : vector<128x32xf32> to vector<128x32xbf16>
    %cst_19 = arith.constant dense<0.000000e+00> : vector<128x32xf32>
    %23 = tpu.matmul %0, %22, %cst_19 {dimension_numbers = #tpu.dot_dimension_numbers<[1], [0], [0], [1], [0, 0, 1, 1], [], []>} : vector<128x128xbf16>, vector<128x32xbf16>, vector<128x32xf32> -> vector<128x32xf32>
    %c0_20 = arith.constant 0 : index
    %c0_21 = arith.constant 0 : index
    %24 = vector.load %arg7[%c0_20, %c0_21] : memref<1x32xf32, #tpu.memory_space<vmem>>, vector<1x32xf32>
    %25 = vector.broadcast %24 : vector<1x32xf32> to vector<128x32xf32>
    %26 = arith.addf %23, %25 : vector<128x32xf32>
    %cst_22 = arith.constant 0.000000e+00 : f32
    %27 = vector.broadcast %cst_22 : f32 to vector<128x32xf32>
    %28 = arith.maximumf %26, %27 : vector<128x32xf32>
    %cst_23 = arith.constant 0.000000e+00 : f32
    %29 = vector.broadcast %cst_23 : f32 to vector<128x32xf32>
    %30 = tpu.concatenate %10, %19, %28, %29 in 1 : vector<128x32xf32>, vector<128x32xf32>, vector<128x32xf32>, vector<128x32xf32> -> vector<128x128xf32>
    %c0_24 = arith.constant 0 : index
    %c0_25 = arith.constant 0 : index
    %31 = vector.load %arg8[%c0_24, %c0_25] : memref<128x128xf32, #tpu.memory_space<vmem>>, vector<128x128xf32>
    tpu.vector_store %arg8[%c0_24, %c0_25], %30 {strides = array<i32>} : memref<128x128xf32, #tpu.memory_space<vmem>>, vector<128x128xf32>,
    return
  }
}

</mosaic_0001>

<llo_original>
// kernel: net_forward.2
$region0: #{net_forward.2}
  #allocation0 [shape = 'u32[]', space=smem, size = 0x4, offset = 0x4, fixed_abs, tag = 'smem constant byte address 0x4 - core index']
  #allocation1 [shape = 'u32[144,128]{1,0:T(1,128)}', space=vmem, size = 0x12000, scoped, tag = 'internal scratch']
  %s0 = inlined_call_operand.vmem [shape: bf16[128,128], index: 0, kind: input, shape index: {}]
  %s1 = inlined_call_operand.vmem [shape: f32[128,3], index: 1, kind: input, shape index: {}]
  %s2 = inlined_call_operand.vmem [shape: f32[3,32], index: 2, kind: input, shape index: {}]
  %s3 = inlined_call_operand.vmem [shape: f32[1,32], index: 3, kind: input, shape index: {}]
  %s4 = inlined_call_operand.vmem [shape: f32[32,32], index: 4, kind: input, shape index: {}]
  %s5 = inlined_call_operand.vmem [shape: f32[1,32], index: 5, kind: input, shape index: {}]
  %s6 = inlined_call_operand.vmem [shape: f32[32,32], index: 6, kind: input, shape index: {}]
  %s7 = inlined_call_operand.vmem [shape: f32[1,32], index: 7, kind: input, shape index: {}]
  %s8 = inlined_call_operand.vmem [shape: f32[128,128], index: 8, kind: output, shape index: {}]
  %s9 = sld [smem:[#allocation0]]
  $region42: #{net_forward.2} parent=0
    _
  %s11 = ssub.s32 1, %s9
  %s12 = scalar_select 0, %s11, %s9
  // Predicated region
  $region2: #{net_forward.2} parent=0 // pred_check
    _
  $region3: #{net_forward.2} parent=0 // pred_check_branch
    %14 = sbr.rel (0) target = $region5
  $region4: #{net_forward.2} parent=0 // pred_region
    _
  $region5: #{net_forward.2} parent=0 // pred_fallthru
    _
  // Predicated region
  $region6: #{net_forward.2} parent=0 // pred_check
    _
  $region7: #{net_forward.2} parent=0 // pred_check_branch
    %16 = sbr.rel (0) target = $region9
  $region8: #{net_forward.2} parent=0 // pred_region
    _
  $region9: #{net_forward.2} parent=0 // pred_fallthru
    _
  // Predicated region
  $region10: #{net_forward.2} parent=0 // pred_check
    _
  $region11: #{net_forward.2} parent=0 // pred_check_branch
    %18 = sbr.rel (0) target = $region13
  $region12: #{net_forward.2} parent=0 // pred_region
    _
  $region13: #{net_forward.2} parent=0 // pred_fallthru
    _
  // Predicated region
  $region14: #{net_forward.2} parent=0 // pred_check
    _
  $region15: #{net_forward.2} parent=0 // pred_check_branch
    %20 = sbr.rel (0) target = $region17
  $region16: #{net_forward.2} parent=0 // pred_region
    _
  $region17: #{net_forward.2} parent=0 // pred_fallthru
    _
  // Predicated region
  $region18: #{net_forward.2} parent=0 // pred_check
    _
  $region19: #{net_forward.2} parent=0 // pred_check_branch
    %22 = sbr.rel (0) target = $region21
  $region20: #{net_forward.2} parent=0 // pred_region
    _
  $region21: #{net_forward.2} parent=0 // pred_fallthru
    _
  // Predicated region
  $region22: #{net_forward.2} parent=0 // pred_check
    _
  $region23: #{net_forward.2} parent=0 // pred_check_branch
    %24 = sbr.rel (0) target = $region25
  $region24: #{net_forward.2} parent=0 // pred_region
    _
  $region25: #{net_forward.2} parent=0 // pred_fallthru
    _
  // Predicated region
  $region26: #{net_forward.2} parent=0 // pred_check
    _
  $region27: #{net_forward.2} parent=0 // pred_check_branch
    %26 = sbr.rel (0) target = $region29
  $region28: #{net_forward.2} parent=0 // pred_region
    _
  $region29: #{net_forward.2} parent=0 // pred_fallthru
    _
  // Predicated region
  $region30: #{net_forward.2} parent=0 // pred_check
    _
  $region31: #{net_forward.2} parent=0 // pred_check_branch
    %28 = sbr.rel (0) target = $region33
  $region32: #{net_forward.2} parent=0 // pred_region
    _
  $region33: #{net_forward.2} parent=0 // pred_fallthru
    _
  %v30 = vld [vmem:[%s0] sm:$0xf]
  %v31 = vld [vmem:[%s0 + $0x4] sm:$0xf]
  %v32 = vld [vmem:[%s0 + $0x8] sm:$0xf]
  %v33 = vld [vmem:[%s0 + $0xc] sm:$0xf]
  %v34 = vld [vmem:[%s0 + $0x10] sm:$0xf]
  %v35 = vld [vmem:[%s0 + $0x14] sm:$0xf]
  %v36 = vld [vmem:[%s0 + $0x18] sm:$0xf]
  %v37 = vld [vmem:[%s0 + $0x1c] sm:$0xf]
  %v38 = vld [vmem:[%s0 + $0x20] sm:$0xf]
  %v39 = vld [vmem:[%s0 + $0x24] sm:$0xf]
  %v40 = vld [vmem:[%s0 + $0x28] sm:$0xf]
  %v41 = vld [vmem:[%s0 + $0x2c] sm:$0xf]
  %v42 = vld [vmem:[%s0 + $0x30] sm:$0xf]
  %v43 = vld [vmem:[%s0 + $0x34] sm:$0xf]
  %v44 = vld [vmem:[%s0 + $0x38] sm:$0xf]
  %v45 = vld [vmem:[%s0 + $0x3c] sm:$0xf]
  %v46 = vld [vmem:[%s1] sm:$0xff]
  %v47 = vld [vmem:[%s1 + $0x8] sm:$0xff]
  %v48 = vld [vmem:[%s1 + $0x10] sm:$0xff]
  %v49 = vld [vmem:[%s1 + $0x18] sm:$0xff]
  %v50 = vld [vmem:[%s1 + $0x20] sm:$0xff]
  %v51 = vld [vmem:[%s1 + $0x28] sm:$0xff]
  %v52 = vld [vmem:[%s1 + $0x30] sm:$0xff]
  %v53 = vld [vmem:[%s1 + $0x38] sm:$0xff]
  %v54 = vld [vmem:[%s1 + $0x40] sm:$0xff]
  %v55 = vld [vmem:[%s1 + $0x48] sm:$0xff]
  %v56 = vld [vmem:[%s1 + $0x50] sm:$0xff]
  %v57 = vld [vmem:[%s1 + $0x58] sm:$0xff]
  %v58 = vld [vmem:[%s1 + $0x60] sm:$0xff]
  %v59 = vld [vmem:[%s1 + $0x68] sm:$0xff]
  %v60 = vld [vmem:[%s1 + $0x70] sm:$0xff]
  %v61 = vld [vmem:[%s1 + $0x78] sm:$0xff]
  %v62 = vld [vmem:[%s2] sm:$0x7]
  %vm63 = vcmask 23552
  %v65 = vsel %vm63, %v46, 0
  %v68 = vsel %vm63, %v47, 0
  %v71 = vsel %vm63, %v48, 0
  %v74 = vsel %vm63, %v49, 0
  %v77 = vsel %vm63, %v50, 0
  %v80 = vsel %vm63, %v51, 0
  %v83 = vsel %vm63, %v52, 0
  %v86 = vsel %vm63, %v53, 0
  %v89 = vsel %vm63, %v54, 0
  %v92 = vsel %vm63, %v55, 0
  %v95 = vsel %vm63, %v56, 0
  %v98 = vsel %vm63, %v57, 0
  %v101 = vsel %vm63, %v58, 0
  %v104 = vsel %vm63, %v59, 0
  %v107 = vsel %vm63, %v60, 0
  %v110 = vsel %vm63, %v61, 0
  %vm112 = vcmask 1042432
  %v114 = vsel %vm112, %v62, 0
  %116 = vmatprep.subr.mxu0 0.0
  %117 = vmatpush1.msra.mxu0 %v114
  %118 = vmatprep.subr.mxu0 0.0
  %119 = vmatpush1.msra.mxu0 0.0
  %120 = vmatprep.subr.mxu0 0.0
  %121 = vmatpush1.msra.mxu0 0.0
  %122 = vmatprep.subr.mxu0 0.0
  %123 = vmatpush1.msra.mxu0 0.0
  %124 = vmatprep.subr.mxu0 0.0
  %125 = vmatpush1.msra.mxu0 0.0
  %126 = vmatprep.subr.mxu0 0.0
  %127 = vmatpush1.msra.mxu0 0.0
  %128 = vmatprep.subr.mxu0 0.0
  %129 = vmatpush1.msra.mxu0 0.0
  %130 = vmatprep.subr.mxu0 0.0
  %131 = vmatpush1.msra.mxu0 0.0
  %132 = vmatprep.subr.mxu0 0.0
  %133 = vmatpush1.msra.mxu0 0.0
  %134 = vmatprep.subr.mxu0 0.0
  %135 = vmatpush1.msra.mxu0 0.0
  %136 = vmatprep.subr.mxu0 0.0
  %137 = vmatpush1.msra.mxu0 0.0
  %138 = vmatprep.subr.mxu0 0.0
  %139 = vmatpush1.msra.mxu0 0.0
  %140 = vmatprep.subr.mxu0 0.0
  %141 = vmatpush1.msra.mxu0 0.0
  %142 = vmatprep.subr.mxu0 0.0
  %143 = vmatpush1.msra.mxu0 0.0
  %144 = vmatprep.subr.mxu0 0.0
  %145 = vmatpush1.msra.mxu0 0.0
  %146 = vmatprep.subr.mxu0 0.0
  %147 = vmatpush1.msra.mxu0 0.0
  %148 = vmatprep.subr.mxu0 0.0
  %149 = vmatpush1.msra.mxu0 0.0
  %150 = vmatprep.subr.mxu0 0.0
  %151 = vmatpush1.msra.mxu0 0.0
  %152 = vmatprep.subr.mxu0 0.0
  %153 = vmatpush1.msra.mxu0 0.0
  %154 = vmatprep.subr.mxu0 0.0
  %155 = vmatpush1.msra.mxu0 0.0
  %156 = vmatprep.subr.mxu0 0.0
  %157 = vmatpush1.msra.mxu0 0.0
  %158 = vmatprep.subr.mxu0 0.0
  %159 = vmatpush1.msra.mxu0 0.0
  %160 = vmatprep.subr.mxu0 0.0
  %161 = vmatpush1.msra.mxu0 0.0
  %162 = vmatprep.subr.mxu0 0.0
  %163 = vmatpush1.msra.mxu0 0.0
  %164 = vmatprep.subr.mxu0 0.0
  %165 = vmatpush1.msra.mxu0 0.0
  %166 = vmatprep.subr.mxu0 0.0
  %167 = vmatpush1.msra.mxu0 0.0
  %168 = vmatprep.subr.mxu0 0.0
  %169 = vmatpush1.msra.mxu0 0.0
  %170 = vmatprep.subr.mxu0 0.0
  %171 = vmatpush1.msra.mxu0 0.0
  %172 = vmatprep.subr.mxu0 0.0
  %173 = vmatpush1.msra.mxu0 0.0
  %174 = vmatprep.subr.mxu0 0.0
  %175 = vmatpush1.msra.mxu0 0.0
  %176 = vmatprep.subr.mxu0 0.0
  %177 = vmatpush1.msra.mxu0 0.0
  %178 = vmatprep.subr.mxu0 0.0
  %179 = vmatpush1.msra.mxu0 0.0
  %180 = vmatprep.mubr.f32.mxu0 0.0
  %181 = vmatmul.mubr.f32.gmra.mrb[0].mxu0 %v65
  %v182 = vpop.f32.mrb[0].mxu0
  %v183 = vadd.f32 0.0, %v182
  %v184 = vpop.f32.mrb[0].mxu0
  %185 = vmatprep.mubr.f32.mxu0 0.0
  %186 = vmatmul.mubr.f32.gmra.mrb[0].mxu0 %v68
  %v187 = vpop.f32.mrb[0].mxu0
  %v188 = vadd.f32 0.0, %v187
  %v189 = vpop.f32.mrb[0].mxu0
  %190 = vmatprep.mubr.f32.mxu0 0.0
  %191 = vmatmul.mubr.f32.gmra.mrb[0].mxu0 %v71
  %v192 = vpop.f32.mrb[0].mxu0
  %v193 = vadd.f32 0.0, %v192
  %v194 = vpop.f32.mrb[0].mxu0
  %195 = vmatprep.mubr.f32.mxu0 0.0
  %196 = vmatmul.mubr.f32.gmra.mrb[0].mxu0 %v74
  %v197 = vpop.f32.mrb[0].mxu0
  %v198 = vadd.f32 0.0, %v197
  %v199 = vpop.f32.mrb[0].mxu0
  %200 = vmatprep.mubr.f32.mxu0 0.0
  %201 = vmatmul.mubr.f32.gmra.mrb[0].mxu0 %v77
  %v202 = vpop.f32.mrb[0].mxu0
  %v203 = vadd.f32 0.0, %v202
  %v204 = vpop.f32.mrb[0].mxu0
  %205 = vmatprep.mubr.f32.mxu0 0.0
  %206 = vmatmul.mubr.f32.gmra.mrb[0].mxu0 %v80
  %v207 = vpop.f32.mrb[0].mxu0
  %v208 = vadd.f32 0.0, %v207
  %v209 = vpop.f32.mrb[0].mxu0
  %210 = vmatprep.mubr.f32.mxu0 0.0
  %211 = vmatmul.mubr.f32.gmra.mrb[0].mxu0 %v83
  %v212 = vpop.f32.mrb[0].mxu0
  %v213 = vadd.f32 0.0, %v212
  %v214 = vpop.f32.mrb[0].mxu0
  %215 = vmatprep.mubr.f32.mxu0 0.0
  %216 = vmatmul.mubr.f32.gmra.mrb[0].mxu0 %v86
  %v217 = vpop.f32.mrb[0].mxu0
  %v218 = vadd.f32 0.0, %v217
  %v219 = vpop.f32.mrb[0].mxu0
  %220 = vmatprep.mubr.f32.mxu0 0.0
  %221 = vmatmul.mubr.f32.gmra.mrb[0].mxu0 %v89
  %v222 = vpop.f32.mrb[0].mxu0
  %v223 = vadd.f32 0.0, %v222
  %v224 = vpop.f32.mrb[0].mxu0
  %225 = vmatprep.mubr.f32.mxu0 0.0
  %226 = vmatmul.mubr.f32.gmra.mrb[0].mxu0 %v92
  %v227 = vpop.f32.mrb[0].mxu0
  %v228 = vadd.f32 0.0, %v227
  %v229 = vpop.f32.mrb[0].mxu0
  %230 = vmatprep.mubr.f32.mxu0 0.0
  %231 = vmatmul.mubr.f32.gmra.mrb[0].mxu0 %v95
  %v232 = vpop.f32.mrb[0].mxu0
  %v233 = vadd.f32 0.0, %v232
  %v234 = vpop.f32.mrb[0].mxu0
  %235 = vmatprep.mubr.f32.mxu0 0.0
  %236 = vmatmul.mubr.f32.gmra.mrb[0].mxu0 %v98
  %v237 = vpop.f32.mrb[0].mxu0
  %v238 = vadd.f32 0.0, %v237
  %v239 = vpop.f32.mrb[0].mxu0
  %240 = vmatprep.mubr.f32.mxu0 0.0
  %241 = vmatmul.mubr.f32.gmra.mrb[0].mxu0 %v101
  %v242 = vpop.f32.mrb[0].mxu0
  %v243 = vadd.f32 0.0, %v242
  %v244 = vpop.f32.mrb[0].mxu0
  %245 = vmatprep.mubr.f32.mxu0 0.0
  %246 = vmatmul.mubr.f32.gmra.mrb[0].mxu0 %v104
  %v247 = vpop.f32.mrb[0].mxu0
  %v248 = vadd.f32 0.0, %v247
  %v249 = vpop.f32.mrb[0].mxu0
  %250 = vmatprep.mubr.f32.mxu0 0.0
  %251 = vmatmul.mubr.f32.gmra.mrb[0].mxu0 %v107
  %v252 = vpop.f32.mrb[0].mxu0
  %v253 = vadd.f32 0.0, %v252
  %v254 = vpop.f32.mrb[0].mxu0
  %255 = vmatprep.mubr.f32.mxu0 0.0
  %256 = vmatmul.mubr.f32.gmra.mrb[0].mxu0 %v110
  %v257 = vpop.f32.mrb[0].mxu0
  %v258 = vadd.f32 0.0, %v257
  %v259 = vpop.f32.mrb[0].mxu0
  %260 = vdwg.mxu0
  %v261 = vpack.c.bf16 %v188, %v183
  %v262 = vpack.c.bf16 %v198, %v193
  %v263 = vpack.c.bf16 %v208, %v203
  %v264 = vpack.c.bf16 %v218, %v213
  %v265 = vpack.c.bf16 %v228, %v223
  %v266 = vpack.c.bf16 %v238, %v233
  %v267 = vpack.c.bf16 %v248, %v243
  %v268 = vpack.c.bf16 %v258, %v253
  %v269 = vld [vmem:[%s3] sm:$0x1]
  %v271 = vlaneseq
  %v272 = vshrl.u32 %v271, 7
  %v273 = vsub.s32 0, %v272
  %v274 = vrot.slane %v269, %v273
  %v292 = vunpack.c.l.b16 %v30
  %v293 = vunpack.c.l.b16 %v31
  %v294 = vunpack.c.l.b16 %v32
  %v295 = vunpack.c.l.b16 %v33
  %v296 = vunpack.c.l.b16 %v34
  %v297 = vunpack.c.l.b16 %v35
  %v298 = vunpack.c.l.b16 %v36
  %v299 = vunpack.c.l.b16 %v37
  %v300 = vunpack.c.l.b16 %v38
  %v301 = vunpack.c.l.b16 %v39
  %v302 = vunpack.c.l.b16 %v40
  %v303 = vunpack.c.l.b16 %v41
  %v304 = vunpack.c.l.b16 %v42
  %v305 = vunpack.c.l.b16 %v43
  %v306 = vunpack.c.l.b16 %v44
  %v307 = vunpack.c.l.b16 %v45
  %v308 = vpack.c.b16 %v293, %v292
  %v309 = vpack.c.b16 %v295, %v294
  %v310 = vpack.c.b16 %v297, %v296
  %v311 = vpack.c.b16 %v299, %v298
  %v312 = vpack.c.b16 %v301, %v300
  %v313 = vpack.c.b16 %v303, %v302
  %v314 = vpack.c.b16 %v305, %v304
  %v315 = vpack.c.b16 %v307, %v306
  %324 = vmatprep.subr.bf16.mxu0 0
  %325 = vmatpush1.bf16.msra.mxu0 %v261
  %326 = vmatprep.subr.bf16.mxu0 0
  %327 = vmatpush1.bf16.msra.mxu0 %v262
  %328 = vmatprep.subr.bf16.mxu0 0
  %329 = vmatpush1.bf16.msra.mxu0 %v263
  %330 = vmatprep.subr.bf16.mxu0 0
  %331 = vmatpush1.bf16.msra.mxu0 %v264
  %332 = vmatprep.subr.bf16.mxu0 0
  %333 = vmatpush1.bf16.msra.mxu0 %v265
  %334 = vmatprep.subr.bf16.mxu0 0
  %335 = vmatpush1.bf16.msra.mxu0 %v266
  %336 = vmatprep.subr.bf16.mxu0 0
  %337 = vmatpush1.bf16.msra.mxu0 %v267
  %338 = vmatprep.subr.bf16.mxu0 0
  %339 = vmatpush1.bf16.msra.mxu0 %v268
  %340 = vmatprep.subr.bf16.mxu0 0
  %341 = vmatpush1.bf16.msra.mxu0 0
  %342 = vmatprep.subr.bf16.mxu0 0
  %343 = vmatpush1.bf16.msra.mxu0 0
  %344 = vmatprep.subr.bf16.mxu0 0
  %345 = vmatpush1.bf16.msra.mxu0 0
  %346 = vmatprep.subr.bf16.mxu0 0
  %347 = vmatpush1.bf16.msra.mxu0 0
  %348 = vmatprep.subr.bf16.mxu0 0
  %349 = vmatpush1.bf16.msra.mxu0 0
  %350 = vmatprep.subr.bf16.mxu0 0
  %351 = vmatpush1.bf16.msra.mxu0 0
  %352 = vmatprep.subr.bf16.mxu0 0
  %353 = vmatpush1.bf16.msra.mxu0 0
  %354 = vmatprep.subr.bf16.mxu0 0
  %355 = vmatpush1.bf16.msra.mxu0 0
  %356 = vmatprep.mubr.bf16.mxu0 0
  %357 = vmatmul.mubr.bf16.gmra.mrb[0].mxu0 %v308
  %v358 = vpop.f32.mrb[0].mxu0
  %v359 = vadd.f32 %v274, %v358
  %v360 = vpop.f32.mrb[0].mxu0
  %v361 = vpop.f32.mrb[0].mxu0
  %v362 = vadd.f32 %v274, %v361
  %v363 = vpop.f32.mrb[0].mxu0
  %364 = vmatprep.mubr.bf16.mxu0 0
  %365 = vmatmul.mubr.bf16.gmra.mrb[0].mxu0 %v309
  %v366 = vpop.f32.mrb[0].mxu0
  %v367 = vadd.f32 %v274, %v366
  %v368 = vpop.f32.mrb[0].mxu0
  %v369 = vpop.f32.mrb[0].mxu0
  %v370 = vadd.f32 %v274, %v369
  %v371 = vpop.f32.mrb[0].mxu0
  %372 = vmatprep.mubr.bf16.mxu0 0
  %373 = vmatmul.mubr.bf16.gmra.mrb[0].mxu0 %v310
  %v374 = vpop.f32.mrb[0].mxu0
  %v375 = vadd.f32 %v274, %v374
  %v376 = vpop.f32.mrb[0].mxu0
  %v377 = vpop.f32.mrb[0].mxu0
  %v378 = vadd.f32 %v274, %v377
  %v379 = vpop.f32.mrb[0].mxu0
  %380 = vmatprep.mubr.bf16.mxu0 0
  %381 = vmatmul.mubr.bf16.gmra.mrb[0].mxu0 %v311
  %v382 = vpop.f32.mrb[0].mxu0
  %v383 = vadd.f32 %v274, %v382
  %v384 = vpop.f32.mrb[0].mxu0
  %v385 = vpop.f32.mrb[0].mxu0
  %v386 = vadd.f32 %v274, %v385
  %v387 = vpop.f32.mrb[0].mxu0
  %388 = vmatprep.mubr.bf16.mxu0 0
  %389 = vmatmul.mubr.bf16.gmra.mrb[0].mxu0 %v312
  %v390 = vpop.f32.mrb[0].mxu0
  %v391 = vadd.f32 %v274, %v390
  %v392 = vpop.f32.mrb[0].mxu0
  %v393 = vpop.f32.mrb[0].mxu0
  %v394 = vadd.f32 %v274, %v393
  %v395 = vpop.f32.mrb[0].mxu0
  %396 = vmatprep.mubr.bf16.mxu0 0
  %397 = vmatmul.mubr.bf16.gmra.mrb[0].mxu0 %v313
  %v398 = vpop.f32.mrb[0].mxu0
  %v399 = vadd.f32 %v274, %v398
  %v400 = vpop.f32.mrb[0].mxu0
  %v401 = vpop.f32.mrb[0].mxu0
  %v402 = vadd.f32 %v274, %v401
  %v403 = vpop.f32.mrb[0].mxu0
  %404 = vmatprep.mubr.bf16.mxu0 0
  %405 = vmatmul.mubr.bf16.gmra.mrb[0].mxu0 %v314
  %v406 = vpop.f32.mrb[0].mxu0
  %v407 = vadd.f32 %v274, %v406
  %v408 = vpop.f32.mrb[0].mxu0
  %v409 = vpop.f32.mrb[0].mxu0
  %v410 = vadd.f32 %v274, %v409
  %v411 = vpop.f32.mrb[0].mxu0
  %412 = vmatprep.mubr.bf16.mxu0 0
  %413 = vmatmul.mubr.bf16.gmra.mrb[0].mxu0 %v315
  %v414 = vpop.f32.mrb[0].mxu0
  %v415 = vadd.f32 %v274, %v414
  %v416 = vpop.f32.mrb[0].mxu0
  %v417 = vpop.f32.mrb[0].mxu0
  %v418 = vadd.f32 %v274, %v417
  %v419 = vpop.f32.mrb[0].mxu0
  %420 = vdwg.mxu0
  %v421 = vmax.f32 %v359, 0.0
  %v422 = vmax.f32 %v362, 0.0
  %v423 = vmax.f32 %v367, 0.0
  %v424 = vmax.f32 %v370, 0.0
  %v425 = vmax.f32 %v375, 0.0
  %v426 = vmax.f32 %v378, 0.0
  %v427 = vmax.f32 %v383, 0.0
  %v428 = vmax.f32 %v386, 0.0
  %v429 = vmax.f32 %v391, 0.0
  %v430 = vmax.f32 %v394, 0.0
  %v431 = vmax.f32 %v399, 0.0
  %v432 = vmax.f32 %v402, 0.0
  %v433 = vmax.f32 %v407, 0.0
  %v434 = vmax.f32 %v410, 0.0
  %v435 = vmax.f32 %v415, 0.0
  %v436 = vmax.f32 %v418, 0.0
  %v437 = vld [vmem:[%s4] sm:$0xff]
  %v438 = vld [vmem:[%s4 + $0x8] sm:$0xff]
  %v439 = vld [vmem:[%s4 + $0x10] sm:$0xff]
  %v440 = vld [vmem:[%s4 + $0x18] sm:$0xff]
  %vm441 = vcmask 261120
  %v443 = vsel %vm441, %v421, 0
  %v446 = vsel %vm441, %v422, 0
  %v449 = vsel %vm441, %v423, 0
  %v452 = vsel %vm441, %v424, 0
  %v455 = vsel %vm441, %v425, 0
  %v458 = vsel %vm441, %v426, 0
  %v461 = vsel %vm441, %v427, 0
  %v464 = vsel %vm441, %v428, 0
  %v467 = vsel %vm441, %v429, 0
  %v470 = vsel %vm441, %v430, 0
  %v473 = vsel %vm441, %v431, 0
  %v476 = vsel %vm441, %v432, 0
  %v479 = vsel %vm441, %v433, 0
  %v482 = vsel %vm441, %v434, 0
  %v485 = vsel %vm441, %v435, 0
  %v488 = vsel %vm441, %v436, 0
  %490 = vmatprep.subr.mxu0 0.0
  %491 = vmatpush1.msra.mxu0 %v437
  %492 = vmatprep.subr.mxu0 0.0
  %493 = vmatpush1.msra.mxu0 %v438
  %494 = vmatprep.subr.mxu0 0.0
  %495 = vmatpush1.msra.mxu0 %v439
  %496 = vmatprep.subr.mxu0 0.0
  %497 = vmatpush1.msra.mxu0 %v440
  %498 = vmatprep.subr.mxu0 0.0
  %499 = vmatpush1.msra.mxu0 0.0
  %500 = vmatprep.subr.mxu0 0.0
  %501 = vmatpush1.msra.mxu0 0.0
  %502 = vmatprep.subr.mxu0 0.0
  %503 = vmatpush1.msra.mxu0 0.0
  %504 = vmatprep.subr.mxu0 0.0
  %505 = vmatpush1.msra.mxu0 0.0
  %506 = vmatprep.subr.mxu0 0.0
  %507 = vmatpush1.msra.mxu0 0.0
  %508 = vmatprep.subr.mxu0 0.0
  %509 = vmatpush1.msra.mxu0 0.0
  %510 = vmatprep.subr.mxu0 0.0
  %511 = vmatpush1.msra.mxu0 0.0
  %512 = vmatprep.subr.mxu0 0.0
  %513 = vmatpush1.msra.mxu0 0.0
  %514 = vmatprep.subr.mxu0 0.0
  %515 = vmatpush1.msra.mxu0 0.0
  %516 = vmatprep.subr.mxu0 0.0
  %517 = vmatpush1.msra.mxu0 0.0
  %518 = vmatprep.subr.mxu0 0.0
  %519 = vmatpush1.msra.mxu0 0.0
  %520 = vmatprep.subr.mxu0 0.0
  %521 = vmatpush1.msra.mxu0 0.0
  %522 = vmatprep.subr.mxu0 0.0
  %523 = vmatpush1.msra.mxu0 0.0
  %524 = vmatprep.subr.mxu0 0.0
  %525 = vmatpush1.msra.mxu0 0.0
  %526 = vmatprep.subr.mxu0 0.0
  %527 = vmatpush1.msra.mxu0 0.0
  %528 = vmatprep.subr.mxu0 0.0
  %529 = vmatpush1.msra.mxu0 0.0
  %530 = vmatprep.subr.mxu0 0.0
  %531 = vmatpush1.msra.mxu0 0.0
  %532 = vmatprep.subr.mxu0 0.0
  %533 = vmatpush1.msra.mxu0 0.0
  %534 = vmatprep.subr.mxu0 0.0
  %535 = vmatpush1.msra.mxu0 0.0
  %536 = vmatprep.subr.mxu0 0.0
  %537 = vmatpush1.msra.mxu0 0.0
  %538 = vmatprep.subr.mxu0 0.0
  %539 = vmatpush1.msra.mxu0 0.0
  %540 = vmatprep.subr.mxu0 0.0
  %541 = vmatpush1.msra.mxu0 0.0
  %542 = vmatprep.subr.mxu0 0.0
  %543 = vmatpush1.msra.mxu0 0.0
  %544 = vmatprep.subr.mxu0 0.0
  %545 = vmatpush1.msra.mxu0 0.0
  %546 = vmatprep.subr.mxu0 0.0
  %547 = vmatpush1.msra.mxu0 0.0
  %548 = vmatprep.subr.mxu0 0.0
  %549 = vmatpush1.msra.mxu0 0.0
  %550 = vmatprep.subr.mxu0 0.0
  %551 = vmatpush1.msra.mxu0 0.0
  %552 = vmatprep.subr.mxu0 0.0
  %553 = vmatpush1.msra.mxu0 0.0
  %554 = vmatprep.mubr.f32.mxu0 0.0
  %555 = vmatmul.mubr.f32.gmra.mrb[0].mxu0 %v443
  %v556 = vpop.f32.mrb[0].mxu0
  %v557 = vadd.f32 0.0, %v556
  %v558 = vpop.f32.mrb[0].mxu0
  %559 = vmatprep.mubr.f32.mxu0 0.0
  %560 = vmatmul.mubr.f32.gmra.mrb[0].mxu0 %v446
  %v561 = vpop.f32.mrb[0].mxu0
  %v562 = vadd.f32 0.0, %v561
  %v563 = vpop.f32.mrb[0].mxu0
  %564 = vmatprep.mubr.f32.mxu0 0.0
  %565 = vmatmul.mubr.f32.gmra.mrb[0].mxu0 %v449
  %v566 = vpop.f32.mrb[0].mxu0
  %v567 = vadd.f32 0.0, %v566
  %v568 = vpop.f32.mrb[0].mxu0
  %569 = vmatprep.mubr.f32.mxu0 0.0
  %570 = vmatmul.mubr.f32.gmra.mrb[0].mxu0 %v452
  %v571 = vpop.f32.mrb[0].mxu0
  %v572 = vadd.f32 0.0, %v571
  %v573 = vpop.f32.mrb[0].mxu0
  %574 = vmatprep.mubr.f32.mxu0 0.0
  %575 = vmatmul.mubr.f32.gmra.mrb[0].mxu0 %v455
  %v576 = vpop.f32.mrb[0].mxu0
  %v577 = vadd.f32 0.0, %v576
  %v578 = vpop.f32.mrb[0].mxu0
  %579 = vmatprep.mubr.f32.mxu0 0.0
  %580 = vmatmul.mubr.f32.gmra.mrb[0].mxu0 %v458
  %v581 = vpop.f32.mrb[0].mxu0
  %v582 = vadd.f32 0.0, %v581
  %v583 = vpop.f32.mrb[0].mxu0
  %584 = vmatprep.mubr.f32.mxu0 0.0
  %585 = vmatmul.mubr.f32.gmra.mrb[0].mxu0 %v461
  %v586 = vpop.f32.mrb[0].mxu0
  %v587 = vadd.f32 0.0, %v586
  %v588 = vpop.f32.mrb[0].mxu0
  %589 = vmatprep.mubr.f32.mxu0 0.0
  %590 = vmatmul.mubr.f32.gmra.mrb[0].mxu0 %v464
  %v591 = vpop.f32.mrb[0].mxu0
  %v592 = vadd.f32 0.0, %v591
  %v593 = vpop.f32.mrb[0].mxu0
  %594 = vmatprep.mubr.f32.mxu0 0.0
  %595 = vmatmul.mubr.f32.gmra.mrb[0].mxu0 %v467
  %v596 = vpop.f32.mrb[0].mxu0
  %v597 = vadd.f32 0.0, %v596
  %v598 = vpop.f32.mrb[0].mxu0
  %599 = vmatprep.mubr.f32.mxu0 0.0
  %600 = vmatmul.mubr.f32.gmra.mrb[0].mxu0 %v470
  %v601 = vpop.f32.mrb[0].mxu0
  %v602 = vadd.f32 0.0, %v601
  %v603 = vpop.f32.mrb[0].mxu0
  %604 = vmatprep.mubr.f32.mxu0 0.0
  %605 = vmatmul.mubr.f32.gmra.mrb[0].mxu0 %v473
  %v606 = vpop.f32.mrb[0].mxu0
  %v607 = vadd.f32 0.0, %v606
  %v608 = vpop.f32.mrb[0].mxu0
  %609 = vmatprep.mubr.f32.mxu0 0.0
  %610 = vmatmul.mubr.f32.gmra.mrb[0].mxu0 %v476
  %v611 = vpop.f32.mrb[0].mxu0
  %v612 = vadd.f32 0.0, %v611
  %v613 = vpop.f32.mrb[0].mxu0
  %614 = vmatprep.mubr.f32.mxu0 0.0
  %615 = vmatmul.mubr.f32.gmra.mrb[0].mxu0 %v479
  %v616 = vpop.f32.mrb[0].mxu0
  %v617 = vadd.f32 0.0, %v616
  %v618 = vpop.f32.mrb[0].mxu0
  %619 = vmatprep.mubr.f32.mxu0 0.0
  %620 = vmatmul.mubr.f32.gmra.mrb[0].mxu0 %v482
  %v621 = vpop.f32.mrb[0].mxu0
  %v622 = vadd.f32 0.0, %v621
  %v623 = vpop.f32.mrb[0].mxu0
  %624 = vmatprep.mubr.f32.mxu0 0.0
  %625 = vmatmul.mubr.f32.gmra.mrb[0].mxu0 %v485
  %v626 = vpop.f32.mrb[0].mxu0
  %v627 = vadd.f32 0.0, %v626
  %v628 = vpop.f32.mrb[0].mxu0
  %629 = vmatprep.mubr.f32.mxu0 0.0
  %630 = vmatmul.mubr.f32.gmra.mrb[0].mxu0 %v488
  %v631 = vpop.f32.mrb[0].mxu0
  %v632 = vadd.f32 0.0, %v631
  %v633 = vpop.f32.mrb[0].mxu0
  %634 = vdwg.mxu0
  %v635 = vpack.c.bf16 %v562, %v557
  %v636 = vpack.c.bf16 %v572, %v567
  %v637 = vpack.c.bf16 %v582, %v577
  %v638 = vpack.c.bf16 %v592, %v587
  %v639 = vpack.c.bf16 %v602, %v597
  %v640 = vpack.c.bf16 %v612, %v607
  %v641 = vpack.c.bf16 %v622, %v617
  %v642 = vpack.c.bf16 %v632, %v627
  %v643 = vld [vmem:[%s5] sm:$0x1]
  %v645 = vlaneseq
  %v646 = vshrl.u32 %v645, 7
  %v647 = vsub.s32 0, %v646
  %v648 = vrot.slane %v643, %v647
  %650 = vmatprep.subr.bf16.mxu0 0
  %651 = vmatpush1.bf16.msra.mxu0 %v635
  %652 = vmatprep.subr.bf16.mxu0 0
  %653 = vmatpush1.bf16.msra.mxu0 %v636
  %654 = vmatprep.subr.bf16.mxu0 0
  %655 = vmatpush1.bf16.msra.mxu0 %v637
  %656 = vmatprep.subr.bf16.mxu0 0
  %657 = vmatpush1.bf16.msra.mxu0 %v638
  %658 = vmatprep.subr.bf16.mxu0 0
  %659 = vmatpush1.bf16.msra.mxu0 %v639
  %660 = vmatprep.subr.bf16.mxu0 0
  %661 = vmatpush1.bf16.msra.mxu0 %v640
  %662 = vmatprep.subr.bf16.mxu0 0
  %663 = vmatpush1.bf16.msra.mxu0 %v641
  %664 = vmatprep.subr.bf16.mxu0 0
  %665 = vmatpush1.bf16.msra.mxu0 %v642
  %666 = vmatprep.subr.bf16.mxu0 0
  %667 = vmatpush1.bf16.msra.mxu0 0
  %668 = vmatprep.subr.bf16.mxu0 0
  %669 = vmatpush1.bf16.msra.mxu0 0
  %670 = vmatprep.subr.bf16.mxu0 0
  %671 = vmatpush1.bf16.msra.mxu0 0
  %672 = vmatprep.subr.bf16.mxu0 0
  %673 = vmatpush1.bf16.msra.mxu0 0
  %674 = vmatprep.subr.bf16.mxu0 0
  %675 = vmatpush1.bf16.msra.mxu0 0
  %676 = vmatprep.subr.bf16.mxu0 0
  %677 = vmatpush1.bf16.msra.mxu0 0
  %678 = vmatprep.subr.bf16.mxu0 0
  %679 = vmatpush1.bf16.msra.mxu0 0
  %680 = vmatprep.subr.bf16.mxu0 0
  %681 = vmatpush1.bf16.msra.mxu0 0
  %682 = vmatprep.mubr.bf16.mxu0 0
  %683 = vmatmul.mubr.bf16.gmra.mrb[0].mxu0 %v308
  %v684 = vpop.f32.mrb[0].mxu0
  %v685 = vadd.f32 %v648, %v684
  %v686 = vpop.f32.mrb[0].mxu0
  %v687 = vpop.f32.mrb[0].mxu0
  %v688 = vadd.f32 %v648, %v687
  %v689 = vpop.f32.mrb[0].mxu0
  %690 = vmatprep.mubr.bf16.mxu0 0
  %691 = vmatmul.mubr.bf16.gmra.mrb[0].mxu0 %v309
  %v692 = vpop.f32.mrb[0].mxu0
  %v693 = vadd.f32 %v648, %v692
  %v694 = vpop.f32.mrb[0].mxu0
  %v695 = vpop.f32.mrb[0].mxu0
  %v696 = vadd.f32 %v648, %v695
  %v697 = vpop.f32.mrb[0].mxu0
  %698 = vmatprep.mubr.bf16.mxu0 0
  %699 = vmatmul.mubr.bf16.gmra.mrb[0].mxu0 %v310
  %v700 = vpop.f32.mrb[0].mxu0
  %v701 = vadd.f32 %v648, %v700
  %v702 = vpop.f32.mrb[0].mxu0
  %v703 = vpop.f32.mrb[0].mxu0
  %v704 = vadd.f32 %v648, %v703
  %v705 = vpop.f32.mrb[0].mxu0
  %706 = vmatprep.mubr.bf16.mxu0 0
  %707 = vmatmul.mubr.bf16.gmra.mrb[0].mxu0 %v311
  %v708 = vpop.f32.mrb[0].mxu0
  %v709 = vadd.f32 %v648, %v708
  %v710 = vpop.f32.mrb[0].mxu0
  %v711 = vpop.f32.mrb[0].mxu0
  %v712 = vadd.f32 %v648, %v711
  %v713 = vpop.f32.mrb[0].mxu0
  %714 = vmatprep.mubr.bf16.mxu0 0
  %715 = vmatmul.mubr.bf16.gmra.mrb[0].mxu0 %v312
  %v716 = vpop.f32.mrb[0].mxu0
  %v717 = vadd.f32 %v648, %v716
  %v718 = vpop.f32.mrb[0].mxu0
  %v719 = vpop.f32.mrb[0].mxu0
  %v720 = vadd.f32 %v648, %v719
  %v721 = vpop.f32.mrb[0].mxu0
  %722 = vmatprep.mubr.bf16.mxu0 0
  %723 = vmatmul.mubr.bf16.gmra.mrb[0].mxu0 %v313
  %v724 = vpop.f32.mrb[0].mxu0
  %v725 = vadd.f32 %v648, %v724
  %v726 = vpop.f32.mrb[0].mxu0
  %v727 = vpop.f32.mrb[0].mxu0
  %v728 = vadd.f32 %v648, %v727
  %v729 = vpop.f32.mrb[0].mxu0
  %730 = vmatprep.mubr.bf16.mxu0 0
  %731 = vmatmul.mubr.bf16.gmra.mrb[0].mxu0 %v314
  %v732 = vpop.f32.mrb[0].mxu0
  %v733 = vadd.f32 %v648, %v732
  %v734 = vpop.f32.mrb[0].mxu0
  %v735 = vpop.f32.mrb[0].mxu0
  %v736 = vadd.f32 %v648, %v735
  %v737 = vpop.f32.mrb[0].mxu0
  %738 = vmatprep.mubr.bf16.mxu0 0
  %739 = vmatmul.mubr.bf16.gmra.mrb[0].mxu0 %v315
  %v740 = vpop.f32.mrb[0].mxu0
  %v741 = vadd.f32 %v648, %v740
  %v742 = vpop.f32.mrb[0].mxu0
  %v743 = vpop.f32.mrb[0].mxu0
  %v744 = vadd.f32 %v648, %v743
  %v745 = vpop.f32.mrb[0].mxu0
  %746 = vdwg.mxu0
  %v747 = vmax.f32 %v685, 0.0
  %v748 = vmax.f32 %v688, 0.0
  %v749 = vmax.f32 %v693, 0.0
  %v750 = vmax.f32 %v696, 0.0
  %v751 = vmax.f32 %v701, 0.0
  %v752 = vmax.f32 %v704, 0.0
  %v753 = vmax.f32 %v709, 0.0
  %v754 = vmax.f32 %v712, 0.0
  %v755 = vmax.f32 %v717, 0.0
  %v756 = vmax.f32 %v720, 0.0
  %v757 = vmax.f32 %v725, 0.0
  %v758 = vmax.f32 %v728, 0.0
  %v759 = vmax.f32 %v733, 0.0
  %v760 = vmax.f32 %v736, 0.0
  %v761 = vmax.f32 %v741, 0.0
  %v762 = vmax.f32 %v744, 0.0
  %v763 = vld [vmem:[%s6] sm:$0xff]
  %v764 = vld [vmem:[%s6 + $0x8] sm:$0xff]
  %v765 = vld [vmem:[%s6 + $0x10] sm:$0xff]
  %v766 = vld [vmem:[%s6 + $0x18] sm:$0xff]
  %v768 = vsel %vm441, %v747, 0
  %v771 = vsel %vm441, %v748, 0
  %v774 = vsel %vm441, %v749, 0
  %v777 = vsel %vm441, %v750, 0
  %v780 = vsel %vm441, %v751, 0
  %v783 = vsel %vm441, %v752, 0
  %v786 = vsel %vm441, %v753, 0
  %v789 = vsel %vm441, %v754, 0
  %v792 = vsel %vm441, %v755, 0
  %v795 = vsel %vm441, %v756, 0
  %v798 = vsel %vm441, %v757, 0
  %v801 = vsel %vm441, %v758, 0
  %v804 = vsel %vm441, %v759, 0
  %v807 = vsel %vm441, %v760, 0
  %v810 = vsel %vm441, %v761, 0
  %v813 = vsel %vm441, %v762, 0
  %815 = vmatprep.subr.mxu0 0.0
  %816 = vmatpush1.msra.mxu0 %v763
  %817 = vmatprep.subr.mxu0 0.0
  %818 = vmatpush1.msra.mxu0 %v764
  %819 = vmatprep.subr.mxu0 0.0
  %820 = vmatpush1.msra.mxu0 %v765
  %821 = vmatprep.subr.mxu0 0.0
  %822 = vmatpush1.msra.mxu0 %v766
  %823 = vmatprep.subr.mxu0 0.0
  %824 = vmatpush1.msra.mxu0 0.0
  %825 = vmatprep.subr.mxu0 0.0
  %826 = vmatpush1.msra.mxu0 0.0
  %827 = vmatprep.subr.mxu0 0.0
  %828 = vmatpush1.msra.mxu0 0.0
  %829 = vmatprep.subr.mxu0 0.0
  %830 = vmatpush1.msra.mxu0 0.0
  %831 = vmatprep.subr.mxu0 0.0
  %832 = vmatpush1.msra.mxu0 0.0
  %833 = vmatprep.subr.mxu0 0.0
  %834 = vmatpush1.msra.mxu0 0.0
  %835 = vmatprep.subr.mxu0 0.0
  %836 = vmatpush1.msra.mxu0 0.0
  %837 = vmatprep.subr.mxu0 0.0
  %838 = vmatpush1.msra.mxu0 0.0
  %839 = vmatprep.subr.mxu0 0.0
  %840 = vmatpush1.msra.mxu0 0.0
  %841 = vmatprep.subr.mxu0 0.0
  %842 = vmatpush1.msra.mxu0 0.0
  %843 = vmatprep.subr.mxu0 0.0
  %844 = vmatpush1.msra.mxu0 0.0
  %845 = vmatprep.subr.mxu0 0.0
  %846 = vmatpush1.msra.mxu0 0.0
  %847 = vmatprep.subr.mxu0 0.0
  %848 = vmatpush1.msra.mxu0 0.0
  %849 = vmatprep.subr.mxu0 0.0
  %850 = vmatpush1.msra.mxu0 0.0
  %851 = vmatprep.subr.mxu0 0.0
  %852 = vmatpush1.msra.mxu0 0.0
  %853 = vmatprep.subr.mxu0 0.0
  %854 = vmatpush1.msra.mxu0 0.0
  %855 = vmatprep.subr.mxu0 0.0
  %856 = vmatpush1.msra.mxu0 0.0
  %857 = vmatprep.subr.mxu0 0.0
  %858 = vmatpush1.msra.mxu0 0.0
  %859 = vmatprep.subr.mxu0 0.0
  %860 = vmatpush1.msra.mxu0 0.0
  %861 = vmatprep.subr.mxu0 0.0
  %862 = vmatpush1.msra.mxu0 0.0
  %863 = vmatprep.subr.mxu0 0.0
  %864 = vmatpush1.msra.mxu0 0.0
  %865 = vmatprep.subr.mxu0 0.0
  %866 = vmatpush1.msra.mxu0 0.0
  %867 = vmatprep.subr.mxu0 0.0
  %868 = vmatpush1.msra.mxu0 0.0
  %869 = vmatprep.subr.mxu0 0.0
  %870 = vmatpush1.msra.mxu0 0.0
  %871 = vmatprep.subr.mxu0 0.0
  %872 = vmatpush1.msra.mxu0 0.0
  %873 = vmatprep.subr.mxu0 0.0
  %874 = vmatpush1.msra.mxu0 0.0
  %875 = vmatprep.subr.mxu0 0.0
  %876 = vmatpush1.msra.mxu0 0.0
  %877 = vmatprep.subr.mxu0 0.0
  %878 = vmatpush1.msra.mxu0 0.0
  %879 = vmatprep.mubr.f32.mxu0 0.0
  %880 = vmatmul.mubr.f32.gmra.mrb[0].mxu0 %v768
  %v881 = vpop.f32.mrb[0].mxu0
  %v882 = vadd.f32 0.0, %v881
  %v883 = vpop.f32.mrb[0].mxu0
  %884 = vmatprep.mubr.f32.mxu0 0.0
  %885 = vmatmul.mubr.f32.gmra.mrb[0].mxu0 %v771
  %v886 = vpop.f32.mrb[0].mxu0
  %v887 = vadd.f32 0.0, %v886
  %v888 = vpop.f32.mrb[0].mxu0
  %889 = vmatprep.mubr.f32.mxu0 0.0
  %890 = vmatmul.mubr.f32.gmra.mrb[0].mxu0 %v774
  %v891 = vpop.f32.mrb[0].mxu0
  %v892 = vadd.f32 0.0, %v891
  %v893 = vpop.f32.mrb[0].mxu0
  %894 = vmatprep.mubr.f32.mxu0 0.0
  %895 = vmatmul.mubr.f32.gmra.mrb[0].mxu0 %v777
  %v896 = vpop.f32.mrb[0].mxu0
  %v897 = vadd.f32 0.0, %v896
  %v898 = vpop.f32.mrb[0].mxu0
  %899 = vmatprep.mubr.f32.mxu0 0.0
  %900 = vmatmul.mubr.f32.gmra.mrb[0].mxu0 %v780
  %v901 = vpop.f32.mrb[0].mxu0
  %v902 = vadd.f32 0.0, %v901
  %v903 = vpop.f32.mrb[0].mxu0
  %904 = vmatprep.mubr.f32.mxu0 0.0
  %905 = vmatmul.mubr.f32.gmra.mrb[0].mxu0 %v783
  %v906 = vpop.f32.mrb[0].mxu0
  %v907 = vadd.f32 0.0, %v906
  %v908 = vpop.f32.mrb[0].mxu0
  %909 = vmatprep.mubr.f32.mxu0 0.0
  %910 = vmatmul.mubr.f32.gmra.mrb[0].mxu0 %v786
  %v911 = vpop.f32.mrb[0].mxu0
  %v912 = vadd.f32 0.0, %v911
  %v913 = vpop.f32.mrb[0].mxu0
  %914 = vmatprep.mubr.f32.mxu0 0.0
  %915 = vmatmul.mubr.f32.gmra.mrb[0].mxu0 %v789
  %v916 = vpop.f32.mrb[0].mxu0
  %v917 = vadd.f32 0.0, %v916
  %v918 = vpop.f32.mrb[0].mxu0
  %919 = vmatprep.mubr.f32.mxu0 0.0
  %920 = vmatmul.mubr.f32.gmra.mrb[0].mxu0 %v792
  %v921 = vpop.f32.mrb[0].mxu0
  %v922 = vadd.f32 0.0, %v921
  %v923 = vpop.f32.mrb[0].mxu0
  %924 = vmatprep.mubr.f32.mxu0 0.0
  %925 = vmatmul.mubr.f32.gmra.mrb[0].mxu0 %v795
  %v926 = vpop.f32.mrb[0].mxu0
  %v927 = vadd.f32 0.0, %v926
  %v928 = vpop.f32.mrb[0].mxu0
  %929 = vmatprep.mubr.f32.mxu0 0.0
  %930 = vmatmul.mubr.f32.gmra.mrb[0].mxu0 %v798
  %v931 = vpop.f32.mrb[0].mxu0
  %v932 = vadd.f32 0.0, %v931
  %v933 = vpop.f32.mrb[0].mxu0
  %934 = vmatprep.mubr.f32.mxu0 0.0
  %935 = vmatmul.mubr.f32.gmra.mrb[0].mxu0 %v801
  %v936 = vpop.f32.mrb[0].mxu0
  %v937 = vadd.f32 0.0, %v936
  %v938 = vpop.f32.mrb[0].mxu0
  %939 = vmatprep.mubr.f32.mxu0 0.0
  %940 = vmatmul.mubr.f32.gmra.mrb[0].mxu0 %v804
  %v941 = vpop.f32.mrb[0].mxu0
  %v942 = vadd.f32 0.0, %v941
  %v943 = vpop.f32.mrb[0].mxu0
  %944 = vmatprep.mubr.f32.mxu0 0.0
  %945 = vmatmul.mubr.f32.gmra.mrb[0].mxu0 %v807
  %v946 = vpop.f32.mrb[0].mxu0
  %v947 = vadd.f32 0.0, %v946
  %v948 = vpop.f32.mrb[0].mxu0
  %949 = vmatprep.mubr.f32.mxu0 0.0
  %950 = vmatmul.mubr.f32.gmra.mrb[0].mxu0 %v810
  %v951 = vpop.f32.mrb[0].mxu0
  %v952 = vadd.f32 0.0, %v951
  %v953 = vpop.f32.mrb[0].mxu0
  %954 = vmatprep.mubr.f32.mxu0 0.0
  %955 = vmatmul.mubr.f32.gmra.mrb[0].mxu0 %v813
  %v956 = vpop.f32.mrb[0].mxu0
  %v957 = vadd.f32 0.0, %v956
  %v958 = vpop.f32.mrb[0].mxu0
  %959 = vdwg.mxu0
  %v960 = vpack.c.bf16 %v887, %v882
  %v961 = vpack.c.bf16 %v897, %v892
  %v962 = vpack.c.bf16 %v907, %v902
  %v963 = vpack.c.bf16 %v917, %v912
  %v964 = vpack.c.bf16 %v927, %v922
  %v965 = vpack.c.bf16 %v937, %v932
  %v966 = vpack.c.bf16 %v947, %v942
  %v967 = vpack.c.bf16 %v957, %v952
  %v968 = vld [vmem:[%s7] sm:$0x1]
  %v970 = vlaneseq
  %v971 = vshrl.u32 %v970, 7
  %v972 = vsub.s32 0, %v971
  %v973 = vrot.slane %v968, %v972
  %975 = vmatprep.subr.bf16.mxu0 0
  %976 = vmatpush1.bf16.msra.mxu0 %v960
  %977 = vmatprep.subr.bf16.mxu0 0
  %978 = vmatpush1.bf16.msra.mxu0 %v961
  %979 = vmatprep.subr.bf16.mxu0 0
  %980 = vmatpush1.bf16.msra.mxu0 %v962
  %981 = vmatprep.subr.bf16.mxu0 0
  %982 = vmatpush1.bf16.msra.mxu0 %v963
  %983 = vmatprep.subr.bf16.mxu0 0
  %984 = vmatpush1.bf16.msra.mxu0 %v964
  %985 = vmatprep.subr.bf16.mxu0 0
  %986 = vmatpush1.bf16.msra.mxu0 %v965
  %987 = vmatprep.subr.bf16.mxu0 0
  %988 = vmatpush1.bf16.msra.mxu0 %v966
  %989 = vmatprep.subr.bf16.mxu0 0
  %990 = vmatpush1.bf16.msra.mxu0 %v967
  %991 = vmatprep.subr.bf16.mxu0 0
  %992 = vmatpush1.bf16.msra.mxu0 0
  %993 = vmatprep.subr.bf16.mxu0 0
  %994 = vmatpush1.bf16.msra.mxu0 0
  %995 = vmatprep.subr.bf16.mxu0 0
  %996 = vmatpush1.bf16.msra.mxu0 0
  %997 = vmatprep.subr.bf16.mxu0 0
  %998 = vmatpush1.bf16.msra.mxu0 0
  %999 = vmatprep.subr.bf16.mxu0 0
  %1000 = vmatpush1.bf16.msra.mxu0 0
  %1001 = vmatprep.subr.bf16.mxu0 0
  %1002 = vmatpush1.bf16.msra.mxu0 0
  %1003 = vmatprep.subr.bf16.mxu0 0
  %1004 = vmatpush1.bf16.msra.mxu0 0
  %1005 = vmatprep.subr.bf16.mxu0 0
  %1006 = vmatpush1.bf16.msra.mxu0 0
  %1007 = vmatprep.mubr.bf16.mxu0 0
  %1008 = vmatmul.mubr.bf16.gmra.mrb[0].mxu0 %v308
  %v1009 = vpop.f32.mrb[0].mxu0
  %v1010 = vadd.f32 %v973, %v1009
  %v1011 = vpop.f32.mrb[0].mxu0
  %v1012 = vpop.f32.mrb[0].mxu0
  %v1013 = vadd.f32 %v973, %v1012
  %v1014 = vpop.f32.mrb[0].mxu0
  %1015 = vmatprep.mubr.bf16.mxu0 0
  %1016 = vmatmul.mubr.bf16.gmra.mrb[0].mxu0 %v309
  %v1017 = vpop.f32.mrb[0].mxu0
  %v1018 = vadd.f32 %v973, %v1017
  %v1019 = vpop.f32.mrb[0].mxu0
  %v1020 = vpop.f32.mrb[0].mxu0
  %v1021 = vadd.f32 %v973, %v1020
  %v1022 = vpop.f32.mrb[0].mxu0
  %1023 = vmatprep.mubr.bf16.mxu0 0
  %1024 = vmatmul.mubr.bf16.gmra.mrb[0].mxu0 %v310
  %v1025 = vpop.f32.mrb[0].mxu0
  %v1026 = vadd.f32 %v973, %v1025
  %v1027 = vpop.f32.mrb[0].mxu0
  %v1028 = vpop.f32.mrb[0].mxu0
  %v1029 = vadd.f32 %v973, %v1028
  %v1030 = vpop.f32.mrb[0].mxu0
  %1031 = vmatprep.mubr.bf16.mxu0 0
  %1032 = vmatmul.mubr.bf16.gmra.mrb[0].mxu0 %v311
  %v1033 = vpop.f32.mrb[0].mxu0
  %v1034 = vadd.f32 %v973, %v1033
  %v1035 = vpop.f32.mrb[0].mxu0
  %v1036 = vpop.f32.mrb[0].mxu0
  %v1037 = vadd.f32 %v973, %v1036
  %v1038 = vpop.f32.mrb[0].mxu0
  %1039 = vmatprep.mubr.bf16.mxu0 0
  %1040 = vmatmul.mubr.bf16.gmra.mrb[0].mxu0 %v312
  %v1041 = vpop.f32.mrb[0].mxu0
  %v1042 = vadd.f32 %v973, %v1041
  %v1043 = vpop.f32.mrb[0].mxu0
  %v1044 = vpop.f32.mrb[0].mxu0
  %v1045 = vadd.f32 %v973, %v1044
  %v1046 = vpop.f32.mrb[0].mxu0
  %1047 = vmatprep.mubr.bf16.mxu0 0
  %1048 = vmatmul.mubr.bf16.gmra.mrb[0].mxu0 %v313
  %v1049 = vpop.f32.mrb[0].mxu0
  %v1050 = vadd.f32 %v973, %v1049
  %v1051 = vpop.f32.mrb[0].mxu0
  %v1052 = vpop.f32.mrb[0].mxu0
  %v1053 = vadd.f32 %v973, %v1052
  %v1054 = vpop.f32.mrb[0].mxu0
  %1055 = vmatprep.mubr.bf16.mxu0 0
  %1056 = vmatmul.mubr.bf16.gmra.mrb[0].mxu0 %v314
  %v1057 = vpop.f32.mrb[0].mxu0
  %v1058 = vadd.f32 %v973, %v1057
  %v1059 = vpop.f32.mrb[0].mxu0
  %v1060 = vpop.f32.mrb[0].mxu0
  %v1061 = vadd.f32 %v973, %v1060
  %v1062 = vpop.f32.mrb[0].mxu0
  %1063 = vmatprep.mubr.bf16.mxu0 0
  %1064 = vmatmul.mubr.bf16.gmra.mrb[0].mxu0 %v315
  %v1065 = vpop.f32.mrb[0].mxu0
  %v1066 = vadd.f32 %v973, %v1065
  %v1067 = vpop.f32.mrb[0].mxu0
  %v1068 = vpop.f32.mrb[0].mxu0
  %v1069 = vadd.f32 %v973, %v1068
  %v1070 = vpop.f32.mrb[0].mxu0
  %1071 = vdwg.mxu0
  %v1072 = vmax.f32 %v1010, 0.0
  %v1073 = vmax.f32 %v1013, 0.0
  %v1074 = vmax.f32 %v1018, 0.0
  %v1075 = vmax.f32 %v1021, 0.0
  %v1076 = vmax.f32 %v1026, 0.0
  %v1077 = vmax.f32 %v1029, 0.0
  %v1078 = vmax.f32 %v1034, 0.0
  %v1079 = vmax.f32 %v1037, 0.0
  %v1080 = vmax.f32 %v1042, 0.0
  %v1081 = vmax.f32 %v1045, 0.0
  %v1082 = vmax.f32 %v1050, 0.0
  %v1083 = vmax.f32 %v1053, 0.0
  %v1084 = vmax.f32 %v1058, 0.0
  %v1085 = vmax.f32 %v1061, 0.0
  %v1086 = vmax.f32 %v1066, 0.0
  %v1087 = vmax.f32 %v1069, 0.0
  %1088 = vrot.lane.b32.xlu0 %v747, 32
  %v1089 = vpop.permute.xlu0 %1088
  %1090 = vrot.lane.b32.xlu0 %v748, 32
  %v1091 = vpop.permute.xlu0 %1090
  %1092 = vrot.lane.b32.xlu0 %v749, 32
  %v1093 = vpop.permute.xlu0 %1092
  %1094 = vrot.lane.b32.xlu0 %v750, 32
  %v1095 = vpop.permute.xlu0 %1094
  %1096 = vrot.lane.b32.xlu0 %v751, 32
  %v1097 = vpop.permute.xlu0 %1096
  %1098 = vrot.lane.b32.xlu0 %v752, 32
  %v1099 = vpop.permute.xlu0 %1098
  %1100 = vrot.lane.b32.xlu0 %v753, 32
  %v1101 = vpop.permute.xlu0 %1100
  %1102 = vrot.lane.b32.xlu0 %v754, 32
  %v1103 = vpop.permute.xlu0 %1102
  %1104 = vrot.lane.b32.xlu0 %v755, 32
  %v1105 = vpop.permute.xlu0 %1104
  %1106 = vrot.lane.b32.xlu0 %v756, 32
  %v1107 = vpop.permute.xlu0 %1106
  %1108 = vrot.lane.b32.xlu0 %v757, 32
  %v1109 = vpop.permute.xlu0 %1108
  %1110 = vrot.lane.b32.xlu0 %v758, 32
  %v1111 = vpop.permute.xlu0 %1110
  %1112 = vrot.lane.b32.xlu0 %v759, 32
  %v1113 = vpop.permute.xlu0 %1112
  %1114 = vrot.lane.b32.xlu0 %v760, 32
  %v1115 = vpop.permute.xlu0 %1114
  %1116 = vrot.lane.b32.xlu0 %v761, 32
  %v1117 = vpop.permute.xlu0 %1116
  %1118 = vrot.lane.b32.xlu0 %v762, 32
  %v1119 = vpop.permute.xlu0 %1118
  %1152 = vrot.lane.b32.xlu0 %v1072, 64
  %v1153 = vpop.permute.xlu0 %1152
  %1154 = vrot.lane.b32.xlu0 %v1073, 64
  %v1155 = vpop.permute.xlu0 %1154
  %1156 = vrot.lane.b32.xlu0 %v1074, 64
  %v1157 = vpop.permute.xlu0 %1156
  %1158 = vrot.lane.b32.xlu0 %v1075, 64
  %v1159 = vpop.permute.xlu0 %1158
  %1160 = vrot.lane.b32.xlu0 %v1076, 64
  %v1161 = vpop.permute.xlu0 %1160
  %1162 = vrot.lane.b32.xlu0 %v1077, 64
  %v1163 = vpop.permute.xlu0 %1162
  %1164 = vrot.lane.b32.xlu0 %v1078, 64
  %v1165 = vpop.permute.xlu0 %1164
  %1166 = vrot.lane.b32.xlu0 %v1079, 64
  %v1167 = vpop.permute.xlu0 %1166
  %1168 = vrot.lane.b32.xlu0 %v1080, 64
  %v1169 = vpop.permute.xlu0 %1168
  %1170 = vrot.lane.b32.xlu0 %v1081, 64
  %v1171 = vpop.permute.xlu0 %1170
  %1172 = vrot.lane.b32.xlu0 %v1082, 64
  %v1173 = vpop.permute.xlu0 %1172
  %1174 = vrot.lane.b32.xlu0 %v1083, 64
  %v1175 = vpop.permute.xlu0 %1174
  %1176 = vrot.lane.b32.xlu0 %v1084, 64
  %v1177 = vpop.permute.xlu0 %1176
  %1178 = vrot.lane.b32.xlu0 %v1085, 64
  %v1179 = vpop.permute.xlu0 %1178
  %1180 = vrot.lane.b32.xlu0 %v1086, 64
  %v1181 = vpop.permute.xlu0 %1180
  %1182 = vrot.lane.b32.xlu0 %v1087, 64
  %v1183 = vpop.permute.xlu0 %1182
  %v1200 = vsel %vm441, %v421, %v1089
  %v1201 = vsel %vm441, %v422, %v1091
  %v1202 = vsel %vm441, %v423, %v1093
  %v1203 = vsel %vm441, %v424, %v1095
  %v1204 = vsel %vm441, %v425, %v1097
  %v1205 = vsel %vm441, %v426, %v1099
  %v1206 = vsel %vm441, %v427, %v1101
  %v1207 = vsel %vm441, %v428, %v1103
  %v1208 = vsel %vm441, %v429, %v1105
  %v1209 = vsel %vm441, %v430, %v1107
  %v1210 = vsel %vm441, %v431, %v1109
  %v1211 = vsel %vm441, %v432, %v1111
  %v1212 = vsel %vm441, %v433, %v1113
  %v1213 = vsel %vm441, %v434, %v1115
  %v1214 = vsel %vm441, %v435, %v1117
  %v1215 = vsel %vm441, %v436, %v1119
  %vm1216 = vcmask 523264
  %v1217 = vsel %vm1216, %v1200, %v1153
  %v1218 = vsel %vm1216, %v1201, %v1155
  %v1219 = vsel %vm1216, %v1202, %v1157
  %v1220 = vsel %vm1216, %v1203, %v1159
  %v1221 = vsel %vm1216, %v1204, %v1161
  %v1222 = vsel %vm1216, %v1205, %v1163
  %v1223 = vsel %vm1216, %v1206, %v1165
  %v1224 = vsel %vm1216, %v1207, %v1167
  %v1225 = vsel %vm1216, %v1208, %v1169
  %v1226 = vsel %vm1216, %v1209, %v1171
  %v1227 = vsel %vm1216, %v1210, %v1173
  %v1228 = vsel %vm1216, %v1211, %v1175
  %v1229 = vsel %vm1216, %v1212, %v1177
  %v1230 = vsel %vm1216, %v1213, %v1179
  %v1231 = vsel %vm1216, %v1214, %v1181
  %v1232 = vsel %vm1216, %v1215, %v1183
  %vm1233 = vcmask 785408
  %v1234 = vsel %vm1233, %v1217, 0.0
  %v1235 = vsel %vm1233, %v1218, 0.0
  %v1236 = vsel %vm1233, %v1219, 0.0
  %v1237 = vsel %vm1233, %v1220, 0.0
  %v1238 = vsel %vm1233, %v1221, 0.0
  %v1239 = vsel %vm1233, %v1222, 0.0
  %v1240 = vsel %vm1233, %v1223, 0.0
  %v1241 = vsel %vm1233, %v1224, 0.0
  %v1242 = vsel %vm1233, %v1225, 0.0
  %v1243 = vsel %vm1233, %v1226, 0.0
  %v1244 = vsel %vm1233, %v1227, 0.0
  %v1245 = vsel %vm1233, %v1228, 0.0
  %v1246 = vsel %vm1233, %v1229, 0.0
  %v1247 = vsel %vm1233, %v1230, 0.0
  %v1248 = vsel %vm1233, %v1231, 0.0
  %v1249 = vsel %vm1233, %v1232, 0.0
  %1250 = vst [vmem:[%s8] sm:$0xff] %v1234
  %1251 = vst [vmem:[%s8 + $0x8] sm:$0xff] %v1235
  %1252 = vst [vmem:[%s8 + $0x10] sm:$0xff] %v1236
  %1253 = vst [vmem:[%s8 + $0x18] sm:$0xff] %v1237
  %1254 = vst [vmem:[%s8 + $0x20] sm:$0xff] %v1238
  %1255 = vst [vmem:[%s8 + $0x28] sm:$0xff] %v1239
  %1256 = vst [vmem:[%s8 + $0x30] sm:$0xff] %v1240
  %1257 = vst [vmem:[%s8 + $0x38] sm:$0xff] %v1241
  %1258 = vst [vmem:[%s8 + $0x40] sm:$0xff] %v1242
  %1259 = vst [vmem:[%s8 + $0x48] sm:$0xff] %v1243
  %1260 = vst [vmem:[%s8 + $0x50] sm:$0xff] %v1244
  %1261 = vst [vmem:[%s8 + $0x58] sm:$0xff] %v1245
  %1262 = vst [vmem:[%s8 + $0x60] sm:$0xff] %v1246
  %1263 = vst [vmem:[%s8 + $0x68] sm:$0xff] %v1247
  %1264 = vst [vmem:[%s8 + $0x70] sm:$0xff] %v1248
  %1265 = vst [vmem:[%s8 + $0x78] sm:$0xff] %v1249
  // Predicated region
  $region34: #{net_forward.2} parent=0 // pred_check
    _
  $region35: #{net_forward.2} parent=0 // pred_check_branch
    %1267 = sbr.rel (0) target = $region37
  $region36: #{net_forward.2} parent=0 // pred_region
    _
  $region37: #{net_forward.2} parent=0 // pred_fallthru
    _
  // Predicated region
  $region38: #{net_forward.2} parent=0 // pred_check
    _
  $region39: #{net_forward.2} parent=0 // pred_check_branch
    %1269 = sbr.rel (0) target = $region41
  $region40: #{net_forward.2} parent=0 // pred_region
    _
  $region41: #{net_forward.2} parent=0 // pred_fallthru
    _

// kernel: net_forward.3
$region0: #{net_forward.3}
  #allocation0 [shape = 'u32[]', space=smem, size = 0x4, offset = 0x4, fixed_abs, tag = 'smem constant byte address 0x4 - core index']
  #allocation1 [shape = 'u32[144,128]{1,0:T(1,128)}', space=vmem, size = 0x12000, scoped, tag = 'internal scratch']
  %s0 = inlined_call_operand.vmem [shape: bf16[32,128], index: 0, kind: input, shape index: {}]
  %s1 = inlined_call_operand.vmem [shape: f32[2,1,16], index: 1, kind: input, shape index: {}]
  %s2 = inlined_call_operand.vmem [shape: bf16[10,128], index: 2, kind: input, shape index: {}]
  %s3 = inlined_call_operand.vmem [shape: bf16[1,128], index: 3, kind: input, shape index: {}]
  %s4 = inlined_call_operand.vmem [shape: bf16[19,128,128], index: 4, kind: input, shape index: {}]
  %s5 = inlined_call_operand.vmem [shape: f32[19,1,128], index: 5, kind: input, shape index: {}]
  %s6 = inlined_call_operand.hbm [shape: f32[2,128], index: 6, kind: output, shape index: {}]
  %s7 = sld [smem:[#allocation0]]
  $region34: #{net_forward.3} parent=0
    _
  %s9 = ssub.s32 1, %s7
  %s10 = scalar_select 0, %s9, %s7
  $region1: #{net_forward.3} parent=0
    #allocation2 [shape = 'u8[1024]{0}', space=vmem, size = 0x400, scoped, tag = 'output window, operand 0, single buffered']
    #allocation3 [shape = 's32[1]{0}', space=sflag, size = 0x4, scoped, tag = 'scoped memory for net_forward.3']
    %11 = vsyncpa [#allocation3], 0
    // Predicated region
    $region2: #{net_forward.3} parent=1 // pred_check
      _
    $region3: #{net_forward.3} parent=1 // pred_check_branch
      %13 = sbr.rel (0) target = $region5
    $region4: #{net_forward.3} parent=1 // pred_region
      _
    $region5: #{net_forward.3} parent=1 // pred_fallthru
      _
    // Predicated region
    $region6: #{net_forward.3} parent=1 // pred_check
      _
    $region7: #{net_forward.3} parent=1 // pred_check_branch
      %15 = sbr.rel (0) target = $region9
    $region8: #{net_forward.3} parent=1 // pred_region
      _
    $region9: #{net_forward.3} parent=1 // pred_fallthru
      _
    // Predicated region
    $region10: #{net_forward.3} parent=1 // pred_check
      _
    $region11: #{net_forward.3} parent=1 // pred_check_branch
      %17 = sbr.rel (0) target = $region13
    $region12: #{net_forward.3} parent=1 // pred_region
      _
    $region13: #{net_forward.3} parent=1 // pred_fallthru
      _
    // Predicated region
    $region14: #{net_forward.3} parent=1 // pred_check
      _
    $region15: #{net_forward.3} parent=1 // pred_check_branch
      %19 = sbr.rel (0) target = $region17
    $region16: #{net_forward.3} parent=1 // pred_region
      _
    $region17: #{net_forward.3} parent=1 // pred_fallthru
      _
    // Predicated region
    $region18: #{net_forward.3} parent=1 // pred_check
      _
    $region19: #{net_forward.3} parent=1 // pred_check_branch
      %21 = sbr.rel (0) target = $region21
    $region20: #{net_forward.3} parent=1 // pred_region
      _
    $region21: #{net_forward.3} parent=1 // pred_fallthru
      _
    // Predicated region
    $region22: #{net_forward.3} parent=1 // pred_check
      _
    $region23: #{net_forward.3} parent=1 // pred_check_branch
      %23 = sbr.rel (0) target = $region25
    $region24: #{net_forward.3} parent=1 // pred_region
      _
    $region25: #{net_forward.3} parent=1 // pred_fallthru
      _
    %v25 = vld [vmem:[%s0] sm:$0xf]
    %v26 = vld [vmem:[%s0 + $0x4] sm:$0xf]
    %v27 = vld [vmem:[%s0 + $0x8] sm:$0xf]
    %v28 = vld [vmem:[%s0 + $0xc] sm:$0xf]
    %v29 = vld [vmem:[%s1] sm:$0x1]
    %v30 = vld [vmem:[%s1 + $0x1] sm:$0x1]
    %v31 = vld [vmem:[%s2] sm:$0xf]
    %v32 = vld [vmem:[%s2 + $0x4] sm:$0x1]
    %v33 = vunpack.c.l.bf16 %v31
    %v34 = vunpack.c.l.bf16 %v32
    %vm37 = vcmask 1041408
    %v38 = vrot.slane %v33, 6
    %v39 = vrot.slane %v34, 6
    %v40 = vsel %vm37, %v38, %v39
    %v43 = vsel %vm37, %v34, %v38
    %v44 = vld [vmem:[%s3] sm:$0x1]
    %v45 = vunpack.c.l.bf16 %v44
    %v47 = vlaneseq
    %v48 = vshrl.u32 %v47, 7
    %v49 = vsub.s32 0, %v48
    %v50 = vrot.slane %v45, %v49
    %vm52 = vcmask 1040384
    %v53 = vsel %vm52, %v45, %v50
    %v54 = vld [vmem:[%s4] sm:$0xf]
    %v55 = vld [vmem:[%s4 + $0x4] sm:$0xf]
    %v56 = vld [vmem:[%s4 + $0x8] sm:$0xf]
    %v57 = vld [vmem:[%s4 + $0xc] sm:$0xf]
    %v58 = vld [vmem:[%s4 + $0x10] sm:$0xf]
    %v59 = vld [vmem:[%s4 + $0x14] sm:$0xf]
    %v60 = vld [vmem:[%s4 + $0x18] sm:$0xf]
    %v61 = vld [vmem:[%s4 + $0x1c] sm:$0xf]
    %v62 = vld [vmem:[%s4 + $0x20] sm:$0xf]
    %v63 = vld [vmem:[%s4 + $0x24] sm:$0xf]
    %v64 = vld [vmem:[%s4 + $0x28] sm:$0xf]
    %v65 = vld [vmem:[%s4 + $0x2c] sm:$0xf]
    %v66 = vld [vmem:[%s4 + $0x30] sm:$0xf]
    %v67 = vld [vmem:[%s4 + $0x34] sm:$0xf]
    %v68 = vld [vmem:[%s4 + $0x38] sm:$0xf]
    %v69 = vld [vmem:[%s4 + $0x3c] sm:$0xf]
    %v70 = vld [vmem:[%s5] sm:$0x1]
    %v72 = vlaneseq
    %v73 = vshrl.u32 %v72, 7
    %v74 = vsub.s32 0, %v73
    %v75 = vrot.slane %v70, %v74
    %v81 = vunpack.c.l.b16 %v25
    %v82 = vunpack.c.l.b16 %v26
    %v83 = vunpack.c.l.b16 %v27
    %v84 = vunpack.c.l.b16 %v28
    %v85 = vpack.c.b16 %v82, %v81
    %v86 = vpack.c.b16 %v84, %v83
    %v105 = vunpack.c.l.b16 %v54
    %v106 = vunpack.c.l.b16 %v55
    %v107 = vunpack.c.l.b16 %v56
    %v108 = vunpack.c.l.b16 %v57
    %v109 = vunpack.c.l.b16 %v58
    %v110 = vunpack.c.l.b16 %v59
    %v111 = vunpack.c.l.b16 %v60
    %v112 = vunpack.c.l.b16 %v61
    %v113 = vunpack.c.l.b16 %v62
    %v114 = vunpack.c.l.b16 %v63
    %v115 = vunpack.c.l.b16 %v64
    %v116 = vunpack.c.l.b16 %v65
    %v117 = vunpack.c.l.b16 %v66
    %v118 = vunpack.c.l.b16 %v67
    %v119 = vunpack.c.l.b16 %v68
    %v120 = vunpack.c.l.b16 %v69
    %v121 = vpack.c.b16 %v106, %v105
    %v122 = vpack.c.b16 %v108, %v107
    %v123 = vpack.c.b16 %v110, %v109
    %v124 = vpack.c.b16 %v112, %v111
    %v125 = vpack.c.b16 %v114, %v113
    %v126 = vpack.c.b16 %v116, %v115
    %v127 = vpack.c.b16 %v118, %v117
    %v128 = vpack.c.b16 %v120, %v119
    %137 = vmatprep.subr.bf16.mxu0 0
    %138 = vmatpush1.bf16.msra.mxu0 %v121
    %139 = vmatprep.subr.bf16.mxu0 0
    %140 = vmatpush1.bf16.msra.mxu0 %v122
    %141 = vmatprep.subr.bf16.mxu0 0
    %142 = vmatpush1.bf16.msra.mxu0 %v123
    %143 = vmatprep.subr.bf16.mxu0 0
    %144 = vmatpush1.bf16.msra.mxu0 %v124
    %145 = vmatprep.subr.bf16.mxu0 0
    %146 = vmatpush1.bf16.msra.mxu0 %v125
    %147 = vmatprep.subr.bf16.mxu0 0
    %148 = vmatpush1.bf16.msra.mxu0 %v126
    %149 = vmatprep.subr.bf16.mxu0 0
    %150 = vmatpush1.bf16.msra.mxu0 %v127
    %151 = vmatprep.subr.bf16.mxu0 0
    %152 = vmatpush1.bf16.msra.mxu0 %v128
    %153 = vmatprep.subr.bf16.mxu0 0
    %154 = vmatpush1.bf16.msra.mxu0 0
    %155 = vmatprep.subr.bf16.mxu0 0
    %156 = vmatpush1.bf16.msra.mxu0 0
    %157 = vmatprep.subr.bf16.mxu0 0
    %158 = vmatpush1.bf16.msra.mxu0 0
    %159 = vmatprep.subr.bf16.mxu0 0
    %160 = vmatpush1.bf16.msra.mxu0 0
    %161 = vmatprep.subr.bf16.mxu0 0
    %162 = vmatpush1.bf16.msra.mxu0 0
    %163 = vmatprep.subr.bf16.mxu0 0
    %164 = vmatpush1.bf16.msra.mxu0 0
    %165 = vmatprep.subr.bf16.mxu0 0
    %166 = vmatpush1.bf16.msra.mxu0 0
    %167 = vmatprep.subr.bf16.mxu0 0
    %168 = vmatpush1.bf16.msra.mxu0 0
    %169 = vmatprep.mubr.bf16.mxu0 0
    %170 = vmatmul.mubr.bf16.gmra.mrb[0].mxu0 %v85
    %v171 = vpop.f32.mrb[0].mxu0
    %v172 = vadd.f32 %v75, %v171
    %v173 = vpop.f32.mrb[0].mxu0
    %v174 = vpop.f32.mrb[0].mxu0
    %v175 = vadd.f32 %v75, %v174
    %v176 = vpop.f32.mrb[0].mxu0
    %177 = vmatprep.mubr.bf16.mxu0 0
    %178 = vmatmul.mubr.bf16.gmra.mrb[0].mxu0 %v86
    %v179 = vpop.f32.mrb[0].mxu0
    %v180 = vadd.f32 %v75, %v179
    %v181 = vpop.f32.mrb[0].mxu0
    %v182 = vpop.f32.mrb[0].mxu0
    %v183 = vadd.f32 %v75, %v182
    %v184 = vpop.f32.mrb[0].mxu0
    %185 = vdwg.mxu0
    %v186 = vmax.f32 %v172, 0.0
    %v187 = vmax.f32 %v175, 0.0
    %v188 = vmax.f32 %v180, 0.0
    %v189 = vmax.f32 %v183, 0.0
    %v190 = vpack.c.bf16 %v43, %v33
    %v191 = vpack.c.bf16 %v40, %v40
    %s192 = scalar_lea.vmem %s4, 64
    %v193 = vld [vmem:[%s192] sm:$0xf]
    %v194 = vld [vmem:[%s192 + $0x4] sm:$0xf]
    %v195 = vld [vmem:[%s192 + $0x8] sm:$0xf]
    %v196 = vld [vmem:[%s192 + $0xc] sm:$0xf]
    %v197 = vld [vmem:[%s192 + $0x10] sm:$0xf]
    %v198 = vld [vmem:[%s192 + $0x14] sm:$0xf]
    %v199 = vld [vmem:[%s192 + $0x18] sm:$0xf]
    %v200 = vld [vmem:[%s192 + $0x1c] sm:$0xf]
    %v201 = vld [vmem:[%s192 + $0x20] sm:$0xf]
    %v202 = vld [vmem:[%s192 + $0x24] sm:$0xf]
    %v203 = vld [vmem:[%s192 + $0x28] sm:$0xf]
    %v204 = vld [vmem:[%s192 + $0x2c] sm:$0xf]
    %v205 = vld [vmem:[%s192 + $0x30] sm:$0xf]
    %v206 = vld [vmem:[%s192 + $0x34] sm:$0xf]
    %v207 = vld [vmem:[%s192 + $0x38] sm:$0xf]
    %v208 = vld [vmem:[%s192 + $0x3c] sm:$0xf]
    %s209 = scalar_lea.vmem %s5, 1
    %v210 = vld [vmem:[%s209] sm:$0x1]
    %v212 = vlaneseq
    %v213 = vshrl.u32 %v212, 7
    %v214 = vsub.s32 0, %v213
    %v215 = vrot.slane %v210, %v214
    %v233 = vunpack.c.l.b16 %v193
    %v234 = vunpack.c.l.b16 %v194
    %v235 = vunpack.c.l.b16 %v195
    %v236 = vunpack.c.l.b16 %v196
    %v237 = vunpack.c.l.b16 %v197
    %v238 = vunpack.c.l.b16 %v198
    %v239 = vunpack.c.l.b16 %v199
    %v240 = vunpack.c.l.b16 %v200
    %v241 = vunpack.c.l.b16 %v201
    %v242 = vunpack.c.l.b16 %v202
    %v243 = vunpack.c.l.b16 %v203
    %v244 = vunpack.c.l.b16 %v204
    %v245 = vunpack.c.l.b16 %v205
    %v246 = vunpack.c.l.b16 %v206
    %v247 = vunpack.c.l.b16 %v207
    %v248 = vunpack.c.l.b16 %v208
    %v249 = vpack.c.b16 %v234, %v233
    %v250 = vpack.c.b16 %v236, %v235
    %v251 = vpack.c.b16 %v238, %v237
    %v252 = vpack.c.b16 %v240, %v239
    %v253 = vpack.c.b16 %v242, %v241
    %v254 = vpack.c.b16 %v244, %v243
    %v255 = vpack.c.b16 %v246, %v245
    %v256 = vpack.c.b16 %v248, %v247
    %265 = vmatprep.subr.bf16.mxu0 0
    %266 = vmatpush1.bf16.msra.mxu0 %v249
    %267 = vmatprep.subr.bf16.mxu0 0
    %268 = vmatpush1.bf16.msra.mxu0 %v250
    %269 = vmatprep.subr.bf16.mxu0 0
    %270 = vmatpush1.bf16.msra.mxu0 %v251
    %271 = vmatprep.subr.bf16.mxu0 0
    %272 = vmatpush1.bf16.msra.mxu0 %v252
    %273 = vmatprep.subr.bf16.mxu0 0
    %274 = vmatpush1.bf16.msra.mxu0 %v253
    %275 = vmatprep.subr.bf16.mxu0 0
    %276 = vmatpush1.bf16.msra.mxu0 %v254
    %277 = vmatprep.subr.bf16.mxu0 0
    %278 = vmatpush1.bf16.msra.mxu0 %v255
    %279 = vmatprep.subr.bf16.mxu0 0
    %280 = vmatpush1.bf16.msra.mxu0 %v256
    %281 = vmatprep.subr.bf16.mxu0 0
    %282 = vmatpush1.bf16.msra.mxu0 0
    %283 = vmatprep.subr.bf16.mxu0 0
    %284 = vmatpush1.bf16.msra.mxu0 0
    %285 = vmatprep.subr.bf16.mxu0 0
    %286 = vmatpush1.bf16.msra.mxu0 0
    %287 = vmatprep.subr.bf16.mxu0 0
    %288 = vmatpush1.bf16.msra.mxu0 0
    %289 = vmatprep.subr.bf16.mxu0 0
    %290 = vmatpush1.bf16.msra.mxu0 0
    %291 = vmatprep.subr.bf16.mxu0 0
    %292 = vmatpush1.bf16.msra.mxu0 0
    %293 = vmatprep.subr.bf16.mxu0 0
    %294 = vmatpush1.bf16.msra.mxu0 0
    %295 = vmatprep.subr.bf16.mxu0 0
    %296 = vmatpush1.bf16.msra.mxu0 0
    %297 = vmatprep.mubr.bf16.mxu0 0
    %298 = vmatmul.mubr.bf16.gmra.mrb[0].mxu0 %v190
    %v299 = vpop.f32.mrb[0].mxu0
    %v300 = vadd.f32 %v215, %v299
    %v301 = vpop.f32.mrb[0].mxu0
    %v302 = vpop.f32.mrb[0].mxu0
    %v303 = vadd.f32 %v215, %v302
    %v304 = vpop.f32.mrb[0].mxu0
    %305 = vmatprep.mubr.bf16.mxu0 0
    %306 = vmatmul.mubr.bf16.gmra.mrb[0].mxu0 %v191
    %v307 = vpop.f32.mrb[0].mxu0
    %v308 = vadd.f32 %v215, %v307
    %v309 = vpop.f32.mrb[0].mxu0
    %v310 = vpop.f32.mrb[0].mxu0
    %v311 = vpop.f32.mrb[0].mxu0
    %312 = vdwg.mxu0
    %v313 = vpack.c.bf16 %v187, %v186
    %v314 = vpack.c.bf16 %v189, %v188
    %s315 = scalar_lea.vmem %s4, 128
    %v316 = vld [vmem:[%s315] sm:$0xf]
    %v317 = vld [vmem:[%s315 + $0x4] sm:$0xf]
    %v318 = vld [vmem:[%s315 + $0x8] sm:$0xf]
    %v319 = vld [vmem:[%s315 + $0xc] sm:$0xf]
    %v320 = vld [vmem:[%s315 + $0x10] sm:$0xf]
    %v321 = vld [vmem:[%s315 + $0x14] sm:$0xf]
    %v322 = vld [vmem:[%s315 + $0x18] sm:$0xf]
    %v323 = vld [vmem:[%s315 + $0x1c] sm:$0xf]
    %v324 = vld [vmem:[%s315 + $0x20] sm:$0xf]
    %v325 = vld [vmem:[%s315 + $0x24] sm:$0xf]
    %v326 = vld [vmem:[%s315 + $0x28] sm:$0xf]
    %v327 = vld [vmem:[%s315 + $0x2c] sm:$0xf]
    %v328 = vld [vmem:[%s315 + $0x30] sm:$0xf]
    %v329 = vld [vmem:[%s315 + $0x34] sm:$0xf]
    %v330 = vld [vmem:[%s315 + $0x38] sm:$0xf]
    %v331 = vld [vmem:[%s315 + $0x3c] sm:$0xf]
    %s332 = scalar_lea.vmem %s5, 2
    %v333 = vld [vmem:[%s332] sm:$0x1]
    %v335 = vlaneseq
    %v336 = vshrl.u32 %v335, 7
    %v337 = vsub.s32 0, %v336
    %v338 = vrot.slane %v333, %v337
    %v356 = vunpack.c.l.b16 %v316
    %v357 = vunpack.c.l.b16 %v317
    %v358 = vunpack.c.l.b16 %v318
    %v359 = vunpack.c.l.b16 %v319
    %v360 = vunpack.c.l.b16 %v320
    %v361 = vunpack.c.l.b16 %v321
    %v362 = vunpack.c.l.b16 %v322
    %v363 = vunpack.c.l.b16 %v323
    %v364 = vunpack.c.l.b16 %v324
    %v365 = vunpack.c.l.b16 %v325
    %v366 = vunpack.c.l.b16 %v326
    %v367 = vunpack.c.l.b16 %v327
    %v368 = vunpack.c.l.b16 %v328
    %v369 = vunpack.c.l.b16 %v329
    %v370 = vunpack.c.l.b16 %v330
    %v371 = vunpack.c.l.b16 %v331
    %v372 = vpack.c.b16 %v357, %v356
    %v373 = vpack.c.b16 %v359, %v358
    %v374 = vpack.c.b16 %v361, %v360
    %v375 = vpack.c.b16 %v363, %v362
    %v376 = vpack.c.b16 %v365, %v364
    %v377 = vpack.c.b16 %v367, %v366
    %v378 = vpack.c.b16 %v369, %v368
    %v379 = vpack.c.b16 %v371, %v370
    %388 = vmatprep.subr.bf16.mxu0 0
    %389 = vmatpush1.bf16.msra.mxu0 %v372
    %390 = vmatprep.subr.bf16.mxu0 0
    %391 = vmatpush1.bf16.msra.mxu0 %v373
    %392 = vmatprep.subr.bf16.mxu0 0
    %393 = vmatpush1.bf16.msra.mxu0 %v374
    %394 = vmatprep.subr.bf16.mxu0 0
    %395 = vmatpush1.bf16.msra.mxu0 %v375
    %396 = vmatprep.subr.bf16.mxu0 0
    %397 = vmatpush1.bf16.msra.mxu0 %v376
    %398 = vmatprep.subr.bf16.mxu0 0
    %399 = vmatpush1.bf16.msra.mxu0 %v377
    %400 = vmatprep.subr.bf16.mxu0 0
    %401 = vmatpush1.bf16.msra.mxu0 %v378
    %402 = vmatprep.subr.bf16.mxu0 0
    %403 = vmatpush1.bf16.msra.mxu0 %v379
    %404 = vmatprep.subr.bf16.mxu0 0
    %405 = vmatpush1.bf16.msra.mxu0 0
    %406 = vmatprep.subr.bf16.mxu0 0
    %407 = vmatpush1.bf16.msra.mxu0 0
    %408 = vmatprep.subr.bf16.mxu0 0
    %409 = vmatpush1.bf16.msra.mxu0 0
    %410 = vmatprep.subr.bf16.mxu0 0
    %411 = vmatpush1.bf16.msra.mxu0 0
    %412 = vmatprep.subr.bf16.mxu0 0
    %413 = vmatpush1.bf16.msra.mxu0 0
    %414 = vmatprep.subr.bf16.mxu0 0
    %415 = vmatpush1.bf16.msra.mxu0 0
    %416 = vmatprep.subr.bf16.mxu0 0
    %417 = vmatpush1.bf16.msra.mxu0 0
    %418 = vmatprep.subr.bf16.mxu0 0
    %419 = vmatpush1.bf16.msra.mxu0 0
    %420 = vmatprep.mubr.bf16.mxu0 0
    %421 = vmatmul.mubr.bf16.gmra.mrb[0].mxu0 %v313
    %v422 = vpop.f32.mrb[0].mxu0
    %v423 = vadd.f32 %v338, %v422
    %v424 = vpop.f32.mrb[0].mxu0
    %v425 = vpop.f32.mrb[0].mxu0
    %v426 = vadd.f32 %v338, %v425
    %v427 = vpop.f32.mrb[0].mxu0
    %428 = vmatprep.mubr.bf16.mxu0 0
    %429 = vmatmul.mubr.bf16.gmra.mrb[0].mxu0 %v314
    %v430 = vpop.f32.mrb[0].mxu0
    %v431 = vadd.f32 %v338, %v430
    %v432 = vpop.f32.mrb[0].mxu0
    %v433 = vpop.f32.mrb[0].mxu0
    %v434 = vadd.f32 %v338, %v433
    %v435 = vpop.f32.mrb[0].mxu0
    %436 = vdwg.mxu0
    %s437 = scalar_lea.vmem %s4, 192
    %v438 = vld [vmem:[%s437] sm:$0xf]
    %v439 = vld [vmem:[%s437 + $0x4] sm:$0xf]
    %v440 = vld [vmem:[%s437 + $0x8] sm:$0xf]
    %v441 = vld [vmem:[%s437 + $0xc] sm:$0xf]
    %v442 = vld [vmem:[%s437 + $0x10] sm:$0xf]
    %v443 = vld [vmem:[%s437 + $0x14] sm:$0xf]
    %v444 = vld [vmem:[%s437 + $0x18] sm:$0xf]
    %v445 = vld [vmem:[%s437 + $0x1c] sm:$0xf]
    %v446 = vld [vmem:[%s437 + $0x20] sm:$0xf]
    %v447 = vld [vmem:[%s437 + $0x24] sm:$0xf]
    %v448 = vld [vmem:[%s437 + $0x28] sm:$0xf]
    %v449 = vld [vmem:[%s437 + $0x2c] sm:$0xf]
    %v450 = vld [vmem:[%s437 + $0x30] sm:$0xf]
    %v451 = vld [vmem:[%s437 + $0x34] sm:$0xf]
    %v452 = vld [vmem:[%s437 + $0x38] sm:$0xf]
    %v453 = vld [vmem:[%s437 + $0x3c] sm:$0xf]
    %s454 = scalar_lea.vmem %s5, 3
    %v455 = vld [vmem:[%s454] sm:$0x1]
    %v457 = vlaneseq
    %v458 = vshrl.u32 %v457, 7
    %v459 = vsub.s32 0, %v458
    %v460 = vrot.slane %v455, %v459
    %v478 = vunpack.c.l.b16 %v438
    %v479 = vunpack.c.l.b16 %v439
    %v480 = vunpack.c.l.b16 %v440
    %v481 = vunpack.c.l.b16 %v441
    %v482 = vunpack.c.l.b16 %v442
    %v483 = vunpack.c.l.b16 %v443
    %v484 = vunpack.c.l.b16 %v444
    %v485 = vunpack.c.l.b16 %v445
    %v486 = vunpack.c.l.b16 %v446
    %v487 = vunpack.c.l.b16 %v447
    %v488 = vunpack.c.l.b16 %v448
    %v489 = vunpack.c.l.b16 %v449
    %v490 = vunpack.c.l.b16 %v450
    %v491 = vunpack.c.l.b16 %v451
    %v492 = vunpack.c.l.b16 %v452
    %v493 = vunpack.c.l.b16 %v453
    %v494 = vpack.c.b16 %v479, %v478
    %v495 = vpack.c.b16 %v481, %v480
    %v496 = vpack.c.b16 %v483, %v482
    %v497 = vpack.c.b16 %v485, %v484
    %v498 = vpack.c.b16 %v487, %v486
    %v499 = vpack.c.b16 %v489, %v488
    %v500 = vpack.c.b16 %v491, %v490
    %v501 = vpack.c.b16 %v493, %v492
    %510 = vmatprep.subr.bf16.mxu0 0
    %511 = vmatpush1.bf16.msra.mxu0 %v494
    %512 = vmatprep.subr.bf16.mxu0 0
    %513 = vmatpush1.bf16.msra.mxu0 %v495
    %514 = vmatprep.subr.bf16.mxu0 0
    %515 = vmatpush1.bf16.msra.mxu0 %v496
    %516 = vmatprep.subr.bf16.mxu0 0
    %517 = vmatpush1.bf16.msra.mxu0 %v497
    %518 = vmatprep.subr.bf16.mxu0 0
    %519 = vmatpush1.bf16.msra.mxu0 %v498
    %520 = vmatprep.subr.bf16.mxu0 0
    %521 = vmatpush1.bf16.msra.mxu0 %v499
    %522 = vmatprep.subr.bf16.mxu0 0
    %523 = vmatpush1.bf16.msra.mxu0 %v500
    %524 = vmatprep.subr.bf16.mxu0 0
    %525 = vmatpush1.bf16.msra.mxu0 %v501
    %526 = vmatprep.subr.bf16.mxu0 0
    %527 = vmatpush1.bf16.msra.mxu0 0
    %528 = vmatprep.subr.bf16.mxu0 0
    %529 = vmatpush1.bf16.msra.mxu0 0
    %530 = vmatprep.subr.bf16.mxu0 0
    %531 = vmatpush1.bf16.msra.mxu0 0
    %532 = vmatprep.subr.bf16.mxu0 0
    %533 = vmatpush1.bf16.msra.mxu0 0
    %534 = vmatprep.subr.bf16.mxu0 0
    %535 = vmatpush1.bf16.msra.mxu0 0
    %536 = vmatprep.subr.bf16.mxu0 0
    %537 = vmatpush1.bf16.msra.mxu0 0
    %538 = vmatprep.subr.bf16.mxu0 0
    %539 = vmatpush1.bf16.msra.mxu0 0
    %540 = vmatprep.subr.bf16.mxu0 0
    %541 = vmatpush1.bf16.msra.mxu0 0
    %542 = vmatprep.mubr.bf16.mxu0 0
    %543 = vmatmul.mubr.bf16.gmra.mrb[0].mxu0 %v313
    %v544 = vpop.f32.mrb[0].mxu0
    %v545 = vadd.f32 %v460, %v544
    %v546 = vpop.f32.mrb[0].mxu0
    %v547 = vpop.f32.mrb[0].mxu0
    %v548 = vadd.f32 %v460, %v547
    %v549 = vpop.f32.mrb[0].mxu0
    %550 = vmatprep.mubr.bf16.mxu0 0
    %551 = vmatmul.mubr.bf16.gmra.mrb[0].mxu0 %v314
    %v552 = vpop.f32.mrb[0].mxu0
    %v553 = vadd.f32 %v460, %v552
    %v554 = vpop.f32.mrb[0].mxu0
    %v555 = vpop.f32.mrb[0].mxu0
    %v556 = vadd.f32 %v460, %v555
    %v557 = vpop.f32.mrb[0].mxu0
    %558 = vdwg.mxu0
    %vm559 = vcmask 261120
    %v561 = vsel %vm559, %v300, 0
    %v564 = vsel %vm559, %v303, 0
    %v567 = vsel %vm559, %v423, 0
    %v570 = vsel %vm559, %v426, 0
    %572 = vmatprep.subr.mxu0 0.0
    %573 = vmatpush1.xpose.msra.mxu0 %v567
    %574 = vmatprep.subr.mxu0 0.0
    %575 = vmatpush1.xpose.msra.mxu0 %v570
    %576 = vmatprep.subr.mxu0 0.0
    %577 = vmatpush1.xpose.msra.mxu0 0.0
    %578 = vmatprep.subr.mxu0 0.0
    %579 = vmatpush1.xpose.msra.mxu0 0.0
    %580 = vmatprep.subr.mxu0 0.0
    %581 = vmatpush1.xpose.msra.mxu0 0.0
    %582 = vmatprep.subr.mxu0 0.0
    %583 = vmatpush1.xpose.msra.mxu0 0.0
    %584 = vmatprep.subr.mxu0 0.0
    %585 = vmatpush1.xpose.msra.mxu0 0.0
    %586 = vmatprep.subr.mxu0 0.0
    %587 = vmatpush1.xpose.msra.mxu0 0.0
    %588 = vmatprep.subr.mxu0 0.0
    %589 = vmatpush1.xpose.msra.mxu0 0.0
    %590 = vmatprep.subr.mxu0 0.0
    %591 = vmatpush1.xpose.msra.mxu0 0.0
    %592 = vmatprep.subr.mxu0 0.0
    %593 = vmatpush1.xpose.msra.mxu0 0.0
    %594 = vmatprep.subr.mxu0 0.0
    %595 = vmatpush1.xpose.msra.mxu0 0.0
    %596 = vmatprep.subr.mxu0 0.0
    %597 = vmatpush1.xpose.msra.mxu0 0.0
    %598 = vmatprep.subr.mxu0 0.0
    %599 = vmatpush1.xpose.msra.mxu0 0.0
    %600 = vmatprep.subr.mxu0 0.0
    %601 = vmatpush1.xpose.msra.mxu0 0.0
    %602 = vmatprep.subr.mxu0 0.0
    %603 = vmatpush1.xpose.msra.mxu0 0.0
    %604 = vmatprep.subr.mxu0 0.0
    %605 = vmatpush1.xpose.msra.mxu0 0.0
    %606 = vmatprep.subr.mxu0 0.0
    %607 = vmatpush1.xpose.msra.mxu0 0.0
    %608 = vmatprep.subr.mxu0 0.0
    %609 = vmatpush1.xpose.msra.mxu0 0.0
    %610 = vmatprep.subr.mxu0 0.0
    %611 = vmatpush1.xpose.msra.mxu0 0.0
    %612 = vmatprep.subr.mxu0 0.0
    %613 = vmatpush1.xpose.msra.mxu0 0.0
    %614 = vmatprep.subr.mxu0 0.0
    %615 = vmatpush1.xpose.msra.mxu0 0.0
    %616 = vmatprep.subr.mxu0 0.0
    %617 = vmatpush1.xpose.msra.mxu0 0.0
    %618 = vmatprep.subr.mxu0 0.0
    %619 = vmatpush1.xpose.msra.mxu0 0.0
    %620 = vmatprep.subr.mxu0 0.0
    %621 = vmatpush1.xpose.msra.mxu0 0.0
    %622 = vmatprep.subr.mxu0 0.0
    %623 = vmatpush1.xpose.msra.mxu0 0.0
    %624 = vmatprep.subr.mxu0 0.0
    %625 = vmatpush1.xpose.msra.mxu0 0.0
    %626 = vmatprep.subr.mxu0 0.0
    %627 = vmatpush1.xpose.msra.mxu0 0.0
    %628 = vmatprep.subr.mxu0 0.0
    %629 = vmatpush1.xpose.msra.mxu0 0.0
    %630 = vmatprep.subr.mxu0 0.0
    %631 = vmatpush1.xpose.msra.mxu0 0.0
    %632 = vmatprep.subr.mxu0 0.0
    %633 = vmatpush1.xpose.msra.mxu0 0.0
    %634 = vmatprep.subr.mxu0 0.0
    %635 = vmatpush1.xpose.msra.mxu0 0.0
    %636 = vmatprep.mubr.f32.mxu0 0.0
    %637 = vmatmul.mubr.f32.gmra.mrb[0].mxu0 %v561
    %v638 = vpop.f32.mrb[0].mxu0
    %v639 = vadd.f32 0.0, %v638
    %v640 = vpop.f32.mrb[0].mxu0
    %641 = vmatprep.mubr.f32.mxu0 0.0
    %642 = vmatmul.mubr.f32.gmra.mrb[0].mxu0 %v564
    %v643 = vpop.f32.mrb[0].mxu0
    %v644 = vadd.f32 0.0, %v643
    %v645 = vpop.f32.mrb[0].mxu0
    %646 = vdwg.mxu0
    %v647 = vmul.f32 %v639, 0.20412415
    %v648 = vmul.f32 %v644, 0.20412415
    %v650 = vlaneseq
    %v651 = vshrl.u32 %v650, 7
    %v652 = vsub.s32 0, %v651
    %v653 = vrot.slane %v29, %v652
    %v655 = vadd.f32 %v647, %v653
    %v656 = vadd.f32 %v648, %v653
    %vm657 = vcmask 130048
    %v658 = vsel %vm657, %v655, -inf
    %659 = vmax.xlane.f32.xlu0 %v658
    %v660 = vpop.xlane.xlu0 %659
    %vm661 = vcmask 123904
    %v662 = vsel %vm661, %v656, -inf
    %663 = vmax.xlane.f32.xlu0 %v662
    %v664 = vpop.xlane.xlu0 %663
    %v665 = vsub.f32 %v655, %v660
    %v666 = vsub.f32 %v656, %v664
    %v667 = vmul.f32 %v665, 1.442695
    %v668 = vpow.pop %v667
    %v669 = vmul.f32 %v666, 1.442695
    %v670 = vpow.pop %v669
    %v671 = vsel %vm657, %v668, 0.0
    %672 = vadd.xlane.f32.xlu0 %v671
    %v673 = vpop.xlane.xlu0 %672
    %v674 = vsel %vm661, %v670, 0.0
    %675 = vadd.xlane.f32.xlu0 %v674
    %v676 = vpop.xlane.xlu0 %675
    %v677 = vrcp.pop %v673
    %v678 = vrcp.pop %v676
    %v679 = vmul.f32 %v668, %v677
    %v680 = vmul.f32 %v670, %v678
    %v682 = vsel %vm657, %v679, 0
    %v685 = vsel %vm657, %v680, 0
    %687 = vmatprep.subr.mxu0 0.0
    %688 = vmatpush1.msra.mxu0 %v545
    %689 = vmatprep.subr.mxu0 0.0
    %690 = vmatpush1.msra.mxu0 %v548
    %691 = vmatprep.subr.mxu0 0.0
    %692 = vmatpush1.msra.mxu0 0.0
    %693 = vmatprep.subr.mxu0 0.0
    %694 = vmatpush1.msra.mxu0 0.0
    %695 = vmatprep.subr.mxu0 0.0
    %696 = vmatpush1.msra.mxu0 0.0
    %697 = vmatprep.subr.mxu0 0.0
    %698 = vmatpush1.msra.mxu0 0.0
    %699 = vmatprep.subr.mxu0 0.0
    %700 = vmatpush1.msra.mxu0 0.0
    %701 = vmatprep.subr.mxu0 0.0
    %702 = vmatpush1.msra.mxu0 0.0
    %703 = vmatprep.subr.mxu0 0.0
    %704 = vmatpush1.msra.mxu0 0.0
    %705 = vmatprep.subr.mxu0 0.0
    %706 = vmatpush1.msra.mxu0 0.0
    %707 = vmatprep.subr.mxu0 0.0
    %708 = vmatpush1.msra.mxu0 0.0
    %709 = vmatprep.subr.mxu0 0.0
    %710 = vmatpush1.msra.mxu0 0.0
    %711 = vmatprep.subr.mxu0 0.0
    %712 = vmatpush1.msra.mxu0 0.0
    %713 = vmatprep.subr.mxu0 0.0
    %714 = vmatpush1.msra.mxu0 0.0
    %715 = vmatprep.subr.mxu0 0.0
    %716 = vmatpush1.msra.mxu0 0.0
    %717 = vmatprep.subr.mxu0 0.0
    %718 = vmatpush1.msra.mxu0 0.0
    %719 = vmatprep.subr.mxu0 0.0
    %720 = vmatpush1.msra.mxu0 0.0
    %721 = vmatprep.subr.mxu0 0.0
    %722 = vmatpush1.msra.mxu0 0.0
    %723 = vmatprep.subr.mxu0 0.0
    %724 = vmatpush1.msra.mxu0 0.0
    %725 = vmatprep.subr.mxu0 0.0
    %726 = vmatpush1.msra.mxu0 0.0
    %727 = vmatprep.subr.mxu0 0.0
    %728 = vmatpush1.msra.mxu0 0.0
    %729 = vmatprep.subr.mxu0 0.0
    %730 = vmatpush1.msra.mxu0 0.0
    %731 = vmatprep.subr.mxu0 0.0
    %732 = vmatpush1.msra.mxu0 0.0
    %733 = vmatprep.subr.mxu0 0.0
    %734 = vmatpush1.msra.mxu0 0.0
    %735 = vmatprep.subr.mxu0 0.0
    %736 = vmatpush1.msra.mxu0 0.0
    %737 = vmatprep.subr.mxu0 0.0
    %738 = vmatpush1.msra.mxu0 0.0
    %739 = vmatprep.subr.mxu0 0.0
    %740 = vmatpush1.msra.mxu0 0.0
    %741 = vmatprep.subr.mxu0 0.0
    %742 = vmatpush1.msra.mxu0 0.0
    %743 = vmatprep.subr.mxu0 0.0
    %744 = vmatpush1.msra.mxu0 0.0
    %745 = vmatprep.subr.mxu0 0.0
    %746 = vmatpush1.msra.mxu0 0.0
    %747 = vmatprep.subr.mxu0 0.0
    %748 = vmatpush1.msra.mxu0 0.0
    %749 = vmatprep.subr.mxu0 0.0
    %750 = vmatpush1.msra.mxu0 0.0
    %751 = vmatprep.mubr.f32.mxu0 0.0
    %752 = vmatmul.mubr.f32.gmra.mrb[0].mxu0 %v682
    %v753 = vpop.f32.mrb[0].mxu0
    %v754 = vadd.f32 0.0, %v753
    %v755 = vpop.f32.mrb[0].mxu0
    %756 = vmatprep.mubr.f32.mxu0 0.0
    %757 = vmatmul.mubr.f32.gmra.mrb[0].mxu0 %v685
    %v758 = vpop.f32.mrb[0].mxu0
    %v759 = vadd.f32 0.0, %v758
    %v760 = vpop.f32.mrb[0].mxu0
    %761 = vdwg.mxu0
    %762 = vrot.lane.b32.xlu0 %v300, 96
    %v763 = vpop.permute.xlu0 %762
    %764 = vrot.lane.b32.xlu0 %v303, 96
    %v765 = vpop.permute.xlu0 %764
    %766 = vrot.lane.b32.xlu0 %v423, 96
    %v767 = vpop.permute.xlu0 %766
    %768 = vrot.lane.b32.xlu0 %v426, 96
    %v769 = vpop.permute.xlu0 %768
    %v770 = vsel %vm559, %v763, 0
    %v772 = vsel %vm559, %v765, 0
    %v774 = vsel %vm559, %v767, 0
    %v776 = vsel %vm559, %v769, 0
    %778 = vmatprep.subr.mxu0 0.0
    %779 = vmatpush1.xpose.msra.mxu0 %v774
    %780 = vmatprep.subr.mxu0 0.0
    %781 = vmatpush1.xpose.msra.mxu0 %v776
    %782 = vmatprep.subr.mxu0 0.0
    %783 = vmatpush1.xpose.msra.mxu0 0.0
    %784 = vmatprep.subr.mxu0 0.0
    %785 = vmatpush1.xpose.msra.mxu0 0.0
    %786 = vmatprep.subr.mxu0 0.0
    %787 = vmatpush1.xpose.msra.mxu0 0.0
    %788 = vmatprep.subr.mxu0 0.0
    %789 = vmatpush1.xpose.msra.mxu0 0.0
    %790 = vmatprep.subr.mxu0 0.0
    %791 = vmatpush1.xpose.msra.mxu0 0.0
    %792 = vmatprep.subr.mxu0 0.0
    %793 = vmatpush1.xpose.msra.mxu0 0.0
    %794 = vmatprep.subr.mxu0 0.0
    %795 = vmatpush1.xpose.msra.mxu0 0.0
    %796 = vmatprep.subr.mxu0 0.0
    %797 = vmatpush1.xpose.msra.mxu0 0.0
    %798 = vmatprep.subr.mxu0 0.0
    %799 = vmatpush1.xpose.msra.mxu0 0.0
    %800 = vmatprep.subr.mxu0 0.0
    %801 = vmatpush1.xpose.msra.mxu0 0.0
    %802 = vmatprep.subr.mxu0 0.0
    %803 = vmatpush1.xpose.msra.mxu0 0.0
    %804 = vmatprep.subr.mxu0 0.0
    %805 = vmatpush1.xpose.msra.mxu0 0.0
    %806 = vmatprep.subr.mxu0 0.0
    %807 = vmatpush1.xpose.msra.mxu0 0.0
    %808 = vmatprep.subr.mxu0 0.0
    %809 = vmatpush1.xpose.msra.mxu0 0.0
    %810 = vmatprep.subr.mxu0 0.0
    %811 = vmatpush1.xpose.msra.mxu0 0.0
    %812 = vmatprep.subr.mxu0 0.0
    %813 = vmatpush1.xpose.msra.mxu0 0.0
    %814 = vmatprep.subr.mxu0 0.0
    %815 = vmatpush1.xpose.msra.mxu0 0.0
    %816 = vmatprep.subr.mxu0 0.0
    %817 = vmatpush1.xpose.msra.mxu0 0.0
    %818 = vmatprep.subr.mxu0 0.0
    %819 = vmatpush1.xpose.msra.mxu0 0.0
    %820 = vmatprep.subr.mxu0 0.0
    %821 = vmatpush1.xpose.msra.mxu0 0.0
    %822 = vmatprep.subr.mxu0 0.0
    %823 = vmatpush1.xpose.msra.mxu0 0.0
    %824 = vmatprep.subr.mxu0 0.0
    %825 = vmatpush1.xpose.msra.mxu0 0.0
    %826 = vmatprep.subr.mxu0 0.0
    %827 = vmatpush1.xpose.msra.mxu0 0.0
    %828 = vmatprep.subr.mxu0 0.0
    %829 = vmatpush1.xpose.msra.mxu0 0.0
    %830 = vmatprep.subr.mxu0 0.0
    %831 = vmatpush1.xpose.msra.mxu0 0.0
    %832 = vmatprep.subr.mxu0 0.0
    %833 = vmatpush1.xpose.msra.mxu0 0.0
    %834 = vmatprep.subr.mxu0 0.0
    %835 = vmatpush1.xpose.msra.mxu0 0.0
    %836 = vmatprep.subr.mxu0 0.0
    %837 = vmatpush1.xpose.msra.mxu0 0.0
    %838 = vmatprep.subr.mxu0 0.0
    %839 = vmatpush1.xpose.msra.mxu0 0.0
    %840 = vmatprep.subr.mxu0 0.0
    %841 = vmatpush1.xpose.msra.mxu0 0.0
    %842 = vmatprep.mubr.f32.mxu0 0.0
    %843 = vmatmul.mubr.f32.gmra.mrb[0].mxu0 %v770
    %v844 = vpop.f32.mrb[0].mxu0
    %v845 = vadd.f32 0.0, %v844
    %v846 = vpop.f32.mrb[0].mxu0
    %847 = vmatprep.mubr.f32.mxu0 0.0
    %848 = vmatmul.mubr.f32.gmra.mrb[0].mxu0 %v772
    %v849 = vpop.f32.mrb[0].mxu0
    %v850 = vadd.f32 0.0, %v849
    %v851 = vpop.f32.mrb[0].mxu0
    %852 = vdwg.mxu0
    %v853 = vmul.f32 %v845, 0.20412415
    %v854 = vmul.f32 %v850, 0.20412415
    %v855 = vadd.f32 %v853, %v653
    %v856 = vadd.f32 %v854, %v653
    %v857 = vsel %vm657, %v855, -inf
    %858 = vmax.xlane.f32.xlu0 %v857
    %v859 = vpop.xlane.xlu0 %858
    %v860 = vsel %vm661, %v856, -inf
    %861 = vmax.xlane.f32.xlu0 %v860
    %v862 = vpop.xlane.xlu0 %861
    %v863 = vsub.f32 %v855, %v859
    %v864 = vsub.f32 %v856, %v862
    %v865 = vmul.f32 %v863, 1.442695
    %v866 = vpow.pop %v865
    %v867 = vmul.f32 %v864, 1.442695
    %v868 = vpow.pop %v867
    %v869 = vsel %vm657, %v866, 0.0
    %870 = vadd.xlane.f32.xlu0 %v869
    %v871 = vpop.xlane.xlu0 %870
    %v872 = vsel %vm661, %v868, 0.0
    %873 = vadd.xlane.f32.xlu0 %v872
    %v874 = vpop.xlane.xlu0 %873
    %v875 = vrcp.pop %v871
    %v876 = vrcp.pop %v874
    %v877 = vmul.f32 %v866, %v875
    %v878 = vmul.f32 %v868, %v876
    %881 = vrot.lane.b32.xlu0 %v545, 96
    %v882 = vpop.permute.xlu0 %881
    %883 = vrot.lane.b32.xlu0 %v548, 96
    %v884 = vpop.permute.xlu0 %883
    %v888 = vsel %vm657, %v877, 0
    %v891 = vsel %vm657, %v878, 0
    %893 = vmatprep.subr.mxu0 0.0
    %894 = vmatpush1.msra.mxu0 %v882
    %895 = vmatprep.subr.mxu0 0.0
    %896 = vmatpush1.msra.mxu0 %v884
    %897 = vmatprep.subr.mxu0 0.0
    %898 = vmatpush1.msra.mxu0 0.0
    %899 = vmatprep.subr.mxu0 0.0
    %900 = vmatpush1.msra.mxu0 0.0
    %901 = vmatprep.subr.mxu0 0.0
    %902 = vmatpush1.msra.mxu0 0.0
    %903 = vmatprep.subr.mxu0 0.0
    %904 = vmatpush1.msra.mxu0 0.0
    %905 = vmatprep.subr.mxu0 0.0
    %906 = vmatpush1.msra.mxu0 0.0
    %907 = vmatprep.subr.mxu0 0.0
    %908 = vmatpush1.msra.mxu0 0.0
    %909 = vmatprep.subr.mxu0 0.0
    %910 = vmatpush1.msra.mxu0 0.0
    %911 = vmatprep.subr.mxu0 0.0
    %912 = vmatpush1.msra.mxu0 0.0
    %913 = vmatprep.subr.mxu0 0.0
    %914 = vmatpush1.msra.mxu0 0.0
    %915 = vmatprep.subr.mxu0 0.0
    %916 = vmatpush1.msra.mxu0 0.0
    %917 = vmatprep.subr.mxu0 0.0
    %918 = vmatpush1.msra.mxu0 0.0
    %919 = vmatprep.subr.mxu0 0.0
    %920 = vmatpush1.msra.mxu0 0.0
    %921 = vmatprep.subr.mxu0 0.0
    %922 = vmatpush1.msra.mxu0 0.0
    %923 = vmatprep.subr.mxu0 0.0
    %924 = vmatpush1.msra.mxu0 0.0
    %925 = vmatprep.subr.mxu0 0.0
    %926 = vmatpush1.msra.mxu0 0.0
    %927 = vmatprep.subr.mxu0 0.0
    %928 = vmatpush1.msra.mxu0 0.0
    %929 = vmatprep.subr.mxu0 0.0
    %930 = vmatpush1.msra.mxu0 0.0
    %931 = vmatprep.subr.mxu0 0.0
    %932 = vmatpush1.msra.mxu0 0.0
    %933 = vmatprep.subr.mxu0 0.0
    %934 = vmatpush1.msra.mxu0 0.0
    %935 = vmatprep.subr.mxu0 0.0
    %936 = vmatpush1.msra.mxu0 0.0
    %937 = vmatprep.subr.mxu0 0.0
    %938 = vmatpush1.msra.mxu0 0.0
    %939 = vmatprep.subr.mxu0 0.0
    %940 = vmatpush1.msra.mxu0 0.0
    %941 = vmatprep.subr.mxu0 0.0
    %942 = vmatpush1.msra.mxu0 0.0
    %943 = vmatprep.subr.mxu0 0.0
    %944 = vmatpush1.msra.mxu0 0.0
    %945 = vmatprep.subr.mxu0 0.0
    %946 = vmatpush1.msra.mxu0 0.0
    %947 = vmatprep.subr.mxu0 0.0
    %948 = vmatpush1.msra.mxu0 0.0
    %949 = vmatprep.subr.mxu0 0.0
    %950 = vmatpush1.msra.mxu0 0.0
    %951 = vmatprep.subr.mxu0 0.0
    %952 = vmatpush1.msra.mxu0 0.0
    %953 = vmatprep.subr.mxu0 0.0
    %954 = vmatpush1.msra.mxu0 0.0
    %955 = vmatprep.subr.mxu0 0.0
    %956 = vmatpush1.msra.mxu0 0.0
    %957 = vmatprep.mubr.f32.mxu0 0.0
    %958 = vmatmul.mubr.f32.gmra.mrb[0].mxu0 %v888
    %v959 = vpop.f32.mrb[0].mxu0
    %v960 = vadd.f32 0.0, %v959
    %v961 = vpop.f32.mrb[0].mxu0
    %962 = vmatprep.mubr.f32.mxu0 0.0
    %963 = vmatmul.mubr.f32.gmra.mrb[0].mxu0 %v891
    %v964 = vpop.f32.mrb[0].mxu0
    %v965 = vadd.f32 0.0, %v964
    %v966 = vpop.f32.mrb[0].mxu0
    %967 = vdwg.mxu0
    %968 = vrot.lane.b32.xlu0 %v300, 64
    %v969 = vpop.permute.xlu0 %968
    %970 = vrot.lane.b32.xlu0 %v303, 64
    %v971 = vpop.permute.xlu0 %970
    %972 = vrot.lane.b32.xlu0 %v423, 64
    %v973 = vpop.permute.xlu0 %972
    %974 = vrot.lane.b32.xlu0 %v426, 64
    %v975 = vpop.permute.xlu0 %974
    %v976 = vsel %vm559, %v969, 0
    %v978 = vsel %vm559, %v971, 0
    %v980 = vsel %vm559, %v973, 0
    %v982 = vsel %vm559, %v975, 0
    %984 = vmatprep.subr.mxu0 0.0
    %985 = vmatpush1.xpose.msra.mxu0 %v980
    %986 = vmatprep.subr.mxu0 0.0
    %987 = vmatpush1.xpose.msra.mxu0 %v982
    %988 = vmatprep.subr.mxu0 0.0
    %989 = vmatpush1.xpose.msra.mxu0 0.0
    %990 = vmatprep.subr.mxu0 0.0
    %991 = vmatpush1.xpose.msra.mxu0 0.0
    %992 = vmatprep.subr.mxu0 0.0
    %993 = vmatpush1.xpose.msra.mxu0 0.0
    %994 = vmatprep.subr.mxu0 0.0
    %995 = vmatpush1.xpose.msra.mxu0 0.0
    %996 = vmatprep.subr.mxu0 0.0
    %997 = vmatpush1.xpose.msra.mxu0 0.0
    %998 = vmatprep.subr.mxu0 0.0
    %999 = vmatpush1.xpose.msra.mxu0 0.0
    %1000 = vmatprep.subr.mxu0 0.0
    %1001 = vmatpush1.xpose.msra.mxu0 0.0
    %1002 = vmatprep.subr.mxu0 0.0
    %1003 = vmatpush1.xpose.msra.mxu0 0.0
    %1004 = vmatprep.subr.mxu0 0.0
    %1005 = vmatpush1.xpose.msra.mxu0 0.0
    %1006 = vmatprep.subr.mxu0 0.0
    %1007 = vmatpush1.xpose.msra.mxu0 0.0
    %1008 = vmatprep.subr.mxu0 0.0
    %1009 = vmatpush1.xpose.msra.mxu0 0.0
    %1010 = vmatprep.subr.mxu0 0.0
    %1011 = vmatpush1.xpose.msra.mxu0 0.0
    %1012 = vmatprep.subr.mxu0 0.0
    %1013 = vmatpush1.xpose.msra.mxu0 0.0
    %1014 = vmatprep.subr.mxu0 0.0
    %1015 = vmatpush1.xpose.msra.mxu0 0.0
    %1016 = vmatprep.subr.mxu0 0.0
    %1017 = vmatpush1.xpose.msra.mxu0 0.0
    %1018 = vmatprep.subr.mxu0 0.0
    %1019 = vmatpush1.xpose.msra.mxu0 0.0
    %1020 = vmatprep.subr.mxu0 0.0
    %1021 = vmatpush1.xpose.msra.mxu0 0.0
    %1022 = vmatprep.subr.mxu0 0.0
    %1023 = vmatpush1.xpose.msra.mxu0 0.0
    %1024 = vmatprep.subr.mxu0 0.0
    %1025 = vmatpush1.xpose.msra.mxu0 0.0
    %1026 = vmatprep.subr.mxu0 0.0
    %1027 = vmatpush1.xpose.msra.mxu0 0.0
    %1028 = vmatprep.subr.mxu0 0.0
    %1029 = vmatpush1.xpose.msra.mxu0 0.0
    %1030 = vmatprep.subr.mxu0 0.0
    %1031 = vmatpush1.xpose.msra.mxu0 0.0
    %1032 = vmatprep.subr.mxu0 0.0
    %1033 = vmatpush1.xpose.msra.mxu0 0.0
    %1034 = vmatprep.subr.mxu0 0.0
    %1035 = vmatpush1.xpose.msra.mxu0 0.0
    %1036 = vmatprep.subr.mxu0 0.0
    %1037 = vmatpush1.xpose.msra.mxu0 0.0
    %1038 = vmatprep.subr.mxu0 0.0
    %1039 = vmatpush1.xpose.msra.mxu0 0.0
    %1040 = vmatprep.subr.mxu0 0.0
    %1041 = vmatpush1.xpose.msra.mxu0 0.0
    %1042 = vmatprep.subr.mxu0 0.0
    %1043 = vmatpush1.xpose.msra.mxu0 0.0
    %1044 = vmatprep.subr.mxu0 0.0
    %1045 = vmatpush1.xpose.msra.mxu0 0.0
    %1046 = vmatprep.subr.mxu0 0.0
    %1047 = vmatpush1.xpose.msra.mxu0 0.0
    %1048 = vmatprep.mubr.f32.mxu0 0.0
    %1049 = vmatmul.mubr.f32.gmra.mrb[0].mxu0 %v976
    %v1050 = vpop.f32.mrb[0].mxu0
    %v1051 = vadd.f32 0.0, %v1050
    %v1052 = vpop.f32.mrb[0].mxu0
    %1053 = vmatprep.mubr.f32.mxu0 0.0
    %1054 = vmatmul.mubr.f32.gmra.mrb[0].mxu0 %v978
    %v1055 = vpop.f32.mrb[0].mxu0
    %v1056 = vadd.f32 0.0, %v1055
    %v1057 = vpop.f32.mrb[0].mxu0
    %1058 = vdwg.mxu0
    %v1059 = vmul.f32 %v1051, 0.20412415
    %v1060 = vmul.f32 %v1056, 0.20412415
    %v1061 = vadd.f32 %v1059, %v653
    %v1062 = vadd.f32 %v1060, %v653
    %v1063 = vsel %vm657, %v1061, -inf
    %1064 = vmax.xlane.f32.xlu0 %v1063
    %v1065 = vpop.xlane.xlu0 %1064
    %v1066 = vsel %vm661, %v1062, -inf
    %1067 = vmax.xlane.f32.xlu0 %v1066
    %v1068 = vpop.xlane.xlu0 %1067
    %v1069 = vsub.f32 %v1061, %v1065
    %v1070 = vsub.f32 %v1062, %v1068
    %v1071 = vmul.f32 %v1069, 1.442695
    %v1072 = vpow.pop %v1071
    %v1073 = vmul.f32 %v1070, 1.442695
    %v1074 = vpow.pop %v1073
    %v1075 = vsel %vm657, %v1072, 0.0
    %1076 = vadd.xlane.f32.xlu0 %v1075
    %v1077 = vpop.xlane.xlu0 %1076
    %v1078 = vsel %vm661, %v1074, 0.0
    %1079 = vadd.xlane.f32.xlu0 %v1078
    %v1080 = vpop.xlane.xlu0 %1079
    %v1081 = vrcp.pop %v1077
    %v1082 = vrcp.pop %v1080
    %v1083 = vmul.f32 %v1072, %v1081
    %v1084 = vmul.f32 %v1074, %v1082
    %1085 = vrot.lane.b32.xlu0 %v545, 64
    %v1086 = vpop.permute.xlu0 %1085
    %1087 = vrot.lane.b32.xlu0 %v548, 64
    %v1088 = vpop.permute.xlu0 %1087
    %v1092 = vsel %vm657, %v1083, 0
    %v1095 = vsel %vm657, %v1084, 0
    %1097 = vmatprep.subr.mxu0 0.0
    %1098 = vmatpush1.msra.mxu0 %v1086
    %1099 = vmatprep.subr.mxu0 0.0
    %1100 = vmatpush1.msra.mxu0 %v1088
    %1101 = vmatprep.subr.mxu0 0.0
    %1102 = vmatpush1.msra.mxu0 0.0
    %1103 = vmatprep.subr.mxu0 0.0
    %1104 = vmatpush1.msra.mxu0 0.0
    %1105 = vmatprep.subr.mxu0 0.0
    %1106 = vmatpush1.msra.mxu0 0.0
    %1107 = vmatprep.subr.mxu0 0.0
    %1108 = vmatpush1.msra.mxu0 0.0
    %1109 = vmatprep.subr.mxu0 0.0
    %1110 = vmatpush1.msra.mxu0 0.0
    %1111 = vmatprep.subr.mxu0 0.0
    %1112 = vmatpush1.msra.mxu0 0.0
    %1113 = vmatprep.subr.mxu0 0.0
    %1114 = vmatpush1.msra.mxu0 0.0
    %1115 = vmatprep.subr.mxu0 0.0
    %1116 = vmatpush1.msra.mxu0 0.0
    %1117 = vmatprep.subr.mxu0 0.0
    %1118 = vmatpush1.msra.mxu0 0.0
    %1119 = vmatprep.subr.mxu0 0.0
    %1120 = vmatpush1.msra.mxu0 0.0
    %1121 = vmatprep.subr.mxu0 0.0
    %1122 = vmatpush1.msra.mxu0 0.0
    %1123 = vmatprep.subr.mxu0 0.0
    %1124 = vmatpush1.msra.mxu0 0.0
    %1125 = vmatprep.subr.mxu0 0.0
    %1126 = vmatpush1.msra.mxu0 0.0
    %1127 = vmatprep.subr.mxu0 0.0
    %1128 = vmatpush1.msra.mxu0 0.0
    %1129 = vmatprep.subr.mxu0 0.0
    %1130 = vmatpush1.msra.mxu0 0.0
    %1131 = vmatprep.subr.mxu0 0.0
    %1132 = vmatpush1.msra.mxu0 0.0
    %1133 = vmatprep.subr.mxu0 0.0
    %1134 = vmatpush1.msra.mxu0 0.0
    %1135 = vmatprep.subr.mxu0 0.0
    %1136 = vmatpush1.msra.mxu0 0.0
    %1137 = vmatprep.subr.mxu0 0.0
    %1138 = vmatpush1.msra.mxu0 0.0
    %1139 = vmatprep.subr.mxu0 0.0
    %1140 = vmatpush1.msra.mxu0 0.0
    %1141 = vmatprep.subr.mxu0 0.0
    %1142 = vmatpush1.msra.mxu0 0.0
    %1143 = vmatprep.subr.mxu0 0.0
    %1144 = vmatpush1.msra.mxu0 0.0
    %1145 = vmatprep.subr.mxu0 0.0
    %1146 = vmatpush1.msra.mxu0 0.0
    %1147 = vmatprep.subr.mxu0 0.0
    %1148 = vmatpush1.msra.mxu0 0.0
    %1149 = vmatprep.subr.mxu0 0.0
    %1150 = vmatpush1.msra.mxu0 0.0
    %1151 = vmatprep.subr.mxu0 0.0
    %1152 = vmatpush1.msra.mxu0 0.0
    %1153 = vmatprep.subr.mxu0 0.0
    %1154 = vmatpush1.msra.mxu0 0.0
    %1155 = vmatprep.subr.mxu0 0.0
    %1156 = vmatpush1.msra.mxu0 0.0
    %1157 = vmatprep.subr.mxu0 0.0
    %1158 = vmatpush1.msra.mxu0 0.0
    %1159 = vmatprep.subr.mxu0 0.0
    %1160 = vmatpush1.msra.mxu0 0.0
    %1161 = vmatprep.mubr.f32.mxu0 0.0
    %1162 = vmatmul.mubr.f32.gmra.mrb[0].mxu0 %v1092
    %v1163 = vpop.f32.mrb[0].mxu0
    %v1164 = vadd.f32 0.0, %v1163
    %v1165 = vpop.f32.mrb[0].mxu0
    %1166 = vmatprep.mubr.f32.mxu0 0.0
    %1167 = vmatmul.mubr.f32.gmra.mrb[0].mxu0 %v1095
    %v1168 = vpop.f32.mrb[0].mxu0
    %v1169 = vadd.f32 0.0, %v1168
    %v1170 = vpop.f32.mrb[0].mxu0
    %1171 = vdwg.mxu0
    %1172 = vrot.lane.b32.xlu0 %v300, 32
    %v1173 = vpop.permute.xlu0 %1172
    %1174 = vrot.lane.b32.xlu0 %v303, 32
    %v1175 = vpop.permute.xlu0 %1174
    %1176 = vrot.lane.b32.xlu0 %v423, 32
    %v1177 = vpop.permute.xlu0 %1176
    %1178 = vrot.lane.b32.xlu0 %v426, 32
    %v1179 = vpop.permute.xlu0 %1178
    %v1180 = vsel %vm559, %v1173, 0
    %v1182 = vsel %vm559, %v1175, 0
    %v1184 = vsel %vm559, %v1177, 0
    %v1186 = vsel %vm559, %v1179, 0
    %1188 = vmatprep.subr.mxu0 0.0
    %1189 = vmatpush1.xpose.msra.mxu0 %v1184
    %1190 = vmatprep.subr.mxu0 0.0
    %1191 = vmatpush1.xpose.msra.mxu0 %v1186
    %1192 = vmatprep.subr.mxu0 0.0
    %1193 = vmatpush1.xpose.msra.mxu0 0.0
    %1194 = vmatprep.subr.mxu0 0.0
    %1195 = vmatpush1.xpose.msra.mxu0 0.0
    %1196 = vmatprep.subr.mxu0 0.0
    %1197 = vmatpush1.xpose.msra.mxu0 0.0
    %1198 = vmatprep.subr.mxu0 0.0
    %1199 = vmatpush1.xpose.msra.mxu0 0.0
    %1200 = vmatprep.subr.mxu0 0.0
    %1201 = vmatpush1.xpose.msra.mxu0 0.0
    %1202 = vmatprep.subr.mxu0 0.0
    %1203 = vmatpush1.xpose.msra.mxu0 0.0
    %1204 = vmatprep.subr.mxu0 0.0
    %1205 = vmatpush1.xpose.msra.mxu0 0.0
    %1206 = vmatprep.subr.mxu0 0.0
    %1207 = vmatpush1.xpose.msra.mxu0 0.0
    %1208 = vmatprep.subr.mxu0 0.0
    %1209 = vmatpush1.xpose.msra.mxu0 0.0
    %1210 = vmatprep.subr.mxu0 0.0
    %1211 = vmatpush1.xpose.msra.mxu0 0.0
    %1212 = vmatprep.subr.mxu0 0.0
    %1213 = vmatpush1.xpose.msra.mxu0 0.0
    %1214 = vmatprep.subr.mxu0 0.0
    %1215 = vmatpush1.xpose.msra.mxu0 0.0
    %1216 = vmatprep.subr.mxu0 0.0
    %1217 = vmatpush1.xpose.msra.mxu0 0.0
    %1218 = vmatprep.subr.mxu0 0.0
    %1219 = vmatpush1.xpose.msra.mxu0 0.0
    %1220 = vmatprep.subr.mxu0 0.0
    %1221 = vmatpush1.xpose.msra.mxu0 0.0
    %1222 = vmatprep.subr.mxu0 0.0
    %1223 = vmatpush1.xpose.msra.mxu0 0.0
    %1224 = vmatprep.subr.mxu0 0.0
    %1225 = vmatpush1.xpose.msra.mxu0 0.0
    %1226 = vmatprep.subr.mxu0 0.0
    %1227 = vmatpush1.xpose.msra.mxu0 0.0
    %1228 = vmatprep.subr.mxu0 0.0
    %1229 = vmatpush1.xpose.msra.mxu0 0.0
    %1230 = vmatprep.subr.mxu0 0.0
    %1231 = vmatpush1.xpose.msra.mxu0 0.0
    %1232 = vmatprep.subr.mxu0 0.0
    %1233 = vmatpush1.xpose.msra.mxu0 0.0
    %1234 = vmatprep.subr.mxu0 0.0
    %1235 = vmatpush1.xpose.msra.mxu0 0.0
    %1236 = vmatprep.subr.mxu0 0.0
    %1237 = vmatpush1.xpose.msra.mxu0 0.0
    %1238 = vmatprep.subr.mxu0 0.0
    %1239 = vmatpush1.xpose.msra.mxu0 0.0
    %1240 = vmatprep.subr.mxu0 0.0
    %1241 = vmatpush1.xpose.msra.mxu0 0.0
    %1242 = vmatprep.subr.mxu0 0.0
    %1243 = vmatpush1.xpose.msra.mxu0 0.0
    %1244 = vmatprep.subr.mxu0 0.0
    %1245 = vmatpush1.xpose.msra.mxu0 0.0
    %1246 = vmatprep.subr.mxu0 0.0
    %1247 = vmatpush1.xpose.msra.mxu0 0.0
    %1248 = vmatprep.subr.mxu0 0.0
    %1249 = vmatpush1.xpose.msra.mxu0 0.0
    %1250 = vmatprep.subr.mxu0 0.0
    %1251 = vmatpush1.xpose.msra.mxu0 0.0
    %1252 = vmatprep.mubr.f32.mxu0 0.0
    %1253 = vmatmul.mubr.f32.gmra.mrb[0].mxu0 %v1180
    %v1254 = vpop.f32.mrb[0].mxu0
    %v1255 = vadd.f32 0.0, %v1254
    %v1256 = vpop.f32.mrb[0].mxu0
    %1257 = vmatprep.mubr.f32.mxu0 0.0
    %1258 = vmatmul.mubr.f32.gmra.mrb[0].mxu0 %v1182
    %v1259 = vpop.f32.mrb[0].mxu0
    %v1260 = vadd.f32 0.0, %v1259
    %v1261 = vpop.f32.mrb[0].mxu0
    %1262 = vdwg.mxu0
    %v1263 = vmul.f32 %v1255, 0.20412415
    %v1264 = vmul.f32 %v1260, 0.20412415
    %v1265 = vadd.f32 %v1263, %v653
    %v1266 = vadd.f32 %v1264, %v653
    %v1267 = vsel %vm657, %v1265, -inf
    %1268 = vmax.xlane.f32.xlu0 %v1267
    %v1269 = vpop.xlane.xlu0 %1268
    %v1270 = vsel %vm661, %v1266, -inf
    %1271 = vmax.xlane.f32.xlu0 %v1270
    %v1272 = vpop.xlane.xlu0 %1271
    %v1273 = vsub.f32 %v1265, %v1269
    %v1274 = vsub.f32 %v1266, %v1272
    %v1275 = vmul.f32 %v1273, 1.442695
    %v1276 = vpow.pop %v1275
    %v1277 = vmul.f32 %v1274, 1.442695
    %v1278 = vpow.pop %v1277
    %v1279 = vsel %vm657, %v1276, 0.0
    %1280 = vadd.xlane.f32.xlu0 %v1279
    %v1281 = vpop.xlane.xlu0 %1280
    %v1282 = vsel %vm661, %v1278, 0.0
    %1283 = vadd.xlane.f32.xlu0 %v1282
    %v1284 = vpop.xlane.xlu0 %1283
    %v1285 = vrcp.pop %v1281
    %v1286 = vrcp.pop %v1284
    %v1287 = vmul.f32 %v1276, %v1285
    %v1288 = vmul.f32 %v1278, %v1286
    %1289 = vrot.lane.b32.xlu0 %v545, 32
    %v1290 = vpop.permute.xlu0 %1289
    %1291 = vrot.lane.b32.xlu0 %v548, 32
    %v1292 = vpop.permute.xlu0 %1291
    %v1296 = vsel %vm657, %v1287, 0
    %v1299 = vsel %vm657, %v1288, 0
    %1301 = vmatprep.subr.mxu0 0.0
    %1302 = vmatpush1.msra.mxu0 %v1290
    %1303 = vmatprep.subr.mxu0 0.0
    %1304 = vmatpush1.msra.mxu0 %v1292
    %1305 = vmatprep.subr.mxu0 0.0
    %1306 = vmatpush1.msra.mxu0 0.0
    %1307 = vmatprep.subr.mxu0 0.0
    %1308 = vmatpush1.msra.mxu0 0.0
    %1309 = vmatprep.subr.mxu0 0.0
    %1310 = vmatpush1.msra.mxu0 0.0
    %1311 = vmatprep.subr.mxu0 0.0
    %1312 = vmatpush1.msra.mxu0 0.0
    %1313 = vmatprep.subr.mxu0 0.0
    %1314 = vmatpush1.msra.mxu0 0.0
    %1315 = vmatprep.subr.mxu0 0.0
    %1316 = vmatpush1.msra.mxu0 0.0
    %1317 = vmatprep.subr.mxu0 0.0
    %1318 = vmatpush1.msra.mxu0 0.0
    %1319 = vmatprep.subr.mxu0 0.0
    %1320 = vmatpush1.msra.mxu0 0.0
    %1321 = vmatprep.subr.mxu0 0.0
    %1322 = vmatpush1.msra.mxu0 0.0
    %1323 = vmatprep.subr.mxu0 0.0
    %1324 = vmatpush1.msra.mxu0 0.0
    %1325 = vmatprep.subr.mxu0 0.0
    %1326 = vmatpush1.msra.mxu0 0.0
    %1327 = vmatprep.subr.mxu0 0.0
    %1328 = vmatpush1.msra.mxu0 0.0
    %1329 = vmatprep.subr.mxu0 0.0
    %1330 = vmatpush1.msra.mxu0 0.0
    %1331 = vmatprep.subr.mxu0 0.0
    %1332 = vmatpush1.msra.mxu0 0.0
    %1333 = vmatprep.subr.mxu0 0.0
    %1334 = vmatpush1.msra.mxu0 0.0
    %1335 = vmatprep.subr.mxu0 0.0
    %1336 = vmatpush1.msra.mxu0 0.0
    %1337 = vmatprep.subr.mxu0 0.0
    %1338 = vmatpush1.msra.mxu0 0.0
    %1339 = vmatprep.subr.mxu0 0.0
    %1340 = vmatpush1.msra.mxu0 0.0
    %1341 = vmatprep.subr.mxu0 0.0
    %1342 = vmatpush1.msra.mxu0 0.0
    %1343 = vmatprep.subr.mxu0 0.0
    %1344 = vmatpush1.msra.mxu0 0.0
    %1345 = vmatprep.subr.mxu0 0.0
    %1346 = vmatpush1.msra.mxu0 0.0
    %1347 = vmatprep.subr.mxu0 0.0
    %1348 = vmatpush1.msra.mxu0 0.0
    %1349 = vmatprep.subr.mxu0 0.0
    %1350 = vmatpush1.msra.mxu0 0.0
    %1351 = vmatprep.subr.mxu0 0.0
    %1352 = vmatpush1.msra.mxu0 0.0
    %1353 = vmatprep.subr.mxu0 0.0
    %1354 = vmatpush1.msra.mxu0 0.0
    %1355 = vmatprep.subr.mxu0 0.0
    %1356 = vmatpush1.msra.mxu0 0.0
    %1357 = vmatprep.subr.mxu0 0.0
    %1358 = vmatpush1.msra.mxu0 0.0
    %1359 = vmatprep.subr.mxu0 0.0
    %1360 = vmatpush1.msra.mxu0 0.0
    %1361 = vmatprep.subr.mxu0 0.0
    %1362 = vmatpush1.msra.mxu0 0.0
    %1363 = vmatprep.subr.mxu0 0.0
    %1364 = vmatpush1.msra.mxu0 0.0
    %1365 = vmatprep.mubr.f32.mxu0 0.0
    %1366 = vmatmul.mubr.f32.gmra.mrb[0].mxu0 %v1296
    %v1367 = vpop.f32.mrb[0].mxu0
    %v1368 = vadd.f32 0.0, %v1367
    %v1369 = vpop.f32.mrb[0].mxu0
    %1370 = vmatprep.mubr.f32.mxu0 0.0
    %1371 = vmatmul.mubr.f32.gmra.mrb[0].mxu0 %v1299
    %v1372 = vpop.f32.mrb[0].mxu0
    %v1373 = vadd.f32 0.0, %v1372
    %v1374 = vpop.f32.mrb[0].mxu0
    %1375 = vdwg.mxu0
    %1378 = vrot.lane.b32.xlu0 %v960, 32
    %v1379 = vpop.permute.xlu0 %1378
    %1380 = vrot.lane.b32.xlu0 %v965, 32
    %v1381 = vpop.permute.xlu0 %1380
    %1386 = vrot.lane.b32.xlu0 %v1164, 64
    %v1387 = vpop.permute.xlu0 %1386
    %1388 = vrot.lane.b32.xlu0 %v1169, 64
    %v1389 = vpop.permute.xlu0 %1388
    %1394 = vrot.lane.b32.xlu0 %v1368, 96
    %v1395 = vpop.permute.xlu0 %1394
    %1396 = vrot.lane.b32.xlu0 %v1373, 96
    %v1397 = vpop.permute.xlu0 %1396
    %v1400 = vsel %vm559, %v754, %v1379
    %v1401 = vsel %vm559, %v759, %v1381
    %vm1402 = vcmask 523264
    %v1403 = vsel %vm1402, %v1400, %v1387
    %v1404 = vsel %vm1402, %v1401, %v1389
    %vm1405 = vcmask 785408
    %v1406 = vsel %vm1405, %v1403, %v1395
    %v1407 = vsel %vm1405, %v1404, %v1397
    %vm1409 = vcmask 1045504
    %v1410 = vrot.slane %v303, 2
    %v1411 = vrot.slane %v308, 2
    %v1412 = vsel %vm1409, %v1410, %v1411
    %v1413 = vsel %vm559, %v1412, 0
    %v1415 = vsel %vm559, %v1411, 0
    %v1418 = vsel %vm559, %v431, 0
    %v1421 = vsel %vm559, %v434, 0
    %1423 = vmatprep.subr.mxu0 0.0
    %1424 = vmatpush1.xpose.msra.mxu0 %v1418
    %1425 = vmatprep.subr.mxu0 0.0
    %1426 = vmatpush1.xpose.msra.mxu0 %v1421
    %1427 = vmatprep.subr.mxu0 0.0
    %1428 = vmatpush1.xpose.msra.mxu0 0.0
    %1429 = vmatprep.subr.mxu0 0.0
    %1430 = vmatpush1.xpose.msra.mxu0 0.0
    %1431 = vmatprep.subr.mxu0 0.0
    %1432 = vmatpush1.xpose.msra.mxu0 0.0
    %1433 = vmatprep.subr.mxu0 0.0
    %1434 = vmatpush1.xpose.msra.mxu0 0.0
    %1435 = vmatprep.subr.mxu0 0.0
    %1436 = vmatpush1.xpose.msra.mxu0 0.0
    %1437 = vmatprep.subr.mxu0 0.0
    %1438 = vmatpush1.xpose.msra.mxu0 0.0
    %1439 = vmatprep.subr.mxu0 0.0
    %1440 = vmatpush1.xpose.msra.mxu0 0.0
    %1441 = vmatprep.subr.mxu0 0.0
    %1442 = vmatpush1.xpose.msra.mxu0 0.0
    %1443 = vmatprep.subr.mxu0 0.0
    %1444 = vmatpush1.xpose.msra.mxu0 0.0
    %1445 = vmatprep.subr.mxu0 0.0
    %1446 = vmatpush1.xpose.msra.mxu0 0.0
    %1447 = vmatprep.subr.mxu0 0.0
    %1448 = vmatpush1.xpose.msra.mxu0 0.0
    %1449 = vmatprep.subr.mxu0 0.0
    %1450 = vmatpush1.xpose.msra.mxu0 0.0
    %1451 = vmatprep.subr.mxu0 0.0
    %1452 = vmatpush1.xpose.msra.mxu0 0.0
    %1453 = vmatprep.subr.mxu0 0.0
    %1454 = vmatpush1.xpose.msra.mxu0 0.0
    %1455 = vmatprep.subr.mxu0 0.0
    %1456 = vmatpush1.xpose.msra.mxu0 0.0
    %1457 = vmatprep.subr.mxu0 0.0
    %1458 = vmatpush1.xpose.msra.mxu0 0.0
    %1459 = vmatprep.subr.mxu0 0.0
    %1460 = vmatpush1.xpose.msra.mxu0 0.0
    %1461 = vmatprep.subr.mxu0 0.0
    %1462 = vmatpush1.xpose.msra.mxu0 0.0
    %1463 = vmatprep.subr.mxu0 0.0
    %1464 = vmatpush1.xpose.msra.mxu0 0.0
    %1465 = vmatprep.subr.mxu0 0.0
    %1466 = vmatpush1.xpose.msra.mxu0 0.0
    %1467 = vmatprep.subr.mxu0 0.0
    %1468 = vmatpush1.xpose.msra.mxu0 0.0
    %1469 = vmatprep.subr.mxu0 0.0
    %1470 = vmatpush1.xpose.msra.mxu0 0.0
    %1471 = vmatprep.subr.mxu0 0.0
    %1472 = vmatpush1.xpose.msra.mxu0 0.0
    %1473 = vmatprep.subr.mxu0 0.0
    %1474 = vmatpush1.xpose.msra.mxu0 0.0
    %1475 = vmatprep.subr.mxu0 0.0
    %1476 = vmatpush1.xpose.msra.mxu0 0.0
    %1477 = vmatprep.subr.mxu0 0.0
    %1478 = vmatpush1.xpose.msra.mxu0 0.0
    %1479 = vmatprep.subr.mxu0 0.0
    %1480 = vmatpush1.xpose.msra.mxu0 0.0
    %1481 = vmatprep.subr.mxu0 0.0
    %1482 = vmatpush1.xpose.msra.mxu0 0.0
    %1483 = vmatprep.subr.mxu0 0.0
    %1484 = vmatpush1.xpose.msra.mxu0 0.0
    %1485 = vmatprep.subr.mxu0 0.0
    %1486 = vmatpush1.xpose.msra.mxu0 0.0
    %1487 = vmatprep.mubr.f32.mxu0 0.0
    %1488 = vmatmul.mubr.f32.gmra.mrb[0].mxu0 %v1413
    %v1489 = vpop.f32.mrb[0].mxu0
    %v1490 = vadd.f32 0.0, %v1489
    %v1491 = vpop.f32.mrb[0].mxu0
    %1492 = vmatprep.mubr.f32.mxu0 0.0
    %1493 = vmatmul.mubr.f32.gmra.mrb[0].mxu0 %v1415
    %v1494 = vpop.f32.mrb[0].mxu0
    %v1495 = vadd.f32 0.0, %v1494
    %v1496 = vpop.f32.mrb[0].mxu0
    %1497 = vdwg.mxu0
    %v1498 = vmul.f32 %v1490, 0.20412415
    %v1499 = vmul.f32 %v1495, 0.20412415
    %v1501 = vlaneseq
    %v1502 = vshrl.u32 %v1501, 7
    %v1503 = vsub.s32 0, %v1502
    %v1504 = vrot.slane %v30, %v1503
    %v1506 = vadd.f32 %v1498, %v1504
    %v1507 = vadd.f32 %v1499, %v1504
    %v1508 = vsel %vm657, %v1506, -inf
    %1509 = vmax.xlane.f32.xlu0 %v1508
    %v1510 = vpop.xlane.xlu0 %1509
    %v1511 = vsel %vm661, %v1507, -inf
    %1512 = vmax.xlane.f32.xlu0 %v1511
    %v1513 = vpop.xlane.xlu0 %1512
    %v1514 = vsub.f32 %v1506, %v1510
    %v1515 = vsub.f32 %v1507, %v1513
    %v1516 = vmul.f32 %v1514, 1.442695
    %v1517 = vpow.pop %v1516
    %v1518 = vmul.f32 %v1515, 1.442695
    %v1519 = vpow.pop %v1518
    %v1520 = vsel %vm657, %v1517, 0.0
    %1521 = vadd.xlane.f32.xlu0 %v1520
    %v1522 = vpop.xlane.xlu0 %1521
    %v1523 = vsel %vm661, %v1519, 0.0
    %1524 = vadd.xlane.f32.xlu0 %v1523
    %v1525 = vpop.xlane.xlu0 %1524
    %v1526 = vrcp.pop %v1522
    %v1527 = vrcp.pop %v1525
    %v1528 = vmul.f32 %v1517, %v1526
    %v1529 = vmul.f32 %v1519, %v1527
    %v1531 = vsel %vm657, %v1528, 0
    %v1534 = vsel %vm657, %v1529, 0
    %1536 = vmatprep.subr.mxu0 0.0
    %1537 = vmatpush1.msra.mxu0 %v553
    %1538 = vmatprep.subr.mxu0 0.0
    %1539 = vmatpush1.msra.mxu0 %v556
    %1540 = vmatprep.subr.mxu0 0.0
    %1541 = vmatpush1.msra.mxu0 0.0
    %1542 = vmatprep.subr.mxu0 0.0
    %1543 = vmatpush1.msra.mxu0 0.0
    %1544 = vmatprep.subr.mxu0 0.0
    %1545 = vmatpush1.msra.mxu0 0.0
    %1546 = vmatprep.subr.mxu0 0.0
    %1547 = vmatpush1.msra.mxu0 0.0
    %1548 = vmatprep.subr.mxu0 0.0
    %1549 = vmatpush1.msra.mxu0 0.0
    %1550 = vmatprep.subr.mxu0 0.0
    %1551 = vmatpush1.msra.mxu0 0.0
    %1552 = vmatprep.subr.mxu0 0.0
    %1553 = vmatpush1.msra.mxu0 0.0
    %1554 = vmatprep.subr.mxu0 0.0
    %1555 = vmatpush1.msra.mxu0 0.0
    %1556 = vmatprep.subr.mxu0 0.0
    %1557 = vmatpush1.msra.mxu0 0.0
    %1558 = vmatprep.subr.mxu0 0.0
    %1559 = vmatpush1.msra.mxu0 0.0
    %1560 = vmatprep.subr.mxu0 0.0
    %1561 = vmatpush1.msra.mxu0 0.0
    %1562 = vmatprep.subr.mxu0 0.0
    %1563 = vmatpush1.msra.mxu0 0.0
    %1564 = vmatprep.subr.mxu0 0.0
    %1565 = vmatpush1.msra.mxu0 0.0
    %1566 = vmatprep.subr.mxu0 0.0
    %1567 = vmatpush1.msra.mxu0 0.0
    %1568 = vmatprep.subr.mxu0 0.0
    %1569 = vmatpush1.msra.mxu0 0.0
    %1570 = vmatprep.subr.mxu0 0.0
    %1571 = vmatpush1.msra.mxu0 0.0
    %1572 = vmatprep.subr.mxu0 0.0
    %1573 = vmatpush1.msra.mxu0 0.0
    %1574 = vmatprep.subr.mxu0 0.0
    %1575 = vmatpush1.msra.mxu0 0.0
    %1576 = vmatprep.subr.mxu0 0.0
    %1577 = vmatpush1.msra.mxu0 0.0
    %1578 = vmatprep.subr.mxu0 0.0
    %1579 = vmatpush1.msra.mxu0 0.0
    %1580 = vmatprep.subr.mxu0 0.0
    %1581 = vmatpush1.msra.mxu0 0.0
    %1582 = vmatprep.subr.mxu0 0.0
    %1583 = vmatpush1.msra.mxu0 0.0
    %1584 = vmatprep.subr.mxu0 0.0
    %1585 = vmatpush1.msra.mxu0 0.0
    %1586 = vmatprep.subr.mxu0 0.0
    %1587 = vmatpush1.msra.mxu0 0.0
    %1588 = vmatprep.subr.mxu0 0.0
    %1589 = vmatpush1.msra.mxu0 0.0
    %1590 = vmatprep.subr.mxu0 0.0
    %1591 = vmatpush1.msra.mxu0 0.0
    %1592 = vmatprep.subr.mxu0 0.0
    %1593 = vmatpush1.msra.mxu0 0.0
    %1594 = vmatprep.subr.mxu0 0.0
    %1595 = vmatpush1.msra.mxu0 0.0
    %1596 = vmatprep.subr.mxu0 0.0
    %1597 = vmatpush1.msra.mxu0 0.0
    %1598 = vmatprep.subr.mxu0 0.0
    %1599 = vmatpush1.msra.mxu0 0.0
    %1600 = vmatprep.mubr.f32.mxu0 0.0
    %1601 = vmatmul.mubr.f32.gmra.mrb[0].mxu0 %v1531
    %v1602 = vpop.f32.mrb[0].mxu0
    %v1603 = vadd.f32 0.0, %v1602
    %v1604 = vpop.f32.mrb[0].mxu0
    %1605 = vmatprep.mubr.f32.mxu0 0.0
    %1606 = vmatmul.mubr.f32.gmra.mrb[0].mxu0 %v1534
    %v1607 = vpop.f32.mrb[0].mxu0
    %v1608 = vadd.f32 0.0, %v1607
    %v1609 = vpop.f32.mrb[0].mxu0
    %1610 = vdwg.mxu0
    %1611 = vrot.lane.b32.xlu0 %v1412, 96
    %v1612 = vpop.permute.xlu0 %1611
    %1613 = vrot.lane.b32.xlu0 %v1411, 96
    %v1614 = vpop.permute.xlu0 %1613
    %1615 = vrot.lane.b32.xlu0 %v431, 96
    %v1616 = vpop.permute.xlu0 %1615
    %1617 = vrot.lane.b32.xlu0 %v434, 96
    %v1618 = vpop.permute.xlu0 %1617
    %v1619 = vsel %vm559, %v1612, 0
    %v1621 = vsel %vm559, %v1614, 0
    %v1623 = vsel %vm559, %v1616, 0
    %v1625 = vsel %vm559, %v1618, 0
    %1627 = vmatprep.subr.mxu0 0.0
    %1628 = vmatpush1.xpose.msra.mxu0 %v1623
    %1629 = vmatprep.subr.mxu0 0.0
    %1630 = vmatpush1.xpose.msra.mxu0 %v1625
    %1631 = vmatprep.subr.mxu0 0.0
    %1632 = vmatpush1.xpose.msra.mxu0 0.0
    %1633 = vmatprep.subr.mxu0 0.0
    %1634 = vmatpush1.xpose.msra.mxu0 0.0
    %1635 = vmatprep.subr.mxu0 0.0
    %1636 = vmatpush1.xpose.msra.mxu0 0.0
    %1637 = vmatprep.subr.mxu0 0.0
    %1638 = vmatpush1.xpose.msra.mxu0 0.0
    %1639 = vmatprep.subr.mxu0 0.0
    %1640 = vmatpush1.xpose.msra.mxu0 0.0
    %1641 = vmatprep.subr.mxu0 0.0
    %1642 = vmatpush1.xpose.msra.mxu0 0.0
    %1643 = vmatprep.subr.mxu0 0.0
    %1644 = vmatpush1.xpose.msra.mxu0 0.0
    %1645 = vmatprep.subr.mxu0 0.0
    %1646 = vmatpush1.xpose.msra.mxu0 0.0
    %1647 = vmatprep.subr.mxu0 0.0
    %1648 = vmatpush1.xpose.msra.mxu0 0.0
    %1649 = vmatprep.subr.mxu0 0.0
    %1650 = vmatpush1.xpose.msra.mxu0 0.0
    %1651 = vmatprep.subr.mxu0 0.0
    %1652 = vmatpush1.xpose.msra.mxu0 0.0
    %1653 = vmatprep.subr.mxu0 0.0
    %1654 = vmatpush1.xpose.msra.mxu0 0.0
    %1655 = vmatprep.subr.mxu0 0.0
    %1656 = vmatpush1.xpose.msra.mxu0 0.0
    %1657 = vmatprep.subr.mxu0 0.0
    %1658 = vmatpush1.xpose.msra.mxu0 0.0
    %1659 = vmatprep.subr.mxu0 0.0
    %1660 = vmatpush1.xpose.msra.mxu0 0.0
    %1661 = vmatprep.subr.mxu0 0.0
    %1662 = vmatpush1.xpose.msra.mxu0 0.0
    %1663 = vmatprep.subr.mxu0 0.0
    %1664 = vmatpush1.xpose.msra.mxu0 0.0
    %1665 = vmatprep.subr.mxu0 0.0
    %1666 = vmatpush1.xpose.msra.mxu0 0.0
    %1667 = vmatprep.subr.mxu0 0.0
    %1668 = vmatpush1.xpose.msra.mxu0 0.0
    %1669 = vmatprep.subr.mxu0 0.0
    %1670 = vmatpush1.xpose.msra.mxu0 0.0
    %1671 = vmatprep.subr.mxu0 0.0
    %1672 = vmatpush1.xpose.msra.mxu0 0.0
    %1673 = vmatprep.subr.mxu0 0.0
    %1674 = vmatpush1.xpose.msra.mxu0 0.0
    %1675 = vmatprep.subr.mxu0 0.0
    %1676 = vmatpush1.xpose.msra.mxu0 0.0
    %1677 = vmatprep.subr.mxu0 0.0
    %1678 = vmatpush1.xpose.msra.mxu0 0.0
    %1679 = vmatprep.subr.mxu0 0.0
    %1680 = vmatpush1.xpose.msra.mxu0 0.0
    %1681 = vmatprep.subr.mxu0 0.0
    %1682 = vmatpush1.xpose.msra.mxu0 0.0
    %1683 = vmatprep.subr.mxu0 0.0
    %1684 = vmatpush1.xpose.msra.mxu0 0.0
    %1685 = vmatprep.subr.mxu0 0.0
    %1686 = vmatpush1.xpose.msra.mxu0 0.0
    %1687 = vmatprep.subr.mxu0 0.0
    %1688 = vmatpush1.xpose.msra.mxu0 0.0
    %1689 = vmatprep.subr.mxu0 0.0
    %1690 = vmatpush1.xpose.msra.mxu0 0.0
    %1691 = vmatprep.mubr.f32.mxu0 0.0
    %1692 = vmatmul.mubr.f32.gmra.mrb[0].mxu0 %v1619
    %v1693 = vpop.f32.mrb[0].mxu0
    %v1694 = vadd.f32 0.0, %v1693
    %v1695 = vpop.f32.mrb[0].mxu0
    %1696 = vmatprep.mubr.f32.mxu0 0.0
    %1697 = vmatmul.mubr.f32.gmra.mrb[0].mxu0 %v1621
    %v1698 = vpop.f32.mrb[0].mxu0
    %v1699 = vadd.f32 0.0, %v1698
    %v1700 = vpop.f32.mrb[0].mxu0
    %1701 = vdwg.mxu0
    %v1702 = vmul.f32 %v1694, 0.20412415
    %v1703 = vmul.f32 %v1699, 0.20412415
    %v1704 = vadd.f32 %v1702, %v1504
    %v1705 = vadd.f32 %v1703, %v1504
    %v1706 = vsel %vm657, %v1704, -inf
    %1707 = vmax.xlane.f32.xlu0 %v1706
    %v1708 = vpop.xlane.xlu0 %1707
    %v1709 = vsel %vm661, %v1705, -inf
    %1710 = vmax.xlane.f32.xlu0 %v1709
    %v1711 = vpop.xlane.xlu0 %1710
    %v1712 = vsub.f32 %v1704, %v1708
    %v1713 = vsub.f32 %v1705, %v1711
    %v1714 = vmul.f32 %v1712, 1.442695
    %v1715 = vpow.pop %v1714
    %v1716 = vmul.f32 %v1713, 1.442695
    %v1717 = vpow.pop %v1716
    %v1718 = vsel %vm657, %v1715, 0.0
    %1719 = vadd.xlane.f32.xlu0 %v1718
    %v1720 = vpop.xlane.xlu0 %1719
    %v1721 = vsel %vm661, %v1717, 0.0
    %1722 = vadd.xlane.f32.xlu0 %v1721
    %v1723 = vpop.xlane.xlu0 %1722
    %v1724 = vrcp.pop %v1720
    %v1725 = vrcp.pop %v1723
    %v1726 = vmul.f32 %v1715, %v1724
    %v1727 = vmul.f32 %v1717, %v1725
    %1730 = vrot.lane.b32.xlu0 %v553, 96
    %v1731 = vpop.permute.xlu0 %1730
    %1732 = vrot.lane.b32.xlu0 %v556, 96
    %v1733 = vpop.permute.xlu0 %1732
    %v1737 = vsel %vm657, %v1726, 0
    %v1740 = vsel %vm657, %v1727, 0
    %1742 = vmatprep.subr.mxu0 0.0
    %1743 = vmatpush1.msra.mxu0 %v1731
    %1744 = vmatprep.subr.mxu0 0.0
    %1745 = vmatpush1.msra.mxu0 %v1733
    %1746 = vmatprep.subr.mxu0 0.0
    %1747 = vmatpush1.msra.mxu0 0.0
    %1748 = vmatprep.subr.mxu0 0.0
    %1749 = vmatpush1.msra.mxu0 0.0
    %1750 = vmatprep.subr.mxu0 0.0
    %1751 = vmatpush1.msra.mxu0 0.0
    %1752 = vmatprep.subr.mxu0 0.0
    %1753 = vmatpush1.msra.mxu0 0.0
    %1754 = vmatprep.subr.mxu0 0.0
    %1755 = vmatpush1.msra.mxu0 0.0
    %1756 = vmatprep.subr.mxu0 0.0
    %1757 = vmatpush1.msra.mxu0 0.0
    %1758 = vmatprep.subr.mxu0 0.0
    %1759 = vmatpush1.msra.mxu0 0.0
    %1760 = vmatprep.subr.mxu0 0.0
    %1761 = vmatpush1.msra.mxu0 0.0
    %1762 = vmatprep.subr.mxu0 0.0
    %1763 = vmatpush1.msra.mxu0 0.0
    %1764 = vmatprep.subr.mxu0 0.0
    %1765 = vmatpush1.msra.mxu0 0.0
    %1766 = vmatprep.subr.mxu0 0.0
    %1767 = vmatpush1.msra.mxu0 0.0
    %1768 = vmatprep.subr.mxu0 0.0
    %1769 = vmatpush1.msra.mxu0 0.0
    %1770 = vmatprep.subr.mxu0 0.0
    %1771 = vmatpush1.msra.mxu0 0.0
    %1772 = vmatprep.subr.mxu0 0.0
    %1773 = vmatpush1.msra.mxu0 0.0
    %1774 = vmatprep.subr.mxu0 0.0
    %1775 = vmatpush1.msra.mxu0 0.0
    %1776 = vmatprep.subr.mxu0 0.0
    %1777 = vmatpush1.msra.mxu0 0.0
    %1778 = vmatprep.subr.mxu0 0.0
    %1779 = vmatpush1.msra.mxu0 0.0
    %1780 = vmatprep.subr.mxu0 0.0
    %1781 = vmatpush1.msra.mxu0 0.0
    %1782 = vmatprep.subr.mxu0 0.0
    %1783 = vmatpush1.msra.mxu0 0.0
    %1784 = vmatprep.subr.mxu0 0.0
    %1785 = vmatpush1.msra.mxu0 0.0
    %1786 = vmatprep.subr.mxu0 0.0
    %1787 = vmatpush1.msra.mxu0 0.0
    %1788 = vmatprep.subr.mxu0 0.0
    %1789 = vmatpush1.msra.mxu0 0.0
    %1790 = vmatprep.subr.mxu0 0.0
    %1791 = vmatpush1.msra.mxu0 0.0
    %1792 = vmatprep.subr.mxu0 0.0
    %1793 = vmatpush1.msra.mxu0 0.0
    %1794 = vmatprep.subr.mxu0 0.0
    %1795 = vmatpush1.msra.mxu0 0.0
    %1796 = vmatprep.subr.mxu0 0.0
    %1797 = vmatpush1.msra.mxu0 0.0
    %1798 = vmatprep.subr.mxu0 0.0
    %1799 = vmatpush1.msra.mxu0 0.0
    %1800 = vmatprep.subr.mxu0 0.0
    %1801 = vmatpush1.msra.mxu0 0.0
    %1802 = vmatprep.subr.mxu0 0.0
    %1803 = vmatpush1.msra.mxu0 0.0
    %1804 = vmatprep.subr.mxu0 0.0
    %1805 = vmatpush1.msra.mxu0 0.0
    %1806 = vmatprep.mubr.f32.mxu0 0.0
    %1807 = vmatmul.mubr.f32.gmra.mrb[0].mxu0 %v1737
    %v1808 = vpop.f32.mrb[0].mxu0
    %v1809 = vadd.f32 0.0, %v1808
    %v1810 = vpop.f32.mrb[0].mxu0
    %1811 = vmatprep.mubr.f32.mxu0 0.0
    %1812 = vmatmul.mubr.f32.gmra.mrb[0].mxu0 %v1740
    %v1813 = vpop.f32.mrb[0].mxu0
    %v1814 = vadd.f32 0.0, %v1813
    %v1815 = vpop.f32.mrb[0].mxu0
    %1816 = vdwg.mxu0
    %1817 = vrot.lane.b32.xlu0 %v1412, 64
    %v1818 = vpop.permute.xlu0 %1817
    %1819 = vrot.lane.b32.xlu0 %v1411, 64
    %v1820 = vpop.permute.xlu0 %1819
    %1821 = vrot.lane.b32.xlu0 %v431, 64
    %v1822 = vpop.permute.xlu0 %1821
    %1823 = vrot.lane.b32.xlu0 %v434, 64
    %v1824 = vpop.permute.xlu0 %1823
    %v1825 = vsel %vm559, %v1818, 0
    %v1827 = vsel %vm559, %v1820, 0
    %v1829 = vsel %vm559, %v1822, 0
    %v1831 = vsel %vm559, %v1824, 0
    %1833 = vmatprep.subr.mxu0 0.0
    %1834 = vmatpush1.xpose.msra.mxu0 %v1829
    %1835 = vmatprep.subr.mxu0 0.0
    %1836 = vmatpush1.xpose.msra.mxu0 %v1831
    %1837 = vmatprep.subr.mxu0 0.0
    %1838 = vmatpush1.xpose.msra.mxu0 0.0
    %1839 = vmatprep.subr.mxu0 0.0
    %1840 = vmatpush1.xpose.msra.mxu0 0.0
    %1841 = vmatprep.subr.mxu0 0.0
    %1842 = vmatpush1.xpose.msra.mxu0 0.0
    %1843 = vmatprep.subr.mxu0 0.0
    %1844 = vmatpush1.xpose.msra.mxu0 0.0
    %1845 = vmatprep.subr.mxu0 0.0
    %1846 = vmatpush1.xpose.msra.mxu0 0.0
    %1847 = vmatprep.subr.mxu0 0.0
    %1848 = vmatpush1.xpose.msra.mxu0 0.0
    %1849 = vmatprep.subr.mxu0 0.0
    %1850 = vmatpush1.xpose.msra.mxu0 0.0
    %1851 = vmatprep.subr.mxu0 0.0
    %1852 = vmatpush1.xpose.msra.mxu0 0.0
    %1853 = vmatprep.subr.mxu0 0.0
    %1854 = vmatpush1.xpose.msra.mxu0 0.0
    %1855 = vmatprep.subr.mxu0 0.0
    %1856 = vmatpush1.xpose.msra.mxu0 0.0
    %1857 = vmatprep.subr.mxu0 0.0
    %1858 = vmatpush1.xpose.msra.mxu0 0.0
    %1859 = vmatprep.subr.mxu0 0.0
    %1860 = vmatpush1.xpose.msra.mxu0 0.0
    %1861 = vmatprep.subr.mxu0 0.0
    %1862 = vmatpush1.xpose.msra.mxu0 0.0
    %1863 = vmatprep.subr.mxu0 0.0
    %1864 = vmatpush1.xpose.msra.mxu0 0.0
    %1865 = vmatprep.subr.mxu0 0.0
    %1866 = vmatpush1.xpose.msra.mxu0 0.0
    %1867 = vmatprep.subr.mxu0 0.0
    %1868 = vmatpush1.xpose.msra.mxu0 0.0
    %1869 = vmatprep.subr.mxu0 0.0
    %1870 = vmatpush1.xpose.msra.mxu0 0.0
    %1871 = vmatprep.subr.mxu0 0.0
    %1872 = vmatpush1.xpose.msra.mxu0 0.0
    %1873 = vmatprep.subr.mxu0 0.0
    %1874 = vmatpush1.xpose.msra.mxu0 0.0
    %1875 = vmatprep.subr.mxu0 0.0
    %1876 = vmatpush1.xpose.msra.mxu0 0.0
    %1877 = vmatprep.subr.mxu0 0.0
    %1878 = vmatpush1.xpose.msra.mxu0 0.0
    %1879 = vmatprep.subr.mxu0 0.0
    %1880 = vmatpush1.xpose.msra.mxu0 0.0
    %1881 = vmatprep.subr.mxu0 0.0
    %1882 = vmatpush1.xpose.msra.mxu0 0.0
    %1883 = vmatprep.subr.mxu0 0.0
    %1884 = vmatpush1.xpose.msra.mxu0 0.0
    %1885 = vmatprep.subr.mxu0 0.0
    %1886 = vmatpush1.xpose.msra.mxu0 0.0
    %1887 = vmatprep.subr.mxu0 0.0
    %1888 = vmatpush1.xpose.msra.mxu0 0.0
    %1889 = vmatprep.subr.mxu0 0.0
    %1890 = vmatpush1.xpose.msra.mxu0 0.0
    %1891 = vmatprep.subr.mxu0 0.0
    %1892 = vmatpush1.xpose.msra.mxu0 0.0
    %1893 = vmatprep.subr.mxu0 0.0
    %1894 = vmatpush1.xpose.msra.mxu0 0.0
    %1895 = vmatprep.subr.mxu0 0.0
    %1896 = vmatpush1.xpose.msra.mxu0 0.0
    %1897 = vmatprep.mubr.f32.mxu0 0.0
    %1898 = vmatmul.mubr.f32.gmra.mrb[0].mxu0 %v1825
    %v1899 = vpop.f32.mrb[0].mxu0
    %v1900 = vadd.f32 0.0, %v1899
    %v1901 = vpop.f32.mrb[0].mxu0
    %1902 = vmatprep.mubr.f32.mxu0 0.0
    %1903 = vmatmul.mubr.f32.gmra.mrb[0].mxu0 %v1827
    %v1904 = vpop.f32.mrb[0].mxu0
    %v1905 = vadd.f32 0.0, %v1904
    %v1906 = vpop.f32.mrb[0].mxu0
    %1907 = vdwg.mxu0
    %v1908 = vmul.f32 %v1900, 0.20412415
    %v1909 = vmul.f32 %v1905, 0.20412415
    %v1910 = vadd.f32 %v1908, %v1504
    %v1911 = vadd.f32 %v1909, %v1504
    %v1912 = vsel %vm657, %v1910, -inf
    %1913 = vmax.xlane.f32.xlu0 %v1912
    %v1914 = vpop.xlane.xlu0 %1913
    %v1915 = vsel %vm661, %v1911, -inf
    %1916 = vmax.xlane.f32.xlu0 %v1915
    %v1917 = vpop.xlane.xlu0 %1916
    %v1918 = vsub.f32 %v1910, %v1914
    %v1919 = vsub.f32 %v1911, %v1917
    %v1920 = vmul.f32 %v1918, 1.442695
    %v1921 = vpow.pop %v1920
    %v1922 = vmul.f32 %v1919, 1.442695
    %v1923 = vpow.pop %v1922
    %v1924 = vsel %vm657, %v1921, 0.0
    %1925 = vadd.xlane.f32.xlu0 %v1924
    %v1926 = vpop.xlane.xlu0 %1925
    %v1927 = vsel %vm661, %v1923, 0.0
    %1928 = vadd.xlane.f32.xlu0 %v1927
    %v1929 = vpop.xlane.xlu0 %1928
    %v1930 = vrcp.pop %v1926
    %v1931 = vrcp.pop %v1929
    %v1932 = vmul.f32 %v1921, %v1930
    %v1933 = vmul.f32 %v1923, %v1931
    %1934 = vrot.lane.b32.xlu0 %v553, 64
    %v1935 = vpop.permute.xlu0 %1934
    %1936 = vrot.lane.b32.xlu0 %v556, 64
    %v1937 = vpop.permute.xlu0 %1936
    %v1941 = vsel %vm657, %v1932, 0
    %v1944 = vsel %vm657, %v1933, 0
    %1946 = vmatprep.subr.mxu0 0.0
    %1947 = vmatpush1.msra.mxu0 %v1935
    %1948 = vmatprep.subr.mxu0 0.0
    %1949 = vmatpush1.msra.mxu0 %v1937
    %1950 = vmatprep.subr.mxu0 0.0
    %1951 = vmatpush1.msra.mxu0 0.0
    %1952 = vmatprep.subr.mxu0 0.0
    %1953 = vmatpush1.msra.mxu0 0.0
    %1954 = vmatprep.subr.mxu0 0.0
    %1955 = vmatpush1.msra.mxu0 0.0
    %1956 = vmatprep.subr.mxu0 0.0
    %1957 = vmatpush1.msra.mxu0 0.0
    %1958 = vmatprep.subr.mxu0 0.0
    %1959 = vmatpush1.msra.mxu0 0.0
    %1960 = vmatprep.subr.mxu0 0.0
    %1961 = vmatpush1.msra.mxu0 0.0
    %1962 = vmatprep.subr.mxu0 0.0
    %1963 = vmatpush1.msra.mxu0 0.0
    %1964 = vmatprep.subr.mxu0 0.0
    %1965 = vmatpush1.msra.mxu0 0.0
    %1966 = vmatprep.subr.mxu0 0.0
    %1967 = vmatpush1.msra.mxu0 0.0
    %1968 = vmatprep.subr.mxu0 0.0
    %1969 = vmatpush1.msra.mxu0 0.0
    %1970 = vmatprep.subr.mxu0 0.0
    %1971 = vmatpush1.msra.mxu0 0.0
    %1972 = vmatprep.subr.mxu0 0.0
    %1973 = vmatpush1.msra.mxu0 0.0
    %1974 = vmatprep.subr.mxu0 0.0
    %1975 = vmatpush1.msra.mxu0 0.0
    %1976 = vmatprep.subr.mxu0 0.0
    %1977 = vmatpush1.msra.mxu0 0.0
    %1978 = vmatprep.subr.mxu0 0.0
    %1979 = vmatpush1.msra.mxu0 0.0
    %1980 = vmatprep.subr.mxu0 0.0
    %1981 = vmatpush1.msra.mxu0 0.0
    %1982 = vmatprep.subr.mxu0 0.0
    %1983 = vmatpush1.msra.mxu0 0.0
    %1984 = vmatprep.subr.mxu0 0.0
    %1985 = vmatpush1.msra.mxu0 0.0
    %1986 = vmatprep.subr.mxu0 0.0
    %1987 = vmatpush1.msra.mxu0 0.0
    %1988 = vmatprep.subr.mxu0 0.0
    %1989 = vmatpush1.msra.mxu0 0.0
    %1990 = vmatprep.subr.mxu0 0.0
    %1991 = vmatpush1.msra.mxu0 0.0
    %1992 = vmatprep.subr.mxu0 0.0
    %1993 = vmatpush1.msra.mxu0 0.0
    %1994 = vmatprep.subr.mxu0 0.0
    %1995 = vmatpush1.msra.mxu0 0.0
    %1996 = vmatprep.subr.mxu0 0.0
    %1997 = vmatpush1.msra.mxu0 0.0
    %1998 = vmatprep.subr.mxu0 0.0
    %1999 = vmatpush1.msra.mxu0 0.0
    %2000 = vmatprep.subr.mxu0 0.0
    %2001 = vmatpush1.msra.mxu0 0.0
    %2002 = vmatprep.subr.mxu0 0.0
    %2003 = vmatpush1.msra.mxu0 0.0
    %2004 = vmatprep.subr.mxu0 0.0
    %2005 = vmatpush1.msra.mxu0 0.0
    %2006 = vmatprep.subr.mxu0 0.0
    %2007 = vmatpush1.msra.mxu0 0.0
    %2008 = vmatprep.subr.mxu0 0.0
    %2009 = vmatpush1.msra.mxu0 0.0
    %2010 = vmatprep.mubr.f32.mxu0 0.0
    %2011 = vmatmul.mubr.f32.gmra.mrb[0].mxu0 %v1941
    %v2012 = vpop.f32.mrb[0].mxu0
    %v2013 = vadd.f32 0.0, %v2012
    %v2014 = vpop.f32.mrb[0].mxu0
    %2015 = vmatprep.mubr.f32.mxu0 0.0
    %2016 = vmatmul.mubr.f32.gmra.mrb[0].mxu0 %v1944
    %v2017 = vpop.f32.mrb[0].mxu0
    %v2018 = vadd.f32 0.0, %v2017
    %v2019 = vpop.f32.mrb[0].mxu0
    %2020 = vdwg.mxu0
    %2021 = vrot.lane.b32.xlu0 %v1412, 32
    %v2022 = vpop.permute.xlu0 %2021
    %2023 = vrot.lane.b32.xlu0 %v1411, 32
    %v2024 = vpop.permute.xlu0 %2023
    %2025 = vrot.lane.b32.xlu0 %v431, 32
    %v2026 = vpop.permute.xlu0 %2025
    %2027 = vrot.lane.b32.xlu0 %v434, 32
    %v2028 = vpop.permute.xlu0 %2027
    %v2029 = vsel %vm559, %v2022, 0
    %v2031 = vsel %vm559, %v2024, 0
    %v2033 = vsel %vm559, %v2026, 0
    %v2035 = vsel %vm559, %v2028, 0
    %2037 = vmatprep.subr.mxu0 0.0
    %2038 = vmatpush1.xpose.msra.mxu0 %v2033
    %2039 = vmatprep.subr.mxu0 0.0
    %2040 = vmatpush1.xpose.msra.mxu0 %v2035
    %2041 = vmatprep.subr.mxu0 0.0
    %2042 = vmatpush1.xpose.msra.mxu0 0.0
    %2043 = vmatprep.subr.mxu0 0.0
    %2044 = vmatpush1.xpose.msra.mxu0 0.0
    %2045 = vmatprep.subr.mxu0 0.0
    %2046 = vmatpush1.xpose.msra.mxu0 0.0
    %2047 = vmatprep.subr.mxu0 0.0
    %2048 = vmatpush1.xpose.msra.mxu0 0.0
    %2049 = vmatprep.subr.mxu0 0.0
    %2050 = vmatpush1.xpose.msra.mxu0 0.0
    %2051 = vmatprep.subr.mxu0 0.0
    %2052 = vmatpush1.xpose.msra.mxu0 0.0
    %2053 = vmatprep.subr.mxu0 0.0
    %2054 = vmatpush1.xpose.msra.mxu0 0.0
    %2055 = vmatprep.subr.mxu0 0.0
    %2056 = vmatpush1.xpose.msra.mxu0 0.0
    %2057 = vmatprep.subr.mxu0 0.0
    %2058 = vmatpush1.xpose.msra.mxu0 0.0
    %2059 = vmatprep.subr.mxu0 0.0
    %2060 = vmatpush1.xpose.msra.mxu0 0.0
    %2061 = vmatprep.subr.mxu0 0.0
    %2062 = vmatpush1.xpose.msra.mxu0 0.0
    %2063 = vmatprep.subr.mxu0 0.0
    %2064 = vmatpush1.xpose.msra.mxu0 0.0
    %2065 = vmatprep.subr.mxu0 0.0
    %2066 = vmatpush1.xpose.msra.mxu0 0.0
    %2067 = vmatprep.subr.mxu0 0.0
    %2068 = vmatpush1.xpose.msra.mxu0 0.0
    %2069 = vmatprep.subr.mxu0 0.0
    %2070 = vmatpush1.xpose.msra.mxu0 0.0
    %2071 = vmatprep.subr.mxu0 0.0
    %2072 = vmatpush1.xpose.msra.mxu0 0.0
    %2073 = vmatprep.subr.mxu0 0.0
    %2074 = vmatpush1.xpose.msra.mxu0 0.0
    %2075 = vmatprep.subr.mxu0 0.0
    %2076 = vmatpush1.xpose.msra.mxu0 0.0
    %2077 = vmatprep.subr.mxu0 0.0
    %2078 = vmatpush1.xpose.msra.mxu0 0.0
    %2079 = vmatprep.subr.mxu0 0.0
    %2080 = vmatpush1.xpose.msra.mxu0 0.0
    %2081 = vmatprep.subr.mxu0 0.0
    %2082 = vmatpush1.xpose.msra.mxu0 0.0
    %2083 = vmatprep.subr.mxu0 0.0
    %2084 = vmatpush1.xpose.msra.mxu0 0.0
    %2085 = vmatprep.subr.mxu0 0.0
    %2086 = vmatpush1.xpose.msra.mxu0 0.0
    %2087 = vmatprep.subr.mxu0 0.0
    %2088 = vmatpush1.xpose.msra.mxu0 0.0
    %2089 = vmatprep.subr.mxu0 0.0
    %2090 = vmatpush1.xpose.msra.mxu0 0.0
    %2091 = vmatprep.subr.mxu0 0.0
    %2092 = vmatpush1.xpose.msra.mxu0 0.0
    %2093 = vmatprep.subr.mxu0 0.0
    %2094 = vmatpush1.xpose.msra.mxu0 0.0
    %2095 = vmatprep.subr.mxu0 0.0
    %2096 = vmatpush1.xpose.msra.mxu0 0.0
    %2097 = vmatprep.subr.mxu0 0.0
    %2098 = vmatpush1.xpose.msra.mxu0 0.0
    %2099 = vmatprep.subr.mxu0 0.0
    %2100 = vmatpush1.xpose.msra.mxu0 0.0
    %2101 = vmatprep.mubr.f32.mxu0 0.0
    %2102 = vmatmul.mubr.f32.gmra.mrb[0].mxu0 %v2029
    %v2103 = vpop.f32.mrb[0].mxu0
    %v2104 = vadd.f32 0.0, %v2103
    %v2105 = vpop.f32.mrb[0].mxu0
    %2106 = vmatprep.mubr.f32.mxu0 0.0
    %2107 = vmatmul.mubr.f32.gmra.mrb[0].mxu0 %v2031
    %v2108 = vpop.f32.mrb[0].mxu0
    %v2109 = vadd.f32 0.0, %v2108
    %v2110 = vpop.f32.mrb[0].mxu0
    %2111 = vdwg.mxu0
    %v2112 = vmul.f32 %v2104, 0.20412415
    %v2113 = vmul.f32 %v2109, 0.20412415
    %v2114 = vadd.f32 %v2112, %v1504
    %v2115 = vadd.f32 %v2113, %v1504
    %v2116 = vsel %vm657, %v2114, -inf
    %2117 = vmax.xlane.f32.xlu0 %v2116
    %v2118 = vpop.xlane.xlu0 %2117
    %v2119 = vsel %vm661, %v2115, -inf
    %2120 = vmax.xlane.f32.xlu0 %v2119
    %v2121 = vpop.xlane.xlu0 %2120
    %v2122 = vsub.f32 %v2114, %v2118
    %v2123 = vsub.f32 %v2115, %v2121
    %v2124 = vmul.f32 %v2122, 1.442695
    %v2125 = vpow.pop %v2124
    %v2126 = vmul.f32 %v2123, 1.442695
    %v2127 = vpow.pop %v2126
    %v2128 = vsel %vm657, %v2125, 0.0
    %2129 = vadd.xlane.f32.xlu0 %v2128
    %v2130 = vpop.xlane.xlu0 %2129
    %v2131 = vsel %vm661, %v2127, 0.0
    %2132 = vadd.xlane.f32.xlu0 %v2131
    %v2133 = vpop.xlane.xlu0 %2132
    %v2134 = vrcp.pop %v2130
    %v2135 = vrcp.pop %v2133
    %v2136 = vmul.f32 %v2125, %v2134
    %v2137 = vmul.f32 %v2127, %v2135
    %2138 = vrot.lane.b32.xlu0 %v553, 32
    %v2139 = vpop.permute.xlu0 %2138
    %2140 = vrot.lane.b32.xlu0 %v556, 32
    %v2141 = vpop.permute.xlu0 %2140
    %v2145 = vsel %vm657, %v2136, 0
    %v2148 = vsel %vm657, %v2137, 0
    %2150 = vmatprep.subr.mxu0 0.0
    %2151 = vmatpush1.msra.mxu0 %v2139
    %2152 = vmatprep.subr.mxu0 0.0
    %2153 = vmatpush1.msra.mxu0 %v2141
    %2154 = vmatprep.subr.mxu0 0.0
    %2155 = vmatpush1.msra.mxu0 0.0
    %2156 = vmatprep.subr.mxu0 0.0
    %2157 = vmatpush1.msra.mxu0 0.0
    %2158 = vmatprep.subr.mxu0 0.0
    %2159 = vmatpush1.msra.mxu0 0.0
    %2160 = vmatprep.subr.mxu0 0.0
    %2161 = vmatpush1.msra.mxu0 0.0
    %2162 = vmatprep.subr.mxu0 0.0
    %2163 = vmatpush1.msra.mxu0 0.0
    %2164 = vmatprep.subr.mxu0 0.0
    %2165 = vmatpush1.msra.mxu0 0.0
    %2166 = vmatprep.subr.mxu0 0.0
    %2167 = vmatpush1.msra.mxu0 0.0
    %2168 = vmatprep.subr.mxu0 0.0
    %2169 = vmatpush1.msra.mxu0 0.0
    %2170 = vmatprep.subr.mxu0 0.0
    %2171 = vmatpush1.msra.mxu0 0.0
    %2172 = vmatprep.subr.mxu0 0.0
    %2173 = vmatpush1.msra.mxu0 0.0
    %2174 = vmatprep.subr.mxu0 0.0
    %2175 = vmatpush1.msra.mxu0 0.0
    %2176 = vmatprep.subr.mxu0 0.0
    %2177 = vmatpush1.msra.mxu0 0.0
    %2178 = vmatprep.subr.mxu0 0.0
    %2179 = vmatpush1.msra.mxu0 0.0
    %2180 = vmatprep.subr.mxu0 0.0
    %2181 = vmatpush1.msra.mxu0 0.0
    %2182 = vmatprep.subr.mxu0 0.0
    %2183 = vmatpush1.msra.mxu0 0.0
    %2184 = vmatprep.subr.mxu0 0.0
    %2185 = vmatpush1.msra.mxu0 0.0
    %2186 = vmatprep.subr.mxu0 0.0
    %2187 = vmatpush1.msra.mxu0 0.0
    %2188 = vmatprep.subr.mxu0 0.0
    %2189 = vmatpush1.msra.mxu0 0.0
    %2190 = vmatprep.subr.mxu0 0.0
    %2191 = vmatpush1.msra.mxu0 0.0
    %2192 = vmatprep.subr.mxu0 0.0
    %2193 = vmatpush1.msra.mxu0 0.0
    %2194 = vmatprep.subr.mxu0 0.0
    %2195 = vmatpush1.msra.mxu0 0.0
    %2196 = vmatprep.subr.mxu0 0.0
    %2197 = vmatpush1.msra.mxu0 0.0
    %2198 = vmatprep.subr.mxu0 0.0
    %2199 = vmatpush1.msra.mxu0 0.0
    %2200 = vmatprep.subr.mxu0 0.0
    %2201 = vmatpush1.msra.mxu0 0.0
    %2202 = vmatprep.subr.mxu0 0.0
    %2203 = vmatpush1.msra.mxu0 0.0
    %2204 = vmatprep.subr.mxu0 0.0
    %2205 = vmatpush1.msra.mxu0 0.0
    %2206 = vmatprep.subr.mxu0 0.0
    %2207 = vmatpush1.msra.mxu0 0.0
    %2208 = vmatprep.subr.mxu0 0.0
    %2209 = vmatpush1.msra.mxu0 0.0
    %2210 = vmatprep.subr.mxu0 0.0
    %2211 = vmatpush1.msra.mxu0 0.0
    %2212 = vmatprep.subr.mxu0 0.0
    %2213 = vmatpush1.msra.mxu0 0.0
    %2214 = vmatprep.mubr.f32.mxu0 0.0
    %2215 = vmatmul.mubr.f32.gmra.mrb[0].mxu0 %v2145
    %v2216 = vpop.f32.mrb[0].mxu0
    %v2217 = vadd.f32 0.0, %v2216
    %v2218 = vpop.f32.mrb[0].mxu0
    %2219 = vmatprep.mubr.f32.mxu0 0.0
    %2220 = vmatmul.mubr.f32.gmra.mrb[0].mxu0 %v2148
    %v2221 = vpop.f32.mrb[0].mxu0
    %v2222 = vadd.f32 0.0, %v2221
    %v2223 = vpop.f32.mrb[0].mxu0
    %2224 = vdwg.mxu0
    %2227 = vrot.lane.b32.xlu0 %v1809, 32
    %v2228 = vpop.permute.xlu0 %2227
    %2229 = vrot.lane.b32.xlu0 %v1814, 32
    %v2230 = vpop.permute.xlu0 %2229
    %2235 = vrot.lane.b32.xlu0 %v2013, 64
    %v2236 = vpop.permute.xlu0 %2235
    %2237 = vrot.lane.b32.xlu0 %v2018, 64
    %v2238 = vpop.permute.xlu0 %2237
    %2243 = vrot.lane.b32.xlu0 %v2217, 96
    %v2244 = vpop.permute.xlu0 %2243
    %2245 = vrot.lane.b32.xlu0 %v2222, 96
    %v2246 = vpop.permute.xlu0 %2245
    %v2249 = vsel %vm559, %v1603, %v2228
    %v2250 = vsel %vm559, %v1608, %v2230
    %v2251 = vsel %vm1402, %v2249, %v2236
    %v2252 = vsel %vm1402, %v2250, %v2238
    %v2253 = vsel %vm1405, %v2251, %v2244
    %v2254 = vsel %vm1405, %v2252, %v2246
    %v2257 = vrot.slane %v2253, 6
    %v2258 = vrot.slane %v2254, 6
    %v2259 = vsel %vm37, %v2257, %v2258
    %v2262 = vsel %vm37, %v1407, %v2257
    %v2263 = vpack.c.bf16 %v2262, %v1406
    %v2264 = vpack.c.bf16 %v2259, %v2259
    %s2265 = scalar_lea.vmem %s4, 256
    %v2266 = vld [vmem:[%s2265] sm:$0xf]
    %v2267 = vld [vmem:[%s2265 + $0x4] sm:$0xf]
    %v2268 = vld [vmem:[%s2265 + $0x8] sm:$0xf]
    %v2269 = vld [vmem:[%s2265 + $0xc] sm:$0xf]
    %v2270 = vld [vmem:[%s2265 + $0x10] sm:$0xf]
    %v2271 = vld [vmem:[%s2265 + $0x14] sm:$0xf]
    %v2272 = vld [vmem:[%s2265 + $0x18] sm:$0xf]
    %v2273 = vld [vmem:[%s2265 + $0x1c] sm:$0xf]
    %v2274 = vld [vmem:[%s2265 + $0x20] sm:$0xf]
    %v2275 = vld [vmem:[%s2265 + $0x24] sm:$0xf]
    %v2276 = vld [vmem:[%s2265 + $0x28] sm:$0xf]
    %v2277 = vld [vmem:[%s2265 + $0x2c] sm:$0xf]
    %v2278 = vld [vmem:[%s2265 + $0x30] sm:$0xf]
    %v2279 = vld [vmem:[%s2265 + $0x34] sm:$0xf]
    %v2280 = vld [vmem:[%s2265 + $0x38] sm:$0xf]
    %v2281 = vld [vmem:[%s2265 + $0x3c] sm:$0xf]
    %s2282 = scalar_lea.vmem %s5, 4
    %v2283 = vld [vmem:[%s2282] sm:$0x1]
    %v2285 = vlaneseq
    %v2286 = vshrl.u32 %v2285, 7
    %v2287 = vsub.s32 0, %v2286
    %v2288 = vrot.slane %v2283, %v2287
    %v2306 = vunpack.c.l.b16 %v2266
    %v2307 = vunpack.c.l.b16 %v2267
    %v2308 = vunpack.c.l.b16 %v2268
    %v2309 = vunpack.c.l.b16 %v2269
    %v2310 = vunpack.c.l.b16 %v2270
    %v2311 = vunpack.c.l.b16 %v2271
    %v2312 = vunpack.c.l.b16 %v2272
    %v2313 = vunpack.c.l.b16 %v2273
    %v2314 = vunpack.c.l.b16 %v2274
    %v2315 = vunpack.c.l.b16 %v2275
    %v2316 = vunpack.c.l.b16 %v2276
    %v2317 = vunpack.c.l.b16 %v2277
    %v2318 = vunpack.c.l.b16 %v2278
    %v2319 = vunpack.c.l.b16 %v2279
    %v2320 = vunpack.c.l.b16 %v2280
    %v2321 = vunpack.c.l.b16 %v2281
    %v2322 = vpack.c.b16 %v2307, %v2306
    %v2323 = vpack.c.b16 %v2309, %v2308
    %v2324 = vpack.c.b16 %v2311, %v2310
    %v2325 = vpack.c.b16 %v2313, %v2312
    %v2326 = vpack.c.b16 %v2315, %v2314
    %v2327 = vpack.c.b16 %v2317, %v2316
    %v2328 = vpack.c.b16 %v2319, %v2318
    %v2329 = vpack.c.b16 %v2321, %v2320
    %2338 = vmatprep.subr.bf16.mxu0 0
    %2339 = vmatpush1.bf16.msra.mxu0 %v2322
    %2340 = vmatprep.subr.bf16.mxu0 0
    %2341 = vmatpush1.bf16.msra.mxu0 %v2323
    %2342 = vmatprep.subr.bf16.mxu0 0
    %2343 = vmatpush1.bf16.msra.mxu0 %v2324
    %2344 = vmatprep.subr.bf16.mxu0 0
    %2345 = vmatpush1.bf16.msra.mxu0 %v2325
    %2346 = vmatprep.subr.bf16.mxu0 0
    %2347 = vmatpush1.bf16.msra.mxu0 %v2326
    %2348 = vmatprep.subr.bf16.mxu0 0
    %2349 = vmatpush1.bf16.msra.mxu0 %v2327
    %2350 = vmatprep.subr.bf16.mxu0 0
    %2351 = vmatpush1.bf16.msra.mxu0 %v2328
    %2352 = vmatprep.subr.bf16.mxu0 0
    %2353 = vmatpush1.bf16.msra.mxu0 %v2329
    %2354 = vmatprep.subr.bf16.mxu0 0
    %2355 = vmatpush1.bf16.msra.mxu0 0
    %2356 = vmatprep.subr.bf16.mxu0 0
    %2357 = vmatpush1.bf16.msra.mxu0 0
    %2358 = vmatprep.subr.bf16.mxu0 0
    %2359 = vmatpush1.bf16.msra.mxu0 0
    %2360 = vmatprep.subr.bf16.mxu0 0
    %2361 = vmatpush1.bf16.msra.mxu0 0
    %2362 = vmatprep.subr.bf16.mxu0 0
    %2363 = vmatpush1.bf16.msra.mxu0 0
    %2364 = vmatprep.subr.bf16.mxu0 0
    %2365 = vmatpush1.bf16.msra.mxu0 0
    %2366 = vmatprep.subr.bf16.mxu0 0
    %2367 = vmatpush1.bf16.msra.mxu0 0
    %2368 = vmatprep.subr.bf16.mxu0 0
    %2369 = vmatpush1.bf16.msra.mxu0 0
    %2370 = vmatprep.mubr.bf16.mxu0 0
    %2371 = vmatmul.mubr.bf16.gmra.mrb[0].mxu0 %v2263
    %v2372 = vpop.f32.mrb[0].mxu0
    %v2373 = vadd.f32 %v2288, %v2372
    %v2374 = vpop.f32.mrb[0].mxu0
    %v2375 = vpop.f32.mrb[0].mxu0
    %v2376 = vadd.f32 %v2288, %v2375
    %v2377 = vpop.f32.mrb[0].mxu0
    %2378 = vmatprep.mubr.bf16.mxu0 0
    %2379 = vmatmul.mubr.bf16.gmra.mrb[0].mxu0 %v2264
    %v2380 = vpop.f32.mrb[0].mxu0
    %v2381 = vadd.f32 %v2288, %v2380
    %v2382 = vpop.f32.mrb[0].mxu0
    %v2383 = vpop.f32.mrb[0].mxu0
    %v2384 = vpop.f32.mrb[0].mxu0
    %2385 = vdwg.mxu0
    %v2386 = vadd.f32 %v2373, %v33
    %v2387 = vadd.f32 %v2376, %v43
    %v2388 = vadd.f32 %v2381, %v40
    %v2389 = vpack.c.bf16 %v2387, %v2386
    %v2390 = vpack.c.bf16 %v2388, %v2388
    %s2391 = scalar_lea.vmem %s4, 320
    %v2392 = vld [vmem:[%s2391] sm:$0xf]
    %v2393 = vld [vmem:[%s2391 + $0x4] sm:$0xf]
    %v2394 = vld [vmem:[%s2391 + $0x8] sm:$0xf]
    %v2395 = vld [vmem:[%s2391 + $0xc] sm:$0xf]
    %v2396 = vld [vmem:[%s2391 + $0x10] sm:$0xf]
    %v2397 = vld [vmem:[%s2391 + $0x14] sm:$0xf]
    %v2398 = vld [vmem:[%s2391 + $0x18] sm:$0xf]
    %v2399 = vld [vmem:[%s2391 + $0x1c] sm:$0xf]
    %v2400 = vld [vmem:[%s2391 + $0x20] sm:$0xf]
    %v2401 = vld [vmem:[%s2391 + $0x24] sm:$0xf]
    %v2402 = vld [vmem:[%s2391 + $0x28] sm:$0xf]
    %v2403 = vld [vmem:[%s2391 + $0x2c] sm:$0xf]
    %v2404 = vld [vmem:[%s2391 + $0x30] sm:$0xf]
    %v2405 = vld [vmem:[%s2391 + $0x34] sm:$0xf]
    %v2406 = vld [vmem:[%s2391 + $0x38] sm:$0xf]
    %v2407 = vld [vmem:[%s2391 + $0x3c] sm:$0xf]
    %s2408 = scalar_lea.vmem %s5, 5
    %v2409 = vld [vmem:[%s2408] sm:$0x1]
    %v2411 = vlaneseq
    %v2412 = vshrl.u32 %v2411, 7
    %v2413 = vsub.s32 0, %v2412
    %v2414 = vrot.slane %v2409, %v2413
    %v2432 = vunpack.c.l.b16 %v2392
    %v2433 = vunpack.c.l.b16 %v2393
    %v2434 = vunpack.c.l.b16 %v2394
    %v2435 = vunpack.c.l.b16 %v2395
    %v2436 = vunpack.c.l.b16 %v2396
    %v2437 = vunpack.c.l.b16 %v2397
    %v2438 = vunpack.c.l.b16 %v2398
    %v2439 = vunpack.c.l.b16 %v2399
    %v2440 = vunpack.c.l.b16 %v2400
    %v2441 = vunpack.c.l.b16 %v2401
    %v2442 = vunpack.c.l.b16 %v2402
    %v2443 = vunpack.c.l.b16 %v2403
    %v2444 = vunpack.c.l.b16 %v2404
    %v2445 = vunpack.c.l.b16 %v2405
    %v2446 = vunpack.c.l.b16 %v2406
    %v2447 = vunpack.c.l.b16 %v2407
    %v2448 = vpack.c.b16 %v2433, %v2432
    %v2449 = vpack.c.b16 %v2435, %v2434
    %v2450 = vpack.c.b16 %v2437, %v2436
    %v2451 = vpack.c.b16 %v2439, %v2438
    %v2452 = vpack.c.b16 %v2441, %v2440
    %v2453 = vpack.c.b16 %v2443, %v2442
    %v2454 = vpack.c.b16 %v2445, %v2444
    %v2455 = vpack.c.b16 %v2447, %v2446
    %2464 = vmatprep.subr.bf16.mxu0 0
    %2465 = vmatpush1.bf16.msra.mxu0 %v2448
    %2466 = vmatprep.subr.bf16.mxu0 0
    %2467 = vmatpush1.bf16.msra.mxu0 %v2449
    %2468 = vmatprep.subr.bf16.mxu0 0
    %2469 = vmatpush1.bf16.msra.mxu0 %v2450
    %2470 = vmatprep.subr.bf16.mxu0 0
    %2471 = vmatpush1.bf16.msra.mxu0 %v2451
    %2472 = vmatprep.subr.bf16.mxu0 0
    %2473 = vmatpush1.bf16.msra.mxu0 %v2452
    %2474 = vmatprep.subr.bf16.mxu0 0
    %2475 = vmatpush1.bf16.msra.mxu0 %v2453
    %2476 = vmatprep.subr.bf16.mxu0 0
    %2477 = vmatpush1.bf16.msra.mxu0 %v2454
    %2478 = vmatprep.subr.bf16.mxu0 0
    %2479 = vmatpush1.bf16.msra.mxu0 %v2455
    %2480 = vmatprep.subr.bf16.mxu0 0
    %2481 = vmatpush1.bf16.msra.mxu0 0
    %2482 = vmatprep.subr.bf16.mxu0 0
    %2483 = vmatpush1.bf16.msra.mxu0 0
    %2484 = vmatprep.subr.bf16.mxu0 0
    %2485 = vmatpush1.bf16.msra.mxu0 0
    %2486 = vmatprep.subr.bf16.mxu0 0
    %2487 = vmatpush1.bf16.msra.mxu0 0
    %2488 = vmatprep.subr.bf16.mxu0 0
    %2489 = vmatpush1.bf16.msra.mxu0 0
    %2490 = vmatprep.subr.bf16.mxu0 0
    %2491 = vmatpush1.bf16.msra.mxu0 0
    %2492 = vmatprep.subr.bf16.mxu0 0
    %2493 = vmatpush1.bf16.msra.mxu0 0
    %2494 = vmatprep.subr.bf16.mxu0 0
    %2495 = vmatpush1.bf16.msra.mxu0 0
    %2496 = vmatprep.mubr.bf16.mxu0 0
    %2497 = vmatmul.mubr.bf16.gmra.mrb[0].mxu0 %v2389
    %v2498 = vpop.f32.mrb[0].mxu0
    %v2499 = vadd.f32 %v2414, %v2498
    %v2500 = vpop.f32.mrb[0].mxu0
    %v2501 = vpop.f32.mrb[0].mxu0
    %v2502 = vadd.f32 %v2414, %v2501
    %v2503 = vpop.f32.mrb[0].mxu0
    %2504 = vmatprep.mubr.bf16.mxu0 0
    %2505 = vmatmul.mubr.bf16.gmra.mrb[0].mxu0 %v2390
    %v2506 = vpop.f32.mrb[0].mxu0
    %v2507 = vadd.f32 %v2414, %v2506
    %v2508 = vpop.f32.mrb[0].mxu0
    %v2509 = vpop.f32.mrb[0].mxu0
    %v2510 = vpop.f32.mrb[0].mxu0
    %2511 = vdwg.mxu0
    %v2512 = vmax.f32 %v2499, 0.0
    %v2513 = vmax.f32 %v2502, 0.0
    %v2514 = vmax.f32 %v2507, 0.0
    %v2515 = vadd.f32 %v2386, %v2512
    %v2516 = vadd.f32 %v2387, %v2513
    %v2517 = vadd.f32 %v2388, %v2514
    %v2518 = vpack.c.bf16 %v2516, %v2515
    %v2519 = vpack.c.bf16 %v2517, %v2517
    %s2520 = scalar_lea.vmem %s4, 384
    %v2521 = vld [vmem:[%s2520] sm:$0xf]
    %v2522 = vld [vmem:[%s2520 + $0x4] sm:$0xf]
    %v2523 = vld [vmem:[%s2520 + $0x8] sm:$0xf]
    %v2524 = vld [vmem:[%s2520 + $0xc] sm:$0xf]
    %v2525 = vld [vmem:[%s2520 + $0x10] sm:$0xf]
    %v2526 = vld [vmem:[%s2520 + $0x14] sm:$0xf]
    %v2527 = vld [vmem:[%s2520 + $0x18] sm:$0xf]
    %v2528 = vld [vmem:[%s2520 + $0x1c] sm:$0xf]
    %v2529 = vld [vmem:[%s2520 + $0x20] sm:$0xf]
    %v2530 = vld [vmem:[%s2520 + $0x24] sm:$0xf]
    %v2531 = vld [vmem:[%s2520 + $0x28] sm:$0xf]
    %v2532 = vld [vmem:[%s2520 + $0x2c] sm:$0xf]
    %v2533 = vld [vmem:[%s2520 + $0x30] sm:$0xf]
    %v2534 = vld [vmem:[%s2520 + $0x34] sm:$0xf]
    %v2535 = vld [vmem:[%s2520 + $0x38] sm:$0xf]
    %v2536 = vld [vmem:[%s2520 + $0x3c] sm:$0xf]
    %s2537 = scalar_lea.vmem %s5, 6
    %v2538 = vld [vmem:[%s2537] sm:$0x1]
    %v2540 = vlaneseq
    %v2541 = vshrl.u32 %v2540, 7
    %v2542 = vsub.s32 0, %v2541
    %v2543 = vrot.slane %v2538, %v2542
    %v2561 = vunpack.c.l.b16 %v2521
    %v2562 = vunpack.c.l.b16 %v2522
    %v2563 = vunpack.c.l.b16 %v2523
    %v2564 = vunpack.c.l.b16 %v2524
    %v2565 = vunpack.c.l.b16 %v2525
    %v2566 = vunpack.c.l.b16 %v2526
    %v2567 = vunpack.c.l.b16 %v2527
    %v2568 = vunpack.c.l.b16 %v2528
    %v2569 = vunpack.c.l.b16 %v2529
    %v2570 = vunpack.c.l.b16 %v2530
    %v2571 = vunpack.c.l.b16 %v2531
    %v2572 = vunpack.c.l.b16 %v2532
    %v2573 = vunpack.c.l.b16 %v2533
    %v2574 = vunpack.c.l.b16 %v2534
    %v2575 = vunpack.c.l.b16 %v2535
    %v2576 = vunpack.c.l.b16 %v2536
    %v2577 = vpack.c.b16 %v2562, %v2561
    %v2578 = vpack.c.b16 %v2564, %v2563
    %v2579 = vpack.c.b16 %v2566, %v2565
    %v2580 = vpack.c.b16 %v2568, %v2567
    %v2581 = vpack.c.b16 %v2570, %v2569
    %v2582 = vpack.c.b16 %v2572, %v2571
    %v2583 = vpack.c.b16 %v2574, %v2573
    %v2584 = vpack.c.b16 %v2576, %v2575
    %2593 = vmatprep.subr.bf16.mxu0 0
    %2594 = vmatpush1.bf16.msra.mxu0 %v2577
    %2595 = vmatprep.subr.bf16.mxu0 0
    %2596 = vmatpush1.bf16.msra.mxu0 %v2578
    %2597 = vmatprep.subr.bf16.mxu0 0
    %2598 = vmatpush1.bf16.msra.mxu0 %v2579
    %2599 = vmatprep.subr.bf16.mxu0 0
    %2600 = vmatpush1.bf16.msra.mxu0 %v2580
    %2601 = vmatprep.subr.bf16.mxu0 0
    %2602 = vmatpush1.bf16.msra.mxu0 %v2581
    %2603 = vmatprep.subr.bf16.mxu0 0
    %2604 = vmatpush1.bf16.msra.mxu0 %v2582
    %2605 = vmatprep.subr.bf16.mxu0 0
    %2606 = vmatpush1.bf16.msra.mxu0 %v2583
    %2607 = vmatprep.subr.bf16.mxu0 0
    %2608 = vmatpush1.bf16.msra.mxu0 %v2584
    %2609 = vmatprep.subr.bf16.mxu0 0
    %2610 = vmatpush1.bf16.msra.mxu0 0
    %2611 = vmatprep.subr.bf16.mxu0 0
    %2612 = vmatpush1.bf16.msra.mxu0 0
    %2613 = vmatprep.subr.bf16.mxu0 0
    %2614 = vmatpush1.bf16.msra.mxu0 0
    %2615 = vmatprep.subr.bf16.mxu0 0
    %2616 = vmatpush1.bf16.msra.mxu0 0
    %2617 = vmatprep.subr.bf16.mxu0 0
    %2618 = vmatpush1.bf16.msra.mxu0 0
    %2619 = vmatprep.subr.bf16.mxu0 0
    %2620 = vmatpush1.bf16.msra.mxu0 0
    %2621 = vmatprep.subr.bf16.mxu0 0
    %2622 = vmatpush1.bf16.msra.mxu0 0
    %2623 = vmatprep.subr.bf16.mxu0 0
    %2624 = vmatpush1.bf16.msra.mxu0 0
    %2625 = vmatprep.mubr.bf16.mxu0 0
    %2626 = vmatmul.mubr.bf16.gmra.mrb[0].mxu0 %v2518
    %v2627 = vpop.f32.mrb[0].mxu0
    %v2628 = vadd.f32 %v2543, %v2627
    %v2629 = vpop.f32.mrb[0].mxu0
    %v2630 = vpop.f32.mrb[0].mxu0
    %v2631 = vadd.f32 %v2543, %v2630
    %v2632 = vpop.f32.mrb[0].mxu0
    %2633 = vmatprep.mubr.bf16.mxu0 0
    %2634 = vmatmul.mubr.bf16.gmra.mrb[0].mxu0 %v2519
    %v2635 = vpop.f32.mrb[0].mxu0
    %v2636 = vadd.f32 %v2543, %v2635
    %v2637 = vpop.f32.mrb[0].mxu0
    %v2638 = vpop.f32.mrb[0].mxu0
    %v2639 = vpop.f32.mrb[0].mxu0
    %2640 = vdwg.mxu0
    %s2641 = scalar_lea.vmem %s4, 448
    %v2642 = vld [vmem:[%s2641] sm:$0xf]
    %v2643 = vld [vmem:[%s2641 + $0x4] sm:$0xf]
    %v2644 = vld [vmem:[%s2641 + $0x8] sm:$0xf]
    %v2645 = vld [vmem:[%s2641 + $0xc] sm:$0xf]
    %v2646 = vld [vmem:[%s2641 + $0x10] sm:$0xf]
    %v2647 = vld [vmem:[%s2641 + $0x14] sm:$0xf]
    %v2648 = vld [vmem:[%s2641 + $0x18] sm:$0xf]
    %v2649 = vld [vmem:[%s2641 + $0x1c] sm:$0xf]
    %v2650 = vld [vmem:[%s2641 + $0x20] sm:$0xf]
    %v2651 = vld [vmem:[%s2641 + $0x24] sm:$0xf]
    %v2652 = vld [vmem:[%s2641 + $0x28] sm:$0xf]
    %v2653 = vld [vmem:[%s2641 + $0x2c] sm:$0xf]
    %v2654 = vld [vmem:[%s2641 + $0x30] sm:$0xf]
    %v2655 = vld [vmem:[%s2641 + $0x34] sm:$0xf]
    %v2656 = vld [vmem:[%s2641 + $0x38] sm:$0xf]
    %v2657 = vld [vmem:[%s2641 + $0x3c] sm:$0xf]
    %s2658 = scalar_lea.vmem %s5, 7
    %v2659 = vld [vmem:[%s2658] sm:$0x1]
    %v2661 = vlaneseq
    %v2662 = vshrl.u32 %v2661, 7
    %v2663 = vsub.s32 0, %v2662
    %v2664 = vrot.slane %v2659, %v2663
    %v2682 = vunpack.c.l.b16 %v2642
    %v2683 = vunpack.c.l.b16 %v2643
    %v2684 = vunpack.c.l.b16 %v2644
    %v2685 = vunpack.c.l.b16 %v2645
    %v2686 = vunpack.c.l.b16 %v2646
    %v2687 = vunpack.c.l.b16 %v2647
    %v2688 = vunpack.c.l.b16 %v2648
    %v2689 = vunpack.c.l.b16 %v2649
    %v2690 = vunpack.c.l.b16 %v2650
    %v2691 = vunpack.c.l.b16 %v2651
    %v2692 = vunpack.c.l.b16 %v2652
    %v2693 = vunpack.c.l.b16 %v2653
    %v2694 = vunpack.c.l.b16 %v2654
    %v2695 = vunpack.c.l.b16 %v2655
    %v2696 = vunpack.c.l.b16 %v2656
    %v2697 = vunpack.c.l.b16 %v2657
    %v2698 = vpack.c.b16 %v2683, %v2682
    %v2699 = vpack.c.b16 %v2685, %v2684
    %v2700 = vpack.c.b16 %v2687, %v2686
    %v2701 = vpack.c.b16 %v2689, %v2688
    %v2702 = vpack.c.b16 %v2691, %v2690
    %v2703 = vpack.c.b16 %v2693, %v2692
    %v2704 = vpack.c.b16 %v2695, %v2694
    %v2705 = vpack.c.b16 %v2697, %v2696
    %2714 = vmatprep.subr.bf16.mxu0 0
    %2715 = vmatpush1.bf16.msra.mxu0 %v2698
    %2716 = vmatprep.subr.bf16.mxu0 0
    %2717 = vmatpush1.bf16.msra.mxu0 %v2699
    %2718 = vmatprep.subr.bf16.mxu0 0
    %2719 = vmatpush1.bf16.msra.mxu0 %v2700
    %2720 = vmatprep.subr.bf16.mxu0 0
    %2721 = vmatpush1.bf16.msra.mxu0 %v2701
    %2722 = vmatprep.subr.bf16.mxu0 0
    %2723 = vmatpush1.bf16.msra.mxu0 %v2702
    %2724 = vmatprep.subr.bf16.mxu0 0
    %2725 = vmatpush1.bf16.msra.mxu0 %v2703
    %2726 = vmatprep.subr.bf16.mxu0 0
    %2727 = vmatpush1.bf16.msra.mxu0 %v2704
    %2728 = vmatprep.subr.bf16.mxu0 0
    %2729 = vmatpush1.bf16.msra.mxu0 %v2705
    %2730 = vmatprep.subr.bf16.mxu0 0
    %2731 = vmatpush1.bf16.msra.mxu0 0
    %2732 = vmatprep.subr.bf16.mxu0 0
    %2733 = vmatpush1.bf16.msra.mxu0 0
    %2734 = vmatprep.subr.bf16.mxu0 0
    %2735 = vmatpush1.bf16.msra.mxu0 0
    %2736 = vmatprep.subr.bf16.mxu0 0
    %2737 = vmatpush1.bf16.msra.mxu0 0
    %2738 = vmatprep.subr.bf16.mxu0 0
    %2739 = vmatpush1.bf16.msra.mxu0 0
    %2740 = vmatprep.subr.bf16.mxu0 0
    %2741 = vmatpush1.bf16.msra.mxu0 0
    %2742 = vmatprep.subr.bf16.mxu0 0
    %2743 = vmatpush1.bf16.msra.mxu0 0
    %2744 = vmatprep.subr.bf16.mxu0 0
    %2745 = vmatpush1.bf16.msra.mxu0 0
    %2746 = vmatprep.mubr.bf16.mxu0 0
    %2747 = vmatmul.mubr.bf16.gmra.mrb[0].mxu0 %v2518
    %v2748 = vpop.f32.mrb[0].mxu0
    %v2749 = vadd.f32 %v2664, %v2748
    %v2750 = vpop.f32.mrb[0].mxu0
    %v2751 = vpop.f32.mrb[0].mxu0
    %v2752 = vadd.f32 %v2664, %v2751
    %v2753 = vpop.f32.mrb[0].mxu0
    %2754 = vmatprep.mubr.bf16.mxu0 0
    %2755 = vmatmul.mubr.bf16.gmra.mrb[0].mxu0 %v2519
    %v2756 = vpop.f32.mrb[0].mxu0
    %v2757 = vadd.f32 %v2664, %v2756
    %v2758 = vpop.f32.mrb[0].mxu0
    %v2759 = vpop.f32.mrb[0].mxu0
    %v2760 = vpop.f32.mrb[0].mxu0
    %2761 = vdwg.mxu0
    %s2762 = scalar_lea.vmem %s4, 512
    %v2763 = vld [vmem:[%s2762] sm:$0xf]
    %v2764 = vld [vmem:[%s2762 + $0x4] sm:$0xf]
    %v2765 = vld [vmem:[%s2762 + $0x8] sm:$0xf]
    %v2766 = vld [vmem:[%s2762 + $0xc] sm:$0xf]
    %v2767 = vld [vmem:[%s2762 + $0x10] sm:$0xf]
    %v2768 = vld [vmem:[%s2762 + $0x14] sm:$0xf]
    %v2769 = vld [vmem:[%s2762 + $0x18] sm:$0xf]
    %v2770 = vld [vmem:[%s2762 + $0x1c] sm:$0xf]
    %v2771 = vld [vmem:[%s2762 + $0x20] sm:$0xf]
    %v2772 = vld [vmem:[%s2762 + $0x24] sm:$0xf]
    %v2773 = vld [vmem:[%s2762 + $0x28] sm:$0xf]
    %v2774 = vld [vmem:[%s2762 + $0x2c] sm:$0xf]
    %v2775 = vld [vmem:[%s2762 + $0x30] sm:$0xf]
    %v2776 = vld [vmem:[%s2762 + $0x34] sm:$0xf]
    %v2777 = vld [vmem:[%s2762 + $0x38] sm:$0xf]
    %v2778 = vld [vmem:[%s2762 + $0x3c] sm:$0xf]
    %s2779 = scalar_lea.vmem %s5, 8
    %v2780 = vld [vmem:[%s2779] sm:$0x1]
    %v2782 = vlaneseq
    %v2783 = vshrl.u32 %v2782, 7
    %v2784 = vsub.s32 0, %v2783
    %v2785 = vrot.slane %v2780, %v2784
    %v2803 = vunpack.c.l.b16 %v2763
    %v2804 = vunpack.c.l.b16 %v2764
    %v2805 = vunpack.c.l.b16 %v2765
    %v2806 = vunpack.c.l.b16 %v2766
    %v2807 = vunpack.c.l.b16 %v2767
    %v2808 = vunpack.c.l.b16 %v2768
    %v2809 = vunpack.c.l.b16 %v2769
    %v2810 = vunpack.c.l.b16 %v2770
    %v2811 = vunpack.c.l.b16 %v2771
    %v2812 = vunpack.c.l.b16 %v2772
    %v2813 = vunpack.c.l.b16 %v2773
    %v2814 = vunpack.c.l.b16 %v2774
    %v2815 = vunpack.c.l.b16 %v2775
    %v2816 = vunpack.c.l.b16 %v2776
    %v2817 = vunpack.c.l.b16 %v2777
    %v2818 = vunpack.c.l.b16 %v2778
    %v2819 = vpack.c.b16 %v2804, %v2803
    %v2820 = vpack.c.b16 %v2806, %v2805
    %v2821 = vpack.c.b16 %v2808, %v2807
    %v2822 = vpack.c.b16 %v2810, %v2809
    %v2823 = vpack.c.b16 %v2812, %v2811
    %v2824 = vpack.c.b16 %v2814, %v2813
    %v2825 = vpack.c.b16 %v2816, %v2815
    %v2826 = vpack.c.b16 %v2818, %v2817
    %2835 = vmatprep.subr.bf16.mxu0 0
    %2836 = vmatpush1.bf16.msra.mxu0 %v2819
    %2837 = vmatprep.subr.bf16.mxu0 0
    %2838 = vmatpush1.bf16.msra.mxu0 %v2820
    %2839 = vmatprep.subr.bf16.mxu0 0
    %2840 = vmatpush1.bf16.msra.mxu0 %v2821
    %2841 = vmatprep.subr.bf16.mxu0 0
    %2842 = vmatpush1.bf16.msra.mxu0 %v2822
    %2843 = vmatprep.subr.bf16.mxu0 0
    %2844 = vmatpush1.bf16.msra.mxu0 %v2823
    %2845 = vmatprep.subr.bf16.mxu0 0
    %2846 = vmatpush1.bf16.msra.mxu0 %v2824
    %2847 = vmatprep.subr.bf16.mxu0 0
    %2848 = vmatpush1.bf16.msra.mxu0 %v2825
    %2849 = vmatprep.subr.bf16.mxu0 0
    %2850 = vmatpush1.bf16.msra.mxu0 %v2826
    %2851 = vmatprep.subr.bf16.mxu0 0
    %2852 = vmatpush1.bf16.msra.mxu0 0
    %2853 = vmatprep.subr.bf16.mxu0 0
    %2854 = vmatpush1.bf16.msra.mxu0 0
    %2855 = vmatprep.subr.bf16.mxu0 0
    %2856 = vmatpush1.bf16.msra.mxu0 0
    %2857 = vmatprep.subr.bf16.mxu0 0
    %2858 = vmatpush1.bf16.msra.mxu0 0
    %2859 = vmatprep.subr.bf16.mxu0 0
    %2860 = vmatpush1.bf16.msra.mxu0 0
    %2861 = vmatprep.subr.bf16.mxu0 0
    %2862 = vmatpush1.bf16.msra.mxu0 0
    %2863 = vmatprep.subr.bf16.mxu0 0
    %2864 = vmatpush1.bf16.msra.mxu0 0
    %2865 = vmatprep.subr.bf16.mxu0 0
    %2866 = vmatpush1.bf16.msra.mxu0 0
    %2867 = vmatprep.mubr.bf16.mxu0 0
    %2868 = vmatmul.mubr.bf16.gmra.mrb[0].mxu0 %v2518
    %v2869 = vpop.f32.mrb[0].mxu0
    %v2870 = vadd.f32 %v2785, %v2869
    %v2871 = vpop.f32.mrb[0].mxu0
    %v2872 = vpop.f32.mrb[0].mxu0
    %v2873 = vadd.f32 %v2785, %v2872
    %v2874 = vpop.f32.mrb[0].mxu0
    %2875 = vmatprep.mubr.bf16.mxu0 0
    %2876 = vmatmul.mubr.bf16.gmra.mrb[0].mxu0 %v2519
    %v2877 = vpop.f32.mrb[0].mxu0
    %v2878 = vadd.f32 %v2785, %v2877
    %v2879 = vpop.f32.mrb[0].mxu0
    %v2880 = vpop.f32.mrb[0].mxu0
    %v2881 = vpop.f32.mrb[0].mxu0
    %2882 = vdwg.mxu0
    %v2884 = vsel %vm559, %v2628, 0
    %v2887 = vsel %vm559, %v2631, 0
    %v2890 = vsel %vm559, %v2749, 0
    %v2893 = vsel %vm559, %v2752, 0
    %2895 = vmatprep.subr.mxu0 0.0
    %2896 = vmatpush1.xpose.msra.mxu0 %v2890
    %2897 = vmatprep.subr.mxu0 0.0
    %2898 = vmatpush1.xpose.msra.mxu0 %v2893
    %2899 = vmatprep.subr.mxu0 0.0
    %2900 = vmatpush1.xpose.msra.mxu0 0.0
    %2901 = vmatprep.subr.mxu0 0.0
    %2902 = vmatpush1.xpose.msra.mxu0 0.0
    %2903 = vmatprep.subr.mxu0 0.0
    %2904 = vmatpush1.xpose.msra.mxu0 0.0
    %2905 = vmatprep.subr.mxu0 0.0
    %2906 = vmatpush1.xpose.msra.mxu0 0.0
    %2907 = vmatprep.subr.mxu0 0.0
    %2908 = vmatpush1.xpose.msra.mxu0 0.0
    %2909 = vmatprep.subr.mxu0 0.0
    %2910 = vmatpush1.xpose.msra.mxu0 0.0
    %2911 = vmatprep.subr.mxu0 0.0
    %2912 = vmatpush1.xpose.msra.mxu0 0.0
    %2913 = vmatprep.subr.mxu0 0.0
    %2914 = vmatpush1.xpose.msra.mxu0 0.0
    %2915 = vmatprep.subr.mxu0 0.0
    %2916 = vmatpush1.xpose.msra.mxu0 0.0
    %2917 = vmatprep.subr.mxu0 0.0
    %2918 = vmatpush1.xpose.msra.mxu0 0.0
    %2919 = vmatprep.subr.mxu0 0.0
    %2920 = vmatpush1.xpose.msra.mxu0 0.0
    %2921 = vmatprep.subr.mxu0 0.0
    %2922 = vmatpush1.xpose.msra.mxu0 0.0
    %2923 = vmatprep.subr.mxu0 0.0
    %2924 = vmatpush1.xpose.msra.mxu0 0.0
    %2925 = vmatprep.subr.mxu0 0.0
    %2926 = vmatpush1.xpose.msra.mxu0 0.0
    %2927 = vmatprep.subr.mxu0 0.0
    %2928 = vmatpush1.xpose.msra.mxu0 0.0
    %2929 = vmatprep.subr.mxu0 0.0
    %2930 = vmatpush1.xpose.msra.mxu0 0.0
    %2931 = vmatprep.subr.mxu0 0.0
    %2932 = vmatpush1.xpose.msra.mxu0 0.0
    %2933 = vmatprep.subr.mxu0 0.0
    %2934 = vmatpush1.xpose.msra.mxu0 0.0
    %2935 = vmatprep.subr.mxu0 0.0
    %2936 = vmatpush1.xpose.msra.mxu0 0.0
    %2937 = vmatprep.subr.mxu0 0.0
    %2938 = vmatpush1.xpose.msra.mxu0 0.0
    %2939 = vmatprep.subr.mxu0 0.0
    %2940 = vmatpush1.xpose.msra.mxu0 0.0
    %2941 = vmatprep.subr.mxu0 0.0
    %2942 = vmatpush1.xpose.msra.mxu0 0.0
    %2943 = vmatprep.subr.mxu0 0.0
    %2944 = vmatpush1.xpose.msra.mxu0 0.0
    %2945 = vmatprep.subr.mxu0 0.0
    %2946 = vmatpush1.xpose.msra.mxu0 0.0
    %2947 = vmatprep.subr.mxu0 0.0
    %2948 = vmatpush1.xpose.msra.mxu0 0.0
    %2949 = vmatprep.subr.mxu0 0.0
    %2950 = vmatpush1.xpose.msra.mxu0 0.0
    %2951 = vmatprep.subr.mxu0 0.0
    %2952 = vmatpush1.xpose.msra.mxu0 0.0
    %2953 = vmatprep.subr.mxu0 0.0
    %2954 = vmatpush1.xpose.msra.mxu0 0.0
    %2955 = vmatprep.subr.mxu0 0.0
    %2956 = vmatpush1.xpose.msra.mxu0 0.0
    %2957 = vmatprep.subr.mxu0 0.0
    %2958 = vmatpush1.xpose.msra.mxu0 0.0
    %2959 = vmatprep.mubr.f32.mxu0 0.0
    %2960 = vmatmul.mubr.f32.gmra.mrb[0].mxu0 %v2884
    %v2961 = vpop.f32.mrb[0].mxu0
    %v2962 = vadd.f32 0.0, %v2961
    %v2963 = vpop.f32.mrb[0].mxu0
    %2964 = vmatprep.mubr.f32.mxu0 0.0
    %2965 = vmatmul.mubr.f32.gmra.mrb[0].mxu0 %v2887
    %v2966 = vpop.f32.mrb[0].mxu0
    %v2967 = vadd.f32 0.0, %v2966
    %v2968 = vpop.f32.mrb[0].mxu0
    %2969 = vdwg.mxu0
    %v2970 = vmul.f32 %v2962, 0.20412415
    %v2971 = vmul.f32 %v2967, 0.20412415
    %vm2972 = vcmask 80896
    %v2973 = vsel %vm2972, %v2970, -inf
    %2974 = vmax.xlane.f32.xlu0 %v2973
    %v2975 = vpop.xlane.xlu0 %2974
    %vm2976 = vcmask 74752
    %v2977 = vsel %vm2976, %v2971, -inf
    %2978 = vmax.xlane.f32.xlu0 %v2977
    %v2979 = vpop.xlane.xlu0 %2978
    %v2980 = vsub.f32 %v2970, %v2975
    %v2981 = vsub.f32 %v2971, %v2979
    %v2982 = vmul.f32 %v2980, 1.442695
    %v2983 = vpow.pop %v2982
    %v2984 = vmul.f32 %v2981, 1.442695
    %v2985 = vpow.pop %v2984
    %v2986 = vsel %vm2972, %v2983, 0.0
    %2987 = vadd.xlane.f32.xlu0 %v2986
    %v2988 = vpop.xlane.xlu0 %2987
    %v2989 = vsel %vm2976, %v2985, 0.0
    %2990 = vadd.xlane.f32.xlu0 %v2989
    %v2991 = vpop.xlane.xlu0 %2990
    %v2992 = vrcp.pop %v2988
    %v2993 = vrcp.pop %v2991
    %v2994 = vmul.f32 %v2983, %v2992
    %v2995 = vmul.f32 %v2985, %v2993
    %v2997 = vsel %vm2972, %v2994, 0
    %v3000 = vsel %vm2972, %v2995, 0
    %v3003 = vsel %vm37, %v2873, 0
    %3005 = vmatprep.subr.mxu0 0.0
    %3006 = vmatpush1.msra.mxu0 %v2870
    %3007 = vmatprep.subr.mxu0 0.0
    %3008 = vmatpush1.msra.mxu0 %v3003
    %3009 = vmatprep.subr.mxu0 0.0
    %3010 = vmatpush1.msra.mxu0 0.0
    %3011 = vmatprep.subr.mxu0 0.0
    %3012 = vmatpush1.msra.mxu0 0.0
    %3013 = vmatprep.subr.mxu0 0.0
    %3014 = vmatpush1.msra.mxu0 0.0
    %3015 = vmatprep.subr.mxu0 0.0
    %3016 = vmatpush1.msra.mxu0 0.0
    %3017 = vmatprep.subr.mxu0 0.0
    %3018 = vmatpush1.msra.mxu0 0.0
    %3019 = vmatprep.subr.mxu0 0.0
    %3020 = vmatpush1.msra.mxu0 0.0
    %3021 = vmatprep.subr.mxu0 0.0
    %3022 = vmatpush1.msra.mxu0 0.0
    %3023 = vmatprep.subr.mxu0 0.0
    %3024 = vmatpush1.msra.mxu0 0.0
    %3025 = vmatprep.subr.mxu0 0.0
    %3026 = vmatpush1.msra.mxu0 0.0
    %3027 = vmatprep.subr.mxu0 0.0
    %3028 = vmatpush1.msra.mxu0 0.0
    %3029 = vmatprep.subr.mxu0 0.0
    %3030 = vmatpush1.msra.mxu0 0.0
    %3031 = vmatprep.subr.mxu0 0.0
    %3032 = vmatpush1.msra.mxu0 0.0
    %3033 = vmatprep.subr.mxu0 0.0
    %3034 = vmatpush1.msra.mxu0 0.0
    %3035 = vmatprep.subr.mxu0 0.0
    %3036 = vmatpush1.msra.mxu0 0.0
    %3037 = vmatprep.subr.mxu0 0.0
    %3038 = vmatpush1.msra.mxu0 0.0
    %3039 = vmatprep.subr.mxu0 0.0
    %3040 = vmatpush1.msra.mxu0 0.0
    %3041 = vmatprep.subr.mxu0 0.0
    %3042 = vmatpush1.msra.mxu0 0.0
    %3043 = vmatprep.subr.mxu0 0.0
    %3044 = vmatpush1.msra.mxu0 0.0
    %3045 = vmatprep.subr.mxu0 0.0
    %3046 = vmatpush1.msra.mxu0 0.0
    %3047 = vmatprep.subr.mxu0 0.0
    %3048 = vmatpush1.msra.mxu0 0.0
    %3049 = vmatprep.subr.mxu0 0.0
    %3050 = vmatpush1.msra.mxu0 0.0
    %3051 = vmatprep.subr.mxu0 0.0
    %3052 = vmatpush1.msra.mxu0 0.0
    %3053 = vmatprep.subr.mxu0 0.0
    %3054 = vmatpush1.msra.mxu0 0.0
    %3055 = vmatprep.subr.mxu0 0.0
    %3056 = vmatpush1.msra.mxu0 0.0
    %3057 = vmatprep.subr.mxu0 0.0
    %3058 = vmatpush1.msra.mxu0 0.0
    %3059 = vmatprep.subr.mxu0 0.0
    %3060 = vmatpush1.msra.mxu0 0.0
    %3061 = vmatprep.subr.mxu0 0.0
    %3062 = vmatpush1.msra.mxu0 0.0
    %3063 = vmatprep.subr.mxu0 0.0
    %3064 = vmatpush1.msra.mxu0 0.0
    %3065 = vmatprep.subr.mxu0 0.0
    %3066 = vmatpush1.msra.mxu0 0.0
    %3067 = vmatprep.subr.mxu0 0.0
    %3068 = vmatpush1.msra.mxu0 0.0
    %3069 = vmatprep.mubr.f32.mxu0 0.0
    %3070 = vmatmul.mubr.f32.gmra.mrb[0].mxu0 %v2997
    %v3071 = vpop.f32.mrb[0].mxu0
    %v3072 = vadd.f32 0.0, %v3071
    %v3073 = vpop.f32.mrb[0].mxu0
    %3074 = vmatprep.mubr.f32.mxu0 0.0
    %3075 = vmatmul.mubr.f32.gmra.mrb[0].mxu0 %v3000
    %v3076 = vpop.f32.mrb[0].mxu0
    %v3077 = vadd.f32 0.0, %v3076
    %v3078 = vpop.f32.mrb[0].mxu0
    %3079 = vdwg.mxu0
    %3080 = vrot.lane.b32.xlu0 %v2628, 96
    %v3081 = vpop.permute.xlu0 %3080
    %3082 = vrot.lane.b32.xlu0 %v2631, 96
    %v3083 = vpop.permute.xlu0 %3082
    %3084 = vrot.lane.b32.xlu0 %v2749, 96
    %v3085 = vpop.permute.xlu0 %3084
    %3086 = vrot.lane.b32.xlu0 %v2752, 96
    %v3087 = vpop.permute.xlu0 %3086
    %v3088 = vsel %vm559, %v3081, 0
    %v3090 = vsel %vm559, %v3083, 0
    %v3092 = vsel %vm559, %v3085, 0
    %v3094 = vsel %vm559, %v3087, 0
    %3096 = vmatprep.subr.mxu0 0.0
    %3097 = vmatpush1.xpose.msra.mxu0 %v3092
    %3098 = vmatprep.subr.mxu0 0.0
    %3099 = vmatpush1.xpose.msra.mxu0 %v3094
    %3100 = vmatprep.subr.mxu0 0.0
    %3101 = vmatpush1.xpose.msra.mxu0 0.0
    %3102 = vmatprep.subr.mxu0 0.0
    %3103 = vmatpush1.xpose.msra.mxu0 0.0
    %3104 = vmatprep.subr.mxu0 0.0
    %3105 = vmatpush1.xpose.msra.mxu0 0.0
    %3106 = vmatprep.subr.mxu0 0.0
    %3107 = vmatpush1.xpose.msra.mxu0 0.0
    %3108 = vmatprep.subr.mxu0 0.0
    %3109 = vmatpush1.xpose.msra.mxu0 0.0
    %3110 = vmatprep.subr.mxu0 0.0
    %3111 = vmatpush1.xpose.msra.mxu0 0.0
    %3112 = vmatprep.subr.mxu0 0.0
    %3113 = vmatpush1.xpose.msra.mxu0 0.0
    %3114 = vmatprep.subr.mxu0 0.0
    %3115 = vmatpush1.xpose.msra.mxu0 0.0
    %3116 = vmatprep.subr.mxu0 0.0
    %3117 = vmatpush1.xpose.msra.mxu0 0.0
    %3118 = vmatprep.subr.mxu0 0.0
    %3119 = vmatpush1.xpose.msra.mxu0 0.0
    %3120 = vmatprep.subr.mxu0 0.0
    %3121 = vmatpush1.xpose.msra.mxu0 0.0
    %3122 = vmatprep.subr.mxu0 0.0
    %3123 = vmatpush1.xpose.msra.mxu0 0.0
    %3124 = vmatprep.subr.mxu0 0.0
    %3125 = vmatpush1.xpose.msra.mxu0 0.0
    %3126 = vmatprep.subr.mxu0 0.0
    %3127 = vmatpush1.xpose.msra.mxu0 0.0
    %3128 = vmatprep.subr.mxu0 0.0
    %3129 = vmatpush1.xpose.msra.mxu0 0.0
    %3130 = vmatprep.subr.mxu0 0.0
    %3131 = vmatpush1.xpose.msra.mxu0 0.0
    %3132 = vmatprep.subr.mxu0 0.0
    %3133 = vmatpush1.xpose.msra.mxu0 0.0
    %3134 = vmatprep.subr.mxu0 0.0
    %3135 = vmatpush1.xpose.msra.mxu0 0.0
    %3136 = vmatprep.subr.mxu0 0.0
    %3137 = vmatpush1.xpose.msra.mxu0 0.0
    %3138 = vmatprep.subr.mxu0 0.0
    %3139 = vmatpush1.xpose.msra.mxu0 0.0
    %3140 = vmatprep.subr.mxu0 0.0
    %3141 = vmatpush1.xpose.msra.mxu0 0.0
    %3142 = vmatprep.subr.mxu0 0.0
    %3143 = vmatpush1.xpose.msra.mxu0 0.0
    %3144 = vmatprep.subr.mxu0 0.0
    %3145 = vmatpush1.xpose.msra.mxu0 0.0
    %3146 = vmatprep.subr.mxu0 0.0
    %3147 = vmatpush1.xpose.msra.mxu0 0.0
    %3148 = vmatprep.subr.mxu0 0.0
    %3149 = vmatpush1.xpose.msra.mxu0 0.0
    %3150 = vmatprep.subr.mxu0 0.0
    %3151 = vmatpush1.xpose.msra.mxu0 0.0
    %3152 = vmatprep.subr.mxu0 0.0
    %3153 = vmatpush1.xpose.msra.mxu0 0.0
    %3154 = vmatprep.subr.mxu0 0.0
    %3155 = vmatpush1.xpose.msra.mxu0 0.0
    %3156 = vmatprep.subr.mxu0 0.0
    %3157 = vmatpush1.xpose.msra.mxu0 0.0
    %3158 = vmatprep.subr.mxu0 0.0
    %3159 = vmatpush1.xpose.msra.mxu0 0.0
    %3160 = vmatprep.mubr.f32.mxu0 0.0
    %3161 = vmatmul.mubr.f32.gmra.mrb[0].mxu0 %v3088
    %v3162 = vpop.f32.mrb[0].mxu0
    %v3163 = vadd.f32 0.0, %v3162
    %v3164 = vpop.f32.mrb[0].mxu0
    %3165 = vmatprep.mubr.f32.mxu0 0.0
    %3166 = vmatmul.mubr.f32.gmra.mrb[0].mxu0 %v3090
    %v3167 = vpop.f32.mrb[0].mxu0
    %v3168 = vadd.f32 0.0, %v3167
    %v3169 = vpop.f32.mrb[0].mxu0
    %3170 = vdwg.mxu0
    %v3171 = vmul.f32 %v3163, 0.20412415
    %v3172 = vmul.f32 %v3168, 0.20412415
    %v3173 = vsel %vm2972, %v3171, -inf
    %3174 = vmax.xlane.f32.xlu0 %v3173
    %v3175 = vpop.xlane.xlu0 %3174
    %v3176 = vsel %vm2976, %v3172, -inf
    %3177 = vmax.xlane.f32.xlu0 %v3176
    %v3178 = vpop.xlane.xlu0 %3177
    %v3179 = vsub.f32 %v3171, %v3175
    %v3180 = vsub.f32 %v3172, %v3178
    %v3181 = vmul.f32 %v3179, 1.442695
    %v3182 = vpow.pop %v3181
    %v3183 = vmul.f32 %v3180, 1.442695
    %v3184 = vpow.pop %v3183
    %v3185 = vsel %vm2972, %v3182, 0.0
    %3186 = vadd.xlane.f32.xlu0 %v3185
    %v3187 = vpop.xlane.xlu0 %3186
    %v3188 = vsel %vm2976, %v3184, 0.0
    %3189 = vadd.xlane.f32.xlu0 %v3188
    %v3190 = vpop.xlane.xlu0 %3189
    %v3191 = vrcp.pop %v3187
    %v3192 = vrcp.pop %v3190
    %v3193 = vmul.f32 %v3182, %v3191
    %v3194 = vmul.f32 %v3184, %v3192
    %3196 = vrot.lane.b32.xlu0 %v2870, 96
    %v3197 = vpop.permute.xlu0 %3196
    %3198 = vrot.lane.b32.xlu0 %v2873, 96
    %v3199 = vpop.permute.xlu0 %3198
    %v3202 = vsel %vm2972, %v3193, 0
    %v3205 = vsel %vm2972, %v3194, 0
    %v3207 = vsel %vm37, %v3199, 0
    %3209 = vmatprep.subr.mxu0 0.0
    %3210 = vmatpush1.msra.mxu0 %v3197
    %3211 = vmatprep.subr.mxu0 0.0
    %3212 = vmatpush1.msra.mxu0 %v3207
    %3213 = vmatprep.subr.mxu0 0.0
    %3214 = vmatpush1.msra.mxu0 0.0
    %3215 = vmatprep.subr.mxu0 0.0
    %3216 = vmatpush1.msra.mxu0 0.0
    %3217 = vmatprep.subr.mxu0 0.0
    %3218 = vmatpush1.msra.mxu0 0.0
    %3219 = vmatprep.subr.mxu0 0.0
    %3220 = vmatpush1.msra.mxu0 0.0
    %3221 = vmatprep.subr.mxu0 0.0
    %3222 = vmatpush1.msra.mxu0 0.0
    %3223 = vmatprep.subr.mxu0 0.0
    %3224 = vmatpush1.msra.mxu0 0.0
    %3225 = vmatprep.subr.mxu0 0.0
    %3226 = vmatpush1.msra.mxu0 0.0
    %3227 = vmatprep.subr.mxu0 0.0
    %3228 = vmatpush1.msra.mxu0 0.0
    %3229 = vmatprep.subr.mxu0 0.0
    %3230 = vmatpush1.msra.mxu0 0.0
    %3231 = vmatprep.subr.mxu0 0.0
    %3232 = vmatpush1.msra.mxu0 0.0
    %3233 = vmatprep.subr.mxu0 0.0
    %3234 = vmatpush1.msra.mxu0 0.0
    %3235 = vmatprep.subr.mxu0 0.0
    %3236 = vmatpush1.msra.mxu0 0.0
    %3237 = vmatprep.subr.mxu0 0.0
    %3238 = vmatpush1.msra.mxu0 0.0
    %3239 = vmatprep.subr.mxu0 0.0
    %3240 = vmatpush1.msra.mxu0 0.0
    %3241 = vmatprep.subr.mxu0 0.0
    %3242 = vmatpush1.msra.mxu0 0.0
    %3243 = vmatprep.subr.mxu0 0.0
    %3244 = vmatpush1.msra.mxu0 0.0
    %3245 = vmatprep.subr.mxu0 0.0
    %3246 = vmatpush1.msra.mxu0 0.0
    %3247 = vmatprep.subr.mxu0 0.0
    %3248 = vmatpush1.msra.mxu0 0.0
    %3249 = vmatprep.subr.mxu0 0.0
    %3250 = vmatpush1.msra.mxu0 0.0
    %3251 = vmatprep.subr.mxu0 0.0
    %3252 = vmatpush1.msra.mxu0 0.0
    %3253 = vmatprep.subr.mxu0 0.0
    %3254 = vmatpush1.msra.mxu0 0.0
    %3255 = vmatprep.subr.mxu0 0.0
    %3256 = vmatpush1.msra.mxu0 0.0
    %3257 = vmatprep.subr.mxu0 0.0
    %3258 = vmatpush1.msra.mxu0 0.0
    %3259 = vmatprep.subr.mxu0 0.0
    %3260 = vmatpush1.msra.mxu0 0.0
    %3261 = vmatprep.subr.mxu0 0.0
    %3262 = vmatpush1.msra.mxu0 0.0
    %3263 = vmatprep.subr.mxu0 0.0
    %3264 = vmatpush1.msra.mxu0 0.0
    %3265 = vmatprep.subr.mxu0 0.0
    %3266 = vmatpush1.msra.mxu0 0.0
    %3267 = vmatprep.subr.mxu0 0.0
    %3268 = vmatpush1.msra.mxu0 0.0
    %3269 = vmatprep.subr.mxu0 0.0
    %3270 = vmatpush1.msra.mxu0 0.0
    %3271 = vmatprep.subr.mxu0 0.0
    %3272 = vmatpush1.msra.mxu0 0.0
    %3273 = vmatprep.mubr.f32.mxu0 0.0
    %3274 = vmatmul.mubr.f32.gmra.mrb[0].mxu0 %v3202
    %v3275 = vpop.f32.mrb[0].mxu0
    %v3276 = vadd.f32 0.0, %v3275
    %v3277 = vpop.f32.mrb[0].mxu0
    %3278 = vmatprep.mubr.f32.mxu0 0.0
    %3279 = vmatmul.mubr.f32.gmra.mrb[0].mxu0 %v3205
    %v3280 = vpop.f32.mrb[0].mxu0
    %v3281 = vadd.f32 0.0, %v3280
    %v3282 = vpop.f32.mrb[0].mxu0
    %3283 = vdwg.mxu0
    %3284 = vrot.lane.b32.xlu0 %v2628, 64
    %v3285 = vpop.permute.xlu0 %3284
    %3286 = vrot.lane.b32.xlu0 %v2631, 64
    %v3287 = vpop.permute.xlu0 %3286
    %3288 = vrot.lane.b32.xlu0 %v2749, 64
    %v3289 = vpop.permute.xlu0 %3288
    %3290 = vrot.lane.b32.xlu0 %v2752, 64
    %v3291 = vpop.permute.xlu0 %3290
    %v3292 = vsel %vm559, %v3285, 0
    %v3294 = vsel %vm559, %v3287, 0
    %v3296 = vsel %vm559, %v3289, 0
    %v3298 = vsel %vm559, %v3291, 0
    %3300 = vmatprep.subr.mxu0 0.0
    %3301 = vmatpush1.xpose.msra.mxu0 %v3296
    %3302 = vmatprep.subr.mxu0 0.0
    %3303 = vmatpush1.xpose.msra.mxu0 %v3298
    %3304 = vmatprep.subr.mxu0 0.0
    %3305 = vmatpush1.xpose.msra.mxu0 0.0
    %3306 = vmatprep.subr.mxu0 0.0
    %3307 = vmatpush1.xpose.msra.mxu0 0.0
    %3308 = vmatprep.subr.mxu0 0.0
    %3309 = vmatpush1.xpose.msra.mxu0 0.0
    %3310 = vmatprep.subr.mxu0 0.0
    %3311 = vmatpush1.xpose.msra.mxu0 0.0
    %3312 = vmatprep.subr.mxu0 0.0
    %3313 = vmatpush1.xpose.msra.mxu0 0.0
    %3314 = vmatprep.subr.mxu0 0.0
    %3315 = vmatpush1.xpose.msra.mxu0 0.0
    %3316 = vmatprep.subr.mxu0 0.0
    %3317 = vmatpush1.xpose.msra.mxu0 0.0
    %3318 = vmatprep.subr.mxu0 0.0
    %3319 = vmatpush1.xpose.msra.mxu0 0.0
    %3320 = vmatprep.subr.mxu0 0.0
    %3321 = vmatpush1.xpose.msra.mxu0 0.0
    %3322 = vmatprep.subr.mxu0 0.0
    %3323 = vmatpush1.xpose.msra.mxu0 0.0
    %3324 = vmatprep.subr.mxu0 0.0
    %3325 = vmatpush1.xpose.msra.mxu0 0.0
    %3326 = vmatprep.subr.mxu0 0.0
    %3327 = vmatpush1.xpose.msra.mxu0 0.0
    %3328 = vmatprep.subr.mxu0 0.0
    %3329 = vmatpush1.xpose.msra.mxu0 0.0
    %3330 = vmatprep.subr.mxu0 0.0
    %3331 = vmatpush1.xpose.msra.mxu0 0.0
    %3332 = vmatprep.subr.mxu0 0.0
    %3333 = vmatpush1.xpose.msra.mxu0 0.0
    %3334 = vmatprep.subr.mxu0 0.0
    %3335 = vmatpush1.xpose.msra.mxu0 0.0
    %3336 = vmatprep.subr.mxu0 0.0
    %3337 = vmatpush1.xpose.msra.mxu0 0.0
    %3338 = vmatprep.subr.mxu0 0.0
    %3339 = vmatpush1.xpose.msra.mxu0 0.0
    %3340 = vmatprep.subr.mxu0 0.0
    %3341 = vmatpush1.xpose.msra.mxu0 0.0
    %3342 = vmatprep.subr.mxu0 0.0
    %3343 = vmatpush1.xpose.msra.mxu0 0.0
    %3344 = vmatprep.subr.mxu0 0.0
    %3345 = vmatpush1.xpose.msra.mxu0 0.0
    %3346 = vmatprep.subr.mxu0 0.0
    %3347 = vmatpush1.xpose.msra.mxu0 0.0
    %3348 = vmatprep.subr.mxu0 0.0
    %3349 = vmatpush1.xpose.msra.mxu0 0.0
    %3350 = vmatprep.subr.mxu0 0.0
    %3351 = vmatpush1.xpose.msra.mxu0 0.0
    %3352 = vmatprep.subr.mxu0 0.0
    %3353 = vmatpush1.xpose.msra.mxu0 0.0
    %3354 = vmatprep.subr.mxu0 0.0
    %3355 = vmatpush1.xpose.msra.mxu0 0.0
    %3356 = vmatprep.subr.mxu0 0.0
    %3357 = vmatpush1.xpose.msra.mxu0 0.0
    %3358 = vmatprep.subr.mxu0 0.0
    %3359 = vmatpush1.xpose.msra.mxu0 0.0
    %3360 = vmatprep.subr.mxu0 0.0
    %3361 = vmatpush1.xpose.msra.mxu0 0.0
    %3362 = vmatprep.subr.mxu0 0.0
    %3363 = vmatpush1.xpose.msra.mxu0 0.0
    %3364 = vmatprep.mubr.f32.mxu0 0.0
    %3365 = vmatmul.mubr.f32.gmra.mrb[0].mxu0 %v3292
    %v3366 = vpop.f32.mrb[0].mxu0
    %v3367 = vadd.f32 0.0, %v3366
    %v3368 = vpop.f32.mrb[0].mxu0
    %3369 = vmatprep.mubr.f32.mxu0 0.0
    %3370 = vmatmul.mubr.f32.gmra.mrb[0].mxu0 %v3294
    %v3371 = vpop.f32.mrb[0].mxu0
    %v3372 = vadd.f32 0.0, %v3371
    %v3373 = vpop.f32.mrb[0].mxu0
    %3374 = vdwg.mxu0
    %v3375 = vmul.f32 %v3367, 0.20412415
    %v3376 = vmul.f32 %v3372, 0.20412415
    %v3377 = vsel %vm2972, %v3375, -inf
    %3378 = vmax.xlane.f32.xlu0 %v3377
    %v3379 = vpop.xlane.xlu0 %3378
    %v3380 = vsel %vm2976, %v3376, -inf
    %3381 = vmax.xlane.f32.xlu0 %v3380
    %v3382 = vpop.xlane.xlu0 %3381
    %v3383 = vsub.f32 %v3375, %v3379
    %v3384 = vsub.f32 %v3376, %v3382
    %v3385 = vmul.f32 %v3383, 1.442695
    %v3386 = vpow.pop %v3385
    %v3387 = vmul.f32 %v3384, 1.442695
    %v3388 = vpow.pop %v3387
    %v3389 = vsel %vm2972, %v3386, 0.0
    %3390 = vadd.xlane.f32.xlu0 %v3389
    %v3391 = vpop.xlane.xlu0 %3390
    %v3392 = vsel %vm2976, %v3388, 0.0
    %3393 = vadd.xlane.f32.xlu0 %v3392
    %v3394 = vpop.xlane.xlu0 %3393
    %v3395 = vrcp.pop %v3391
    %v3396 = vrcp.pop %v3394
    %v3397 = vmul.f32 %v3386, %v3395
    %v3398 = vmul.f32 %v3388, %v3396
    %3399 = vrot.lane.b32.xlu0 %v2870, 64
    %v3400 = vpop.permute.xlu0 %3399
    %3401 = vrot.lane.b32.xlu0 %v2873, 64
    %v3402 = vpop.permute.xlu0 %3401
    %v3405 = vsel %vm2972, %v3397, 0
    %v3408 = vsel %vm2972, %v3398, 0
    %v3410 = vsel %vm37, %v3402, 0
    %3412 = vmatprep.subr.mxu0 0.0
    %3413 = vmatpush1.msra.mxu0 %v3400
    %3414 = vmatprep.subr.mxu0 0.0
    %3415 = vmatpush1.msra.mxu0 %v3410
    %3416 = vmatprep.subr.mxu0 0.0
    %3417 = vmatpush1.msra.mxu0 0.0
    %3418 = vmatprep.subr.mxu0 0.0
    %3419 = vmatpush1.msra.mxu0 0.0
    %3420 = vmatprep.subr.mxu0 0.0
    %3421 = vmatpush1.msra.mxu0 0.0
    %3422 = vmatprep.subr.mxu0 0.0
    %3423 = vmatpush1.msra.mxu0 0.0
    %3424 = vmatprep.subr.mxu0 0.0
    %3425 = vmatpush1.msra.mxu0 0.0
    %3426 = vmatprep.subr.mxu0 0.0
    %3427 = vmatpush1.msra.mxu0 0.0
    %3428 = vmatprep.subr.mxu0 0.0
    %3429 = vmatpush1.msra.mxu0 0.0
    %3430 = vmatprep.subr.mxu0 0.0
    %3431 = vmatpush1.msra.mxu0 0.0
    %3432 = vmatprep.subr.mxu0 0.0
    %3433 = vmatpush1.msra.mxu0 0.0
    %3434 = vmatprep.subr.mxu0 0.0
    %3435 = vmatpush1.msra.mxu0 0.0
    %3436 = vmatprep.subr.mxu0 0.0
    %3437 = vmatpush1.msra.mxu0 0.0
    %3438 = vmatprep.subr.mxu0 0.0
    %3439 = vmatpush1.msra.mxu0 0.0
    %3440 = vmatprep.subr.mxu0 0.0
    %3441 = vmatpush1.msra.mxu0 0.0
    %3442 = vmatprep.subr.mxu0 0.0
    %3443 = vmatpush1.msra.mxu0 0.0
    %3444 = vmatprep.subr.mxu0 0.0
    %3445 = vmatpush1.msra.mxu0 0.0
    %3446 = vmatprep.subr.mxu0 0.0
    %3447 = vmatpush1.msra.mxu0 0.0
    %3448 = vmatprep.subr.mxu0 0.0
    %3449 = vmatpush1.msra.mxu0 0.0
    %3450 = vmatprep.subr.mxu0 0.0
    %3451 = vmatpush1.msra.mxu0 0.0
    %3452 = vmatprep.subr.mxu0 0.0
    %3453 = vmatpush1.msra.mxu0 0.0
    %3454 = vmatprep.subr.mxu0 0.0
    %3455 = vmatpush1.msra.mxu0 0.0
    %3456 = vmatprep.subr.mxu0 0.0
    %3457 = vmatpush1.msra.mxu0 0.0
    %3458 = vmatprep.subr.mxu0 0.0
    %3459 = vmatpush1.msra.mxu0 0.0
    %3460 = vmatprep.subr.mxu0 0.0
    %3461 = vmatpush1.msra.mxu0 0.0
    %3462 = vmatprep.subr.mxu0 0.0
    %3463 = vmatpush1.msra.mxu0 0.0
    %3464 = vmatprep.subr.mxu0 0.0
    %3465 = vmatpush1.msra.mxu0 0.0
    %3466 = vmatprep.subr.mxu0 0.0
    %3467 = vmatpush1.msra.mxu0 0.0
    %3468 = vmatprep.subr.mxu0 0.0
    %3469 = vmatpush1.msra.mxu0 0.0
    %3470 = vmatprep.subr.mxu0 0.0
    %3471 = vmatpush1.msra.mxu0 0.0
    %3472 = vmatprep.subr.mxu0 0.0
    %3473 = vmatpush1.msra.mxu0 0.0
    %3474 = vmatprep.subr.mxu0 0.0
    %3475 = vmatpush1.msra.mxu0 0.0
    %3476 = vmatprep.mubr.f32.mxu0 0.0
    %3477 = vmatmul.mubr.f32.gmra.mrb[0].mxu0 %v3405
    %v3478 = vpop.f32.mrb[0].mxu0
    %v3479 = vadd.f32 0.0, %v3478
    %v3480 = vpop.f32.mrb[0].mxu0
    %3481 = vmatprep.mubr.f32.mxu0 0.0
    %3482 = vmatmul.mubr.f32.gmra.mrb[0].mxu0 %v3408
    %v3483 = vpop.f32.mrb[0].mxu0
    %v3484 = vadd.f32 0.0, %v3483
    %v3485 = vpop.f32.mrb[0].mxu0
    %3486 = vdwg.mxu0
    %3487 = vrot.lane.b32.xlu0 %v2628, 32
    %v3488 = vpop.permute.xlu0 %3487
    %3489 = vrot.lane.b32.xlu0 %v2631, 32
    %v3490 = vpop.permute.xlu0 %3489
    %3491 = vrot.lane.b32.xlu0 %v2749, 32
    %v3492 = vpop.permute.xlu0 %3491
    %3493 = vrot.lane.b32.xlu0 %v2752, 32
    %v3494 = vpop.permute.xlu0 %3493
    %v3495 = vsel %vm559, %v3488, 0
    %v3497 = vsel %vm559, %v3490, 0
    %v3499 = vsel %vm559, %v3492, 0
    %v3501 = vsel %vm559, %v3494, 0
    %3503 = vmatprep.subr.mxu0 0.0
    %3504 = vmatpush1.xpose.msra.mxu0 %v3499
    %3505 = vmatprep.subr.mxu0 0.0
    %3506 = vmatpush1.xpose.msra.mxu0 %v3501
    %3507 = vmatprep.subr.mxu0 0.0
    %3508 = vmatpush1.xpose.msra.mxu0 0.0
    %3509 = vmatprep.subr.mxu0 0.0
    %3510 = vmatpush1.xpose.msra.mxu0 0.0
    %3511 = vmatprep.subr.mxu0 0.0
    %3512 = vmatpush1.xpose.msra.mxu0 0.0
    %3513 = vmatprep.subr.mxu0 0.0
    %3514 = vmatpush1.xpose.msra.mxu0 0.0
    %3515 = vmatprep.subr.mxu0 0.0
    %3516 = vmatpush1.xpose.msra.mxu0 0.0
    %3517 = vmatprep.subr.mxu0 0.0
    %3518 = vmatpush1.xpose.msra.mxu0 0.0
    %3519 = vmatprep.subr.mxu0 0.0
    %3520 = vmatpush1.xpose.msra.mxu0 0.0
    %3521 = vmatprep.subr.mxu0 0.0
    %3522 = vmatpush1.xpose.msra.mxu0 0.0
    %3523 = vmatprep.subr.mxu0 0.0
    %3524 = vmatpush1.xpose.msra.mxu0 0.0
    %3525 = vmatprep.subr.mxu0 0.0
    %3526 = vmatpush1.xpose.msra.mxu0 0.0
    %3527 = vmatprep.subr.mxu0 0.0
    %3528 = vmatpush1.xpose.msra.mxu0 0.0
    %3529 = vmatprep.subr.mxu0 0.0
    %3530 = vmatpush1.xpose.msra.mxu0 0.0
    %3531 = vmatprep.subr.mxu0 0.0
    %3532 = vmatpush1.xpose.msra.mxu0 0.0
    %3533 = vmatprep.subr.mxu0 0.0
    %3534 = vmatpush1.xpose.msra.mxu0 0.0
    %3535 = vmatprep.subr.mxu0 0.0
    %3536 = vmatpush1.xpose.msra.mxu0 0.0
    %3537 = vmatprep.subr.mxu0 0.0
    %3538 = vmatpush1.xpose.msra.mxu0 0.0
    %3539 = vmatprep.subr.mxu0 0.0
    %3540 = vmatpush1.xpose.msra.mxu0 0.0
    %3541 = vmatprep.subr.mxu0 0.0
    %3542 = vmatpush1.xpose.msra.mxu0 0.0
    %3543 = vmatprep.subr.mxu0 0.0
    %3544 = vmatpush1.xpose.msra.mxu0 0.0
    %3545 = vmatprep.subr.mxu0 0.0
    %3546 = vmatpush1.xpose.msra.mxu0 0.0
    %3547 = vmatprep.subr.mxu0 0.0
    %3548 = vmatpush1.xpose.msra.mxu0 0.0
    %3549 = vmatprep.subr.mxu0 0.0
    %3550 = vmatpush1.xpose.msra.mxu0 0.0
    %3551 = vmatprep.subr.mxu0 0.0
    %3552 = vmatpush1.xpose.msra.mxu0 0.0
    %3553 = vmatprep.subr.mxu0 0.0
    %3554 = vmatpush1.xpose.msra.mxu0 0.0
    %3555 = vmatprep.subr.mxu0 0.0
    %3556 = vmatpush1.xpose.msra.mxu0 0.0
    %3557 = vmatprep.subr.mxu0 0.0
    %3558 = vmatpush1.xpose.msra.mxu0 0.0
    %3559 = vmatprep.subr.mxu0 0.0
    %3560 = vmatpush1.xpose.msra.mxu0 0.0
    %3561 = vmatprep.subr.mxu0 0.0
    %3562 = vmatpush1.xpose.msra.mxu0 0.0
    %3563 = vmatprep.subr.mxu0 0.0
    %3564 = vmatpush1.xpose.msra.mxu0 0.0
    %3565 = vmatprep.subr.mxu0 0.0
    %3566 = vmatpush1.xpose.msra.mxu0 0.0
    %3567 = vmatprep.mubr.f32.mxu0 0.0
    %3568 = vmatmul.mubr.f32.gmra.mrb[0].mxu0 %v3495
    %v3569 = vpop.f32.mrb[0].mxu0
    %v3570 = vadd.f32 0.0, %v3569
    %v3571 = vpop.f32.mrb[0].mxu0
    %3572 = vmatprep.mubr.f32.mxu0 0.0
    %3573 = vmatmul.mubr.f32.gmra.mrb[0].mxu0 %v3497
    %v3574 = vpop.f32.mrb[0].mxu0
    %v3575 = vadd.f32 0.0, %v3574
    %v3576 = vpop.f32.mrb[0].mxu0
    %3577 = vdwg.mxu0
    %v3578 = vmul.f32 %v3570, 0.20412415
    %v3579 = vmul.f32 %v3575, 0.20412415
    %v3580 = vsel %vm2972, %v3578, -inf
    %3581 = vmax.xlane.f32.xlu0 %v3580
    %v3582 = vpop.xlane.xlu0 %3581
    %v3583 = vsel %vm2976, %v3579, -inf
    %3584 = vmax.xlane.f32.xlu0 %v3583
    %v3585 = vpop.xlane.xlu0 %3584
    %v3586 = vsub.f32 %v3578, %v3582
    %v3587 = vsub.f32 %v3579, %v3585
    %v3588 = vmul.f32 %v3586, 1.442695
    %v3589 = vpow.pop %v3588
    %v3590 = vmul.f32 %v3587, 1.442695
    %v3591 = vpow.pop %v3590
    %v3592 = vsel %vm2972, %v3589, 0.0
    %3593 = vadd.xlane.f32.xlu0 %v3592
    %v3594 = vpop.xlane.xlu0 %3593
    %v3595 = vsel %vm2976, %v3591, 0.0
    %3596 = vadd.xlane.f32.xlu0 %v3595
    %v3597 = vpop.xlane.xlu0 %3596
    %v3598 = vrcp.pop %v3594
    %v3599 = vrcp.pop %v3597
    %v3600 = vmul.f32 %v3589, %v3598
    %v3601 = vmul.f32 %v3591, %v3599
    %3602 = vrot.lane.b32.xlu0 %v2870, 32
    %v3603 = vpop.permute.xlu0 %3602
    %3604 = vrot.lane.b32.xlu0 %v2873, 32
    %v3605 = vpop.permute.xlu0 %3604
    %v3608 = vsel %vm2972, %v3600, 0
    %v3611 = vsel %vm2972, %v3601, 0
    %v3613 = vsel %vm37, %v3605, 0
    %3615 = vmatprep.subr.mxu0 0.0
    %3616 = vmatpush1.msra.mxu0 %v3603
    %3617 = vmatprep.subr.mxu0 0.0
    %3618 = vmatpush1.msra.mxu0 %v3613
    %3619 = vmatprep.subr.mxu0 0.0
    %3620 = vmatpush1.msra.mxu0 0.0
    %3621 = vmatprep.subr.mxu0 0.0
    %3622 = vmatpush1.msra.mxu0 0.0
    %3623 = vmatprep.subr.mxu0 0.0
    %3624 = vmatpush1.msra.mxu0 0.0
    %3625 = vmatprep.subr.mxu0 0.0
    %3626 = vmatpush1.msra.mxu0 0.0
    %3627 = vmatprep.subr.mxu0 0.0
    %3628 = vmatpush1.msra.mxu0 0.0
    %3629 = vmatprep.subr.mxu0 0.0
    %3630 = vmatpush1.msra.mxu0 0.0
    %3631 = vmatprep.subr.mxu0 0.0
    %3632 = vmatpush1.msra.mxu0 0.0
    %3633 = vmatprep.subr.mxu0 0.0
    %3634 = vmatpush1.msra.mxu0 0.0
    %3635 = vmatprep.subr.mxu0 0.0
    %3636 = vmatpush1.msra.mxu0 0.0
    %3637 = vmatprep.subr.mxu0 0.0
    %3638 = vmatpush1.msra.mxu0 0.0
    %3639 = vmatprep.subr.mxu0 0.0
    %3640 = vmatpush1.msra.mxu0 0.0
    %3641 = vmatprep.subr.mxu0 0.0
    %3642 = vmatpush1.msra.mxu0 0.0
    %3643 = vmatprep.subr.mxu0 0.0
    %3644 = vmatpush1.msra.mxu0 0.0
    %3645 = vmatprep.subr.mxu0 0.0
    %3646 = vmatpush1.msra.mxu0 0.0
    %3647 = vmatprep.subr.mxu0 0.0
    %3648 = vmatpush1.msra.mxu0 0.0
    %3649 = vmatprep.subr.mxu0 0.0
    %3650 = vmatpush1.msra.mxu0 0.0
    %3651 = vmatprep.subr.mxu0 0.0
    %3652 = vmatpush1.msra.mxu0 0.0
    %3653 = vmatprep.subr.mxu0 0.0
    %3654 = vmatpush1.msra.mxu0 0.0
    %3655 = vmatprep.subr.mxu0 0.0
    %3656 = vmatpush1.msra.mxu0 0.0
    %3657 = vmatprep.subr.mxu0 0.0
    %3658 = vmatpush1.msra.mxu0 0.0
    %3659 = vmatprep.subr.mxu0 0.0
    %3660 = vmatpush1.msra.mxu0 0.0
    %3661 = vmatprep.subr.mxu0 0.0
    %3662 = vmatpush1.msra.mxu0 0.0
    %3663 = vmatprep.subr.mxu0 0.0
    %3664 = vmatpush1.msra.mxu0 0.0
    %3665 = vmatprep.subr.mxu0 0.0
    %3666 = vmatpush1.msra.mxu0 0.0
    %3667 = vmatprep.subr.mxu0 0.0
    %3668 = vmatpush1.msra.mxu0 0.0
    %3669 = vmatprep.subr.mxu0 0.0
    %3670 = vmatpush1.msra.mxu0 0.0
    %3671 = vmatprep.subr.mxu0 0.0
    %3672 = vmatpush1.msra.mxu0 0.0
    %3673 = vmatprep.subr.mxu0 0.0
    %3674 = vmatpush1.msra.mxu0 0.0
    %3675 = vmatprep.subr.mxu0 0.0
    %3676 = vmatpush1.msra.mxu0 0.0
    %3677 = vmatprep.subr.mxu0 0.0
    %3678 = vmatpush1.msra.mxu0 0.0
    %3679 = vmatprep.mubr.f32.mxu0 0.0
    %3680 = vmatmul.mubr.f32.gmra.mrb[0].mxu0 %v3608
    %v3681 = vpop.f32.mrb[0].mxu0
    %v3682 = vadd.f32 0.0, %v3681
    %v3683 = vpop.f32.mrb[0].mxu0
    %3684 = vmatprep.mubr.f32.mxu0 0.0
    %3685 = vmatmul.mubr.f32.gmra.mrb[0].mxu0 %v3611
    %v3686 = vpop.f32.mrb[0].mxu0
    %v3687 = vadd.f32 0.0, %v3686
    %v3688 = vpop.f32.mrb[0].mxu0
    %3689 = vdwg.mxu0
    %3692 = vrot.lane.b32.xlu0 %v3276, 32
    %v3693 = vpop.permute.xlu0 %3692
    %3694 = vrot.lane.b32.xlu0 %v3281, 32
    %v3695 = vpop.permute.xlu0 %3694
    %3700 = vrot.lane.b32.xlu0 %v3479, 64
    %v3701 = vpop.permute.xlu0 %3700
    %3702 = vrot.lane.b32.xlu0 %v3484, 64
    %v3703 = vpop.permute.xlu0 %3702
    %3708 = vrot.lane.b32.xlu0 %v3682, 96
    %v3709 = vpop.permute.xlu0 %3708
    %3710 = vrot.lane.b32.xlu0 %v3687, 96
    %v3711 = vpop.permute.xlu0 %3710
    %v3714 = vsel %vm559, %v3072, %v3693
    %v3715 = vsel %vm559, %v3077, %v3695
    %v3716 = vsel %vm1402, %v3714, %v3701
    %v3717 = vsel %vm1402, %v3715, %v3703
    %v3718 = vsel %vm1405, %v3716, %v3709
    %v3719 = vsel %vm1405, %v3717, %v3711
    %v3721 = vrot.slane %v2631, 2
    %v3722 = vrot.slane %v2636, 2
    %v3723 = vsel %vm1409, %v3721, %v3722
    %v3725 = vrot.slane %v2752, 2
    %v3726 = vrot.slane %v2757, 2
    %v3727 = vsel %vm1409, %v3725, %v3726
    %v3728 = vsel %vm559, %v3723, 0
    %v3730 = vsel %vm559, %v3722, 0
    %v3732 = vsel %vm559, %v3727, 0
    %v3734 = vsel %vm559, %v3726, 0
    %3736 = vmatprep.subr.mxu0 0.0
    %3737 = vmatpush1.xpose.msra.mxu0 %v3732
    %3738 = vmatprep.subr.mxu0 0.0
    %3739 = vmatpush1.xpose.msra.mxu0 %v3734
    %3740 = vmatprep.subr.mxu0 0.0
    %3741 = vmatpush1.xpose.msra.mxu0 0.0
    %3742 = vmatprep.subr.mxu0 0.0
    %3743 = vmatpush1.xpose.msra.mxu0 0.0
    %3744 = vmatprep.subr.mxu0 0.0
    %3745 = vmatpush1.xpose.msra.mxu0 0.0
    %3746 = vmatprep.subr.mxu0 0.0
    %3747 = vmatpush1.xpose.msra.mxu0 0.0
    %3748 = vmatprep.subr.mxu0 0.0
    %3749 = vmatpush1.xpose.msra.mxu0 0.0
    %3750 = vmatprep.subr.mxu0 0.0
    %3751 = vmatpush1.xpose.msra.mxu0 0.0
    %3752 = vmatprep.subr.mxu0 0.0
    %3753 = vmatpush1.xpose.msra.mxu0 0.0
    %3754 = vmatprep.subr.mxu0 0.0
    %3755 = vmatpush1.xpose.msra.mxu0 0.0
    %3756 = vmatprep.subr.mxu0 0.0
    %3757 = vmatpush1.xpose.msra.mxu0 0.0
    %3758 = vmatprep.subr.mxu0 0.0
    %3759 = vmatpush1.xpose.msra.mxu0 0.0
    %3760 = vmatprep.subr.mxu0 0.0
    %3761 = vmatpush1.xpose.msra.mxu0 0.0
    %3762 = vmatprep.subr.mxu0 0.0
    %3763 = vmatpush1.xpose.msra.mxu0 0.0
    %3764 = vmatprep.subr.mxu0 0.0
    %3765 = vmatpush1.xpose.msra.mxu0 0.0
    %3766 = vmatprep.subr.mxu0 0.0
    %3767 = vmatpush1.xpose.msra.mxu0 0.0
    %3768 = vmatprep.subr.mxu0 0.0
    %3769 = vmatpush1.xpose.msra.mxu0 0.0
    %3770 = vmatprep.subr.mxu0 0.0
    %3771 = vmatpush1.xpose.msra.mxu0 0.0
    %3772 = vmatprep.subr.mxu0 0.0
    %3773 = vmatpush1.xpose.msra.mxu0 0.0
    %3774 = vmatprep.subr.mxu0 0.0
    %3775 = vmatpush1.xpose.msra.mxu0 0.0
    %3776 = vmatprep.subr.mxu0 0.0
    %3777 = vmatpush1.xpose.msra.mxu0 0.0
    %3778 = vmatprep.subr.mxu0 0.0
    %3779 = vmatpush1.xpose.msra.mxu0 0.0
    %3780 = vmatprep.subr.mxu0 0.0
    %3781 = vmatpush1.xpose.msra.mxu0 0.0
    %3782 = vmatprep.subr.mxu0 0.0
    %3783 = vmatpush1.xpose.msra.mxu0 0.0
    %3784 = vmatprep.subr.mxu0 0.0
    %3785 = vmatpush1.xpose.msra.mxu0 0.0
    %3786 = vmatprep.subr.mxu0 0.0
    %3787 = vmatpush1.xpose.msra.mxu0 0.0
    %3788 = vmatprep.subr.mxu0 0.0
    %3789 = vmatpush1.xpose.msra.mxu0 0.0
    %3790 = vmatprep.subr.mxu0 0.0
    %3791 = vmatpush1.xpose.msra.mxu0 0.0
    %3792 = vmatprep.subr.mxu0 0.0
    %3793 = vmatpush1.xpose.msra.mxu0 0.0
    %3794 = vmatprep.subr.mxu0 0.0
    %3795 = vmatpush1.xpose.msra.mxu0 0.0
    %3796 = vmatprep.subr.mxu0 0.0
    %3797 = vmatpush1.xpose.msra.mxu0 0.0
    %3798 = vmatprep.subr.mxu0 0.0
    %3799 = vmatpush1.xpose.msra.mxu0 0.0
    %3800 = vmatprep.mubr.f32.mxu0 0.0
    %3801 = vmatmul.mubr.f32.gmra.mrb[0].mxu0 %v3728
    %v3802 = vpop.f32.mrb[0].mxu0
    %v3803 = vadd.f32 0.0, %v3802
    %v3804 = vpop.f32.mrb[0].mxu0
    %3805 = vmatprep.mubr.f32.mxu0 0.0
    %3806 = vmatmul.mubr.f32.gmra.mrb[0].mxu0 %v3730
    %v3807 = vpop.f32.mrb[0].mxu0
    %v3808 = vadd.f32 0.0, %v3807
    %v3809 = vpop.f32.mrb[0].mxu0
    %3810 = vdwg.mxu0
    %v3811 = vmul.f32 %v3803, 0.20412415
    %v3812 = vmul.f32 %v3808, 0.20412415
    %v3813 = vsel %vm2972, %v3811, -inf
    %3814 = vmax.xlane.f32.xlu0 %v3813
    %v3815 = vpop.xlane.xlu0 %3814
    %v3816 = vsel %vm2976, %v3812, -inf
    %3817 = vmax.xlane.f32.xlu0 %v3816
    %v3818 = vpop.xlane.xlu0 %3817
    %v3819 = vsub.f32 %v3811, %v3815
    %v3820 = vsub.f32 %v3812, %v3818
    %v3821 = vmul.f32 %v3819, 1.442695
    %v3822 = vpow.pop %v3821
    %v3823 = vmul.f32 %v3820, 1.442695
    %v3824 = vpow.pop %v3823
    %v3825 = vsel %vm2972, %v3822, 0.0
    %3826 = vadd.xlane.f32.xlu0 %v3825
    %v3827 = vpop.xlane.xlu0 %3826
    %v3828 = vsel %vm2976, %v3824, 0.0
    %3829 = vadd.xlane.f32.xlu0 %v3828
    %v3830 = vpop.xlane.xlu0 %3829
    %v3831 = vrcp.pop %v3827
    %v3832 = vrcp.pop %v3830
    %v3833 = vmul.f32 %v3822, %v3831
    %v3834 = vmul.f32 %v3824, %v3832
    %v3836 = vrot.slane %v2873, 2
    %v3837 = vrot.slane %v2878, 2
    %v3838 = vsel %vm1409, %v3836, %v3837
    %v3841 = vsel %vm2972, %v3833, 0
    %v3844 = vsel %vm2972, %v3834, 0
    %v3846 = vsel %vm37, %v3837, 0
    %3848 = vmatprep.subr.mxu0 0.0
    %3849 = vmatpush1.msra.mxu0 %v3838
    %3850 = vmatprep.subr.mxu0 0.0
    %3851 = vmatpush1.msra.mxu0 %v3846
    %3852 = vmatprep.subr.mxu0 0.0
    %3853 = vmatpush1.msra.mxu0 0.0
    %3854 = vmatprep.subr.mxu0 0.0
    %3855 = vmatpush1.msra.mxu0 0.0
    %3856 = vmatprep.subr.mxu0 0.0
    %3857 = vmatpush1.msra.mxu0 0.0
    %3858 = vmatprep.subr.mxu0 0.0
    %3859 = vmatpush1.msra.mxu0 0.0
    %3860 = vmatprep.subr.mxu0 0.0
    %3861 = vmatpush1.msra.mxu0 0.0
    %3862 = vmatprep.subr.mxu0 0.0
    %3863 = vmatpush1.msra.mxu0 0.0
    %3864 = vmatprep.subr.mxu0 0.0
    %3865 = vmatpush1.msra.mxu0 0.0
    %3866 = vmatprep.subr.mxu0 0.0
    %3867 = vmatpush1.msra.mxu0 0.0
    %3868 = vmatprep.subr.mxu0 0.0
    %3869 = vmatpush1.msra.mxu0 0.0
    %3870 = vmatprep.subr.mxu0 0.0
    %3871 = vmatpush1.msra.mxu0 0.0
    %3872 = vmatprep.subr.mxu0 0.0
    %3873 = vmatpush1.msra.mxu0 0.0
    %3874 = vmatprep.subr.mxu0 0.0
    %3875 = vmatpush1.msra.mxu0 0.0
    %3876 = vmatprep.subr.mxu0 0.0
    %3877 = vmatpush1.msra.mxu0 0.0
    %3878 = vmatprep.subr.mxu0 0.0
    %3879 = vmatpush1.msra.mxu0 0.0
    %3880 = vmatprep.subr.mxu0 0.0
    %3881 = vmatpush1.msra.mxu0 0.0
    %3882 = vmatprep.subr.mxu0 0.0
    %3883 = vmatpush1.msra.mxu0 0.0
    %3884 = vmatprep.subr.mxu0 0.0
    %3885 = vmatpush1.msra.mxu0 0.0
    %3886 = vmatprep.subr.mxu0 0.0
    %3887 = vmatpush1.msra.mxu0 0.0
    %3888 = vmatprep.subr.mxu0 0.0
    %3889 = vmatpush1.msra.mxu0 0.0
    %3890 = vmatprep.subr.mxu0 0.0
    %3891 = vmatpush1.msra.mxu0 0.0
    %3892 = vmatprep.subr.mxu0 0.0
    %3893 = vmatpush1.msra.mxu0 0.0
    %3894 = vmatprep.subr.mxu0 0.0
    %3895 = vmatpush1.msra.mxu0 0.0
    %3896 = vmatprep.subr.mxu0 0.0
    %3897 = vmatpush1.msra.mxu0 0.0
    %3898 = vmatprep.subr.mxu0 0.0
    %3899 = vmatpush1.msra.mxu0 0.0
    %3900 = vmatprep.subr.mxu0 0.0
    %3901 = vmatpush1.msra.mxu0 0.0
    %3902 = vmatprep.subr.mxu0 0.0
    %3903 = vmatpush1.msra.mxu0 0.0
    %3904 = vmatprep.subr.mxu0 0.0
    %3905 = vmatpush1.msra.mxu0 0.0
    %3906 = vmatprep.subr.mxu0 0.0
    %3907 = vmatpush1.msra.mxu0 0.0
    %3908 = vmatprep.subr.mxu0 0.0
    %3909 = vmatpush1.msra.mxu0 0.0
    %3910 = vmatprep.subr.mxu0 0.0
    %3911 = vmatpush1.msra.mxu0 0.0
    %3912 = vmatprep.mubr.f32.mxu0 0.0
    %3913 = vmatmul.mubr.f32.gmra.mrb[0].mxu0 %v3841
    %v3914 = vpop.f32.mrb[0].mxu0
    %v3915 = vadd.f32 0.0, %v3914
    %v3916 = vpop.f32.mrb[0].mxu0
    %3917 = vmatprep.mubr.f32.mxu0 0.0
    %3918 = vmatmul.mubr.f32.gmra.mrb[0].mxu0 %v3844
    %v3919 = vpop.f32.mrb[0].mxu0
    %v3920 = vadd.f32 0.0, %v3919
    %v3921 = vpop.f32.mrb[0].mxu0
    %3922 = vdwg.mxu0
    %3923 = vrot.lane.b32.xlu0 %v3723, 96
    %v3924 = vpop.permute.xlu0 %3923
    %3925 = vrot.lane.b32.xlu0 %v3722, 96
    %v3926 = vpop.permute.xlu0 %3925
    %3927 = vrot.lane.b32.xlu0 %v3727, 96
    %v3928 = vpop.permute.xlu0 %3927
    %3929 = vrot.lane.b32.xlu0 %v3726, 96
    %v3930 = vpop.permute.xlu0 %3929
    %v3931 = vsel %vm559, %v3924, 0
    %v3933 = vsel %vm559, %v3926, 0
    %v3935 = vsel %vm559, %v3928, 0
    %v3937 = vsel %vm559, %v3930, 0
    %3939 = vmatprep.subr.mxu0 0.0
    %3940 = vmatpush1.xpose.msra.mxu0 %v3935
    %3941 = vmatprep.subr.mxu0 0.0
    %3942 = vmatpush1.xpose.msra.mxu0 %v3937
    %3943 = vmatprep.subr.mxu0 0.0
    %3944 = vmatpush1.xpose.msra.mxu0 0.0
    %3945 = vmatprep.subr.mxu0 0.0
    %3946 = vmatpush1.xpose.msra.mxu0 0.0
    %3947 = vmatprep.subr.mxu0 0.0
    %3948 = vmatpush1.xpose.msra.mxu0 0.0
    %3949 = vmatprep.subr.mxu0 0.0
    %3950 = vmatpush1.xpose.msra.mxu0 0.0
    %3951 = vmatprep.subr.mxu0 0.0
    %3952 = vmatpush1.xpose.msra.mxu0 0.0
    %3953 = vmatprep.subr.mxu0 0.0
    %3954 = vmatpush1.xpose.msra.mxu0 0.0
    %3955 = vmatprep.subr.mxu0 0.0
    %3956 = vmatpush1.xpose.msra.mxu0 0.0
    %3957 = vmatprep.subr.mxu0 0.0
    %3958 = vmatpush1.xpose.msra.mxu0 0.0
    %3959 = vmatprep.subr.mxu0 0.0
    %3960 = vmatpush1.xpose.msra.mxu0 0.0
    %3961 = vmatprep.subr.mxu0 0.0
    %3962 = vmatpush1.xpose.msra.mxu0 0.0
    %3963 = vmatprep.subr.mxu0 0.0
    %3964 = vmatpush1.xpose.msra.mxu0 0.0
    %3965 = vmatprep.subr.mxu0 0.0
    %3966 = vmatpush1.xpose.msra.mxu0 0.0
    %3967 = vmatprep.subr.mxu0 0.0
    %3968 = vmatpush1.xpose.msra.mxu0 0.0
    %3969 = vmatprep.subr.mxu0 0.0
    %3970 = vmatpush1.xpose.msra.mxu0 0.0
    %3971 = vmatprep.subr.mxu0 0.0
    %3972 = vmatpush1.xpose.msra.mxu0 0.0
    %3973 = vmatprep.subr.mxu0 0.0
    %3974 = vmatpush1.xpose.msra.mxu0 0.0
    %3975 = vmatprep.subr.mxu0 0.0
    %3976 = vmatpush1.xpose.msra.mxu0 0.0
    %3977 = vmatprep.subr.mxu0 0.0
    %3978 = vmatpush1.xpose.msra.mxu0 0.0
    %3979 = vmatprep.subr.mxu0 0.0
    %3980 = vmatpush1.xpose.msra.mxu0 0.0
    %3981 = vmatprep.subr.mxu0 0.0
    %3982 = vmatpush1.xpose.msra.mxu0 0.0
    %3983 = vmatprep.subr.mxu0 0.0
    %3984 = vmatpush1.xpose.msra.mxu0 0.0
    %3985 = vmatprep.subr.mxu0 0.0
    %3986 = vmatpush1.xpose.msra.mxu0 0.0
    %3987 = vmatprep.subr.mxu0 0.0
    %3988 = vmatpush1.xpose.msra.mxu0 0.0
    %3989 = vmatprep.subr.mxu0 0.0
    %3990 = vmatpush1.xpose.msra.mxu0 0.0
    %3991 = vmatprep.subr.mxu0 0.0
    %3992 = vmatpush1.xpose.msra.mxu0 0.0
    %3993 = vmatprep.subr.mxu0 0.0
    %3994 = vmatpush1.xpose.msra.mxu0 0.0
    %3995 = vmatprep.subr.mxu0 0.0
    %3996 = vmatpush1.xpose.msra.mxu0 0.0
    %3997 = vmatprep.subr.mxu0 0.0
    %3998 = vmatpush1.xpose.msra.mxu0 0.0
    %3999 = vmatprep.subr.mxu0 0.0
    %4000 = vmatpush1.xpose.msra.mxu0 0.0
    %4001 = vmatprep.subr.mxu0 0.0
    %4002 = vmatpush1.xpose.msra.mxu0 0.0
    %4003 = vmatprep.mubr.f32.mxu0 0.0
    %4004 = vmatmul.mubr.f32.gmra.mrb[0].mxu0 %v3931
    %v4005 = vpop.f32.mrb[0].mxu0
    %v4006 = vadd.f32 0.0, %v4005
    %v4007 = vpop.f32.mrb[0].mxu0
    %4008 = vmatprep.mubr.f32.mxu0 0.0
    %4009 = vmatmul.mubr.f32.gmra.mrb[0].mxu0 %v3933
    %v4010 = vpop.f32.mrb[0].mxu0
    %v4011 = vadd.f32 0.0, %v4010
    %v4012 = vpop.f32.mrb[0].mxu0
    %4013 = vdwg.mxu0
    %v4014 = vmul.f32 %v4006, 0.20412415
    %v4015 = vmul.f32 %v4011, 0.20412415
    %v4016 = vsel %vm2972, %v4014, -inf
    %4017 = vmax.xlane.f32.xlu0 %v4016
    %v4018 = vpop.xlane.xlu0 %4017
    %v4019 = vsel %vm2976, %v4015, -inf
    %4020 = vmax.xlane.f32.xlu0 %v4019
    %v4021 = vpop.xlane.xlu0 %4020
    %v4022 = vsub.f32 %v4014, %v4018
    %v4023 = vsub.f32 %v4015, %v4021
    %v4024 = vmul.f32 %v4022, 1.442695
    %v4025 = vpow.pop %v4024
    %v4026 = vmul.f32 %v4023, 1.442695
    %v4027 = vpow.pop %v4026
    %v4028 = vsel %vm2972, %v4025, 0.0
    %4029 = vadd.xlane.f32.xlu0 %v4028
    %v4030 = vpop.xlane.xlu0 %4029
    %v4031 = vsel %vm2976, %v4027, 0.0
    %4032 = vadd.xlane.f32.xlu0 %v4031
    %v4033 = vpop.xlane.xlu0 %4032
    %v4034 = vrcp.pop %v4030
    %v4035 = vrcp.pop %v4033
    %v4036 = vmul.f32 %v4025, %v4034
    %v4037 = vmul.f32 %v4027, %v4035
    %4038 = vrot.lane.b32.xlu0 %v3838, 96
    %v4039 = vpop.permute.xlu0 %4038
    %4040 = vrot.lane.b32.xlu0 %v3837, 96
    %v4041 = vpop.permute.xlu0 %4040
    %v4044 = vsel %vm2972, %v4036, 0
    %v4047 = vsel %vm2972, %v4037, 0
    %v4049 = vsel %vm37, %v4041, 0
    %4051 = vmatprep.subr.mxu0 0.0
    %4052 = vmatpush1.msra.mxu0 %v4039
    %4053 = vmatprep.subr.mxu0 0.0
    %4054 = vmatpush1.msra.mxu0 %v4049
    %4055 = vmatprep.subr.mxu0 0.0
    %4056 = vmatpush1.msra.mxu0 0.0
    %4057 = vmatprep.subr.mxu0 0.0
    %4058 = vmatpush1.msra.mxu0 0.0
    %4059 = vmatprep.subr.mxu0 0.0
    %4060 = vmatpush1.msra.mxu0 0.0
    %4061 = vmatprep.subr.mxu0 0.0
    %4062 = vmatpush1.msra.mxu0 0.0
    %4063 = vmatprep.subr.mxu0 0.0
    %4064 = vmatpush1.msra.mxu0 0.0
    %4065 = vmatprep.subr.mxu0 0.0
    %4066 = vmatpush1.msra.mxu0 0.0
    %4067 = vmatprep.subr.mxu0 0.0
    %4068 = vmatpush1.msra.mxu0 0.0
    %4069 = vmatprep.subr.mxu0 0.0
    %4070 = vmatpush1.msra.mxu0 0.0
    %4071 = vmatprep.subr.mxu0 0.0
    %4072 = vmatpush1.msra.mxu0 0.0
    %4073 = vmatprep.subr.mxu0 0.0
    %4074 = vmatpush1.msra.mxu0 0.0
    %4075 = vmatprep.subr.mxu0 0.0
    %4076 = vmatpush1.msra.mxu0 0.0
    %4077 = vmatprep.subr.mxu0 0.0
    %4078 = vmatpush1.msra.mxu0 0.0
    %4079 = vmatprep.subr.mxu0 0.0
    %4080 = vmatpush1.msra.mxu0 0.0
    %4081 = vmatprep.subr.mxu0 0.0
    %4082 = vmatpush1.msra.mxu0 0.0
    %4083 = vmatprep.subr.mxu0 0.0
    %4084 = vmatpush1.msra.mxu0 0.0
    %4085 = vmatprep.subr.mxu0 0.0
    %4086 = vmatpush1.msra.mxu0 0.0
    %4087 = vmatprep.subr.mxu0 0.0
    %4088 = vmatpush1.msra.mxu0 0.0
    %4089 = vmatprep.subr.mxu0 0.0
    %4090 = vmatpush1.msra.mxu0 0.0
    %4091 = vmatprep.subr.mxu0 0.0
    %4092 = vmatpush1.msra.mxu0 0.0
    %4093 = vmatprep.subr.mxu0 0.0
    %4094 = vmatpush1.msra.mxu0 0.0
    %4095 = vmatprep.subr.mxu0 0.0
    %4096 = vmatpush1.msra.mxu0 0.0
    %4097 = vmatprep.subr.mxu0 0.0
    %4098 = vmatpush1.msra.mxu0 0.0
    %4099 = vmatprep.subr.mxu0 0.0
    %4100 = vmatpush1.msra.mxu0 0.0
    %4101 = vmatprep.subr.mxu0 0.0
    %4102 = vmatpush1.msra.mxu0 0.0
    %4103 = vmatprep.subr.mxu0 0.0
    %4104 = vmatpush1.msra.mxu0 0.0
    %4105 = vmatprep.subr.mxu0 0.0
    %4106 = vmatpush1.msra.mxu0 0.0
    %4107 = vmatprep.subr.mxu0 0.0
    %4108 = vmatpush1.msra.mxu0 0.0
    %4109 = vmatprep.subr.mxu0 0.0
    %4110 = vmatpush1.msra.mxu0 0.0
    %4111 = vmatprep.subr.mxu0 0.0
    %4112 = vmatpush1.msra.mxu0 0.0
    %4113 = vmatprep.subr.mxu0 0.0
    %4114 = vmatpush1.msra.mxu0 0.0
    %4115 = vmatprep.mubr.f32.mxu0 0.0
    %4116 = vmatmul.mubr.f32.gmra.mrb[0].mxu0 %v4044
    %v4117 = vpop.f32.mrb[0].mxu0
    %v4118 = vadd.f32 0.0, %v4117
    %v4119 = vpop.f32.mrb[0].mxu0
    %4120 = vmatprep.mubr.f32.mxu0 0.0
    %4121 = vmatmul.mubr.f32.gmra.mrb[0].mxu0 %v4047
    %v4122 = vpop.f32.mrb[0].mxu0
    %v4123 = vadd.f32 0.0, %v4122
    %v4124 = vpop.f32.mrb[0].mxu0
    %4125 = vdwg.mxu0
    %4126 = vrot.lane.b32.xlu0 %v3723, 64
    %v4127 = vpop.permute.xlu0 %4126
    %4128 = vrot.lane.b32.xlu0 %v3722, 64
    %v4129 = vpop.permute.xlu0 %4128
    %4130 = vrot.lane.b32.xlu0 %v3727, 64
    %v4131 = vpop.permute.xlu0 %4130
    %4132 = vrot.lane.b32.xlu0 %v3726, 64
    %v4133 = vpop.permute.xlu0 %4132
    %v4134 = vsel %vm559, %v4127, 0
    %v4136 = vsel %vm559, %v4129, 0
    %v4138 = vsel %vm559, %v4131, 0
    %v4140 = vsel %vm559, %v4133, 0
    %4142 = vmatprep.subr.mxu0 0.0
    %4143 = vmatpush1.xpose.msra.mxu0 %v4138
    %4144 = vmatprep.subr.mxu0 0.0
    %4145 = vmatpush1.xpose.msra.mxu0 %v4140
    %4146 = vmatprep.subr.mxu0 0.0
    %4147 = vmatpush1.xpose.msra.mxu0 0.0
    %4148 = vmatprep.subr.mxu0 0.0
    %4149 = vmatpush1.xpose.msra.mxu0 0.0
    %4150 = vmatprep.subr.mxu0 0.0
    %4151 = vmatpush1.xpose.msra.mxu0 0.0
    %4152 = vmatprep.subr.mxu0 0.0
    %4153 = vmatpush1.xpose.msra.mxu0 0.0
    %4154 = vmatprep.subr.mxu0 0.0
    %4155 = vmatpush1.xpose.msra.mxu0 0.0
    %4156 = vmatprep.subr.mxu0 0.0
    %4157 = vmatpush1.xpose.msra.mxu0 0.0
    %4158 = vmatprep.subr.mxu0 0.0
    %4159 = vmatpush1.xpose.msra.mxu0 0.0
    %4160 = vmatprep.subr.mxu0 0.0
    %4161 = vmatpush1.xpose.msra.mxu0 0.0
    %4162 = vmatprep.subr.mxu0 0.0
    %4163 = vmatpush1.xpose.msra.mxu0 0.0
    %4164 = vmatprep.subr.mxu0 0.0
    %4165 = vmatpush1.xpose.msra.mxu0 0.0
    %4166 = vmatprep.subr.mxu0 0.0
    %4167 = vmatpush1.xpose.msra.mxu0 0.0
    %4168 = vmatprep.subr.mxu0 0.0
    %4169 = vmatpush1.xpose.msra.mxu0 0.0
    %4170 = vmatprep.subr.mxu0 0.0
    %4171 = vmatpush1.xpose.msra.mxu0 0.0
    %4172 = vmatprep.subr.mxu0 0.0
    %4173 = vmatpush1.xpose.msra.mxu0 0.0
    %4174 = vmatprep.subr.mxu0 0.0
    %4175 = vmatpush1.xpose.msra.mxu0 0.0
    %4176 = vmatprep.subr.mxu0 0.0
    %4177 = vmatpush1.xpose.msra.mxu0 0.0
    %4178 = vmatprep.subr.mxu0 0.0
    %4179 = vmatpush1.xpose.msra.mxu0 0.0
    %4180 = vmatprep.subr.mxu0 0.0
    %4181 = vmatpush1.xpose.msra.mxu0 0.0
    %4182 = vmatprep.subr.mxu0 0.0
    %4183 = vmatpush1.xpose.msra.mxu0 0.0
    %4184 = vmatprep.subr.mxu0 0.0
    %4185 = vmatpush1.xpose.msra.mxu0 0.0
    %4186 = vmatprep.subr.mxu0 0.0
    %4187 = vmatpush1.xpose.msra.mxu0 0.0
    %4188 = vmatprep.subr.mxu0 0.0
    %4189 = vmatpush1.xpose.msra.mxu0 0.0
    %4190 = vmatprep.subr.mxu0 0.0
    %4191 = vmatpush1.xpose.msra.mxu0 0.0
    %4192 = vmatprep.subr.mxu0 0.0
    %4193 = vmatpush1.xpose.msra.mxu0 0.0
    %4194 = vmatprep.subr.mxu0 0.0
    %4195 = vmatpush1.xpose.msra.mxu0 0.0
    %4196 = vmatprep.subr.mxu0 0.0
    %4197 = vmatpush1.xpose.msra.mxu0 0.0
    %4198 = vmatprep.subr.mxu0 0.0
    %4199 = vmatpush1.xpose.msra.mxu0 0.0
    %4200 = vmatprep.subr.mxu0 0.0
    %4201 = vmatpush1.xpose.msra.mxu0 0.0
    %4202 = vmatprep.subr.mxu0 0.0
    %4203 = vmatpush1.xpose.msra.mxu0 0.0
    %4204 = vmatprep.subr.mxu0 0.0
    %4205 = vmatpush1.xpose.msra.mxu0 0.0
    %4206 = vmatprep.mubr.f32.mxu0 0.0
    %4207 = vmatmul.mubr.f32.gmra.mrb[0].mxu0 %v4134
    %v4208 = vpop.f32.mrb[0].mxu0
    %v4209 = vadd.f32 0.0, %v4208
    %v4210 = vpop.f32.mrb[0].mxu0
    %4211 = vmatprep.mubr.f32.mxu0 0.0
    %4212 = vmatmul.mubr.f32.gmra.mrb[0].mxu0 %v4136
    %v4213 = vpop.f32.mrb[0].mxu0
    %v4214 = vadd.f32 0.0, %v4213
    %v4215 = vpop.f32.mrb[0].mxu0
    %4216 = vdwg.mxu0
    %v4217 = vmul.f32 %v4209, 0.20412415
    %v4218 = vmul.f32 %v4214, 0.20412415
    %v4219 = vsel %vm2972, %v4217, -inf
    %4220 = vmax.xlane.f32.xlu0 %v4219
    %v4221 = vpop.xlane.xlu0 %4220
    %v4222 = vsel %vm2976, %v4218, -inf
    %4223 = vmax.xlane.f32.xlu0 %v4222
    %v4224 = vpop.xlane.xlu0 %4223
    %v4225 = vsub.f32 %v4217, %v4221
    %v4226 = vsub.f32 %v4218, %v4224
    %v4227 = vmul.f32 %v4225, 1.442695
    %v4228 = vpow.pop %v4227
    %v4229 = vmul.f32 %v4226, 1.442695
    %v4230 = vpow.pop %v4229
    %v4231 = vsel %vm2972, %v4228, 0.0
    %4232 = vadd.xlane.f32.xlu0 %v4231
    %v4233 = vpop.xlane.xlu0 %4232
    %v4234 = vsel %vm2976, %v4230, 0.0
    %4235 = vadd.xlane.f32.xlu0 %v4234
    %v4236 = vpop.xlane.xlu0 %4235
    %v4237 = vrcp.pop %v4233
    %v4238 = vrcp.pop %v4236
    %v4239 = vmul.f32 %v4228, %v4237
    %v4240 = vmul.f32 %v4230, %v4238
    %4241 = vrot.lane.b32.xlu0 %v3838, 64
    %v4242 = vpop.permute.xlu0 %4241
    %4243 = vrot.lane.b32.xlu0 %v3837, 64
    %v4244 = vpop.permute.xlu0 %4243
    %v4247 = vsel %vm2972, %v4239, 0
    %v4250 = vsel %vm2972, %v4240, 0
    %v4252 = vsel %vm37, %v4244, 0
    %4254 = vmatprep.subr.mxu0 0.0
    %4255 = vmatpush1.msra.mxu0 %v4242
    %4256 = vmatprep.subr.mxu0 0.0
    %4257 = vmatpush1.msra.mxu0 %v4252
    %4258 = vmatprep.subr.mxu0 0.0
    %4259 = vmatpush1.msra.mxu0 0.0
    %4260 = vmatprep.subr.mxu0 0.0
    %4261 = vmatpush1.msra.mxu0 0.0
    %4262 = vmatprep.subr.mxu0 0.0
    %4263 = vmatpush1.msra.mxu0 0.0
    %4264 = vmatprep.subr.mxu0 0.0
    %4265 = vmatpush1.msra.mxu0 0.0
    %4266 = vmatprep.subr.mxu0 0.0
    %4267 = vmatpush1.msra.mxu0 0.0
    %4268 = vmatprep.subr.mxu0 0.0
    %4269 = vmatpush1.msra.mxu0 0.0
    %4270 = vmatprep.subr.mxu0 0.0
    %4271 = vmatpush1.msra.mxu0 0.0
    %4272 = vmatprep.subr.mxu0 0.0
    %4273 = vmatpush1.msra.mxu0 0.0
    %4274 = vmatprep.subr.mxu0 0.0
    %4275 = vmatpush1.msra.mxu0 0.0
    %4276 = vmatprep.subr.mxu0 0.0
    %4277 = vmatpush1.msra.mxu0 0.0
    %4278 = vmatprep.subr.mxu0 0.0
    %4279 = vmatpush1.msra.mxu0 0.0
    %4280 = vmatprep.subr.mxu0 0.0
    %4281 = vmatpush1.msra.mxu0 0.0
    %4282 = vmatprep.subr.mxu0 0.0
    %4283 = vmatpush1.msra.mxu0 0.0
    %4284 = vmatprep.subr.mxu0 0.0
    %4285 = vmatpush1.msra.mxu0 0.0
    %4286 = vmatprep.subr.mxu0 0.0
    %4287 = vmatpush1.msra.mxu0 0.0
    %4288 = vmatprep.subr.mxu0 0.0
    %4289 = vmatpush1.msra.mxu0 0.0
    %4290 = vmatprep.subr.mxu0 0.0
    %4291 = vmatpush1.msra.mxu0 0.0
    %4292 = vmatprep.subr.mxu0 0.0
    %4293 = vmatpush1.msra.mxu0 0.0
    %4294 = vmatprep.subr.mxu0 0.0
    %4295 = vmatpush1.msra.mxu0 0.0
    %4296 = vmatprep.subr.mxu0 0.0
    %4297 = vmatpush1.msra.mxu0 0.0
    %4298 = vmatprep.subr.mxu0 0.0
    %4299 = vmatpush1.msra.mxu0 0.0
    %4300 = vmatprep.subr.mxu0 0.0
    %4301 = vmatpush1.msra.mxu0 0.0
    %4302 = vmatprep.subr.mxu0 0.0
    %4303 = vmatpush1.msra.mxu0 0.0
    %4304 = vmatprep.subr.mxu0 0.0
    %4305 = vmatpush1.msra.mxu0 0.0
    %4306 = vmatprep.subr.mxu0 0.0
    %4307 = vmatpush1.msra.mxu0 0.0
    %4308 = vmatprep.subr.mxu0 0.0
    %4309 = vmatpush1.msra.mxu0 0.0
    %4310 = vmatprep.subr.mxu0 0.0
    %4311 = vmatpush1.msra.mxu0 0.0
    %4312 = vmatprep.subr.mxu0 0.0
    %4313 = vmatpush1.msra.mxu0 0.0
    %4314 = vmatprep.subr.mxu0 0.0
    %4315 = vmatpush1.msra.mxu0 0.0
    %4316 = vmatprep.subr.mxu0 0.0
    %4317 = vmatpush1.msra.mxu0 0.0
    %4318 = vmatprep.mubr.f32.mxu0 0.0
    %4319 = vmatmul.mubr.f32.gmra.mrb[0].mxu0 %v4247
    %v4320 = vpop.f32.mrb[0].mxu0
    %v4321 = vadd.f32 0.0, %v4320
    %v4322 = vpop.f32.mrb[0].mxu0
    %4323 = vmatprep.mubr.f32.mxu0 0.0
    %4324 = vmatmul.mubr.f32.gmra.mrb[0].mxu0 %v4250
    %v4325 = vpop.f32.mrb[0].mxu0
    %v4326 = vadd.f32 0.0, %v4325
    %v4327 = vpop.f32.mrb[0].mxu0
    %4328 = vdwg.mxu0
    %4329 = vrot.lane.b32.xlu0 %v3723, 32
    %v4330 = vpop.permute.xlu0 %4329
    %4331 = vrot.lane.b32.xlu0 %v3722, 32
    %v4332 = vpop.permute.xlu0 %4331
    %4333 = vrot.lane.b32.xlu0 %v3727, 32
    %v4334 = vpop.permute.xlu0 %4333
    %4335 = vrot.lane.b32.xlu0 %v3726, 32
    %v4336 = vpop.permute.xlu0 %4335
    %v4337 = vsel %vm559, %v4330, 0
    %v4339 = vsel %vm559, %v4332, 0
    %v4341 = vsel %vm559, %v4334, 0
    %v4343 = vsel %vm559, %v4336, 0
    %4345 = vmatprep.subr.mxu0 0.0
    %4346 = vmatpush1.xpose.msra.mxu0 %v4341
    %4347 = vmatprep.subr.mxu0 0.0
    %4348 = vmatpush1.xpose.msra.mxu0 %v4343
    %4349 = vmatprep.subr.mxu0 0.0
    %4350 = vmatpush1.xpose.msra.mxu0 0.0
    %4351 = vmatprep.subr.mxu0 0.0
    %4352 = vmatpush1.xpose.msra.mxu0 0.0
    %4353 = vmatprep.subr.mxu0 0.0
    %4354 = vmatpush1.xpose.msra.mxu0 0.0
    %4355 = vmatprep.subr.mxu0 0.0
    %4356 = vmatpush1.xpose.msra.mxu0 0.0
    %4357 = vmatprep.subr.mxu0 0.0
    %4358 = vmatpush1.xpose.msra.mxu0 0.0
    %4359 = vmatprep.subr.mxu0 0.0
    %4360 = vmatpush1.xpose.msra.mxu0 0.0
    %4361 = vmatprep.subr.mxu0 0.0
    %4362 = vmatpush1.xpose.msra.mxu0 0.0
    %4363 = vmatprep.subr.mxu0 0.0
    %4364 = vmatpush1.xpose.msra.mxu0 0.0
    %4365 = vmatprep.subr.mxu0 0.0
    %4366 = vmatpush1.xpose.msra.mxu0 0.0
    %4367 = vmatprep.subr.mxu0 0.0
    %4368 = vmatpush1.xpose.msra.mxu0 0.0
    %4369 = vmatprep.subr.mxu0 0.0
    %4370 = vmatpush1.xpose.msra.mxu0 0.0
    %4371 = vmatprep.subr.mxu0 0.0
    %4372 = vmatpush1.xpose.msra.mxu0 0.0
    %4373 = vmatprep.subr.mxu0 0.0
    %4374 = vmatpush1.xpose.msra.mxu0 0.0
    %4375 = vmatprep.subr.mxu0 0.0
    %4376 = vmatpush1.xpose.msra.mxu0 0.0
    %4377 = vmatprep.subr.mxu0 0.0
    %4378 = vmatpush1.xpose.msra.mxu0 0.0
    %4379 = vmatprep.subr.mxu0 0.0
    %4380 = vmatpush1.xpose.msra.mxu0 0.0
    %4381 = vmatprep.subr.mxu0 0.0
    %4382 = vmatpush1.xpose.msra.mxu0 0.0
    %4383 = vmatprep.subr.mxu0 0.0
    %4384 = vmatpush1.xpose.msra.mxu0 0.0
    %4385 = vmatprep.subr.mxu0 0.0
    %4386 = vmatpush1.xpose.msra.mxu0 0.0
    %4387 = vmatprep.subr.mxu0 0.0
    %4388 = vmatpush1.xpose.msra.mxu0 0.0
    %4389 = vmatprep.subr.mxu0 0.0
    %4390 = vmatpush1.xpose.msra.mxu0 0.0
    %4391 = vmatprep.subr.mxu0 0.0
    %4392 = vmatpush1.xpose.msra.mxu0 0.0
    %4393 = vmatprep.subr.mxu0 0.0
    %4394 = vmatpush1.xpose.msra.mxu0 0.0
    %4395 = vmatprep.subr.mxu0 0.0
    %4396 = vmatpush1.xpose.msra.mxu0 0.0
    %4397 = vmatprep.subr.mxu0 0.0
    %4398 = vmatpush1.xpose.msra.mxu0 0.0
    %4399 = vmatprep.subr.mxu0 0.0
    %4400 = vmatpush1.xpose.msra.mxu0 0.0
    %4401 = vmatprep.subr.mxu0 0.0
    %4402 = vmatpush1.xpose.msra.mxu0 0.0
    %4403 = vmatprep.subr.mxu0 0.0
    %4404 = vmatpush1.xpose.msra.mxu0 0.0
    %4405 = vmatprep.subr.mxu0 0.0
    %4406 = vmatpush1.xpose.msra.mxu0 0.0
    %4407 = vmatprep.subr.mxu0 0.0
    %4408 = vmatpush1.xpose.msra.mxu0 0.0
    %4409 = vmatprep.mubr.f32.mxu0 0.0
    %4410 = vmatmul.mubr.f32.gmra.mrb[0].mxu0 %v4337
    %v4411 = vpop.f32.mrb[0].mxu0
    %v4412 = vadd.f32 0.0, %v4411
    %v4413 = vpop.f32.mrb[0].mxu0
    %4414 = vmatprep.mubr.f32.mxu0 0.0
    %4415 = vmatmul.mubr.f32.gmra.mrb[0].mxu0 %v4339
    %v4416 = vpop.f32.mrb[0].mxu0
    %v4417 = vadd.f32 0.0, %v4416
    %v4418 = vpop.f32.mrb[0].mxu0
    %4419 = vdwg.mxu0
    %v4420 = vmul.f32 %v4412, 0.20412415
    %v4421 = vmul.f32 %v4417, 0.20412415
    %v4422 = vsel %vm2972, %v4420, -inf
    %4423 = vmax.xlane.f32.xlu0 %v4422
    %v4424 = vpop.xlane.xlu0 %4423
    %v4425 = vsel %vm2976, %v4421, -inf
    %4426 = vmax.xlane.f32.xlu0 %v4425
    %v4427 = vpop.xlane.xlu0 %4426
    %v4428 = vsub.f32 %v4420, %v4424
    %v4429 = vsub.f32 %v4421, %v4427
    %v4430 = vmul.f32 %v4428, 1.442695
    %v4431 = vpow.pop %v4430
    %v4432 = vmul.f32 %v4429, 1.442695
    %v4433 = vpow.pop %v4432
    %v4434 = vsel %vm2972, %v4431, 0.0
    %4435 = vadd.xlane.f32.xlu0 %v4434
    %v4436 = vpop.xlane.xlu0 %4435
    %v4437 = vsel %vm2976, %v4433, 0.0
    %4438 = vadd.xlane.f32.xlu0 %v4437
    %v4439 = vpop.xlane.xlu0 %4438
    %v4440 = vrcp.pop %v4436
    %v4441 = vrcp.pop %v4439
    %v4442 = vmul.f32 %v4431, %v4440
    %v4443 = vmul.f32 %v4433, %v4441
    %4444 = vrot.lane.b32.xlu0 %v3838, 32
    %v4445 = vpop.permute.xlu0 %4444
    %4446 = vrot.lane.b32.xlu0 %v3837, 32
    %v4447 = vpop.permute.xlu0 %4446
    %v4450 = vsel %vm2972, %v4442, 0
    %v4453 = vsel %vm2972, %v4443, 0
    %v4455 = vsel %vm37, %v4447, 0
    %4457 = vmatprep.subr.mxu0 0.0
    %4458 = vmatpush1.msra.mxu0 %v4445
    %4459 = vmatprep.subr.mxu0 0.0
    %4460 = vmatpush1.msra.mxu0 %v4455
    %4461 = vmatprep.subr.mxu0 0.0
    %4462 = vmatpush1.msra.mxu0 0.0
    %4463 = vmatprep.subr.mxu0 0.0
    %4464 = vmatpush1.msra.mxu0 0.0
    %4465 = vmatprep.subr.mxu0 0.0
    %4466 = vmatpush1.msra.mxu0 0.0
    %4467 = vmatprep.subr.mxu0 0.0
    %4468 = vmatpush1.msra.mxu0 0.0
    %4469 = vmatprep.subr.mxu0 0.0
    %4470 = vmatpush1.msra.mxu0 0.0
    %4471 = vmatprep.subr.mxu0 0.0
    %4472 = vmatpush1.msra.mxu0 0.0
    %4473 = vmatprep.subr.mxu0 0.0
    %4474 = vmatpush1.msra.mxu0 0.0
    %4475 = vmatprep.subr.mxu0 0.0
    %4476 = vmatpush1.msra.mxu0 0.0
    %4477 = vmatprep.subr.mxu0 0.0
    %4478 = vmatpush1.msra.mxu0 0.0
    %4479 = vmatprep.subr.mxu0 0.0
    %4480 = vmatpush1.msra.mxu0 0.0
    %4481 = vmatprep.subr.mxu0 0.0
    %4482 = vmatpush1.msra.mxu0 0.0
    %4483 = vmatprep.subr.mxu0 0.0
    %4484 = vmatpush1.msra.mxu0 0.0
    %4485 = vmatprep.subr.mxu0 0.0
    %4486 = vmatpush1.msra.mxu0 0.0
    %4487 = vmatprep.subr.mxu0 0.0
    %4488 = vmatpush1.msra.mxu0 0.0
    %4489 = vmatprep.subr.mxu0 0.0
    %4490 = vmatpush1.msra.mxu0 0.0
    %4491 = vmatprep.subr.mxu0 0.0
    %4492 = vmatpush1.msra.mxu0 0.0
    %4493 = vmatprep.subr.mxu0 0.0
    %4494 = vmatpush1.msra.mxu0 0.0
    %4495 = vmatprep.subr.mxu0 0.0
    %4496 = vmatpush1.msra.mxu0 0.0
    %4497 = vmatprep.subr.mxu0 0.0
    %4498 = vmatpush1.msra.mxu0 0.0
    %4499 = vmatprep.subr.mxu0 0.0
    %4500 = vmatpush1.msra.mxu0 0.0
    %4501 = vmatprep.subr.mxu0 0.0
    %4502 = vmatpush1.msra.mxu0 0.0
    %4503 = vmatprep.subr.mxu0 0.0
    %4504 = vmatpush1.msra.mxu0 0.0
    %4505 = vmatprep.subr.mxu0 0.0
    %4506 = vmatpush1.msra.mxu0 0.0
    %4507 = vmatprep.subr.mxu0 0.0
    %4508 = vmatpush1.msra.mxu0 0.0
    %4509 = vmatprep.subr.mxu0 0.0
    %4510 = vmatpush1.msra.mxu0 0.0
    %4511 = vmatprep.subr.mxu0 0.0
    %4512 = vmatpush1.msra.mxu0 0.0
    %4513 = vmatprep.subr.mxu0 0.0
    %4514 = vmatpush1.msra.mxu0 0.0
    %4515 = vmatprep.subr.mxu0 0.0
    %4516 = vmatpush1.msra.mxu0 0.0
    %4517 = vmatprep.subr.mxu0 0.0
    %4518 = vmatpush1.msra.mxu0 0.0
    %4519 = vmatprep.subr.mxu0 0.0
    %4520 = vmatpush1.msra.mxu0 0.0
    %4521 = vmatprep.mubr.f32.mxu0 0.0
    %4522 = vmatmul.mubr.f32.gmra.mrb[0].mxu0 %v4450
    %v4523 = vpop.f32.mrb[0].mxu0
    %v4524 = vadd.f32 0.0, %v4523
    %v4525 = vpop.f32.mrb[0].mxu0
    %4526 = vmatprep.mubr.f32.mxu0 0.0
    %4527 = vmatmul.mubr.f32.gmra.mrb[0].mxu0 %v4453
    %v4528 = vpop.f32.mrb[0].mxu0
    %v4529 = vadd.f32 0.0, %v4528
    %v4530 = vpop.f32.mrb[0].mxu0
    %4531 = vdwg.mxu0
    %4534 = vrot.lane.b32.xlu0 %v4118, 32
    %v4535 = vpop.permute.xlu0 %4534
    %4536 = vrot.lane.b32.xlu0 %v4123, 32
    %v4537 = vpop.permute.xlu0 %4536
    %4542 = vrot.lane.b32.xlu0 %v4321, 64
    %v4543 = vpop.permute.xlu0 %4542
    %4544 = vrot.lane.b32.xlu0 %v4326, 64
    %v4545 = vpop.permute.xlu0 %4544
    %4550 = vrot.lane.b32.xlu0 %v4524, 96
    %v4551 = vpop.permute.xlu0 %4550
    %4552 = vrot.lane.b32.xlu0 %v4529, 96
    %v4553 = vpop.permute.xlu0 %4552
    %v4556 = vsel %vm559, %v3915, %v4535
    %v4557 = vsel %vm559, %v3920, %v4537
    %v4558 = vsel %vm1402, %v4556, %v4543
    %v4559 = vsel %vm1402, %v4557, %v4545
    %v4560 = vsel %vm1405, %v4558, %v4551
    %v4561 = vsel %vm1405, %v4559, %v4553
    %v4564 = vrot.slane %v4560, 6
    %v4565 = vrot.slane %v4561, 6
    %v4566 = vsel %vm37, %v4564, %v4565
    %v4569 = vsel %vm37, %v3719, %v4564
    %v4570 = vpack.c.bf16 %v4569, %v3718
    %v4571 = vpack.c.bf16 %v4566, %v4566
    %s4572 = scalar_lea.vmem %s4, 576
    %v4573 = vld [vmem:[%s4572] sm:$0xf]
    %v4574 = vld [vmem:[%s4572 + $0x4] sm:$0xf]
    %v4575 = vld [vmem:[%s4572 + $0x8] sm:$0xf]
    %v4576 = vld [vmem:[%s4572 + $0xc] sm:$0xf]
    %v4577 = vld [vmem:[%s4572 + $0x10] sm:$0xf]
    %v4578 = vld [vmem:[%s4572 + $0x14] sm:$0xf]
    %v4579 = vld [vmem:[%s4572 + $0x18] sm:$0xf]
    %v4580 = vld [vmem:[%s4572 + $0x1c] sm:$0xf]
    %v4581 = vld [vmem:[%s4572 + $0x20] sm:$0xf]
    %v4582 = vld [vmem:[%s4572 + $0x24] sm:$0xf]
    %v4583 = vld [vmem:[%s4572 + $0x28] sm:$0xf]
    %v4584 = vld [vmem:[%s4572 + $0x2c] sm:$0xf]
    %v4585 = vld [vmem:[%s4572 + $0x30] sm:$0xf]
    %v4586 = vld [vmem:[%s4572 + $0x34] sm:$0xf]
    %v4587 = vld [vmem:[%s4572 + $0x38] sm:$0xf]
    %v4588 = vld [vmem:[%s4572 + $0x3c] sm:$0xf]
    %s4589 = scalar_lea.vmem %s5, 9
    %v4590 = vld [vmem:[%s4589] sm:$0x1]
    %v4592 = vlaneseq
    %v4593 = vshrl.u32 %v4592, 7
    %v4594 = vsub.s32 0, %v4593
    %v4595 = vrot.slane %v4590, %v4594
    %v4613 = vunpack.c.l.b16 %v4573
    %v4614 = vunpack.c.l.b16 %v4574
    %v4615 = vunpack.c.l.b16 %v4575
    %v4616 = vunpack.c.l.b16 %v4576
    %v4617 = vunpack.c.l.b16 %v4577
    %v4618 = vunpack.c.l.b16 %v4578
    %v4619 = vunpack.c.l.b16 %v4579
    %v4620 = vunpack.c.l.b16 %v4580
    %v4621 = vunpack.c.l.b16 %v4581
    %v4622 = vunpack.c.l.b16 %v4582
    %v4623 = vunpack.c.l.b16 %v4583
    %v4624 = vunpack.c.l.b16 %v4584
    %v4625 = vunpack.c.l.b16 %v4585
    %v4626 = vunpack.c.l.b16 %v4586
    %v4627 = vunpack.c.l.b16 %v4587
    %v4628 = vunpack.c.l.b16 %v4588
    %v4629 = vpack.c.b16 %v4614, %v4613
    %v4630 = vpack.c.b16 %v4616, %v4615
    %v4631 = vpack.c.b16 %v4618, %v4617
    %v4632 = vpack.c.b16 %v4620, %v4619
    %v4633 = vpack.c.b16 %v4622, %v4621
    %v4634 = vpack.c.b16 %v4624, %v4623
    %v4635 = vpack.c.b16 %v4626, %v4625
    %v4636 = vpack.c.b16 %v4628, %v4627
    %4645 = vmatprep.subr.bf16.mxu0 0
    %4646 = vmatpush1.bf16.msra.mxu0 %v4629
    %4647 = vmatprep.subr.bf16.mxu0 0
    %4648 = vmatpush1.bf16.msra.mxu0 %v4630
    %4649 = vmatprep.subr.bf16.mxu0 0
    %4650 = vmatpush1.bf16.msra.mxu0 %v4631
    %4651 = vmatprep.subr.bf16.mxu0 0
    %4652 = vmatpush1.bf16.msra.mxu0 %v4632
    %4653 = vmatprep.subr.bf16.mxu0 0
    %4654 = vmatpush1.bf16.msra.mxu0 %v4633
    %4655 = vmatprep.subr.bf16.mxu0 0
    %4656 = vmatpush1.bf16.msra.mxu0 %v4634
    %4657 = vmatprep.subr.bf16.mxu0 0
    %4658 = vmatpush1.bf16.msra.mxu0 %v4635
    %4659 = vmatprep.subr.bf16.mxu0 0
    %4660 = vmatpush1.bf16.msra.mxu0 %v4636
    %4661 = vmatprep.subr.bf16.mxu0 0
    %4662 = vmatpush1.bf16.msra.mxu0 0
    %4663 = vmatprep.subr.bf16.mxu0 0
    %4664 = vmatpush1.bf16.msra.mxu0 0
    %4665 = vmatprep.subr.bf16.mxu0 0
    %4666 = vmatpush1.bf16.msra.mxu0 0
    %4667 = vmatprep.subr.bf16.mxu0 0
    %4668 = vmatpush1.bf16.msra.mxu0 0
    %4669 = vmatprep.subr.bf16.mxu0 0
    %4670 = vmatpush1.bf16.msra.mxu0 0
    %4671 = vmatprep.subr.bf16.mxu0 0
    %4672 = vmatpush1.bf16.msra.mxu0 0
    %4673 = vmatprep.subr.bf16.mxu0 0
    %4674 = vmatpush1.bf16.msra.mxu0 0
    %4675 = vmatprep.subr.bf16.mxu0 0
    %4676 = vmatpush1.bf16.msra.mxu0 0
    %4677 = vmatprep.mubr.bf16.mxu0 0
    %4678 = vmatmul.mubr.bf16.gmra.mrb[0].mxu0 %v4570
    %v4679 = vpop.f32.mrb[0].mxu0
    %v4680 = vadd.f32 %v4595, %v4679
    %v4681 = vpop.f32.mrb[0].mxu0
    %v4682 = vpop.f32.mrb[0].mxu0
    %v4683 = vadd.f32 %v4595, %v4682
    %v4684 = vpop.f32.mrb[0].mxu0
    %4685 = vmatprep.mubr.bf16.mxu0 0
    %4686 = vmatmul.mubr.bf16.gmra.mrb[0].mxu0 %v4571
    %v4687 = vpop.f32.mrb[0].mxu0
    %v4688 = vadd.f32 %v4595, %v4687
    %v4689 = vpop.f32.mrb[0].mxu0
    %v4690 = vpop.f32.mrb[0].mxu0
    %v4691 = vpop.f32.mrb[0].mxu0
    %4692 = vdwg.mxu0
    %v4693 = vadd.f32 %v4680, %v2515
    %v4694 = vadd.f32 %v4683, %v2516
    %v4695 = vadd.f32 %v4688, %v2517
    %v4696 = vpack.c.bf16 %v4694, %v4693
    %v4697 = vpack.c.bf16 %v4695, %v4695
    %s4698 = scalar_lea.vmem %s4, 640
    %v4699 = vld [vmem:[%s4698] sm:$0xf]
    %v4700 = vld [vmem:[%s4698 + $0x4] sm:$0xf]
    %v4701 = vld [vmem:[%s4698 + $0x8] sm:$0xf]
    %v4702 = vld [vmem:[%s4698 + $0xc] sm:$0xf]
    %v4703 = vld [vmem:[%s4698 + $0x10] sm:$0xf]
    %v4704 = vld [vmem:[%s4698 + $0x14] sm:$0xf]
    %v4705 = vld [vmem:[%s4698 + $0x18] sm:$0xf]
    %v4706 = vld [vmem:[%s4698 + $0x1c] sm:$0xf]
    %v4707 = vld [vmem:[%s4698 + $0x20] sm:$0xf]
    %v4708 = vld [vmem:[%s4698 + $0x24] sm:$0xf]
    %v4709 = vld [vmem:[%s4698 + $0x28] sm:$0xf]
    %v4710 = vld [vmem:[%s4698 + $0x2c] sm:$0xf]
    %v4711 = vld [vmem:[%s4698 + $0x30] sm:$0xf]
    %v4712 = vld [vmem:[%s4698 + $0x34] sm:$0xf]
    %v4713 = vld [vmem:[%s4698 + $0x38] sm:$0xf]
    %v4714 = vld [vmem:[%s4698 + $0x3c] sm:$0xf]
    %s4715 = scalar_lea.vmem %s5, 10
    %v4716 = vld [vmem:[%s4715] sm:$0x1]
    %v4718 = vlaneseq
    %v4719 = vshrl.u32 %v4718, 7
    %v4720 = vsub.s32 0, %v4719
    %v4721 = vrot.slane %v4716, %v4720
    %v4739 = vunpack.c.l.b16 %v4699
    %v4740 = vunpack.c.l.b16 %v4700
    %v4741 = vunpack.c.l.b16 %v4701
    %v4742 = vunpack.c.l.b16 %v4702
    %v4743 = vunpack.c.l.b16 %v4703
    %v4744 = vunpack.c.l.b16 %v4704
    %v4745 = vunpack.c.l.b16 %v4705
    %v4746 = vunpack.c.l.b16 %v4706
    %v4747 = vunpack.c.l.b16 %v4707
    %v4748 = vunpack.c.l.b16 %v4708
    %v4749 = vunpack.c.l.b16 %v4709
    %v4750 = vunpack.c.l.b16 %v4710
    %v4751 = vunpack.c.l.b16 %v4711
    %v4752 = vunpack.c.l.b16 %v4712
    %v4753 = vunpack.c.l.b16 %v4713
    %v4754 = vunpack.c.l.b16 %v4714
    %v4755 = vpack.c.b16 %v4740, %v4739
    %v4756 = vpack.c.b16 %v4742, %v4741
    %v4757 = vpack.c.b16 %v4744, %v4743
    %v4758 = vpack.c.b16 %v4746, %v4745
    %v4759 = vpack.c.b16 %v4748, %v4747
    %v4760 = vpack.c.b16 %v4750, %v4749
    %v4761 = vpack.c.b16 %v4752, %v4751
    %v4762 = vpack.c.b16 %v4754, %v4753
    %4771 = vmatprep.subr.bf16.mxu0 0
    %4772 = vmatpush1.bf16.msra.mxu0 %v4755
    %4773 = vmatprep.subr.bf16.mxu0 0
    %4774 = vmatpush1.bf16.msra.mxu0 %v4756
    %4775 = vmatprep.subr.bf16.mxu0 0
    %4776 = vmatpush1.bf16.msra.mxu0 %v4757
    %4777 = vmatprep.subr.bf16.mxu0 0
    %4778 = vmatpush1.bf16.msra.mxu0 %v4758
    %4779 = vmatprep.subr.bf16.mxu0 0
    %4780 = vmatpush1.bf16.msra.mxu0 %v4759
    %4781 = vmatprep.subr.bf16.mxu0 0
    %4782 = vmatpush1.bf16.msra.mxu0 %v4760
    %4783 = vmatprep.subr.bf16.mxu0 0
    %4784 = vmatpush1.bf16.msra.mxu0 %v4761
    %4785 = vmatprep.subr.bf16.mxu0 0
    %4786 = vmatpush1.bf16.msra.mxu0 %v4762
    %4787 = vmatprep.subr.bf16.mxu0 0
    %4788 = vmatpush1.bf16.msra.mxu0 0
    %4789 = vmatprep.subr.bf16.mxu0 0
    %4790 = vmatpush1.bf16.msra.mxu0 0
    %4791 = vmatprep.subr.bf16.mxu0 0
    %4792 = vmatpush1.bf16.msra.mxu0 0
    %4793 = vmatprep.subr.bf16.mxu0 0
    %4794 = vmatpush1.bf16.msra.mxu0 0
    %4795 = vmatprep.subr.bf16.mxu0 0
    %4796 = vmatpush1.bf16.msra.mxu0 0
    %4797 = vmatprep.subr.bf16.mxu0 0
    %4798 = vmatpush1.bf16.msra.mxu0 0
    %4799 = vmatprep.subr.bf16.mxu0 0
    %4800 = vmatpush1.bf16.msra.mxu0 0
    %4801 = vmatprep.subr.bf16.mxu0 0
    %4802 = vmatpush1.bf16.msra.mxu0 0
    %4803 = vmatprep.mubr.bf16.mxu0 0
    %4804 = vmatmul.mubr.bf16.gmra.mrb[0].mxu0 %v4696
    %v4805 = vpop.f32.mrb[0].mxu0
    %v4806 = vadd.f32 %v4721, %v4805
    %v4807 = vpop.f32.mrb[0].mxu0
    %v4808 = vpop.f32.mrb[0].mxu0
    %v4809 = vadd.f32 %v4721, %v4808
    %v4810 = vpop.f32.mrb[0].mxu0
    %4811 = vmatprep.mubr.bf16.mxu0 0
    %4812 = vmatmul.mubr.bf16.gmra.mrb[0].mxu0 %v4697
    %v4813 = vpop.f32.mrb[0].mxu0
    %v4814 = vadd.f32 %v4721, %v4813
    %v4815 = vpop.f32.mrb[0].mxu0
    %v4816 = vpop.f32.mrb[0].mxu0
    %v4817 = vpop.f32.mrb[0].mxu0
    %4818 = vdwg.mxu0
    %v4819 = vmax.f32 %v4806, 0.0
    %v4820 = vmax.f32 %v4809, 0.0
    %v4821 = vmax.f32 %v4814, 0.0
    %v4822 = vadd.f32 %v4693, %v4819
    %v4823 = vadd.f32 %v4694, %v4820
    %v4824 = vadd.f32 %v4695, %v4821
    %v4825 = vpack.c.bf16 %v4823, %v4822
    %v4826 = vpack.c.bf16 %v4824, %v4824
    %s4827 = scalar_lea.vmem %s4, 704
    %v4828 = vld [vmem:[%s4827] sm:$0xf]
    %v4829 = vld [vmem:[%s4827 + $0x4] sm:$0xf]
    %v4830 = vld [vmem:[%s4827 + $0x8] sm:$0xf]
    %v4831 = vld [vmem:[%s4827 + $0xc] sm:$0xf]
    %v4832 = vld [vmem:[%s4827 + $0x10] sm:$0xf]
    %v4833 = vld [vmem:[%s4827 + $0x14] sm:$0xf]
    %v4834 = vld [vmem:[%s4827 + $0x18] sm:$0xf]
    %v4835 = vld [vmem:[%s4827 + $0x1c] sm:$0xf]
    %v4836 = vld [vmem:[%s4827 + $0x20] sm:$0xf]
    %v4837 = vld [vmem:[%s4827 + $0x24] sm:$0xf]
    %v4838 = vld [vmem:[%s4827 + $0x28] sm:$0xf]
    %v4839 = vld [vmem:[%s4827 + $0x2c] sm:$0xf]
    %v4840 = vld [vmem:[%s4827 + $0x30] sm:$0xf]
    %v4841 = vld [vmem:[%s4827 + $0x34] sm:$0xf]
    %v4842 = vld [vmem:[%s4827 + $0x38] sm:$0xf]
    %v4843 = vld [vmem:[%s4827 + $0x3c] sm:$0xf]
    %s4844 = scalar_lea.vmem %s5, 11
    %v4845 = vld [vmem:[%s4844] sm:$0x1]
    %v4847 = vlaneseq
    %v4848 = vshrl.u32 %v4847, 7
    %v4849 = vsub.s32 0, %v4848
    %v4850 = vrot.slane %v4845, %v4849
    %v4868 = vunpack.c.l.b16 %v4828
    %v4869 = vunpack.c.l.b16 %v4829
    %v4870 = vunpack.c.l.b16 %v4830
    %v4871 = vunpack.c.l.b16 %v4831
    %v4872 = vunpack.c.l.b16 %v4832
    %v4873 = vunpack.c.l.b16 %v4833
    %v4874 = vunpack.c.l.b16 %v4834
    %v4875 = vunpack.c.l.b16 %v4835
    %v4876 = vunpack.c.l.b16 %v4836
    %v4877 = vunpack.c.l.b16 %v4837
    %v4878 = vunpack.c.l.b16 %v4838
    %v4879 = vunpack.c.l.b16 %v4839
    %v4880 = vunpack.c.l.b16 %v4840
    %v4881 = vunpack.c.l.b16 %v4841
    %v4882 = vunpack.c.l.b16 %v4842
    %v4883 = vunpack.c.l.b16 %v4843
    %v4884 = vpack.c.b16 %v4869, %v4868
    %v4885 = vpack.c.b16 %v4871, %v4870
    %v4886 = vpack.c.b16 %v4873, %v4872
    %v4887 = vpack.c.b16 %v4875, %v4874
    %v4888 = vpack.c.b16 %v4877, %v4876
    %v4889 = vpack.c.b16 %v4879, %v4878
    %v4890 = vpack.c.b16 %v4881, %v4880
    %v4891 = vpack.c.b16 %v4883, %v4882
    %4900 = vmatprep.subr.bf16.mxu0 0
    %4901 = vmatpush1.bf16.msra.mxu0 %v4884
    %4902 = vmatprep.subr.bf16.mxu0 0
    %4903 = vmatpush1.bf16.msra.mxu0 %v4885
    %4904 = vmatprep.subr.bf16.mxu0 0
    %4905 = vmatpush1.bf16.msra.mxu0 %v4886
    %4906 = vmatprep.subr.bf16.mxu0 0
    %4907 = vmatpush1.bf16.msra.mxu0 %v4887
    %4908 = vmatprep.subr.bf16.mxu0 0
    %4909 = vmatpush1.bf16.msra.mxu0 %v4888
    %4910 = vmatprep.subr.bf16.mxu0 0
    %4911 = vmatpush1.bf16.msra.mxu0 %v4889
    %4912 = vmatprep.subr.bf16.mxu0 0
    %4913 = vmatpush1.bf16.msra.mxu0 %v4890
    %4914 = vmatprep.subr.bf16.mxu0 0
    %4915 = vmatpush1.bf16.msra.mxu0 %v4891
    %4916 = vmatprep.subr.bf16.mxu0 0
    %4917 = vmatpush1.bf16.msra.mxu0 0
    %4918 = vmatprep.subr.bf16.mxu0 0
    %4919 = vmatpush1.bf16.msra.mxu0 0
    %4920 = vmatprep.subr.bf16.mxu0 0
    %4921 = vmatpush1.bf16.msra.mxu0 0
    %4922 = vmatprep.subr.bf16.mxu0 0
    %4923 = vmatpush1.bf16.msra.mxu0 0
    %4924 = vmatprep.subr.bf16.mxu0 0
    %4925 = vmatpush1.bf16.msra.mxu0 0
    %4926 = vmatprep.subr.bf16.mxu0 0
    %4927 = vmatpush1.bf16.msra.mxu0 0
    %4928 = vmatprep.subr.bf16.mxu0 0
    %4929 = vmatpush1.bf16.msra.mxu0 0
    %4930 = vmatprep.subr.bf16.mxu0 0
    %4931 = vmatpush1.bf16.msra.mxu0 0
    %4932 = vmatprep.mubr.bf16.mxu0 0
    %4933 = vmatmul.mubr.bf16.gmra.mrb[0].mxu0 %v4825
    %v4934 = vpop.f32.mrb[0].mxu0
    %v4935 = vadd.f32 %v4850, %v4934
    %v4936 = vpop.f32.mrb[0].mxu0
    %v4937 = vpop.f32.mrb[0].mxu0
    %v4938 = vadd.f32 %v4850, %v4937
    %v4939 = vpop.f32.mrb[0].mxu0
    %4940 = vmatprep.mubr.bf16.mxu0 0
    %4941 = vmatmul.mubr.bf16.gmra.mrb[0].mxu0 %v4826
    %v4942 = vpop.f32.mrb[0].mxu0
    %v4943 = vadd.f32 %v4850, %v4942
    %v4944 = vpop.f32.mrb[0].mxu0
    %v4945 = vpop.f32.mrb[0].mxu0
    %v4946 = vpop.f32.mrb[0].mxu0
    %4947 = vdwg.mxu0
    %v4948 = vmax.f32 %v4935, 0.0
    %v4949 = vmax.f32 %v4938, 0.0
    %v4950 = vmax.f32 %v4943, 0.0
    %v4951 = vpack.c.bf16 %v53, %v53
    %s4952 = scalar_lea.vmem %s4, 768
    %v4953 = vld [vmem:[%s4952] sm:$0xf]
    %v4954 = vld [vmem:[%s4952 + $0x4] sm:$0xf]
    %v4955 = vld [vmem:[%s4952 + $0x8] sm:$0xf]
    %v4956 = vld [vmem:[%s4952 + $0xc] sm:$0xf]
    %v4957 = vld [vmem:[%s4952 + $0x10] sm:$0xf]
    %v4958 = vld [vmem:[%s4952 + $0x14] sm:$0xf]
    %v4959 = vld [vmem:[%s4952 + $0x18] sm:$0xf]
    %v4960 = vld [vmem:[%s4952 + $0x1c] sm:$0xf]
    %v4961 = vld [vmem:[%s4952 + $0x20] sm:$0xf]
    %v4962 = vld [vmem:[%s4952 + $0x24] sm:$0xf]
    %v4963 = vld [vmem:[%s4952 + $0x28] sm:$0xf]
    %v4964 = vld [vmem:[%s4952 + $0x2c] sm:$0xf]
    %v4965 = vld [vmem:[%s4952 + $0x30] sm:$0xf]
    %v4966 = vld [vmem:[%s4952 + $0x34] sm:$0xf]
    %v4967 = vld [vmem:[%s4952 + $0x38] sm:$0xf]
    %v4968 = vld [vmem:[%s4952 + $0x3c] sm:$0xf]
    %s4969 = scalar_lea.vmem %s5, 12
    %v4970 = vld [vmem:[%s4969] sm:$0x1]
    %v4972 = vlaneseq
    %v4973 = vshrl.u32 %v4972, 7
    %v4974 = vsub.s32 0, %v4973
    %v4975 = vrot.slane %v4970, %v4974
    %v4993 = vunpack.c.l.b16 %v4953
    %v4994 = vunpack.c.l.b16 %v4954
    %v4995 = vunpack.c.l.b16 %v4955
    %v4996 = vunpack.c.l.b16 %v4956
    %v4997 = vunpack.c.l.b16 %v4957
    %v4998 = vunpack.c.l.b16 %v4958
    %v4999 = vunpack.c.l.b16 %v4959
    %v5000 = vunpack.c.l.b16 %v4960
    %v5001 = vunpack.c.l.b16 %v4961
    %v5002 = vunpack.c.l.b16 %v4962
    %v5003 = vunpack.c.l.b16 %v4963
    %v5004 = vunpack.c.l.b16 %v4964
    %v5005 = vunpack.c.l.b16 %v4965
    %v5006 = vunpack.c.l.b16 %v4966
    %v5007 = vunpack.c.l.b16 %v4967
    %v5008 = vunpack.c.l.b16 %v4968
    %v5009 = vpack.c.b16 %v4994, %v4993
    %v5010 = vpack.c.b16 %v4996, %v4995
    %v5011 = vpack.c.b16 %v4998, %v4997
    %v5012 = vpack.c.b16 %v5000, %v4999
    %v5013 = vpack.c.b16 %v5002, %v5001
    %v5014 = vpack.c.b16 %v5004, %v5003
    %v5015 = vpack.c.b16 %v5006, %v5005
    %v5016 = vpack.c.b16 %v5008, %v5007
    %5025 = vmatprep.subr.bf16.mxu0 0
    %5026 = vmatpush1.bf16.msra.mxu0 %v5009
    %5027 = vmatprep.subr.bf16.mxu0 0
    %5028 = vmatpush1.bf16.msra.mxu0 %v5010
    %5029 = vmatprep.subr.bf16.mxu0 0
    %5030 = vmatpush1.bf16.msra.mxu0 %v5011
    %5031 = vmatprep.subr.bf16.mxu0 0
    %5032 = vmatpush1.bf16.msra.mxu0 %v5012
    %5033 = vmatprep.subr.bf16.mxu0 0
    %5034 = vmatpush1.bf16.msra.mxu0 %v5013
    %5035 = vmatprep.subr.bf16.mxu0 0
    %5036 = vmatpush1.bf16.msra.mxu0 %v5014
    %5037 = vmatprep.subr.bf16.mxu0 0
    %5038 = vmatpush1.bf16.msra.mxu0 %v5015
    %5039 = vmatprep.subr.bf16.mxu0 0
    %5040 = vmatpush1.bf16.msra.mxu0 %v5016
    %5041 = vmatprep.subr.bf16.mxu0 0
    %5042 = vmatpush1.bf16.msra.mxu0 0
    %5043 = vmatprep.subr.bf16.mxu0 0
    %5044 = vmatpush1.bf16.msra.mxu0 0
    %5045 = vmatprep.subr.bf16.mxu0 0
    %5046 = vmatpush1.bf16.msra.mxu0 0
    %5047 = vmatprep.subr.bf16.mxu0 0
    %5048 = vmatpush1.bf16.msra.mxu0 0
    %5049 = vmatprep.subr.bf16.mxu0 0
    %5050 = vmatpush1.bf16.msra.mxu0 0
    %5051 = vmatprep.subr.bf16.mxu0 0
    %5052 = vmatpush1.bf16.msra.mxu0 0
    %5053 = vmatprep.subr.bf16.mxu0 0
    %5054 = vmatpush1.bf16.msra.mxu0 0
    %5055 = vmatprep.subr.bf16.mxu0 0
    %5056 = vmatpush1.bf16.msra.mxu0 0
    %5057 = vmatprep.mubr.bf16.mxu0 0
    %5058 = vmatmul.mubr.bf16.gmra.mrb[0].mxu0 %v4951
    %v5059 = vpop.f32.mrb[0].mxu0
    %v5060 = vadd.f32 %v4975, %v5059
    %v5061 = vpop.f32.mrb[0].mxu0
    %v5062 = vpop.f32.mrb[0].mxu0
    %v5063 = vpop.f32.mrb[0].mxu0
    %5064 = vdwg.mxu0
    %v5065 = vpack.c.bf16 %v4949, %v4948
    %v5066 = vpack.c.bf16 %v4950, %v4950
    %s5067 = scalar_lea.vmem %s4, 832
    %v5068 = vld [vmem:[%s5067] sm:$0xf]
    %v5069 = vld [vmem:[%s5067 + $0x4] sm:$0xf]
    %v5070 = vld [vmem:[%s5067 + $0x8] sm:$0xf]
    %v5071 = vld [vmem:[%s5067 + $0xc] sm:$0xf]
    %v5072 = vld [vmem:[%s5067 + $0x10] sm:$0xf]
    %v5073 = vld [vmem:[%s5067 + $0x14] sm:$0xf]
    %v5074 = vld [vmem:[%s5067 + $0x18] sm:$0xf]
    %v5075 = vld [vmem:[%s5067 + $0x1c] sm:$0xf]
    %v5076 = vld [vmem:[%s5067 + $0x20] sm:$0xf]
    %v5077 = vld [vmem:[%s5067 + $0x24] sm:$0xf]
    %v5078 = vld [vmem:[%s5067 + $0x28] sm:$0xf]
    %v5079 = vld [vmem:[%s5067 + $0x2c] sm:$0xf]
    %v5080 = vld [vmem:[%s5067 + $0x30] sm:$0xf]
    %v5081 = vld [vmem:[%s5067 + $0x34] sm:$0xf]
    %v5082 = vld [vmem:[%s5067 + $0x38] sm:$0xf]
    %v5083 = vld [vmem:[%s5067 + $0x3c] sm:$0xf]
    %s5084 = scalar_lea.vmem %s5, 13
    %v5085 = vld [vmem:[%s5084] sm:$0x1]
    %v5087 = vlaneseq
    %v5088 = vshrl.u32 %v5087, 7
    %v5089 = vsub.s32 0, %v5088
    %v5090 = vrot.slane %v5085, %v5089
    %v5108 = vunpack.c.l.b16 %v5068
    %v5109 = vunpack.c.l.b16 %v5069
    %v5110 = vunpack.c.l.b16 %v5070
    %v5111 = vunpack.c.l.b16 %v5071
    %v5112 = vunpack.c.l.b16 %v5072
    %v5113 = vunpack.c.l.b16 %v5073
    %v5114 = vunpack.c.l.b16 %v5074
    %v5115 = vunpack.c.l.b16 %v5075
    %v5116 = vunpack.c.l.b16 %v5076
    %v5117 = vunpack.c.l.b16 %v5077
    %v5118 = vunpack.c.l.b16 %v5078
    %v5119 = vunpack.c.l.b16 %v5079
    %v5120 = vunpack.c.l.b16 %v5080
    %v5121 = vunpack.c.l.b16 %v5081
    %v5122 = vunpack.c.l.b16 %v5082
    %v5123 = vunpack.c.l.b16 %v5083
    %v5124 = vpack.c.b16 %v5109, %v5108
    %v5125 = vpack.c.b16 %v5111, %v5110
    %v5126 = vpack.c.b16 %v5113, %v5112
    %v5127 = vpack.c.b16 %v5115, %v5114
    %v5128 = vpack.c.b16 %v5117, %v5116
    %v5129 = vpack.c.b16 %v5119, %v5118
    %v5130 = vpack.c.b16 %v5121, %v5120
    %v5131 = vpack.c.b16 %v5123, %v5122
    %5140 = vmatprep.subr.bf16.mxu0 0
    %5141 = vmatpush1.bf16.msra.mxu0 %v5124
    %5142 = vmatprep.subr.bf16.mxu0 0
    %5143 = vmatpush1.bf16.msra.mxu0 %v5125
    %5144 = vmatprep.subr.bf16.mxu0 0
    %5145 = vmatpush1.bf16.msra.mxu0 %v5126
    %5146 = vmatprep.subr.bf16.mxu0 0
    %5147 = vmatpush1.bf16.msra.mxu0 %v5127
    %5148 = vmatprep.subr.bf16.mxu0 0
    %5149 = vmatpush1.bf16.msra.mxu0 %v5128
    %5150 = vmatprep.subr.bf16.mxu0 0
    %5151 = vmatpush1.bf16.msra.mxu0 %v5129
    %5152 = vmatprep.subr.bf16.mxu0 0
    %5153 = vmatpush1.bf16.msra.mxu0 %v5130
    %5154 = vmatprep.subr.bf16.mxu0 0
    %5155 = vmatpush1.bf16.msra.mxu0 %v5131
    %5156 = vmatprep.subr.bf16.mxu0 0
    %5157 = vmatpush1.bf16.msra.mxu0 0
    %5158 = vmatprep.subr.bf16.mxu0 0
    %5159 = vmatpush1.bf16.msra.mxu0 0
    %5160 = vmatprep.subr.bf16.mxu0 0
    %5161 = vmatpush1.bf16.msra.mxu0 0
    %5162 = vmatprep.subr.bf16.mxu0 0
    %5163 = vmatpush1.bf16.msra.mxu0 0
    %5164 = vmatprep.subr.bf16.mxu0 0
    %5165 = vmatpush1.bf16.msra.mxu0 0
    %5166 = vmatprep.subr.bf16.mxu0 0
    %5167 = vmatpush1.bf16.msra.mxu0 0
    %5168 = vmatprep.subr.bf16.mxu0 0
    %5169 = vmatpush1.bf16.msra.mxu0 0
    %5170 = vmatprep.subr.bf16.mxu0 0
    %5171 = vmatpush1.bf16.msra.mxu0 0
    %5172 = vmatprep.mubr.bf16.mxu0 0
    %5173 = vmatmul.mubr.bf16.gmra.mrb[0].mxu0 %v5065
    %v5174 = vpop.f32.mrb[0].mxu0
    %v5175 = vadd.f32 %v5090, %v5174
    %v5176 = vpop.f32.mrb[0].mxu0
    %v5177 = vpop.f32.mrb[0].mxu0
    %v5178 = vadd.f32 %v5090, %v5177
    %v5179 = vpop.f32.mrb[0].mxu0
    %5180 = vmatprep.mubr.bf16.mxu0 0
    %5181 = vmatmul.mubr.bf16.gmra.mrb[0].mxu0 %v5066
    %v5182 = vpop.f32.mrb[0].mxu0
    %v5183 = vadd.f32 %v5090, %v5182
    %v5184 = vpop.f32.mrb[0].mxu0
    %v5185 = vpop.f32.mrb[0].mxu0
    %v5186 = vpop.f32.mrb[0].mxu0
    %5187 = vdwg.mxu0
    %s5188 = scalar_lea.vmem %s4, 896
    %v5189 = vld [vmem:[%s5188] sm:$0xf]
    %v5190 = vld [vmem:[%s5188 + $0x4] sm:$0xf]
    %v5191 = vld [vmem:[%s5188 + $0x8] sm:$0xf]
    %v5192 = vld [vmem:[%s5188 + $0xc] sm:$0xf]
    %v5193 = vld [vmem:[%s5188 + $0x10] sm:$0xf]
    %v5194 = vld [vmem:[%s5188 + $0x14] sm:$0xf]
    %v5195 = vld [vmem:[%s5188 + $0x18] sm:$0xf]
    %v5196 = vld [vmem:[%s5188 + $0x1c] sm:$0xf]
    %v5197 = vld [vmem:[%s5188 + $0x20] sm:$0xf]
    %v5198 = vld [vmem:[%s5188 + $0x24] sm:$0xf]
    %v5199 = vld [vmem:[%s5188 + $0x28] sm:$0xf]
    %v5200 = vld [vmem:[%s5188 + $0x2c] sm:$0xf]
    %v5201 = vld [vmem:[%s5188 + $0x30] sm:$0xf]
    %v5202 = vld [vmem:[%s5188 + $0x34] sm:$0xf]
    %v5203 = vld [vmem:[%s5188 + $0x38] sm:$0xf]
    %v5204 = vld [vmem:[%s5188 + $0x3c] sm:$0xf]
    %s5205 = scalar_lea.vmem %s5, 14
    %v5206 = vld [vmem:[%s5205] sm:$0x1]
    %v5208 = vlaneseq
    %v5209 = vshrl.u32 %v5208, 7
    %v5210 = vsub.s32 0, %v5209
    %v5211 = vrot.slane %v5206, %v5210
    %v5229 = vunpack.c.l.b16 %v5189
    %v5230 = vunpack.c.l.b16 %v5190
    %v5231 = vunpack.c.l.b16 %v5191
    %v5232 = vunpack.c.l.b16 %v5192
    %v5233 = vunpack.c.l.b16 %v5193
    %v5234 = vunpack.c.l.b16 %v5194
    %v5235 = vunpack.c.l.b16 %v5195
    %v5236 = vunpack.c.l.b16 %v5196
    %v5237 = vunpack.c.l.b16 %v5197
    %v5238 = vunpack.c.l.b16 %v5198
    %v5239 = vunpack.c.l.b16 %v5199
    %v5240 = vunpack.c.l.b16 %v5200
    %v5241 = vunpack.c.l.b16 %v5201
    %v5242 = vunpack.c.l.b16 %v5202
    %v5243 = vunpack.c.l.b16 %v5203
    %v5244 = vunpack.c.l.b16 %v5204
    %v5245 = vpack.c.b16 %v5230, %v5229
    %v5246 = vpack.c.b16 %v5232, %v5231
    %v5247 = vpack.c.b16 %v5234, %v5233
    %v5248 = vpack.c.b16 %v5236, %v5235
    %v5249 = vpack.c.b16 %v5238, %v5237
    %v5250 = vpack.c.b16 %v5240, %v5239
    %v5251 = vpack.c.b16 %v5242, %v5241
    %v5252 = vpack.c.b16 %v5244, %v5243
    %5261 = vmatprep.subr.bf16.mxu0 0
    %5262 = vmatpush1.bf16.msra.mxu0 %v5245
    %5263 = vmatprep.subr.bf16.mxu0 0
    %5264 = vmatpush1.bf16.msra.mxu0 %v5246
    %5265 = vmatprep.subr.bf16.mxu0 0
    %5266 = vmatpush1.bf16.msra.mxu0 %v5247
    %5267 = vmatprep.subr.bf16.mxu0 0
    %5268 = vmatpush1.bf16.msra.mxu0 %v5248
    %5269 = vmatprep.subr.bf16.mxu0 0
    %5270 = vmatpush1.bf16.msra.mxu0 %v5249
    %5271 = vmatprep.subr.bf16.mxu0 0
    %5272 = vmatpush1.bf16.msra.mxu0 %v5250
    %5273 = vmatprep.subr.bf16.mxu0 0
    %5274 = vmatpush1.bf16.msra.mxu0 %v5251
    %5275 = vmatprep.subr.bf16.mxu0 0
    %5276 = vmatpush1.bf16.msra.mxu0 %v5252
    %5277 = vmatprep.subr.bf16.mxu0 0
    %5278 = vmatpush1.bf16.msra.mxu0 0
    %5279 = vmatprep.subr.bf16.mxu0 0
    %5280 = vmatpush1.bf16.msra.mxu0 0
    %5281 = vmatprep.subr.bf16.mxu0 0
    %5282 = vmatpush1.bf16.msra.mxu0 0
    %5283 = vmatprep.subr.bf16.mxu0 0
    %5284 = vmatpush1.bf16.msra.mxu0 0
    %5285 = vmatprep.subr.bf16.mxu0 0
    %5286 = vmatpush1.bf16.msra.mxu0 0
    %5287 = vmatprep.subr.bf16.mxu0 0
    %5288 = vmatpush1.bf16.msra.mxu0 0
    %5289 = vmatprep.subr.bf16.mxu0 0
    %5290 = vmatpush1.bf16.msra.mxu0 0
    %5291 = vmatprep.subr.bf16.mxu0 0
    %5292 = vmatpush1.bf16.msra.mxu0 0
    %5293 = vmatprep.mubr.bf16.mxu0 0
    %5294 = vmatmul.mubr.bf16.gmra.mrb[0].mxu0 %v5065
    %v5295 = vpop.f32.mrb[0].mxu0
    %v5296 = vadd.f32 %v5211, %v5295
    %v5297 = vpop.f32.mrb[0].mxu0
    %v5298 = vpop.f32.mrb[0].mxu0
    %v5299 = vadd.f32 %v5211, %v5298
    %v5300 = vpop.f32.mrb[0].mxu0
    %5301 = vmatprep.mubr.bf16.mxu0 0
    %5302 = vmatmul.mubr.bf16.gmra.mrb[0].mxu0 %v5066
    %v5303 = vpop.f32.mrb[0].mxu0
    %v5304 = vadd.f32 %v5211, %v5303
    %v5305 = vpop.f32.mrb[0].mxu0
    %v5306 = vpop.f32.mrb[0].mxu0
    %v5307 = vpop.f32.mrb[0].mxu0
    %5308 = vdwg.mxu0
    %v5310 = vsel %vm559, %v5060, 0
    %v5313 = vsel %vm559, %v5175, 0
    %v5316 = vsel %vm559, %v5178, 0
    %5318 = vmatprep.subr.mxu0 0.0
    %5319 = vmatpush1.xpose.msra.mxu0 %v5313
    %5320 = vmatprep.subr.mxu0 0.0
    %5321 = vmatpush1.xpose.msra.mxu0 %v5316
    %5322 = vmatprep.subr.mxu0 0.0
    %5323 = vmatpush1.xpose.msra.mxu0 0.0
    %5324 = vmatprep.subr.mxu0 0.0
    %5325 = vmatpush1.xpose.msra.mxu0 0.0
    %5326 = vmatprep.subr.mxu0 0.0
    %5327 = vmatpush1.xpose.msra.mxu0 0.0
    %5328 = vmatprep.subr.mxu0 0.0
    %5329 = vmatpush1.xpose.msra.mxu0 0.0
    %5330 = vmatprep.subr.mxu0 0.0
    %5331 = vmatpush1.xpose.msra.mxu0 0.0
    %5332 = vmatprep.subr.mxu0 0.0
    %5333 = vmatpush1.xpose.msra.mxu0 0.0
    %5334 = vmatprep.subr.mxu0 0.0
    %5335 = vmatpush1.xpose.msra.mxu0 0.0
    %5336 = vmatprep.subr.mxu0 0.0
    %5337 = vmatpush1.xpose.msra.mxu0 0.0
    %5338 = vmatprep.subr.mxu0 0.0
    %5339 = vmatpush1.xpose.msra.mxu0 0.0
    %5340 = vmatprep.subr.mxu0 0.0
    %5341 = vmatpush1.xpose.msra.mxu0 0.0
    %5342 = vmatprep.subr.mxu0 0.0
    %5343 = vmatpush1.xpose.msra.mxu0 0.0
    %5344 = vmatprep.subr.mxu0 0.0
    %5345 = vmatpush1.xpose.msra.mxu0 0.0
    %5346 = vmatprep.subr.mxu0 0.0
    %5347 = vmatpush1.xpose.msra.mxu0 0.0
    %5348 = vmatprep.subr.mxu0 0.0
    %5349 = vmatpush1.xpose.msra.mxu0 0.0
    %5350 = vmatprep.subr.mxu0 0.0
    %5351 = vmatpush1.xpose.msra.mxu0 0.0
    %5352 = vmatprep.subr.mxu0 0.0
    %5353 = vmatpush1.xpose.msra.mxu0 0.0
    %5354 = vmatprep.subr.mxu0 0.0
    %5355 = vmatpush1.xpose.msra.mxu0 0.0
    %5356 = vmatprep.subr.mxu0 0.0
    %5357 = vmatpush1.xpose.msra.mxu0 0.0
    %5358 = vmatprep.subr.mxu0 0.0
    %5359 = vmatpush1.xpose.msra.mxu0 0.0
    %5360 = vmatprep.subr.mxu0 0.0
    %5361 = vmatpush1.xpose.msra.mxu0 0.0
    %5362 = vmatprep.subr.mxu0 0.0
    %5363 = vmatpush1.xpose.msra.mxu0 0.0
    %5364 = vmatprep.subr.mxu0 0.0
    %5365 = vmatpush1.xpose.msra.mxu0 0.0
    %5366 = vmatprep.subr.mxu0 0.0
    %5367 = vmatpush1.xpose.msra.mxu0 0.0
    %5368 = vmatprep.subr.mxu0 0.0
    %5369 = vmatpush1.xpose.msra.mxu0 0.0
    %5370 = vmatprep.subr.mxu0 0.0
    %5371 = vmatpush1.xpose.msra.mxu0 0.0
    %5372 = vmatprep.subr.mxu0 0.0
    %5373 = vmatpush1.xpose.msra.mxu0 0.0
    %5374 = vmatprep.subr.mxu0 0.0
    %5375 = vmatpush1.xpose.msra.mxu0 0.0
    %5376 = vmatprep.subr.mxu0 0.0
    %5377 = vmatpush1.xpose.msra.mxu0 0.0
    %5378 = vmatprep.subr.mxu0 0.0
    %5379 = vmatpush1.xpose.msra.mxu0 0.0
    %5380 = vmatprep.subr.mxu0 0.0
    %5381 = vmatpush1.xpose.msra.mxu0 0.0
    %5382 = vmatprep.mubr.f32.mxu0 0.0
    %5383 = vmatmul.mubr.f32.gmra.mrb[0].mxu0 %v5310
    %v5384 = vpop.f32.mrb[0].mxu0
    %v5385 = vadd.f32 0.0, %v5384
    %v5386 = vpop.f32.mrb[0].mxu0
    %5387 = vdwg.mxu0
    %v5388 = vmul.f32 %v5385, 0.20412415
    %vm5389 = vcmask 73728
    %v5390 = vsel %vm5389, %v5388, -inf
    %5391 = vmax.xlane.f32.xlu0 %v5390
    %v5392 = vpop.xlane.xlu0 %5391
    %v5393 = vsub.f32 %v5388, %v5392
    %v5394 = vmul.f32 %v5393, 1.442695
    %v5395 = vpow.pop %v5394
    %v5396 = vsel %vm5389, %v5395, 0.0
    %5397 = vadd.xlane.f32.xlu0 %v5396
    %v5398 = vpop.xlane.xlu0 %5397
    %v5399 = vrcp.pop %v5398
    %v5400 = vmul.f32 %v5395, %v5399
    %v5402 = vsel %vm2972, %v5400, 0
    %v5405 = vsel %vm37, %v5299, 0
    %5407 = vmatprep.subr.mxu0 0.0
    %5408 = vmatpush1.msra.mxu0 %v5296
    %5409 = vmatprep.subr.mxu0 0.0
    %5410 = vmatpush1.msra.mxu0 %v5405
    %5411 = vmatprep.subr.mxu0 0.0
    %5412 = vmatpush1.msra.mxu0 0.0
    %5413 = vmatprep.subr.mxu0 0.0
    %5414 = vmatpush1.msra.mxu0 0.0
    %5415 = vmatprep.subr.mxu0 0.0
    %5416 = vmatpush1.msra.mxu0 0.0
    %5417 = vmatprep.subr.mxu0 0.0
    %5418 = vmatpush1.msra.mxu0 0.0
    %5419 = vmatprep.subr.mxu0 0.0
    %5420 = vmatpush1.msra.mxu0 0.0
    %5421 = vmatprep.subr.mxu0 0.0
    %5422 = vmatpush1.msra.mxu0 0.0
    %5423 = vmatprep.subr.mxu0 0.0
    %5424 = vmatpush1.msra.mxu0 0.0
    %5425 = vmatprep.subr.mxu0 0.0
    %5426 = vmatpush1.msra.mxu0 0.0
    %5427 = vmatprep.subr.mxu0 0.0
    %5428 = vmatpush1.msra.mxu0 0.0
    %5429 = vmatprep.subr.mxu0 0.0
    %5430 = vmatpush1.msra.mxu0 0.0
    %5431 = vmatprep.subr.mxu0 0.0
    %5432 = vmatpush1.msra.mxu0 0.0
    %5433 = vmatprep.subr.mxu0 0.0
    %5434 = vmatpush1.msra.mxu0 0.0
    %5435 = vmatprep.subr.mxu0 0.0
    %5436 = vmatpush1.msra.mxu0 0.0
    %5437 = vmatprep.subr.mxu0 0.0
    %5438 = vmatpush1.msra.mxu0 0.0
    %5439 = vmatprep.subr.mxu0 0.0
    %5440 = vmatpush1.msra.mxu0 0.0
    %5441 = vmatprep.subr.mxu0 0.0
    %5442 = vmatpush1.msra.mxu0 0.0
    %5443 = vmatprep.subr.mxu0 0.0
    %5444 = vmatpush1.msra.mxu0 0.0
    %5445 = vmatprep.subr.mxu0 0.0
    %5446 = vmatpush1.msra.mxu0 0.0
    %5447 = vmatprep.subr.mxu0 0.0
    %5448 = vmatpush1.msra.mxu0 0.0
    %5449 = vmatprep.subr.mxu0 0.0
    %5450 = vmatpush1.msra.mxu0 0.0
    %5451 = vmatprep.subr.mxu0 0.0
    %5452 = vmatpush1.msra.mxu0 0.0
    %5453 = vmatprep.subr.mxu0 0.0
    %5454 = vmatpush1.msra.mxu0 0.0
    %5455 = vmatprep.subr.mxu0 0.0
    %5456 = vmatpush1.msra.mxu0 0.0
    %5457 = vmatprep.subr.mxu0 0.0
    %5458 = vmatpush1.msra.mxu0 0.0
    %5459 = vmatprep.subr.mxu0 0.0
    %5460 = vmatpush1.msra.mxu0 0.0
    %5461 = vmatprep.subr.mxu0 0.0
    %5462 = vmatpush1.msra.mxu0 0.0
    %5463 = vmatprep.subr.mxu0 0.0
    %5464 = vmatpush1.msra.mxu0 0.0
    %5465 = vmatprep.subr.mxu0 0.0
    %5466 = vmatpush1.msra.mxu0 0.0
    %5467 = vmatprep.subr.mxu0 0.0
    %5468 = vmatpush1.msra.mxu0 0.0
    %5469 = vmatprep.subr.mxu0 0.0
    %5470 = vmatpush1.msra.mxu0 0.0
    %5471 = vmatprep.mubr.f32.mxu0 0.0
    %5472 = vmatmul.mubr.f32.gmra.mrb[0].mxu0 %v5402
    %v5473 = vpop.f32.mrb[0].mxu0
    %v5474 = vadd.f32 0.0, %v5473
    %v5475 = vpop.f32.mrb[0].mxu0
    %5476 = vdwg.mxu0
    %5477 = vrot.lane.b32.xlu0 %v5060, 96
    %v5478 = vpop.permute.xlu0 %5477
    %5479 = vrot.lane.b32.xlu0 %v5175, 96
    %v5480 = vpop.permute.xlu0 %5479
    %5481 = vrot.lane.b32.xlu0 %v5178, 96
    %v5482 = vpop.permute.xlu0 %5481
    %v5483 = vsel %vm559, %v5478, 0
    %v5485 = vsel %vm559, %v5480, 0
    %v5487 = vsel %vm559, %v5482, 0
    %5489 = vmatprep.subr.mxu0 0.0
    %5490 = vmatpush1.xpose.msra.mxu0 %v5485
    %5491 = vmatprep.subr.mxu0 0.0
    %5492 = vmatpush1.xpose.msra.mxu0 %v5487
    %5493 = vmatprep.subr.mxu0 0.0
    %5494 = vmatpush1.xpose.msra.mxu0 0.0
    %5495 = vmatprep.subr.mxu0 0.0
    %5496 = vmatpush1.xpose.msra.mxu0 0.0
    %5497 = vmatprep.subr.mxu0 0.0
    %5498 = vmatpush1.xpose.msra.mxu0 0.0
    %5499 = vmatprep.subr.mxu0 0.0
    %5500 = vmatpush1.xpose.msra.mxu0 0.0
    %5501 = vmatprep.subr.mxu0 0.0
    %5502 = vmatpush1.xpose.msra.mxu0 0.0
    %5503 = vmatprep.subr.mxu0 0.0
    %5504 = vmatpush1.xpose.msra.mxu0 0.0
    %5505 = vmatprep.subr.mxu0 0.0
    %5506 = vmatpush1.xpose.msra.mxu0 0.0
    %5507 = vmatprep.subr.mxu0 0.0
    %5508 = vmatpush1.xpose.msra.mxu0 0.0
    %5509 = vmatprep.subr.mxu0 0.0
    %5510 = vmatpush1.xpose.msra.mxu0 0.0
    %5511 = vmatprep.subr.mxu0 0.0
    %5512 = vmatpush1.xpose.msra.mxu0 0.0
    %5513 = vmatprep.subr.mxu0 0.0
    %5514 = vmatpush1.xpose.msra.mxu0 0.0
    %5515 = vmatprep.subr.mxu0 0.0
    %5516 = vmatpush1.xpose.msra.mxu0 0.0
    %5517 = vmatprep.subr.mxu0 0.0
    %5518 = vmatpush1.xpose.msra.mxu0 0.0
    %5519 = vmatprep.subr.mxu0 0.0
    %5520 = vmatpush1.xpose.msra.mxu0 0.0
    %5521 = vmatprep.subr.mxu0 0.0
    %5522 = vmatpush1.xpose.msra.mxu0 0.0
    %5523 = vmatprep.subr.mxu0 0.0
    %5524 = vmatpush1.xpose.msra.mxu0 0.0
    %5525 = vmatprep.subr.mxu0 0.0
    %5526 = vmatpush1.xpose.msra.mxu0 0.0
    %5527 = vmatprep.subr.mxu0 0.0
    %5528 = vmatpush1.xpose.msra.mxu0 0.0
    %5529 = vmatprep.subr.mxu0 0.0
    %5530 = vmatpush1.xpose.msra.mxu0 0.0
    %5531 = vmatprep.subr.mxu0 0.0
    %5532 = vmatpush1.xpose.msra.mxu0 0.0
    %5533 = vmatprep.subr.mxu0 0.0
    %5534 = vmatpush1.xpose.msra.mxu0 0.0
    %5535 = vmatprep.subr.mxu0 0.0
    %5536 = vmatpush1.xpose.msra.mxu0 0.0
    %5537 = vmatprep.subr.mxu0 0.0
    %5538 = vmatpush1.xpose.msra.mxu0 0.0
    %5539 = vmatprep.subr.mxu0 0.0
    %5540 = vmatpush1.xpose.msra.mxu0 0.0
    %5541 = vmatprep.subr.mxu0 0.0
    %5542 = vmatpush1.xpose.msra.mxu0 0.0
    %5543 = vmatprep.subr.mxu0 0.0
    %5544 = vmatpush1.xpose.msra.mxu0 0.0
    %5545 = vmatprep.subr.mxu0 0.0
    %5546 = vmatpush1.xpose.msra.mxu0 0.0
    %5547 = vmatprep.subr.mxu0 0.0
    %5548 = vmatpush1.xpose.msra.mxu0 0.0
    %5549 = vmatprep.subr.mxu0 0.0
    %5550 = vmatpush1.xpose.msra.mxu0 0.0
    %5551 = vmatprep.subr.mxu0 0.0
    %5552 = vmatpush1.xpose.msra.mxu0 0.0
    %5553 = vmatprep.mubr.f32.mxu0 0.0
    %5554 = vmatmul.mubr.f32.gmra.mrb[0].mxu0 %v5483
    %v5555 = vpop.f32.mrb[0].mxu0
    %v5556 = vadd.f32 0.0, %v5555
    %v5557 = vpop.f32.mrb[0].mxu0
    %5558 = vdwg.mxu0
    %v5559 = vmul.f32 %v5556, 0.20412415
    %v5560 = vsel %vm5389, %v5559, -inf
    %5561 = vmax.xlane.f32.xlu0 %v5560
    %v5562 = vpop.xlane.xlu0 %5561
    %v5563 = vsub.f32 %v5559, %v5562
    %v5564 = vmul.f32 %v5563, 1.442695
    %v5565 = vpow.pop %v5564
    %v5566 = vsel %vm5389, %v5565, 0.0
    %5567 = vadd.xlane.f32.xlu0 %v5566
    %v5568 = vpop.xlane.xlu0 %5567
    %v5569 = vrcp.pop %v5568
    %v5570 = vmul.f32 %v5565, %v5569
    %5572 = vrot.lane.b32.xlu0 %v5296, 96
    %v5573 = vpop.permute.xlu0 %5572
    %5574 = vrot.lane.b32.xlu0 %v5299, 96
    %v5575 = vpop.permute.xlu0 %5574
    %v5578 = vsel %vm2972, %v5570, 0
    %v5580 = vsel %vm37, %v5575, 0
    %5582 = vmatprep.subr.mxu0 0.0
    %5583 = vmatpush1.msra.mxu0 %v5573
    %5584 = vmatprep.subr.mxu0 0.0
    %5585 = vmatpush1.msra.mxu0 %v5580
    %5586 = vmatprep.subr.mxu0 0.0
    %5587 = vmatpush1.msra.mxu0 0.0
    %5588 = vmatprep.subr.mxu0 0.0
    %5589 = vmatpush1.msra.mxu0 0.0
    %5590 = vmatprep.subr.mxu0 0.0
    %5591 = vmatpush1.msra.mxu0 0.0
    %5592 = vmatprep.subr.mxu0 0.0
    %5593 = vmatpush1.msra.mxu0 0.0
    %5594 = vmatprep.subr.mxu0 0.0
    %5595 = vmatpush1.msra.mxu0 0.0
    %5596 = vmatprep.subr.mxu0 0.0
    %5597 = vmatpush1.msra.mxu0 0.0
    %5598 = vmatprep.subr.mxu0 0.0
    %5599 = vmatpush1.msra.mxu0 0.0
    %5600 = vmatprep.subr.mxu0 0.0
    %5601 = vmatpush1.msra.mxu0 0.0
    %5602 = vmatprep.subr.mxu0 0.0
    %5603 = vmatpush1.msra.mxu0 0.0
    %5604 = vmatprep.subr.mxu0 0.0
    %5605 = vmatpush1.msra.mxu0 0.0
    %5606 = vmatprep.subr.mxu0 0.0
    %5607 = vmatpush1.msra.mxu0 0.0
    %5608 = vmatprep.subr.mxu0 0.0
    %5609 = vmatpush1.msra.mxu0 0.0
    %5610 = vmatprep.subr.mxu0 0.0
    %5611 = vmatpush1.msra.mxu0 0.0
    %5612 = vmatprep.subr.mxu0 0.0
    %5613 = vmatpush1.msra.mxu0 0.0
    %5614 = vmatprep.subr.mxu0 0.0
    %5615 = vmatpush1.msra.mxu0 0.0
    %5616 = vmatprep.subr.mxu0 0.0
    %5617 = vmatpush1.msra.mxu0 0.0
    %5618 = vmatprep.subr.mxu0 0.0
    %5619 = vmatpush1.msra.mxu0 0.0
    %5620 = vmatprep.subr.mxu0 0.0
    %5621 = vmatpush1.msra.mxu0 0.0
    %5622 = vmatprep.subr.mxu0 0.0
    %5623 = vmatpush1.msra.mxu0 0.0
    %5624 = vmatprep.subr.mxu0 0.0
    %5625 = vmatpush1.msra.mxu0 0.0
    %5626 = vmatprep.subr.mxu0 0.0
    %5627 = vmatpush1.msra.mxu0 0.0
    %5628 = vmatprep.subr.mxu0 0.0
    %5629 = vmatpush1.msra.mxu0 0.0
    %5630 = vmatprep.subr.mxu0 0.0
    %5631 = vmatpush1.msra.mxu0 0.0
    %5632 = vmatprep.subr.mxu0 0.0
    %5633 = vmatpush1.msra.mxu0 0.0
    %5634 = vmatprep.subr.mxu0 0.0
    %5635 = vmatpush1.msra.mxu0 0.0
    %5636 = vmatprep.subr.mxu0 0.0
    %5637 = vmatpush1.msra.mxu0 0.0
    %5638 = vmatprep.subr.mxu0 0.0
    %5639 = vmatpush1.msra.mxu0 0.0
    %5640 = vmatprep.subr.mxu0 0.0
    %5641 = vmatpush1.msra.mxu0 0.0
    %5642 = vmatprep.subr.mxu0 0.0
    %5643 = vmatpush1.msra.mxu0 0.0
    %5644 = vmatprep.subr.mxu0 0.0
    %5645 = vmatpush1.msra.mxu0 0.0
    %5646 = vmatprep.mubr.f32.mxu0 0.0
    %5647 = vmatmul.mubr.f32.gmra.mrb[0].mxu0 %v5578
    %v5648 = vpop.f32.mrb[0].mxu0
    %v5649 = vadd.f32 0.0, %v5648
    %v5650 = vpop.f32.mrb[0].mxu0
    %5651 = vdwg.mxu0
    %5652 = vrot.lane.b32.xlu0 %v5060, 64
    %v5653 = vpop.permute.xlu0 %5652
    %5654 = vrot.lane.b32.xlu0 %v5175, 64
    %v5655 = vpop.permute.xlu0 %5654
    %5656 = vrot.lane.b32.xlu0 %v5178, 64
    %v5657 = vpop.permute.xlu0 %5656
    %v5658 = vsel %vm559, %v5653, 0
    %v5660 = vsel %vm559, %v5655, 0
    %v5662 = vsel %vm559, %v5657, 0
    %5664 = vmatprep.subr.mxu0 0.0
    %5665 = vmatpush1.xpose.msra.mxu0 %v5660
    %5666 = vmatprep.subr.mxu0 0.0
    %5667 = vmatpush1.xpose.msra.mxu0 %v5662
    %5668 = vmatprep.subr.mxu0 0.0
    %5669 = vmatpush1.xpose.msra.mxu0 0.0
    %5670 = vmatprep.subr.mxu0 0.0
    %5671 = vmatpush1.xpose.msra.mxu0 0.0
    %5672 = vmatprep.subr.mxu0 0.0
    %5673 = vmatpush1.xpose.msra.mxu0 0.0
    %5674 = vmatprep.subr.mxu0 0.0
    %5675 = vmatpush1.xpose.msra.mxu0 0.0
    %5676 = vmatprep.subr.mxu0 0.0
    %5677 = vmatpush1.xpose.msra.mxu0 0.0
    %5678 = vmatprep.subr.mxu0 0.0
    %5679 = vmatpush1.xpose.msra.mxu0 0.0
    %5680 = vmatprep.subr.mxu0 0.0
    %5681 = vmatpush1.xpose.msra.mxu0 0.0
    %5682 = vmatprep.subr.mxu0 0.0
    %5683 = vmatpush1.xpose.msra.mxu0 0.0
    %5684 = vmatprep.subr.mxu0 0.0
    %5685 = vmatpush1.xpose.msra.mxu0 0.0
    %5686 = vmatprep.subr.mxu0 0.0
    %5687 = vmatpush1.xpose.msra.mxu0 0.0
    %5688 = vmatprep.subr.mxu0 0.0
    %5689 = vmatpush1.xpose.msra.mxu0 0.0
    %5690 = vmatprep.subr.mxu0 0.0
    %5691 = vmatpush1.xpose.msra.mxu0 0.0
    %5692 = vmatprep.subr.mxu0 0.0
    %5693 = vmatpush1.xpose.msra.mxu0 0.0
    %5694 = vmatprep.subr.mxu0 0.0
    %5695 = vmatpush1.xpose.msra.mxu0 0.0
    %5696 = vmatprep.subr.mxu0 0.0
    %5697 = vmatpush1.xpose.msra.mxu0 0.0
    %5698 = vmatprep.subr.mxu0 0.0
    %5699 = vmatpush1.xpose.msra.mxu0 0.0
    %5700 = vmatprep.subr.mxu0 0.0
    %5701 = vmatpush1.xpose.msra.mxu0 0.0
    %5702 = vmatprep.subr.mxu0 0.0
    %5703 = vmatpush1.xpose.msra.mxu0 0.0
    %5704 = vmatprep.subr.mxu0 0.0
    %5705 = vmatpush1.xpose.msra.mxu0 0.0
    %5706 = vmatprep.subr.mxu0 0.0
    %5707 = vmatpush1.xpose.msra.mxu0 0.0
    %5708 = vmatprep.subr.mxu0 0.0
    %5709 = vmatpush1.xpose.msra.mxu0 0.0
    %5710 = vmatprep.subr.mxu0 0.0
    %5711 = vmatpush1.xpose.msra.mxu0 0.0
    %5712 = vmatprep.subr.mxu0 0.0
    %5713 = vmatpush1.xpose.msra.mxu0 0.0
    %5714 = vmatprep.subr.mxu0 0.0
    %5715 = vmatpush1.xpose.msra.mxu0 0.0
    %5716 = vmatprep.subr.mxu0 0.0
    %5717 = vmatpush1.xpose.msra.mxu0 0.0
    %5718 = vmatprep.subr.mxu0 0.0
    %5719 = vmatpush1.xpose.msra.mxu0 0.0
    %5720 = vmatprep.subr.mxu0 0.0
    %5721 = vmatpush1.xpose.msra.mxu0 0.0
    %5722 = vmatprep.subr.mxu0 0.0
    %5723 = vmatpush1.xpose.msra.mxu0 0.0
    %5724 = vmatprep.subr.mxu0 0.0
    %5725 = vmatpush1.xpose.msra.mxu0 0.0
    %5726 = vmatprep.subr.mxu0 0.0
    %5727 = vmatpush1.xpose.msra.mxu0 0.0
    %5728 = vmatprep.mubr.f32.mxu0 0.0
    %5729 = vmatmul.mubr.f32.gmra.mrb[0].mxu0 %v5658
    %v5730 = vpop.f32.mrb[0].mxu0
    %v5731 = vadd.f32 0.0, %v5730
    %v5732 = vpop.f32.mrb[0].mxu0
    %5733 = vdwg.mxu0
    %v5734 = vmul.f32 %v5731, 0.20412415
    %v5735 = vsel %vm5389, %v5734, -inf
    %5736 = vmax.xlane.f32.xlu0 %v5735
    %v5737 = vpop.xlane.xlu0 %5736
    %v5738 = vsub.f32 %v5734, %v5737
    %v5739 = vmul.f32 %v5738, 1.442695
    %v5740 = vpow.pop %v5739
    %v5741 = vsel %vm5389, %v5740, 0.0
    %5742 = vadd.xlane.f32.xlu0 %v5741
    %v5743 = vpop.xlane.xlu0 %5742
    %v5744 = vrcp.pop %v5743
    %v5745 = vmul.f32 %v5740, %v5744
    %5746 = vrot.lane.b32.xlu0 %v5296, 64
    %v5747 = vpop.permute.xlu0 %5746
    %5748 = vrot.lane.b32.xlu0 %v5299, 64
    %v5749 = vpop.permute.xlu0 %5748
    %v5752 = vsel %vm2972, %v5745, 0
    %v5754 = vsel %vm37, %v5749, 0
    %5756 = vmatprep.subr.mxu0 0.0
    %5757 = vmatpush1.msra.mxu0 %v5747
    %5758 = vmatprep.subr.mxu0 0.0
    %5759 = vmatpush1.msra.mxu0 %v5754
    %5760 = vmatprep.subr.mxu0 0.0
    %5761 = vmatpush1.msra.mxu0 0.0
    %5762 = vmatprep.subr.mxu0 0.0
    %5763 = vmatpush1.msra.mxu0 0.0
    %5764 = vmatprep.subr.mxu0 0.0
    %5765 = vmatpush1.msra.mxu0 0.0
    %5766 = vmatprep.subr.mxu0 0.0
    %5767 = vmatpush1.msra.mxu0 0.0
    %5768 = vmatprep.subr.mxu0 0.0
    %5769 = vmatpush1.msra.mxu0 0.0
    %5770 = vmatprep.subr.mxu0 0.0
    %5771 = vmatpush1.msra.mxu0 0.0
    %5772 = vmatprep.subr.mxu0 0.0
    %5773 = vmatpush1.msra.mxu0 0.0
    %5774 = vmatprep.subr.mxu0 0.0
    %5775 = vmatpush1.msra.mxu0 0.0
    %5776 = vmatprep.subr.mxu0 0.0
    %5777 = vmatpush1.msra.mxu0 0.0
    %5778 = vmatprep.subr.mxu0 0.0
    %5779 = vmatpush1.msra.mxu0 0.0
    %5780 = vmatprep.subr.mxu0 0.0
    %5781 = vmatpush1.msra.mxu0 0.0
    %5782 = vmatprep.subr.mxu0 0.0
    %5783 = vmatpush1.msra.mxu0 0.0
    %5784 = vmatprep.subr.mxu0 0.0
    %5785 = vmatpush1.msra.mxu0 0.0
    %5786 = vmatprep.subr.mxu0 0.0
    %5787 = vmatpush1.msra.mxu0 0.0
    %5788 = vmatprep.subr.mxu0 0.0
    %5789 = vmatpush1.msra.mxu0 0.0
    %5790 = vmatprep.subr.mxu0 0.0
    %5791 = vmatpush1.msra.mxu0 0.0
    %5792 = vmatprep.subr.mxu0 0.0
    %5793 = vmatpush1.msra.mxu0 0.0
    %5794 = vmatprep.subr.mxu0 0.0
    %5795 = vmatpush1.msra.mxu0 0.0
    %5796 = vmatprep.subr.mxu0 0.0
    %5797 = vmatpush1.msra.mxu0 0.0
    %5798 = vmatprep.subr.mxu0 0.0
    %5799 = vmatpush1.msra.mxu0 0.0
    %5800 = vmatprep.subr.mxu0 0.0
    %5801 = vmatpush1.msra.mxu0 0.0
    %5802 = vmatprep.subr.mxu0 0.0
    %5803 = vmatpush1.msra.mxu0 0.0
    %5804 = vmatprep.subr.mxu0 0.0
    %5805 = vmatpush1.msra.mxu0 0.0
    %5806 = vmatprep.subr.mxu0 0.0
    %5807 = vmatpush1.msra.mxu0 0.0
    %5808 = vmatprep.subr.mxu0 0.0
    %5809 = vmatpush1.msra.mxu0 0.0
    %5810 = vmatprep.subr.mxu0 0.0
    %5811 = vmatpush1.msra.mxu0 0.0
    %5812 = vmatprep.subr.mxu0 0.0
    %5813 = vmatpush1.msra.mxu0 0.0
    %5814 = vmatprep.subr.mxu0 0.0
    %5815 = vmatpush1.msra.mxu0 0.0
    %5816 = vmatprep.subr.mxu0 0.0
    %5817 = vmatpush1.msra.mxu0 0.0
    %5818 = vmatprep.subr.mxu0 0.0
    %5819 = vmatpush1.msra.mxu0 0.0
    %5820 = vmatprep.mubr.f32.mxu0 0.0
    %5821 = vmatmul.mubr.f32.gmra.mrb[0].mxu0 %v5752
    %v5822 = vpop.f32.mrb[0].mxu0
    %v5823 = vadd.f32 0.0, %v5822
    %v5824 = vpop.f32.mrb[0].mxu0
    %5825 = vdwg.mxu0
    %5826 = vrot.lane.b32.xlu0 %v5060, 32
    %v5827 = vpop.permute.xlu0 %5826
    %5828 = vrot.lane.b32.xlu0 %v5175, 32
    %v5829 = vpop.permute.xlu0 %5828
    %5830 = vrot.lane.b32.xlu0 %v5178, 32
    %v5831 = vpop.permute.xlu0 %5830
    %v5832 = vsel %vm559, %v5827, 0
    %v5834 = vsel %vm559, %v5829, 0
    %v5836 = vsel %vm559, %v5831, 0
    %5838 = vmatprep.subr.mxu0 0.0
    %5839 = vmatpush1.xpose.msra.mxu0 %v5834
    %5840 = vmatprep.subr.mxu0 0.0
    %5841 = vmatpush1.xpose.msra.mxu0 %v5836
    %5842 = vmatprep.subr.mxu0 0.0
    %5843 = vmatpush1.xpose.msra.mxu0 0.0
    %5844 = vmatprep.subr.mxu0 0.0
    %5845 = vmatpush1.xpose.msra.mxu0 0.0
    %5846 = vmatprep.subr.mxu0 0.0
    %5847 = vmatpush1.xpose.msra.mxu0 0.0
    %5848 = vmatprep.subr.mxu0 0.0
    %5849 = vmatpush1.xpose.msra.mxu0 0.0
    %5850 = vmatprep.subr.mxu0 0.0
    %5851 = vmatpush1.xpose.msra.mxu0 0.0
    %5852 = vmatprep.subr.mxu0 0.0
    %5853 = vmatpush1.xpose.msra.mxu0 0.0
    %5854 = vmatprep.subr.mxu0 0.0
    %5855 = vmatpush1.xpose.msra.mxu0 0.0
    %5856 = vmatprep.subr.mxu0 0.0
    %5857 = vmatpush1.xpose.msra.mxu0 0.0
    %5858 = vmatprep.subr.mxu0 0.0
    %5859 = vmatpush1.xpose.msra.mxu0 0.0
    %5860 = vmatprep.subr.mxu0 0.0
    %5861 = vmatpush1.xpose.msra.mxu0 0.0
    %5862 = vmatprep.subr.mxu0 0.0
    %5863 = vmatpush1.xpose.msra.mxu0 0.0
    %5864 = vmatprep.subr.mxu0 0.0
    %5865 = vmatpush1.xpose.msra.mxu0 0.0
    %5866 = vmatprep.subr.mxu0 0.0
    %5867 = vmatpush1.xpose.msra.mxu0 0.0
    %5868 = vmatprep.subr.mxu0 0.0
    %5869 = vmatpush1.xpose.msra.mxu0 0.0
    %5870 = vmatprep.subr.mxu0 0.0
    %5871 = vmatpush1.xpose.msra.mxu0 0.0
    %5872 = vmatprep.subr.mxu0 0.0
    %5873 = vmatpush1.xpose.msra.mxu0 0.0
    %5874 = vmatprep.subr.mxu0 0.0
    %5875 = vmatpush1.xpose.msra.mxu0 0.0
    %5876 = vmatprep.subr.mxu0 0.0
    %5877 = vmatpush1.xpose.msra.mxu0 0.0
    %5878 = vmatprep.subr.mxu0 0.0
    %5879 = vmatpush1.xpose.msra.mxu0 0.0
    %5880 = vmatprep.subr.mxu0 0.0
    %5881 = vmatpush1.xpose.msra.mxu0 0.0
    %5882 = vmatprep.subr.mxu0 0.0
    %5883 = vmatpush1.xpose.msra.mxu0 0.0
    %5884 = vmatprep.subr.mxu0 0.0
    %5885 = vmatpush1.xpose.msra.mxu0 0.0
    %5886 = vmatprep.subr.mxu0 0.0
    %5887 = vmatpush1.xpose.msra.mxu0 0.0
    %5888 = vmatprep.subr.mxu0 0.0
    %5889 = vmatpush1.xpose.msra.mxu0 0.0
    %5890 = vmatprep.subr.mxu0 0.0
    %5891 = vmatpush1.xpose.msra.mxu0 0.0
    %5892 = vmatprep.subr.mxu0 0.0
    %5893 = vmatpush1.xpose.msra.mxu0 0.0
    %5894 = vmatprep.subr.mxu0 0.0
    %5895 = vmatpush1.xpose.msra.mxu0 0.0
    %5896 = vmatprep.subr.mxu0 0.0
    %5897 = vmatpush1.xpose.msra.mxu0 0.0
    %5898 = vmatprep.subr.mxu0 0.0
    %5899 = vmatpush1.xpose.msra.mxu0 0.0
    %5900 = vmatprep.subr.mxu0 0.0
    %5901 = vmatpush1.xpose.msra.mxu0 0.0
    %5902 = vmatprep.mubr.f32.mxu0 0.0
    %5903 = vmatmul.mubr.f32.gmra.mrb[0].mxu0 %v5832
    %v5904 = vpop.f32.mrb[0].mxu0
    %v5905 = vadd.f32 0.0, %v5904
    %v5906 = vpop.f32.mrb[0].mxu0
    %5907 = vdwg.mxu0
    %v5908 = vmul.f32 %v5905, 0.20412415
    %v5909 = vsel %vm5389, %v5908, -inf
    %5910 = vmax.xlane.f32.xlu0 %v5909
    %v5911 = vpop.xlane.xlu0 %5910
    %v5912 = vsub.f32 %v5908, %v5911
    %v5913 = vmul.f32 %v5912, 1.442695
    %v5914 = vpow.pop %v5913
    %v5915 = vsel %vm5389, %v5914, 0.0
    %5916 = vadd.xlane.f32.xlu0 %v5915
    %v5917 = vpop.xlane.xlu0 %5916
    %v5918 = vrcp.pop %v5917
    %v5919 = vmul.f32 %v5914, %v5918
    %5920 = vrot.lane.b32.xlu0 %v5296, 32
    %v5921 = vpop.permute.xlu0 %5920
    %5922 = vrot.lane.b32.xlu0 %v5299, 32
    %v5923 = vpop.permute.xlu0 %5922
    %v5926 = vsel %vm2972, %v5919, 0
    %v5928 = vsel %vm37, %v5923, 0
    %5930 = vmatprep.subr.mxu0 0.0
    %5931 = vmatpush1.msra.mxu0 %v5921
    %5932 = vmatprep.subr.mxu0 0.0
    %5933 = vmatpush1.msra.mxu0 %v5928
    %5934 = vmatprep.subr.mxu0 0.0
    %5935 = vmatpush1.msra.mxu0 0.0
    %5936 = vmatprep.subr.mxu0 0.0
    %5937 = vmatpush1.msra.mxu0 0.0
    %5938 = vmatprep.subr.mxu0 0.0
    %5939 = vmatpush1.msra.mxu0 0.0
    %5940 = vmatprep.subr.mxu0 0.0
    %5941 = vmatpush1.msra.mxu0 0.0
    %5942 = vmatprep.subr.mxu0 0.0
    %5943 = vmatpush1.msra.mxu0 0.0
    %5944 = vmatprep.subr.mxu0 0.0
    %5945 = vmatpush1.msra.mxu0 0.0
    %5946 = vmatprep.subr.mxu0 0.0
    %5947 = vmatpush1.msra.mxu0 0.0
    %5948 = vmatprep.subr.mxu0 0.0
    %5949 = vmatpush1.msra.mxu0 0.0
    %5950 = vmatprep.subr.mxu0 0.0
    %5951 = vmatpush1.msra.mxu0 0.0
    %5952 = vmatprep.subr.mxu0 0.0
    %5953 = vmatpush1.msra.mxu0 0.0
    %5954 = vmatprep.subr.mxu0 0.0
    %5955 = vmatpush1.msra.mxu0 0.0
    %5956 = vmatprep.subr.mxu0 0.0
    %5957 = vmatpush1.msra.mxu0 0.0
    %5958 = vmatprep.subr.mxu0 0.0
    %5959 = vmatpush1.msra.mxu0 0.0
    %5960 = vmatprep.subr.mxu0 0.0
    %5961 = vmatpush1.msra.mxu0 0.0
    %5962 = vmatprep.subr.mxu0 0.0
    %5963 = vmatpush1.msra.mxu0 0.0
    %5964 = vmatprep.subr.mxu0 0.0
    %5965 = vmatpush1.msra.mxu0 0.0
    %5966 = vmatprep.subr.mxu0 0.0
    %5967 = vmatpush1.msra.mxu0 0.0
    %5968 = vmatprep.subr.mxu0 0.0
    %5969 = vmatpush1.msra.mxu0 0.0
    %5970 = vmatprep.subr.mxu0 0.0
    %5971 = vmatpush1.msra.mxu0 0.0
    %5972 = vmatprep.subr.mxu0 0.0
    %5973 = vmatpush1.msra.mxu0 0.0
    %5974 = vmatprep.subr.mxu0 0.0
    %5975 = vmatpush1.msra.mxu0 0.0
    %5976 = vmatprep.subr.mxu0 0.0
    %5977 = vmatpush1.msra.mxu0 0.0
    %5978 = vmatprep.subr.mxu0 0.0
    %5979 = vmatpush1.msra.mxu0 0.0
    %5980 = vmatprep.subr.mxu0 0.0
    %5981 = vmatpush1.msra.mxu0 0.0
    %5982 = vmatprep.subr.mxu0 0.0
    %5983 = vmatpush1.msra.mxu0 0.0
    %5984 = vmatprep.subr.mxu0 0.0
    %5985 = vmatpush1.msra.mxu0 0.0
    %5986 = vmatprep.subr.mxu0 0.0
    %5987 = vmatpush1.msra.mxu0 0.0
    %5988 = vmatprep.subr.mxu0 0.0
    %5989 = vmatpush1.msra.mxu0 0.0
    %5990 = vmatprep.subr.mxu0 0.0
    %5991 = vmatpush1.msra.mxu0 0.0
    %5992 = vmatprep.subr.mxu0 0.0
    %5993 = vmatpush1.msra.mxu0 0.0
    %5994 = vmatprep.mubr.f32.mxu0 0.0
    %5995 = vmatmul.mubr.f32.gmra.mrb[0].mxu0 %v5926
    %v5996 = vpop.f32.mrb[0].mxu0
    %v5997 = vadd.f32 0.0, %v5996
    %v5998 = vpop.f32.mrb[0].mxu0
    %5999 = vdwg.mxu0
    %6001 = vrot.lane.b32.xlu0 %v5649, 32
    %v6002 = vpop.permute.xlu0 %6001
    %6005 = vrot.lane.b32.xlu0 %v5823, 64
    %v6006 = vpop.permute.xlu0 %6005
    %6009 = vrot.lane.b32.xlu0 %v5997, 96
    %v6010 = vpop.permute.xlu0 %6009
    %v6012 = vsel %vm559, %v5474, %v6002
    %v6013 = vsel %vm1402, %v6012, %v6006
    %v6014 = vsel %vm1405, %v6013, %v6010
    %v6015 = vrot.slane %v5060, 1
    %v6017 = vrot.slane %v5178, 2
    %v6018 = vrot.slane %v5183, 2
    %v6019 = vsel %vm1409, %v6017, %v6018
    %v6020 = vsel %vm559, %v6015, 0
    %v6022 = vsel %vm559, %v6019, 0
    %v6024 = vsel %vm559, %v6018, 0
    %6026 = vmatprep.subr.mxu0 0.0
    %6027 = vmatpush1.xpose.msra.mxu0 %v6022
    %6028 = vmatprep.subr.mxu0 0.0
    %6029 = vmatpush1.xpose.msra.mxu0 %v6024
    %6030 = vmatprep.subr.mxu0 0.0
    %6031 = vmatpush1.xpose.msra.mxu0 0.0
    %6032 = vmatprep.subr.mxu0 0.0
    %6033 = vmatpush1.xpose.msra.mxu0 0.0
    %6034 = vmatprep.subr.mxu0 0.0
    %6035 = vmatpush1.xpose.msra.mxu0 0.0
    %6036 = vmatprep.subr.mxu0 0.0
    %6037 = vmatpush1.xpose.msra.mxu0 0.0
    %6038 = vmatprep.subr.mxu0 0.0
    %6039 = vmatpush1.xpose.msra.mxu0 0.0
    %6040 = vmatprep.subr.mxu0 0.0
    %6041 = vmatpush1.xpose.msra.mxu0 0.0
    %6042 = vmatprep.subr.mxu0 0.0
    %6043 = vmatpush1.xpose.msra.mxu0 0.0
    %6044 = vmatprep.subr.mxu0 0.0
    %6045 = vmatpush1.xpose.msra.mxu0 0.0
    %6046 = vmatprep.subr.mxu0 0.0
    %6047 = vmatpush1.xpose.msra.mxu0 0.0
    %6048 = vmatprep.subr.mxu0 0.0
    %6049 = vmatpush1.xpose.msra.mxu0 0.0
    %6050 = vmatprep.subr.mxu0 0.0
    %6051 = vmatpush1.xpose.msra.mxu0 0.0
    %6052 = vmatprep.subr.mxu0 0.0
    %6053 = vmatpush1.xpose.msra.mxu0 0.0
    %6054 = vmatprep.subr.mxu0 0.0
    %6055 = vmatpush1.xpose.msra.mxu0 0.0
    %6056 = vmatprep.subr.mxu0 0.0
    %6057 = vmatpush1.xpose.msra.mxu0 0.0
    %6058 = vmatprep.subr.mxu0 0.0
    %6059 = vmatpush1.xpose.msra.mxu0 0.0
    %6060 = vmatprep.subr.mxu0 0.0
    %6061 = vmatpush1.xpose.msra.mxu0 0.0
    %6062 = vmatprep.subr.mxu0 0.0
    %6063 = vmatpush1.xpose.msra.mxu0 0.0
    %6064 = vmatprep.subr.mxu0 0.0
    %6065 = vmatpush1.xpose.msra.mxu0 0.0
    %6066 = vmatprep.subr.mxu0 0.0
    %6067 = vmatpush1.xpose.msra.mxu0 0.0
    %6068 = vmatprep.subr.mxu0 0.0
    %6069 = vmatpush1.xpose.msra.mxu0 0.0
    %6070 = vmatprep.subr.mxu0 0.0
    %6071 = vmatpush1.xpose.msra.mxu0 0.0
    %6072 = vmatprep.subr.mxu0 0.0
    %6073 = vmatpush1.xpose.msra.mxu0 0.0
    %6074 = vmatprep.subr.mxu0 0.0
    %6075 = vmatpush1.xpose.msra.mxu0 0.0
    %6076 = vmatprep.subr.mxu0 0.0
    %6077 = vmatpush1.xpose.msra.mxu0 0.0
    %6078 = vmatprep.subr.mxu0 0.0
    %6079 = vmatpush1.xpose.msra.mxu0 0.0
    %6080 = vmatprep.subr.mxu0 0.0
    %6081 = vmatpush1.xpose.msra.mxu0 0.0
    %6082 = vmatprep.subr.mxu0 0.0
    %6083 = vmatpush1.xpose.msra.mxu0 0.0
    %6084 = vmatprep.subr.mxu0 0.0
    %6085 = vmatpush1.xpose.msra.mxu0 0.0
    %6086 = vmatprep.subr.mxu0 0.0
    %6087 = vmatpush1.xpose.msra.mxu0 0.0
    %6088 = vmatprep.subr.mxu0 0.0
    %6089 = vmatpush1.xpose.msra.mxu0 0.0
    %6090 = vmatprep.mubr.f32.mxu0 0.0
    %6091 = vmatmul.mubr.f32.gmra.mrb[0].mxu0 %v6020
    %v6092 = vpop.f32.mrb[0].mxu0
    %v6093 = vadd.f32 0.0, %v6092
    %v6094 = vpop.f32.mrb[0].mxu0
    %6095 = vdwg.mxu0
    %v6096 = vmul.f32 %v6093, 0.20412415
    %v6097 = vsel %vm5389, %v6096, -inf
    %6098 = vmax.xlane.f32.xlu0 %v6097
    %v6099 = vpop.xlane.xlu0 %6098
    %v6100 = vsub.f32 %v6096, %v6099
    %v6101 = vmul.f32 %v6100, 1.442695
    %v6102 = vpow.pop %v6101
    %v6103 = vsel %vm5389, %v6102, 0.0
    %6104 = vadd.xlane.f32.xlu0 %v6103
    %v6105 = vpop.xlane.xlu0 %6104
    %v6106 = vrcp.pop %v6105
    %v6107 = vmul.f32 %v6102, %v6106
    %v6109 = vrot.slane %v5299, 2
    %v6110 = vrot.slane %v5304, 2
    %v6111 = vsel %vm1409, %v6109, %v6110
    %v6114 = vsel %vm2972, %v6107, 0
    %v6116 = vsel %vm37, %v6110, 0
    %6118 = vmatprep.subr.mxu0 0.0
    %6119 = vmatpush1.msra.mxu0 %v6111
    %6120 = vmatprep.subr.mxu0 0.0
    %6121 = vmatpush1.msra.mxu0 %v6116
    %6122 = vmatprep.subr.mxu0 0.0
    %6123 = vmatpush1.msra.mxu0 0.0
    %6124 = vmatprep.subr.mxu0 0.0
    %6125 = vmatpush1.msra.mxu0 0.0
    %6126 = vmatprep.subr.mxu0 0.0
    %6127 = vmatpush1.msra.mxu0 0.0
    %6128 = vmatprep.subr.mxu0 0.0
    %6129 = vmatpush1.msra.mxu0 0.0
    %6130 = vmatprep.subr.mxu0 0.0
    %6131 = vmatpush1.msra.mxu0 0.0
    %6132 = vmatprep.subr.mxu0 0.0
    %6133 = vmatpush1.msra.mxu0 0.0
    %6134 = vmatprep.subr.mxu0 0.0
    %6135 = vmatpush1.msra.mxu0 0.0
    %6136 = vmatprep.subr.mxu0 0.0
    %6137 = vmatpush1.msra.mxu0 0.0
    %6138 = vmatprep.subr.mxu0 0.0
    %6139 = vmatpush1.msra.mxu0 0.0
    %6140 = vmatprep.subr.mxu0 0.0
    %6141 = vmatpush1.msra.mxu0 0.0
    %6142 = vmatprep.subr.mxu0 0.0
    %6143 = vmatpush1.msra.mxu0 0.0
    %6144 = vmatprep.subr.mxu0 0.0
    %6145 = vmatpush1.msra.mxu0 0.0
    %6146 = vmatprep.subr.mxu0 0.0
    %6147 = vmatpush1.msra.mxu0 0.0
    %6148 = vmatprep.subr.mxu0 0.0
    %6149 = vmatpush1.msra.mxu0 0.0
    %6150 = vmatprep.subr.mxu0 0.0
    %6151 = vmatpush1.msra.mxu0 0.0
    %6152 = vmatprep.subr.mxu0 0.0
    %6153 = vmatpush1.msra.mxu0 0.0
    %6154 = vmatprep.subr.mxu0 0.0
    %6155 = vmatpush1.msra.mxu0 0.0
    %6156 = vmatprep.subr.mxu0 0.0
    %6157 = vmatpush1.msra.mxu0 0.0
    %6158 = vmatprep.subr.mxu0 0.0
    %6159 = vmatpush1.msra.mxu0 0.0
    %6160 = vmatprep.subr.mxu0 0.0
    %6161 = vmatpush1.msra.mxu0 0.0
    %6162 = vmatprep.subr.mxu0 0.0
    %6163 = vmatpush1.msra.mxu0 0.0
    %6164 = vmatprep.subr.mxu0 0.0
    %6165 = vmatpush1.msra.mxu0 0.0
    %6166 = vmatprep.subr.mxu0 0.0
    %6167 = vmatpush1.msra.mxu0 0.0
    %6168 = vmatprep.subr.mxu0 0.0
    %6169 = vmatpush1.msra.mxu0 0.0
    %6170 = vmatprep.subr.mxu0 0.0
    %6171 = vmatpush1.msra.mxu0 0.0
    %6172 = vmatprep.subr.mxu0 0.0
    %6173 = vmatpush1.msra.mxu0 0.0
    %6174 = vmatprep.subr.mxu0 0.0
    %6175 = vmatpush1.msra.mxu0 0.0
    %6176 = vmatprep.subr.mxu0 0.0
    %6177 = vmatpush1.msra.mxu0 0.0
    %6178 = vmatprep.subr.mxu0 0.0
    %6179 = vmatpush1.msra.mxu0 0.0
    %6180 = vmatprep.subr.mxu0 0.0
    %6181 = vmatpush1.msra.mxu0 0.0
    %6182 = vmatprep.mubr.f32.mxu0 0.0
    %6183 = vmatmul.mubr.f32.gmra.mrb[0].mxu0 %v6114
    %v6184 = vpop.f32.mrb[0].mxu0
    %v6185 = vadd.f32 0.0, %v6184
    %v6186 = vpop.f32.mrb[0].mxu0
    %6187 = vdwg.mxu0
    %6188 = vrot.lane.b32.xlu0 %v6015, 96
    %v6189 = vpop.permute.xlu0 %6188
    %6190 = vrot.lane.b32.xlu0 %v6019, 96
    %v6191 = vpop.permute.xlu0 %6190
    %6192 = vrot.lane.b32.xlu0 %v6018, 96
    %v6193 = vpop.permute.xlu0 %6192
    %v6194 = vsel %vm559, %v6189, 0
    %v6196 = vsel %vm559, %v6191, 0
    %v6198 = vsel %vm559, %v6193, 0
    %6200 = vmatprep.subr.mxu0 0.0
    %6201 = vmatpush1.xpose.msra.mxu0 %v6196
    %6202 = vmatprep.subr.mxu0 0.0
    %6203 = vmatpush1.xpose.msra.mxu0 %v6198
    %6204 = vmatprep.subr.mxu0 0.0
    %6205 = vmatpush1.xpose.msra.mxu0 0.0
    %6206 = vmatprep.subr.mxu0 0.0
    %6207 = vmatpush1.xpose.msra.mxu0 0.0
    %6208 = vmatprep.subr.mxu0 0.0
    %6209 = vmatpush1.xpose.msra.mxu0 0.0
    %6210 = vmatprep.subr.mxu0 0.0
    %6211 = vmatpush1.xpose.msra.mxu0 0.0
    %6212 = vmatprep.subr.mxu0 0.0
    %6213 = vmatpush1.xpose.msra.mxu0 0.0
    %6214 = vmatprep.subr.mxu0 0.0
    %6215 = vmatpush1.xpose.msra.mxu0 0.0
    %6216 = vmatprep.subr.mxu0 0.0
    %6217 = vmatpush1.xpose.msra.mxu0 0.0
    %6218 = vmatprep.subr.mxu0 0.0
    %6219 = vmatpush1.xpose.msra.mxu0 0.0
    %6220 = vmatprep.subr.mxu0 0.0
    %6221 = vmatpush1.xpose.msra.mxu0 0.0
    %6222 = vmatprep.subr.mxu0 0.0
    %6223 = vmatpush1.xpose.msra.mxu0 0.0
    %6224 = vmatprep.subr.mxu0 0.0
    %6225 = vmatpush1.xpose.msra.mxu0 0.0
    %6226 = vmatprep.subr.mxu0 0.0
    %6227 = vmatpush1.xpose.msra.mxu0 0.0
    %6228 = vmatprep.subr.mxu0 0.0
    %6229 = vmatpush1.xpose.msra.mxu0 0.0
    %6230 = vmatprep.subr.mxu0 0.0
    %6231 = vmatpush1.xpose.msra.mxu0 0.0
    %6232 = vmatprep.subr.mxu0 0.0
    %6233 = vmatpush1.xpose.msra.mxu0 0.0
    %6234 = vmatprep.subr.mxu0 0.0
    %6235 = vmatpush1.xpose.msra.mxu0 0.0
    %6236 = vmatprep.subr.mxu0 0.0
    %6237 = vmatpush1.xpose.msra.mxu0 0.0
    %6238 = vmatprep.subr.mxu0 0.0
    %6239 = vmatpush1.xpose.msra.mxu0 0.0
    %6240 = vmatprep.subr.mxu0 0.0
    %6241 = vmatpush1.xpose.msra.mxu0 0.0
    %6242 = vmatprep.subr.mxu0 0.0
    %6243 = vmatpush1.xpose.msra.mxu0 0.0
    %6244 = vmatprep.subr.mxu0 0.0
    %6245 = vmatpush1.xpose.msra.mxu0 0.0
    %6246 = vmatprep.subr.mxu0 0.0
    %6247 = vmatpush1.xpose.msra.mxu0 0.0
    %6248 = vmatprep.subr.mxu0 0.0
    %6249 = vmatpush1.xpose.msra.mxu0 0.0
    %6250 = vmatprep.subr.mxu0 0.0
    %6251 = vmatpush1.xpose.msra.mxu0 0.0
    %6252 = vmatprep.subr.mxu0 0.0
    %6253 = vmatpush1.xpose.msra.mxu0 0.0
    %6254 = vmatprep.subr.mxu0 0.0
    %6255 = vmatpush1.xpose.msra.mxu0 0.0
    %6256 = vmatprep.subr.mxu0 0.0
    %6257 = vmatpush1.xpose.msra.mxu0 0.0
    %6258 = vmatprep.subr.mxu0 0.0
    %6259 = vmatpush1.xpose.msra.mxu0 0.0
    %6260 = vmatprep.subr.mxu0 0.0
    %6261 = vmatpush1.xpose.msra.mxu0 0.0
    %6262 = vmatprep.subr.mxu0 0.0
    %6263 = vmatpush1.xpose.msra.mxu0 0.0
    %6264 = vmatprep.mubr.f32.mxu0 0.0
    %6265 = vmatmul.mubr.f32.gmra.mrb[0].mxu0 %v6194
    %v6266 = vpop.f32.mrb[0].mxu0
    %v6267 = vadd.f32 0.0, %v6266
    %v6268 = vpop.f32.mrb[0].mxu0
    %6269 = vdwg.mxu0
    %v6270 = vmul.f32 %v6267, 0.20412415
    %v6271 = vsel %vm5389, %v6270, -inf
    %6272 = vmax.xlane.f32.xlu0 %v6271
    %v6273 = vpop.xlane.xlu0 %6272
    %v6274 = vsub.f32 %v6270, %v6273
    %v6275 = vmul.f32 %v6274, 1.442695
    %v6276 = vpow.pop %v6275
    %v6277 = vsel %vm5389, %v6276, 0.0
    %6278 = vadd.xlane.f32.xlu0 %v6277
    %v6279 = vpop.xlane.xlu0 %6278
    %v6280 = vrcp.pop %v6279
    %v6281 = vmul.f32 %v6276, %v6280
    %6282 = vrot.lane.b32.xlu0 %v6111, 96
    %v6283 = vpop.permute.xlu0 %6282
    %6284 = vrot.lane.b32.xlu0 %v6110, 96
    %v6285 = vpop.permute.xlu0 %6284
    %v6288 = vsel %vm2972, %v6281, 0
    %v6290 = vsel %vm37, %v6285, 0
    %6292 = vmatprep.subr.mxu0 0.0
    %6293 = vmatpush1.msra.mxu0 %v6283
    %6294 = vmatprep.subr.mxu0 0.0
    %6295 = vmatpush1.msra.mxu0 %v6290
    %6296 = vmatprep.subr.mxu0 0.0
    %6297 = vmatpush1.msra.mxu0 0.0
    %6298 = vmatprep.subr.mxu0 0.0
    %6299 = vmatpush1.msra.mxu0 0.0
    %6300 = vmatprep.subr.mxu0 0.0
    %6301 = vmatpush1.msra.mxu0 0.0
    %6302 = vmatprep.subr.mxu0 0.0
    %6303 = vmatpush1.msra.mxu0 0.0
    %6304 = vmatprep.subr.mxu0 0.0
    %6305 = vmatpush1.msra.mxu0 0.0
    %6306 = vmatprep.subr.mxu0 0.0
    %6307 = vmatpush1.msra.mxu0 0.0
    %6308 = vmatprep.subr.mxu0 0.0
    %6309 = vmatpush1.msra.mxu0 0.0
    %6310 = vmatprep.subr.mxu0 0.0
    %6311 = vmatpush1.msra.mxu0 0.0
    %6312 = vmatprep.subr.mxu0 0.0
    %6313 = vmatpush1.msra.mxu0 0.0
    %6314 = vmatprep.subr.mxu0 0.0
    %6315 = vmatpush1.msra.mxu0 0.0
    %6316 = vmatprep.subr.mxu0 0.0
    %6317 = vmatpush1.msra.mxu0 0.0
    %6318 = vmatprep.subr.mxu0 0.0
    %6319 = vmatpush1.msra.mxu0 0.0
    %6320 = vmatprep.subr.mxu0 0.0
    %6321 = vmatpush1.msra.mxu0 0.0
    %6322 = vmatprep.subr.mxu0 0.0
    %6323 = vmatpush1.msra.mxu0 0.0
    %6324 = vmatprep.subr.mxu0 0.0
    %6325 = vmatpush1.msra.mxu0 0.0
    %6326 = vmatprep.subr.mxu0 0.0
    %6327 = vmatpush1.msra.mxu0 0.0
    %6328 = vmatprep.subr.mxu0 0.0
    %6329 = vmatpush1.msra.mxu0 0.0
    %6330 = vmatprep.subr.mxu0 0.0
    %6331 = vmatpush1.msra.mxu0 0.0
    %6332 = vmatprep.subr.mxu0 0.0
    %6333 = vmatpush1.msra.mxu0 0.0
    %6334 = vmatprep.subr.mxu0 0.0
    %6335 = vmatpush1.msra.mxu0 0.0
    %6336 = vmatprep.subr.mxu0 0.0
    %6337 = vmatpush1.msra.mxu0 0.0
    %6338 = vmatprep.subr.mxu0 0.0
    %6339 = vmatpush1.msra.mxu0 0.0
    %6340 = vmatprep.subr.mxu0 0.0
    %6341 = vmatpush1.msra.mxu0 0.0
    %6342 = vmatprep.subr.mxu0 0.0
    %6343 = vmatpush1.msra.mxu0 0.0
    %6344 = vmatprep.subr.mxu0 0.0
    %6345 = vmatpush1.msra.mxu0 0.0
    %6346 = vmatprep.subr.mxu0 0.0
    %6347 = vmatpush1.msra.mxu0 0.0
    %6348 = vmatprep.subr.mxu0 0.0
    %6349 = vmatpush1.msra.mxu0 0.0
    %6350 = vmatprep.subr.mxu0 0.0
    %6351 = vmatpush1.msra.mxu0 0.0
    %6352 = vmatprep.subr.mxu0 0.0
    %6353 = vmatpush1.msra.mxu0 0.0
    %6354 = vmatprep.subr.mxu0 0.0
    %6355 = vmatpush1.msra.mxu0 0.0
    %6356 = vmatprep.mubr.f32.mxu0 0.0
    %6357 = vmatmul.mubr.f32.gmra.mrb[0].mxu0 %v6288
    %v6358 = vpop.f32.mrb[0].mxu0
    %v6359 = vadd.f32 0.0, %v6358
    %v6360 = vpop.f32.mrb[0].mxu0
    %6361 = vdwg.mxu0
    %6362 = vrot.lane.b32.xlu0 %v6015, 64
    %v6363 = vpop.permute.xlu0 %6362
    %6364 = vrot.lane.b32.xlu0 %v6019, 64
    %v6365 = vpop.permute.xlu0 %6364
    %6366 = vrot.lane.b32.xlu0 %v6018, 64
    %v6367 = vpop.permute.xlu0 %6366
    %v6368 = vsel %vm559, %v6363, 0
    %v6370 = vsel %vm559, %v6365, 0
    %v6372 = vsel %vm559, %v6367, 0
    %6374 = vmatprep.subr.mxu0 0.0
    %6375 = vmatpush1.xpose.msra.mxu0 %v6370
    %6376 = vmatprep.subr.mxu0 0.0
    %6377 = vmatpush1.xpose.msra.mxu0 %v6372
    %6378 = vmatprep.subr.mxu0 0.0
    %6379 = vmatpush1.xpose.msra.mxu0 0.0
    %6380 = vmatprep.subr.mxu0 0.0
    %6381 = vmatpush1.xpose.msra.mxu0 0.0
    %6382 = vmatprep.subr.mxu0 0.0
    %6383 = vmatpush1.xpose.msra.mxu0 0.0
    %6384 = vmatprep.subr.mxu0 0.0
    %6385 = vmatpush1.xpose.msra.mxu0 0.0
    %6386 = vmatprep.subr.mxu0 0.0
    %6387 = vmatpush1.xpose.msra.mxu0 0.0
    %6388 = vmatprep.subr.mxu0 0.0
    %6389 = vmatpush1.xpose.msra.mxu0 0.0
    %6390 = vmatprep.subr.mxu0 0.0
    %6391 = vmatpush1.xpose.msra.mxu0 0.0
    %6392 = vmatprep.subr.mxu0 0.0
    %6393 = vmatpush1.xpose.msra.mxu0 0.0
    %6394 = vmatprep.subr.mxu0 0.0
    %6395 = vmatpush1.xpose.msra.mxu0 0.0
    %6396 = vmatprep.subr.mxu0 0.0
    %6397 = vmatpush1.xpose.msra.mxu0 0.0
    %6398 = vmatprep.subr.mxu0 0.0
    %6399 = vmatpush1.xpose.msra.mxu0 0.0
    %6400 = vmatprep.subr.mxu0 0.0
    %6401 = vmatpush1.xpose.msra.mxu0 0.0
    %6402 = vmatprep.subr.mxu0 0.0
    %6403 = vmatpush1.xpose.msra.mxu0 0.0
    %6404 = vmatprep.subr.mxu0 0.0
    %6405 = vmatpush1.xpose.msra.mxu0 0.0
    %6406 = vmatprep.subr.mxu0 0.0
    %6407 = vmatpush1.xpose.msra.mxu0 0.0
    %6408 = vmatprep.subr.mxu0 0.0
    %6409 = vmatpush1.xpose.msra.mxu0 0.0
    %6410 = vmatprep.subr.mxu0 0.0
    %6411 = vmatpush1.xpose.msra.mxu0 0.0
    %6412 = vmatprep.subr.mxu0 0.0
    %6413 = vmatpush1.xpose.msra.mxu0 0.0
    %6414 = vmatprep.subr.mxu0 0.0
    %6415 = vmatpush1.xpose.msra.mxu0 0.0
    %6416 = vmatprep.subr.mxu0 0.0
    %6417 = vmatpush1.xpose.msra.mxu0 0.0
    %6418 = vmatprep.subr.mxu0 0.0
    %6419 = vmatpush1.xpose.msra.mxu0 0.0
    %6420 = vmatprep.subr.mxu0 0.0
    %6421 = vmatpush1.xpose.msra.mxu0 0.0
    %6422 = vmatprep.subr.mxu0 0.0
    %6423 = vmatpush1.xpose.msra.mxu0 0.0
    %6424 = vmatprep.subr.mxu0 0.0
    %6425 = vmatpush1.xpose.msra.mxu0 0.0
    %6426 = vmatprep.subr.mxu0 0.0
    %6427 = vmatpush1.xpose.msra.mxu0 0.0
    %6428 = vmatprep.subr.mxu0 0.0
    %6429 = vmatpush1.xpose.msra.mxu0 0.0
    %6430 = vmatprep.subr.mxu0 0.0
    %6431 = vmatpush1.xpose.msra.mxu0 0.0
    %6432 = vmatprep.subr.mxu0 0.0
    %6433 = vmatpush1.xpose.msra.mxu0 0.0
    %6434 = vmatprep.subr.mxu0 0.0
    %6435 = vmatpush1.xpose.msra.mxu0 0.0
    %6436 = vmatprep.subr.mxu0 0.0
    %6437 = vmatpush1.xpose.msra.mxu0 0.0
    %6438 = vmatprep.mubr.f32.mxu0 0.0
    %6439 = vmatmul.mubr.f32.gmra.mrb[0].mxu0 %v6368
    %v6440 = vpop.f32.mrb[0].mxu0
    %v6441 = vadd.f32 0.0, %v6440
    %v6442 = vpop.f32.mrb[0].mxu0
    %6443 = vdwg.mxu0
    %v6444 = vmul.f32 %v6441, 0.20412415
    %v6445 = vsel %vm5389, %v6444, -inf
    %6446 = vmax.xlane.f32.xlu0 %v6445
    %v6447 = vpop.xlane.xlu0 %6446
    %v6448 = vsub.f32 %v6444, %v6447
    %v6449 = vmul.f32 %v6448, 1.442695
    %v6450 = vpow.pop %v6449
    %v6451 = vsel %vm5389, %v6450, 0.0
    %6452 = vadd.xlane.f32.xlu0 %v6451
    %v6453 = vpop.xlane.xlu0 %6452
    %v6454 = vrcp.pop %v6453
    %v6455 = vmul.f32 %v6450, %v6454
    %6456 = vrot.lane.b32.xlu0 %v6111, 64
    %v6457 = vpop.permute.xlu0 %6456
    %6458 = vrot.lane.b32.xlu0 %v6110, 64
    %v6459 = vpop.permute.xlu0 %6458
    %v6462 = vsel %vm2972, %v6455, 0
    %v6464 = vsel %vm37, %v6459, 0
    %6466 = vmatprep.subr.mxu0 0.0
    %6467 = vmatpush1.msra.mxu0 %v6457
    %6468 = vmatprep.subr.mxu0 0.0
    %6469 = vmatpush1.msra.mxu0 %v6464
    %6470 = vmatprep.subr.mxu0 0.0
    %6471 = vmatpush1.msra.mxu0 0.0
    %6472 = vmatprep.subr.mxu0 0.0
    %6473 = vmatpush1.msra.mxu0 0.0
    %6474 = vmatprep.subr.mxu0 0.0
    %6475 = vmatpush1.msra.mxu0 0.0
    %6476 = vmatprep.subr.mxu0 0.0
    %6477 = vmatpush1.msra.mxu0 0.0
    %6478 = vmatprep.subr.mxu0 0.0
    %6479 = vmatpush1.msra.mxu0 0.0
    %6480 = vmatprep.subr.mxu0 0.0
    %6481 = vmatpush1.msra.mxu0 0.0
    %6482 = vmatprep.subr.mxu0 0.0
    %6483 = vmatpush1.msra.mxu0 0.0
    %6484 = vmatprep.subr.mxu0 0.0
    %6485 = vmatpush1.msra.mxu0 0.0
    %6486 = vmatprep.subr.mxu0 0.0
    %6487 = vmatpush1.msra.mxu0 0.0
    %6488 = vmatprep.subr.mxu0 0.0
    %6489 = vmatpush1.msra.mxu0 0.0
    %6490 = vmatprep.subr.mxu0 0.0
    %6491 = vmatpush1.msra.mxu0 0.0
    %6492 = vmatprep.subr.mxu0 0.0
    %6493 = vmatpush1.msra.mxu0 0.0
    %6494 = vmatprep.subr.mxu0 0.0
    %6495 = vmatpush1.msra.mxu0 0.0
    %6496 = vmatprep.subr.mxu0 0.0
    %6497 = vmatpush1.msra.mxu0 0.0
    %6498 = vmatprep.subr.mxu0 0.0
    %6499 = vmatpush1.msra.mxu0 0.0
    %6500 = vmatprep.subr.mxu0 0.0
    %6501 = vmatpush1.msra.mxu0 0.0
    %6502 = vmatprep.subr.mxu0 0.0
    %6503 = vmatpush1.msra.mxu0 0.0
    %6504 = vmatprep.subr.mxu0 0.0
    %6505 = vmatpush1.msra.mxu0 0.0
    %6506 = vmatprep.subr.mxu0 0.0
    %6507 = vmatpush1.msra.mxu0 0.0
    %6508 = vmatprep.subr.mxu0 0.0
    %6509 = vmatpush1.msra.mxu0 0.0
    %6510 = vmatprep.subr.mxu0 0.0
    %6511 = vmatpush1.msra.mxu0 0.0
    %6512 = vmatprep.subr.mxu0 0.0
    %6513 = vmatpush1.msra.mxu0 0.0
    %6514 = vmatprep.subr.mxu0 0.0
    %6515 = vmatpush1.msra.mxu0 0.0
    %6516 = vmatprep.subr.mxu0 0.0
    %6517 = vmatpush1.msra.mxu0 0.0
    %6518 = vmatprep.subr.mxu0 0.0
    %6519 = vmatpush1.msra.mxu0 0.0
    %6520 = vmatprep.subr.mxu0 0.0
    %6521 = vmatpush1.msra.mxu0 0.0
    %6522 = vmatprep.subr.mxu0 0.0
    %6523 = vmatpush1.msra.mxu0 0.0
    %6524 = vmatprep.subr.mxu0 0.0
    %6525 = vmatpush1.msra.mxu0 0.0
    %6526 = vmatprep.subr.mxu0 0.0
    %6527 = vmatpush1.msra.mxu0 0.0
    %6528 = vmatprep.subr.mxu0 0.0
    %6529 = vmatpush1.msra.mxu0 0.0
    %6530 = vmatprep.mubr.f32.mxu0 0.0
    %6531 = vmatmul.mubr.f32.gmra.mrb[0].mxu0 %v6462
    %v6532 = vpop.f32.mrb[0].mxu0
    %v6533 = vadd.f32 0.0, %v6532
    %v6534 = vpop.f32.mrb[0].mxu0
    %6535 = vdwg.mxu0
    %6536 = vrot.lane.b32.xlu0 %v6015, 32
    %v6537 = vpop.permute.xlu0 %6536
    %6538 = vrot.lane.b32.xlu0 %v6019, 32
    %v6539 = vpop.permute.xlu0 %6538
    %6540 = vrot.lane.b32.xlu0 %v6018, 32
    %v6541 = vpop.permute.xlu0 %6540
    %v6542 = vsel %vm559, %v6537, 0
    %v6544 = vsel %vm559, %v6539, 0
    %v6546 = vsel %vm559, %v6541, 0
    %6548 = vmatprep.subr.mxu0 0.0
    %6549 = vmatpush1.xpose.msra.mxu0 %v6544
    %6550 = vmatprep.subr.mxu0 0.0
    %6551 = vmatpush1.xpose.msra.mxu0 %v6546
    %6552 = vmatprep.subr.mxu0 0.0
    %6553 = vmatpush1.xpose.msra.mxu0 0.0
    %6554 = vmatprep.subr.mxu0 0.0
    %6555 = vmatpush1.xpose.msra.mxu0 0.0
    %6556 = vmatprep.subr.mxu0 0.0
    %6557 = vmatpush1.xpose.msra.mxu0 0.0
    %6558 = vmatprep.subr.mxu0 0.0
    %6559 = vmatpush1.xpose.msra.mxu0 0.0
    %6560 = vmatprep.subr.mxu0 0.0
    %6561 = vmatpush1.xpose.msra.mxu0 0.0
    %6562 = vmatprep.subr.mxu0 0.0
    %6563 = vmatpush1.xpose.msra.mxu0 0.0
    %6564 = vmatprep.subr.mxu0 0.0
    %6565 = vmatpush1.xpose.msra.mxu0 0.0
    %6566 = vmatprep.subr.mxu0 0.0
    %6567 = vmatpush1.xpose.msra.mxu0 0.0
    %6568 = vmatprep.subr.mxu0 0.0
    %6569 = vmatpush1.xpose.msra.mxu0 0.0
    %6570 = vmatprep.subr.mxu0 0.0
    %6571 = vmatpush1.xpose.msra.mxu0 0.0
    %6572 = vmatprep.subr.mxu0 0.0
    %6573 = vmatpush1.xpose.msra.mxu0 0.0
    %6574 = vmatprep.subr.mxu0 0.0
    %6575 = vmatpush1.xpose.msra.mxu0 0.0
    %6576 = vmatprep.subr.mxu0 0.0
    %6577 = vmatpush1.xpose.msra.mxu0 0.0
    %6578 = vmatprep.subr.mxu0 0.0
    %6579 = vmatpush1.xpose.msra.mxu0 0.0
    %6580 = vmatprep.subr.mxu0 0.0
    %6581 = vmatpush1.xpose.msra.mxu0 0.0
    %6582 = vmatprep.subr.mxu0 0.0
    %6583 = vmatpush1.xpose.msra.mxu0 0.0
    %6584 = vmatprep.subr.mxu0 0.0
    %6585 = vmatpush1.xpose.msra.mxu0 0.0
    %6586 = vmatprep.subr.mxu0 0.0
    %6587 = vmatpush1.xpose.msra.mxu0 0.0
    %6588 = vmatprep.subr.mxu0 0.0
    %6589 = vmatpush1.xpose.msra.mxu0 0.0
    %6590 = vmatprep.subr.mxu0 0.0
    %6591 = vmatpush1.xpose.msra.mxu0 0.0
    %6592 = vmatprep.subr.mxu0 0.0
    %6593 = vmatpush1.xpose.msra.mxu0 0.0
    %6594 = vmatprep.subr.mxu0 0.0
    %6595 = vmatpush1.xpose.msra.mxu0 0.0
    %6596 = vmatprep.subr.mxu0 0.0
    %6597 = vmatpush1.xpose.msra.mxu0 0.0
    %6598 = vmatprep.subr.mxu0 0.0
    %6599 = vmatpush1.xpose.msra.mxu0 0.0
    %6600 = vmatprep.subr.mxu0 0.0
    %6601 = vmatpush1.xpose.msra.mxu0 0.0
    %6602 = vmatprep.subr.mxu0 0.0
    %6603 = vmatpush1.xpose.msra.mxu0 0.0
    %6604 = vmatprep.subr.mxu0 0.0
    %6605 = vmatpush1.xpose.msra.mxu0 0.0
    %6606 = vmatprep.subr.mxu0 0.0
    %6607 = vmatpush1.xpose.msra.mxu0 0.0
    %6608 = vmatprep.subr.mxu0 0.0
    %6609 = vmatpush1.xpose.msra.mxu0 0.0
    %6610 = vmatprep.subr.mxu0 0.0
    %6611 = vmatpush1.xpose.msra.mxu0 0.0
    %6612 = vmatprep.mubr.f32.mxu0 0.0
    %6613 = vmatmul.mubr.f32.gmra.mrb[0].mxu0 %v6542
    %v6614 = vpop.f32.mrb[0].mxu0
    %v6615 = vadd.f32 0.0, %v6614
    %v6616 = vpop.f32.mrb[0].mxu0
    %6617 = vdwg.mxu0
    %v6618 = vmul.f32 %v6615, 0.20412415
    %v6619 = vsel %vm5389, %v6618, -inf
    %6620 = vmax.xlane.f32.xlu0 %v6619
    %v6621 = vpop.xlane.xlu0 %6620
    %v6622 = vsub.f32 %v6618, %v6621
    %v6623 = vmul.f32 %v6622, 1.442695
    %v6624 = vpow.pop %v6623
    %v6625 = vsel %vm5389, %v6624, 0.0
    %6626 = vadd.xlane.f32.xlu0 %v6625
    %v6627 = vpop.xlane.xlu0 %6626
    %v6628 = vrcp.pop %v6627
    %v6629 = vmul.f32 %v6624, %v6628
    %6630 = vrot.lane.b32.xlu0 %v6111, 32
    %v6631 = vpop.permute.xlu0 %6630
    %6632 = vrot.lane.b32.xlu0 %v6110, 32
    %v6633 = vpop.permute.xlu0 %6632
    %v6636 = vsel %vm2972, %v6629, 0
    %v6638 = vsel %vm37, %v6633, 0
    %6640 = vmatprep.subr.mxu0 0.0
    %6641 = vmatpush1.msra.mxu0 %v6631
    %6642 = vmatprep.subr.mxu0 0.0
    %6643 = vmatpush1.msra.mxu0 %v6638
    %6644 = vmatprep.subr.mxu0 0.0
    %6645 = vmatpush1.msra.mxu0 0.0
    %6646 = vmatprep.subr.mxu0 0.0
    %6647 = vmatpush1.msra.mxu0 0.0
    %6648 = vmatprep.subr.mxu0 0.0
    %6649 = vmatpush1.msra.mxu0 0.0
    %6650 = vmatprep.subr.mxu0 0.0
    %6651 = vmatpush1.msra.mxu0 0.0
    %6652 = vmatprep.subr.mxu0 0.0
    %6653 = vmatpush1.msra.mxu0 0.0
    %6654 = vmatprep.subr.mxu0 0.0
    %6655 = vmatpush1.msra.mxu0 0.0
    %6656 = vmatprep.subr.mxu0 0.0
    %6657 = vmatpush1.msra.mxu0 0.0
    %6658 = vmatprep.subr.mxu0 0.0
    %6659 = vmatpush1.msra.mxu0 0.0
    %6660 = vmatprep.subr.mxu0 0.0
    %6661 = vmatpush1.msra.mxu0 0.0
    %6662 = vmatprep.subr.mxu0 0.0
    %6663 = vmatpush1.msra.mxu0 0.0
    %6664 = vmatprep.subr.mxu0 0.0
    %6665 = vmatpush1.msra.mxu0 0.0
    %6666 = vmatprep.subr.mxu0 0.0
    %6667 = vmatpush1.msra.mxu0 0.0
    %6668 = vmatprep.subr.mxu0 0.0
    %6669 = vmatpush1.msra.mxu0 0.0
    %6670 = vmatprep.subr.mxu0 0.0
    %6671 = vmatpush1.msra.mxu0 0.0
    %6672 = vmatprep.subr.mxu0 0.0
    %6673 = vmatpush1.msra.mxu0 0.0
    %6674 = vmatprep.subr.mxu0 0.0
    %6675 = vmatpush1.msra.mxu0 0.0
    %6676 = vmatprep.subr.mxu0 0.0
    %6677 = vmatpush1.msra.mxu0 0.0
    %6678 = vmatprep.subr.mxu0 0.0
    %6679 = vmatpush1.msra.mxu0 0.0
    %6680 = vmatprep.subr.mxu0 0.0
    %6681 = vmatpush1.msra.mxu0 0.0
    %6682 = vmatprep.subr.mxu0 0.0
    %6683 = vmatpush1.msra.mxu0 0.0
    %6684 = vmatprep.subr.mxu0 0.0
    %6685 = vmatpush1.msra.mxu0 0.0
    %6686 = vmatprep.subr.mxu0 0.0
    %6687 = vmatpush1.msra.mxu0 0.0
    %6688 = vmatprep.subr.mxu0 0.0
    %6689 = vmatpush1.msra.mxu0 0.0
    %6690 = vmatprep.subr.mxu0 0.0
    %6691 = vmatpush1.msra.mxu0 0.0
    %6692 = vmatprep.subr.mxu0 0.0
    %6693 = vmatpush1.msra.mxu0 0.0
    %6694 = vmatprep.subr.mxu0 0.0
    %6695 = vmatpush1.msra.mxu0 0.0
    %6696 = vmatprep.subr.mxu0 0.0
    %6697 = vmatpush1.msra.mxu0 0.0
    %6698 = vmatprep.subr.mxu0 0.0
    %6699 = vmatpush1.msra.mxu0 0.0
    %6700 = vmatprep.subr.mxu0 0.0
    %6701 = vmatpush1.msra.mxu0 0.0
    %6702 = vmatprep.subr.mxu0 0.0
    %6703 = vmatpush1.msra.mxu0 0.0
    %6704 = vmatprep.mubr.f32.mxu0 0.0
    %6705 = vmatmul.mubr.f32.gmra.mrb[0].mxu0 %v6636
    %v6706 = vpop.f32.mrb[0].mxu0
    %v6707 = vadd.f32 0.0, %v6706
    %v6708 = vpop.f32.mrb[0].mxu0
    %6709 = vdwg.mxu0
    %6711 = vrot.lane.b32.xlu0 %v6359, 32
    %v6712 = vpop.permute.xlu0 %6711
    %6715 = vrot.lane.b32.xlu0 %v6533, 64
    %v6716 = vpop.permute.xlu0 %6715
    %6719 = vrot.lane.b32.xlu0 %v6707, 96
    %v6720 = vpop.permute.xlu0 %6719
    %v6722 = vsel %vm559, %v6185, %v6712
    %v6723 = vsel %vm1402, %v6722, %v6716
    %v6724 = vsel %vm1405, %v6723, %v6720
    %v6726 = vrot.slane %v6724, 7
    %v6728 = vsel %vm52, %v6014, %v6726
    %v6729 = vpack.c.bf16 %v6728, %v6728
    %s6730 = scalar_lea.vmem %s4, 960
    %v6731 = vld [vmem:[%s6730] sm:$0xf]
    %v6732 = vld [vmem:[%s6730 + $0x4] sm:$0xf]
    %v6733 = vld [vmem:[%s6730 + $0x8] sm:$0xf]
    %v6734 = vld [vmem:[%s6730 + $0xc] sm:$0xf]
    %v6735 = vld [vmem:[%s6730 + $0x10] sm:$0xf]
    %v6736 = vld [vmem:[%s6730 + $0x14] sm:$0xf]
    %v6737 = vld [vmem:[%s6730 + $0x18] sm:$0xf]
    %v6738 = vld [vmem:[%s6730 + $0x1c] sm:$0xf]
    %v6739 = vld [vmem:[%s6730 + $0x20] sm:$0xf]
    %v6740 = vld [vmem:[%s6730 + $0x24] sm:$0xf]
    %v6741 = vld [vmem:[%s6730 + $0x28] sm:$0xf]
    %v6742 = vld [vmem:[%s6730 + $0x2c] sm:$0xf]
    %v6743 = vld [vmem:[%s6730 + $0x30] sm:$0xf]
    %v6744 = vld [vmem:[%s6730 + $0x34] sm:$0xf]
    %v6745 = vld [vmem:[%s6730 + $0x38] sm:$0xf]
    %v6746 = vld [vmem:[%s6730 + $0x3c] sm:$0xf]
    %s6747 = scalar_lea.vmem %s5, 15
    %v6748 = vld [vmem:[%s6747] sm:$0x1]
    %v6750 = vlaneseq
    %v6751 = vshrl.u32 %v6750, 7
    %v6752 = vsub.s32 0, %v6751
    %v6753 = vrot.slane %v6748, %v6752
    %v6771 = vunpack.c.l.b16 %v6731
    %v6772 = vunpack.c.l.b16 %v6732
    %v6773 = vunpack.c.l.b16 %v6733
    %v6774 = vunpack.c.l.b16 %v6734
    %v6775 = vunpack.c.l.b16 %v6735
    %v6776 = vunpack.c.l.b16 %v6736
    %v6777 = vunpack.c.l.b16 %v6737
    %v6778 = vunpack.c.l.b16 %v6738
    %v6779 = vunpack.c.l.b16 %v6739
    %v6780 = vunpack.c.l.b16 %v6740
    %v6781 = vunpack.c.l.b16 %v6741
    %v6782 = vunpack.c.l.b16 %v6742
    %v6783 = vunpack.c.l.b16 %v6743
    %v6784 = vunpack.c.l.b16 %v6744
    %v6785 = vunpack.c.l.b16 %v6745
    %v6786 = vunpack.c.l.b16 %v6746
    %v6787 = vpack.c.b16 %v6772, %v6771
    %v6788 = vpack.c.b16 %v6774, %v6773
    %v6789 = vpack.c.b16 %v6776, %v6775
    %v6790 = vpack.c.b16 %v6778, %v6777
    %v6791 = vpack.c.b16 %v6780, %v6779
    %v6792 = vpack.c.b16 %v6782, %v6781
    %v6793 = vpack.c.b16 %v6784, %v6783
    %v6794 = vpack.c.b16 %v6786, %v6785
    %6803 = vmatprep.subr.bf16.mxu0 0
    %6804 = vmatpush1.bf16.msra.mxu0 %v6787
    %6805 = vmatprep.subr.bf16.mxu0 0
    %6806 = vmatpush1.bf16.msra.mxu0 %v6788
    %6807 = vmatprep.subr.bf16.mxu0 0
    %6808 = vmatpush1.bf16.msra.mxu0 %v6789
    %6809 = vmatprep.subr.bf16.mxu0 0
    %6810 = vmatpush1.bf16.msra.mxu0 %v6790
    %6811 = vmatprep.subr.bf16.mxu0 0
    %6812 = vmatpush1.bf16.msra.mxu0 %v6791
    %6813 = vmatprep.subr.bf16.mxu0 0
    %6814 = vmatpush1.bf16.msra.mxu0 %v6792
    %6815 = vmatprep.subr.bf16.mxu0 0
    %6816 = vmatpush1.bf16.msra.mxu0 %v6793
    %6817 = vmatprep.subr.bf16.mxu0 0
    %6818 = vmatpush1.bf16.msra.mxu0 %v6794
    %6819 = vmatprep.subr.bf16.mxu0 0
    %6820 = vmatpush1.bf16.msra.mxu0 0
    %6821 = vmatprep.subr.bf16.mxu0 0
    %6822 = vmatpush1.bf16.msra.mxu0 0
    %6823 = vmatprep.subr.bf16.mxu0 0
    %6824 = vmatpush1.bf16.msra.mxu0 0
    %6825 = vmatprep.subr.bf16.mxu0 0
    %6826 = vmatpush1.bf16.msra.mxu0 0
    %6827 = vmatprep.subr.bf16.mxu0 0
    %6828 = vmatpush1.bf16.msra.mxu0 0
    %6829 = vmatprep.subr.bf16.mxu0 0
    %6830 = vmatpush1.bf16.msra.mxu0 0
    %6831 = vmatprep.subr.bf16.mxu0 0
    %6832 = vmatpush1.bf16.msra.mxu0 0
    %6833 = vmatprep.subr.bf16.mxu0 0
    %6834 = vmatpush1.bf16.msra.mxu0 0
    %6835 = vmatprep.mubr.bf16.mxu0 0
    %6836 = vmatmul.mubr.bf16.gmra.mrb[0].mxu0 %v6729
    %v6837 = vpop.f32.mrb[0].mxu0
    %v6838 = vadd.f32 %v6753, %v6837
    %v6839 = vpop.f32.mrb[0].mxu0
    %v6840 = vpop.f32.mrb[0].mxu0
    %v6841 = vpop.f32.mrb[0].mxu0
    %6842 = vdwg.mxu0
    %v6843 = vadd.f32 %v6838, %v53
    %v6844 = vpack.c.bf16 %v6843, %v6843
    %s6845 = scalar_lea.vmem %s4, 1024
    %v6846 = vld [vmem:[%s6845] sm:$0xf]
    %v6847 = vld [vmem:[%s6845 + $0x4] sm:$0xf]
    %v6848 = vld [vmem:[%s6845 + $0x8] sm:$0xf]
    %v6849 = vld [vmem:[%s6845 + $0xc] sm:$0xf]
    %v6850 = vld [vmem:[%s6845 + $0x10] sm:$0xf]
    %v6851 = vld [vmem:[%s6845 + $0x14] sm:$0xf]
    %v6852 = vld [vmem:[%s6845 + $0x18] sm:$0xf]
    %v6853 = vld [vmem:[%s6845 + $0x1c] sm:$0xf]
    %v6854 = vld [vmem:[%s6845 + $0x20] sm:$0xf]
    %v6855 = vld [vmem:[%s6845 + $0x24] sm:$0xf]
    %v6856 = vld [vmem:[%s6845 + $0x28] sm:$0xf]
    %v6857 = vld [vmem:[%s6845 + $0x2c] sm:$0xf]
    %v6858 = vld [vmem:[%s6845 + $0x30] sm:$0xf]
    %v6859 = vld [vmem:[%s6845 + $0x34] sm:$0xf]
    %v6860 = vld [vmem:[%s6845 + $0x38] sm:$0xf]
    %v6861 = vld [vmem:[%s6845 + $0x3c] sm:$0xf]
    %s6862 = scalar_lea.vmem %s5, 16
    %v6863 = vld [vmem:[%s6862] sm:$0x1]
    %v6865 = vlaneseq
    %v6866 = vshrl.u32 %v6865, 7
    %v6867 = vsub.s32 0, %v6866
    %v6868 = vrot.slane %v6863, %v6867
    %v6886 = vunpack.c.l.b16 %v6846
    %v6887 = vunpack.c.l.b16 %v6847
    %v6888 = vunpack.c.l.b16 %v6848
    %v6889 = vunpack.c.l.b16 %v6849
    %v6890 = vunpack.c.l.b16 %v6850
    %v6891 = vunpack.c.l.b16 %v6851
    %v6892 = vunpack.c.l.b16 %v6852
    %v6893 = vunpack.c.l.b16 %v6853
    %v6894 = vunpack.c.l.b16 %v6854
    %v6895 = vunpack.c.l.b16 %v6855
    %v6896 = vunpack.c.l.b16 %v6856
    %v6897 = vunpack.c.l.b16 %v6857
    %v6898 = vunpack.c.l.b16 %v6858
    %v6899 = vunpack.c.l.b16 %v6859
    %v6900 = vunpack.c.l.b16 %v6860
    %v6901 = vunpack.c.l.b16 %v6861
    %v6902 = vpack.c.b16 %v6887, %v6886
    %v6903 = vpack.c.b16 %v6889, %v6888
    %v6904 = vpack.c.b16 %v6891, %v6890
    %v6905 = vpack.c.b16 %v6893, %v6892
    %v6906 = vpack.c.b16 %v6895, %v6894
    %v6907 = vpack.c.b16 %v6897, %v6896
    %v6908 = vpack.c.b16 %v6899, %v6898
    %v6909 = vpack.c.b16 %v6901, %v6900
    %6918 = vmatprep.subr.bf16.mxu0 0
    %6919 = vmatpush1.bf16.msra.mxu0 %v6902
    %6920 = vmatprep.subr.bf16.mxu0 0
    %6921 = vmatpush1.bf16.msra.mxu0 %v6903
    %6922 = vmatprep.subr.bf16.mxu0 0
    %6923 = vmatpush1.bf16.msra.mxu0 %v6904
    %6924 = vmatprep.subr.bf16.mxu0 0
    %6925 = vmatpush1.bf16.msra.mxu0 %v6905
    %6926 = vmatprep.subr.bf16.mxu0 0
    %6927 = vmatpush1.bf16.msra.mxu0 %v6906
    %6928 = vmatprep.subr.bf16.mxu0 0
    %6929 = vmatpush1.bf16.msra.mxu0 %v6907
    %6930 = vmatprep.subr.bf16.mxu0 0
    %6931 = vmatpush1.bf16.msra.mxu0 %v6908
    %6932 = vmatprep.subr.bf16.mxu0 0
    %6933 = vmatpush1.bf16.msra.mxu0 %v6909
    %6934 = vmatprep.subr.bf16.mxu0 0
    %6935 = vmatpush1.bf16.msra.mxu0 0
    %6936 = vmatprep.subr.bf16.mxu0 0
    %6937 = vmatpush1.bf16.msra.mxu0 0
    %6938 = vmatprep.subr.bf16.mxu0 0
    %6939 = vmatpush1.bf16.msra.mxu0 0
    %6940 = vmatprep.subr.bf16.mxu0 0
    %6941 = vmatpush1.bf16.msra.mxu0 0
    %6942 = vmatprep.subr.bf16.mxu0 0
    %6943 = vmatpush1.bf16.msra.mxu0 0
    %6944 = vmatprep.subr.bf16.mxu0 0
    %6945 = vmatpush1.bf16.msra.mxu0 0
    %6946 = vmatprep.subr.bf16.mxu0 0
    %6947 = vmatpush1.bf16.msra.mxu0 0
    %6948 = vmatprep.subr.bf16.mxu0 0
    %6949 = vmatpush1.bf16.msra.mxu0 0
    %6950 = vmatprep.mubr.bf16.mxu0 0
    %6951 = vmatmul.mubr.bf16.gmra.mrb[0].mxu0 %v6844
    %v6952 = vpop.f32.mrb[0].mxu0
    %v6953 = vadd.f32 %v6868, %v6952
    %v6954 = vpop.f32.mrb[0].mxu0
    %v6955 = vpop.f32.mrb[0].mxu0
    %v6956 = vpop.f32.mrb[0].mxu0
    %6957 = vdwg.mxu0
    %v6958 = vmax.f32 %v6953, 0.0
    %v6959 = vadd.f32 %v6843, %v6958
    %v6960 = vpack.c.bf16 %v6959, %v6959
    %s6961 = scalar_lea.vmem %s4, 1088
    %v6962 = vld [vmem:[%s6961] sm:$0xf]
    %v6963 = vld [vmem:[%s6961 + $0x4] sm:$0xf]
    %v6964 = vld [vmem:[%s6961 + $0x8] sm:$0xf]
    %v6965 = vld [vmem:[%s6961 + $0xc] sm:$0xf]
    %v6966 = vld [vmem:[%s6961 + $0x10] sm:$0xf]
    %v6967 = vld [vmem:[%s6961 + $0x14] sm:$0xf]
    %v6968 = vld [vmem:[%s6961 + $0x18] sm:$0xf]
    %v6969 = vld [vmem:[%s6961 + $0x1c] sm:$0xf]
    %v6970 = vld [vmem:[%s6961 + $0x20] sm:$0xf]
    %v6971 = vld [vmem:[%s6961 + $0x24] sm:$0xf]
    %v6972 = vld [vmem:[%s6961 + $0x28] sm:$0xf]
    %v6973 = vld [vmem:[%s6961 + $0x2c] sm:$0xf]
    %v6974 = vld [vmem:[%s6961 + $0x30] sm:$0xf]
    %v6975 = vld [vmem:[%s6961 + $0x34] sm:$0xf]
    %v6976 = vld [vmem:[%s6961 + $0x38] sm:$0xf]
    %v6977 = vld [vmem:[%s6961 + $0x3c] sm:$0xf]
    %s6978 = scalar_lea.vmem %s5, 17
    %v6979 = vld [vmem:[%s6978] sm:$0x1]
    %v6981 = vlaneseq
    %v6982 = vshrl.u32 %v6981, 7
    %v6983 = vsub.s32 0, %v6982
    %v6984 = vrot.slane %v6979, %v6983
    %v7002 = vunpack.c.l.b16 %v6962
    %v7003 = vunpack.c.l.b16 %v6963
    %v7004 = vunpack.c.l.b16 %v6964
    %v7005 = vunpack.c.l.b16 %v6965
    %v7006 = vunpack.c.l.b16 %v6966
    %v7007 = vunpack.c.l.b16 %v6967
    %v7008 = vunpack.c.l.b16 %v6968
    %v7009 = vunpack.c.l.b16 %v6969
    %v7010 = vunpack.c.l.b16 %v6970
    %v7011 = vunpack.c.l.b16 %v6971
    %v7012 = vunpack.c.l.b16 %v6972
    %v7013 = vunpack.c.l.b16 %v6973
    %v7014 = vunpack.c.l.b16 %v6974
    %v7015 = vunpack.c.l.b16 %v6975
    %v7016 = vunpack.c.l.b16 %v6976
    %v7017 = vunpack.c.l.b16 %v6977
    %v7018 = vpack.c.b16 %v7003, %v7002
    %v7019 = vpack.c.b16 %v7005, %v7004
    %v7020 = vpack.c.b16 %v7007, %v7006
    %v7021 = vpack.c.b16 %v7009, %v7008
    %v7022 = vpack.c.b16 %v7011, %v7010
    %v7023 = vpack.c.b16 %v7013, %v7012
    %v7024 = vpack.c.b16 %v7015, %v7014
    %v7025 = vpack.c.b16 %v7017, %v7016
    %7034 = vmatprep.subr.bf16.mxu0 0
    %7035 = vmatpush1.bf16.msra.mxu0 %v7018
    %7036 = vmatprep.subr.bf16.mxu0 0
    %7037 = vmatpush1.bf16.msra.mxu0 %v7019
    %7038 = vmatprep.subr.bf16.mxu0 0
    %7039 = vmatpush1.bf16.msra.mxu0 %v7020
    %7040 = vmatprep.subr.bf16.mxu0 0
    %7041 = vmatpush1.bf16.msra.mxu0 %v7021
    %7042 = vmatprep.subr.bf16.mxu0 0
    %7043 = vmatpush1.bf16.msra.mxu0 %v7022
    %7044 = vmatprep.subr.bf16.mxu0 0
    %7045 = vmatpush1.bf16.msra.mxu0 %v7023
    %7046 = vmatprep.subr.bf16.mxu0 0
    %7047 = vmatpush1.bf16.msra.mxu0 %v7024
    %7048 = vmatprep.subr.bf16.mxu0 0
    %7049 = vmatpush1.bf16.msra.mxu0 %v7025
    %7050 = vmatprep.subr.bf16.mxu0 0
    %7051 = vmatpush1.bf16.msra.mxu0 0
    %7052 = vmatprep.subr.bf16.mxu0 0
    %7053 = vmatpush1.bf16.msra.mxu0 0
    %7054 = vmatprep.subr.bf16.mxu0 0
    %7055 = vmatpush1.bf16.msra.mxu0 0
    %7056 = vmatprep.subr.bf16.mxu0 0
    %7057 = vmatpush1.bf16.msra.mxu0 0
    %7058 = vmatprep.subr.bf16.mxu0 0
    %7059 = vmatpush1.bf16.msra.mxu0 0
    %7060 = vmatprep.subr.bf16.mxu0 0
    %7061 = vmatpush1.bf16.msra.mxu0 0
    %7062 = vmatprep.subr.bf16.mxu0 0
    %7063 = vmatpush1.bf16.msra.mxu0 0
    %7064 = vmatprep.subr.bf16.mxu0 0
    %7065 = vmatpush1.bf16.msra.mxu0 0
    %7066 = vmatprep.mubr.bf16.mxu0 0
    %7067 = vmatmul.mubr.bf16.gmra.mrb[0].mxu0 %v6960
    %v7068 = vpop.f32.mrb[0].mxu0
    %v7069 = vadd.f32 %v6984, %v7068
    %v7070 = vpop.f32.mrb[0].mxu0
    %v7071 = vpop.f32.mrb[0].mxu0
    %v7072 = vpop.f32.mrb[0].mxu0
    %7073 = vdwg.mxu0
    %v7074 = vmax.f32 %v7069, 0.0
    %v7075 = vpack.c.bf16 %v7074, %v7074
    %s7076 = scalar_lea.vmem %s4, 1152
    %v7077 = vld [vmem:[%s7076] sm:$0xf]
    %v7078 = vld [vmem:[%s7076 + $0x4] sm:$0xf]
    %v7079 = vld [vmem:[%s7076 + $0x8] sm:$0xf]
    %v7080 = vld [vmem:[%s7076 + $0xc] sm:$0xf]
    %v7081 = vld [vmem:[%s7076 + $0x10] sm:$0xf]
    %v7082 = vld [vmem:[%s7076 + $0x14] sm:$0xf]
    %v7083 = vld [vmem:[%s7076 + $0x18] sm:$0xf]
    %v7084 = vld [vmem:[%s7076 + $0x1c] sm:$0xf]
    %v7085 = vld [vmem:[%s7076 + $0x20] sm:$0xf]
    %v7086 = vld [vmem:[%s7076 + $0x24] sm:$0xf]
    %v7087 = vld [vmem:[%s7076 + $0x28] sm:$0xf]
    %v7088 = vld [vmem:[%s7076 + $0x2c] sm:$0xf]
    %v7089 = vld [vmem:[%s7076 + $0x30] sm:$0xf]
    %v7090 = vld [vmem:[%s7076 + $0x34] sm:$0xf]
    %v7091 = vld [vmem:[%s7076 + $0x38] sm:$0xf]
    %v7092 = vld [vmem:[%s7076 + $0x3c] sm:$0xf]
    %s7093 = scalar_lea.vmem %s5, 18
    %v7094 = vld [vmem:[%s7093] sm:$0x1]
    %v7096 = vlaneseq
    %v7097 = vshrl.u32 %v7096, 7
    %v7098 = vsub.s32 0, %v7097
    %v7099 = vrot.slane %v7094, %v7098
    %v7117 = vunpack.c.l.b16 %v7077
    %v7118 = vunpack.c.l.b16 %v7078
    %v7119 = vunpack.c.l.b16 %v7079
    %v7120 = vunpack.c.l.b16 %v7080
    %v7121 = vunpack.c.l.b16 %v7081
    %v7122 = vunpack.c.l.b16 %v7082
    %v7123 = vunpack.c.l.b16 %v7083
    %v7124 = vunpack.c.l.b16 %v7084
    %v7125 = vunpack.c.l.b16 %v7085
    %v7126 = vunpack.c.l.b16 %v7086
    %v7127 = vunpack.c.l.b16 %v7087
    %v7128 = vunpack.c.l.b16 %v7088
    %v7129 = vunpack.c.l.b16 %v7089
    %v7130 = vunpack.c.l.b16 %v7090
    %v7131 = vunpack.c.l.b16 %v7091
    %v7132 = vunpack.c.l.b16 %v7092
    %v7133 = vpack.c.b16 %v7118, %v7117
    %v7134 = vpack.c.b16 %v7120, %v7119
    %v7135 = vpack.c.b16 %v7122, %v7121
    %v7136 = vpack.c.b16 %v7124, %v7123
    %v7137 = vpack.c.b16 %v7126, %v7125
    %v7138 = vpack.c.b16 %v7128, %v7127
    %v7139 = vpack.c.b16 %v7130, %v7129
    %v7140 = vpack.c.b16 %v7132, %v7131
    %7149 = vmatprep.subr.bf16.mxu0 0
    %7150 = vmatpush1.bf16.msra.mxu0 %v7133
    %7151 = vmatprep.subr.bf16.mxu0 0
    %7152 = vmatpush1.bf16.msra.mxu0 %v7134
    %7153 = vmatprep.subr.bf16.mxu0 0
    %7154 = vmatpush1.bf16.msra.mxu0 %v7135
    %7155 = vmatprep.subr.bf16.mxu0 0
    %7156 = vmatpush1.bf16.msra.mxu0 %v7136
    %7157 = vmatprep.subr.bf16.mxu0 0
    %7158 = vmatpush1.bf16.msra.mxu0 %v7137
    %7159 = vmatprep.subr.bf16.mxu0 0
    %7160 = vmatpush1.bf16.msra.mxu0 %v7138
    %7161 = vmatprep.subr.bf16.mxu0 0
    %7162 = vmatpush1.bf16.msra.mxu0 %v7139
    %7163 = vmatprep.subr.bf16.mxu0 0
    %7164 = vmatpush1.bf16.msra.mxu0 %v7140
    %7165 = vmatprep.subr.bf16.mxu0 0
    %7166 = vmatpush1.bf16.msra.mxu0 0
    %7167 = vmatprep.subr.bf16.mxu0 0
    %7168 = vmatpush1.bf16.msra.mxu0 0
    %7169 = vmatprep.subr.bf16.mxu0 0
    %7170 = vmatpush1.bf16.msra.mxu0 0
    %7171 = vmatprep.subr.bf16.mxu0 0
    %7172 = vmatpush1.bf16.msra.mxu0 0
    %7173 = vmatprep.subr.bf16.mxu0 0
    %7174 = vmatpush1.bf16.msra.mxu0 0
    %7175 = vmatprep.subr.bf16.mxu0 0
    %7176 = vmatpush1.bf16.msra.mxu0 0
    %7177 = vmatprep.subr.bf16.mxu0 0
    %7178 = vmatpush1.bf16.msra.mxu0 0
    %7179 = vmatprep.subr.bf16.mxu0 0
    %7180 = vmatpush1.bf16.msra.mxu0 0
    %7181 = vmatprep.mubr.bf16.mxu0 0
    %7182 = vmatmul.mubr.bf16.gmra.mrb[0].mxu0 %v7075
    %v7183 = vpop.f32.mrb[0].mxu0
    %v7184 = vadd.f32 %v7099, %v7183
    %v7185 = vpop.f32.mrb[0].mxu0
    %v7186 = vpop.f32.mrb[0].mxu0
    %v7187 = vpop.f32.mrb[0].mxu0
    %7188 = vdwg.mxu0
    %7189 = vst [vmem:[#allocation2] sm:$0x3] %v7184
    // Predicated region
    $region26: #{net_forward.3} parent=1 // pred_check
      _
    $region27: #{net_forward.3} parent=1 // pred_check_branch
      %7191 = sbr.rel (0) target = $region29
    $region28: #{net_forward.3} parent=1 // pred_region
      %s7193 = ssub.s32 32, 32
      %7194 = vsyncadd [#allocation3], %s7193
      %s7196 = sshll.u32 [#allocation2], 4
      %s7197 = int_to_ptr.vmem [resolvable:$true] %s7196
      %7199 = dma.vmem_to_hbm [thread:$0]  %s7197, 32, %s6, [#allocation3]
    $region29: #{net_forward.3} parent=1 // pred_fallthru
      _
    // Predicated region
    $region30: #{net_forward.3} parent=1 // pred_check
      _
    $region31: #{net_forward.3} parent=1 // pred_check_branch
      %7201 = sbr.rel (0) target = $region33
    $region32: #{net_forward.3} parent=1 // pred_region
      %7202 = dma.done [#allocation3], 32
    $region33: #{net_forward.3} parent=1 // pred_fallthru
      _
    %7203 = vsyncpa [#allocation3], 1

</llo_original>
